<compile_context>
chip_gen: v5e
topology: v5e:2x2
jax: 0.10.0
libtpu: 0.0.40
codegen_flags: <defaults>
</compile_context>

<pallas_src>
import functools

import numpy as np
import jax
import jax.numpy as jnp
from jax.experimental import pallas as pl
from jax.experimental.pallas import tpu as pltpu

BIG = 1.0e30     # sentinel masking padded neighbor slots (killed by the ReLU)
CPAD = 128       # lane-dense channel padding


def _round_up(x, m):
    return ((x + m - 1) // m) * m


def _pad_nodes(n):
    """Pad node counts to a multiple of 16 (bf16 sublane tiling)."""
    return _round_up(max(int(n), 1), 16)


# ------------------------------ fused kernel --------------------------------

def _efgcn_fused_kernel(x0_ref, w1_ref, w2_ref, w3_ref, w4_ref, w5_ref,
                        g1_ref, g2_ref, g3_ref, p1_ref, p2_ref, po_ref,
                        r1_ref, r2_ref, r3_ref, r4_ref, r5_ref, wlin_ref,
                        out_ref):
    """Whole EFGCN float forward in one program, all intermediates in VMEM.

    x0_ref  : (n0_pad, 128)        bf16  input features (lane 0 real)
    w*_ref  : (128, 128)           bf16  feature part of each conv weight
    g*_ref  : (k, n_pad, n_pad)    bf16  slot-major one-hot neighbor gathers
    p*_ref  : (p, m_pad, n_pad)    bf16  slot-major one-hot pooling members
    r*_ref  : (k, n_pad, 128)      f32   host-precomputed rel_pos @ Wp
                                         (-1e30 rows on padded slots)
    wlin_ref: (64, 128, 128)       bf16  per-grid-cell blocks of the linear W
    out_ref : (8, 128)             f32   row 0 holds the logits
    """

    def conv(f_bf, w_ref, g_ref, r_ref):
        # One feature matmul per stage, then one gather dot + f32 add per
        # neighbor slot; per-slot max aggregation, fused ReLU.
        y = jnp.dot(f_bf, w_ref[...], preferred_element_type=jnp.float32)
        y_bf = y.astype(jnp.bfloat16)
        acc = None
        for s in range(g_ref.shape[0]):        # k is small; fully unrolled
            msg = jnp.dot(g_ref[s], y_bf,
                          preferred_element_type=jnp.float32) + r_ref[s]
            acc = msg if acc is None else jnp.maximum(acc, msg)
        # ReLU also zeroes isolated / padded nodes (all their slots are -1e30).
        return jnp.maximum(acc, 0.0).astype(jnp.bfloat16)

    def pool(f_bf, p_ref):
        # Max over member slots; padded slots are all-zero one-hot rows and
        # features are post-ReLU (>= 0), so no masking is needed.
        acc = None
        for s in range(p_ref.shape[0]):
            g = jnp.dot(p_ref[s], f_bf, preferred_element_type=jnp.float32)
            acc = g if acc is None else jnp.maximum(acc, g)
        return acc.astype(jnp.bfloat16)

    f = x0_ref[...]
    f = conv(f, w1_ref, g1_ref, r1_ref)        # conv1 + relu1
    f = pool(f, p1_ref)                        # max_pool1
    f = conv(f, w2_ref, g2_ref, r2_ref)        # conv2 + relu2
    f = conv(f, w3_ref, g2_ref, r3_ref)        # conv3 + relu3
    f = pool(f, p2_ref)                        # max_pool2
    f = conv(f, w4_ref, g3_ref, r4_ref)        # conv4 + relu4
    f = conv(f, w5_ref, g3_ref, r5_ref)        # conv5 + relu5
    pooled = pool(f, po_ref)                   # QuantGraphPoolOut -> (64, 128)

    # QuantLinear over the flattened 4x4x4x64 grid: a 4096-long contraction,
    # done as 64 unrolled per-cell (1,128)@(128,128) dots with f32 accumulation.
    acc = jnp.zeros((1, CPAD), jnp.float32)
    for c in range(pooled.shape[0]):
        acc = acc + jnp.dot(pooled[c:c + 1, :], wlin_ref[c],
                            preferred_element_type=jnp.float32)
    out_ref[...] = jnp.broadcast_to(acc, out_ref.shape)


def _efgcn_fused_call(*args, num_outputs):
    vspec = pl.BlockSpec(memory_space=pltpu.MemorySpace.VMEM)
    out = pl.pallas_call(
        _efgcn_fused_kernel,
        out_shape=jax.ShapeDtypeStruct((8, CPAD), jnp.float32),
        in_specs=[vspec] * len(args),
        out_specs=vspec,
        compiler_params=pltpu.CompilerParams(
            vmem_limit_bytes=32 * 1024 * 1024),
    )(*args)
    return out[:1, :num_outputs]


# ----------------- host-side graph-structure precompute (numpy) -------------

def _build_conv_structs(nodes, edges, num_nodes, n_pad):
    """Slot-major one-hot neighbor gathers + relative positions per slot."""
    src = np.asarray(edges[0], np.int64)
    tgt = np.asarray(edges[1], np.int64)
    counts = np.bincount(tgt, minlength=num_nodes)
    k = max(int(counts.max()) if counts.size else 0, 1)
    nbr = np.zeros((n_pad, k), np.int64)
    valid = np.zeros((n_pad, k), bool)
    if tgt.size:
        order = np.argsort(tgt, kind="stable")
        t_s, s_s = tgt[order], src[order]
        offsets = np.zeros(num_nodes + 1, np.int64)
        offsets[1:] = np.cumsum(counts)
        slot = np.arange(t_s.shape[0]) - offsets[t_s]
        nbr[t_s, slot] = s_s
        valid[t_s, slot] = True
    G = np.zeros((k, n_pad, n_pad), np.float32)
    rows = np.arange(n_pad)
    for s in range(k):
        sel = valid[:, s]
        G[s, rows[sel], nbr[sel, s]] = 1.0
    pos = np.zeros((n_pad, 3), np.float32)
    pos[:num_nodes] = np.asarray(nodes, np.float32)
    rel = pos[nbr] - pos[:, None, :]                      # pos_src - pos_tgt
    rel = np.where(valid[:, :, None], rel, 0.0)           # (n_pad, k, 3)
    return G, rel, valid


def _build_rpw(rel, valid, w, cin, cout):
    """rel_pos @ Wp per slot (f32); padded slots get -1e30 on every lane."""
    wpos = np.asarray(w, np.float32)[:, cin:cin + 3]      # (cout, 3)
    k, n_pad = rel.shape[1], rel.shape[0]
    rpw = np.zeros((k, n_pad, CPAD), np.float32)
    rpw[:, :, :cout] = np.einsum("iks,os->kio", rel, wpos)
    rpw = np.where(~valid.T[:, :, None], -BIG, rpw)
    return rpw


def _pack_feat_weight(w, cin, cout):
    wf = np.zeros((CPAD, CPAD), np.float32)
    wf[:cin, :cout] = np.asarray(w, np.float32)[:, :cin].T
    return wf


def _build_pool_onehot(cluster, num_clusters, m_pad, n_in_pad):
    """Slot-major one-hot member matrices (p, m_pad, n_in_pad)."""
    cluster = np.asarray(cluster, np.int64)
    counts = np.bincount(cluster, minlength=num_clusters)
    p = max(int(counts.max()) if counts.size else 0, 1)
    P = np.zeros((p, m_pad, n_in_pad), np.float32)
    if cluster.size:
        order = np.argsort(cluster, kind="stable")
        c_s = cluster[order]
        offsets = np.zeros(num_clusters + 1, np.int64)
        offsets[1:] = np.cumsum(counts)
        slot = np.arange(c_s.shape[0]) - offsets[c_s]
        P[slot, c_s, order] = 1.0
    return P


def _pool_graph_structure(nodes, edges, pool_size, max_dimension):
    # TODO(synk): the reference GraphPooling may rebuild radius/kNN edges; here
    # edges are remapped to the coarse voxel grid, deduplicated, and self-loops
    # are added (self_loop=True in the reference config).
    coarse = (np.asarray(nodes) // pool_size).astype(np.int64)
    D = int(max_dimension)
    keys = (coarse[:, 0] * D + coarse[:, 1]) * D + coarse[:, 2]
    uniq, inv = np.unique(keys, return_inverse=True)
    m = int(uniq.shape[0])
    new_nodes = np.stack(
        [uniq // (D * D), (uniq // D) % D, uniq % D], axis=1
    ).astype(np.int32)
    new_edges = np.stack([inv[edges[0]], inv[edges[1]]])
    loops = np.arange(m, dtype=np.int64)
    new_edges = np.concatenate([new_edges, np.stack([loops, loops])], axis=1)
    new_edges = np.unique(new_edges, axis=1).astype(np.int32)
    return new_nodes, new_edges, inv.astype(np.int64), m


def _pack_linear(w, num_cells, last_ch, num_outputs):
    """Repack (num_outputs, num_cells*last_ch) into per-cell (128,128) blocks."""
    w = np.asarray(w, np.float32)
    w3 = np.zeros((num_cells, CPAD, CPAD), np.float32)
    w3[:, :last_ch, :num_outputs] = w.T.reshape(num_cells, last_ch, num_outputs)
    return w3


# ------------------------------ EFGCN model ---------------------------------

def init_params(key, num_outputs):
    shapes = {
        "conv1": (16, 1 + 3),
        "conv2": (32, 16 + 3),
        "conv3": (32, 32 + 3),
        "conv4": (64, 32 + 3),
        "conv5": (64, 64 + 3),
        "linear": (num_outputs, 4 * 4 * 4 * 64),
    }
    params = {}
    for i, (name, (out_dim, in_dim)) in enumerate(shapes.items()):
        k = jax.random.fold_in(key, i)
        bound = 1.0 / np.sqrt(in_dim)
        params[name] = np.asarray(
            jax.random.uniform(k, (out_dim, in_dim), jnp.float32, -bound, bound)
        )
    return params


def efgcn_forward(nodes, features, edges, params, input_dimension):
    nodes = np.asarray(nodes)
    features = np.asarray(features, np.float32)
    edges = np.asarray(edges, np.int64)
    n0 = nodes.shape[0]
    dim0 = int(input_dimension[0])

    # ---- host: graph structure only (coordinates / connectivity), done once ----
    n0_pad = _pad_nodes(n0)
    G1, rel1, val1 = _build_conv_structs(nodes, edges, n0, n0_pad)

    nodes1, edges1, inv1, m1 = _pool_graph_structure(nodes, edges, 4, dim0)
    m1_pad = _pad_nodes(m1)
    P1 = _build_pool_onehot(inv1, m1, m1_pad, n0_pad)
    G2, rel2, val2 = _build_conv_structs(nodes1, edges1, m1, m1_pad)

    nodes2, edges2, inv2, m2 = _pool_graph_structure(nodes1, edges1, 2, dim0 // 4)
    m2_pad = _pad_nodes(m2)
    P2 = _build_pool_onehot(inv2, m2, m2_pad, m1_pad)
    G3, rel3, val3 = _build_conv_structs(nodes2, edges2, m2, m2_pad)

    out_pull = 8 if dim0 == 256 else 4
    gcells = (dim0 // 8) // out_pull                      # == 4 for supported dims
    num_cells = gcells ** 3
    cc = (np.asarray(nodes2) // out_pull).astype(np.int64)
    cells = (cc[:, 0] * gcells + cc[:, 1]) * gcells + cc[:, 2]
    Pout = _build_pool_onehot(cells, num_cells, num_cells, m2_pad)

    last_channels = 64
    num_outputs = params["linear"].shape[0]
    assert last_channels * num_cells == params["linear"].shape[1]

    # ---- packed device operands (bf16 MXU inputs, f32 rel-pos bias) ----
    x0 = np.zeros((n0_pad, CPAD), np.float32)
    x0[:n0, : features.shape[1]] = features

    channels = {"conv1": (1, 16), "conv2": (16, 32), "conv3": (32, 32),
                "conv4": (32, 64), "conv5": (64, 64)}
    geom = {"conv1": (rel1, val1), "conv2": (rel2, val2), "conv3": (rel2, val2),
            "conv4": (rel3, val3), "conv5": (rel3, val3)}
    ws, rpws = [], []
    for name in ("conv1", "conv2", "conv3", "conv4", "conv5"):
        cin, cout = channels[name]
        rel, val = geom[name]
        ws.append(jnp.asarray(_pack_feat_weight(params[name], cin, cout),
                              jnp.bfloat16))
        rpws.append(jnp.asarray(_build_rpw(rel, val, params[name], cin, cout),
                                jnp.float32))

    wlin = jnp.asarray(
        _pack_linear(params["linear"], num_cells, last_channels, num_outputs),
        jnp.bfloat16)

    args = ([jnp.asarray(x0, jnp.bfloat16)] + ws
            + [jnp.asarray(G1, jnp.bfloat16), jnp.asarray(G2, jnp.bfloat16),
               jnp.asarray(G3, jnp.bfloat16), jnp.asarray(P1, jnp.bfloat16),
               jnp.asarray(P2, jnp.bfloat16), jnp.asarray(Pout, jnp.bfloat16)]
            + rpws + [wlin])

    fwd = jax.jit(functools.partial(_efgcn_fused_call, num_outputs=num_outputs))
    return fwd(*args)


# --------------------------------- main --------------------------------------

if __name__ == "__main__":
    key = jax.random.PRNGKey(0)
    input_dimension = (128, 128, 128)   # => out_pull = 4, final grid = 4x4x4
    num_outputs = 10
    N0 = 64
    K_NN = 4

    kn, kf = jax.random.split(jax.random.fold_in(key, 100))
    nodes = np.asarray(
        jax.random.randint(kn, (N0, 3), 0, input_dimension[0], dtype=jnp.int32)
    )
    features = np.asarray(jax.random.uniform(kf, (N0, 1), jnp.float32))

    # deterministic kNN edges (source -> target) + self loops
    pos = nodes.astype(np.float32)
    d2 = ((pos[:, None, :] - pos[None, :, :]) ** 2).sum(-1)
    np.fill_diagonal(d2, np.inf)
    nbrs = np.argsort(d2, axis=1)[:, :K_NN]
    tgt = np.repeat(np.arange(N0), K_NN)
    src = nbrs.reshape(-1)
    loops = np.arange(N0)
    edges = np.stack(
        [np.concatenate([src, loops]), np.concatenate([tgt, loops])]
    ).astype(np.int32)

    params = init_params(key, num_outputs)

    out = efgcn_forward(nodes, features, edges, params, input_dimension)
    out = jax.block_until_ready(out)

    assert out.shape == (1, num_outputs), out.shape
    assert np.all(np.isfinite(np.asarray(out)))
    print("KERNEL_OK")
</pallas_src>

<mosaic_0001>
module attributes {stable_mosaic.version = 11 : i64} {
  func.func @_efgcn_fused_kernel(%arg0: memref<64x128xbf16, #tpu.memory_space<vmem>>, %arg1: memref<128x128xbf16, #tpu.memory_space<vmem>>, %arg2: memref<128x128xbf16, #tpu.memory_space<vmem>>, %arg3: memref<128x128xbf16, #tpu.memory_space<vmem>>, %arg4: memref<128x128xbf16, #tpu.memory_space<vmem>>, %arg5: memref<128x128xbf16, #tpu.memory_space<vmem>>, %arg6: memref<5x64x64xbf16, #tpu.memory_space<vmem>>, %arg7: memref<5x64x64xbf16, #tpu.memory_space<vmem>>, %arg8: memref<5x64x64xbf16, #tpu.memory_space<vmem>>, %arg9: memref<1x64x64xbf16, #tpu.memory_space<vmem>>, %arg10: memref<2x64x64xbf16, #tpu.memory_space<vmem>>, %arg11: memref<3x64x64xbf16, #tpu.memory_space<vmem>>, %arg12: memref<5x64x128xf32, #tpu.memory_space<vmem>>, %arg13: memref<5x64x128xf32, #tpu.memory_space<vmem>>, %arg14: memref<5x64x128xf32, #tpu.memory_space<vmem>>, %arg15: memref<5x64x128xf32, #tpu.memory_space<vmem>>, %arg16: memref<5x64x128xf32, #tpu.memory_space<vmem>>, %arg17: memref<64x128x128xbf16, #tpu.memory_space<vmem>>, %arg18: memref<8x128xf32, #tpu.memory_space<vmem>>) attributes {dimension_semantics = [], scalar_prefetch = 0 : i64, scratch_operands = 0 : i64, tpu.core_type = #tpu.core_type<tc>} {
    %c0 = arith.constant 0 : index
    %c0_0 = arith.constant 0 : index
    %0 = vector.load %arg0[%c0, %c0_0] : memref<64x128xbf16, #tpu.memory_space<vmem>>, vector<64x128xbf16>
    %c0_1 = arith.constant 0 : index
    %c0_2 = arith.constant 0 : index
    %1 = vector.load %arg1[%c0_1, %c0_2] : memref<128x128xbf16, #tpu.memory_space<vmem>>, vector<128x128xbf16>
    %cst = arith.constant dense<0.000000e+00> : vector<64x128xf32>
    %2 = tpu.matmul %0, %1, %cst {dimension_numbers = #tpu.dot_dimension_numbers<[1], [0], [0], [1], [0, 0, 1, 1], [], []>} : vector<64x128xbf16>, vector<128x128xbf16>, vector<64x128xf32> -> vector<64x128xf32>
    %3 = arith.truncf %2 : vector<64x128xf32> to vector<64x128xbf16>
    %c0_3 = arith.constant 0 : index
    %c0_4 = arith.constant 0 : index
    %c0_5 = arith.constant 0 : index
    %4 = vector.load %arg6[%c0_3, %c0_4, %c0_5] : memref<5x64x64xbf16, #tpu.memory_space<vmem>>, vector<1x64x64xbf16>
    %5 = vector.shape_cast %4 : vector<1x64x64xbf16> to vector<64x64xbf16>
    %cst_6 = arith.constant dense<0.000000e+00> : vector<64x128xf32>
    %6 = tpu.matmul %5, %3, %cst_6 {dimension_numbers = #tpu.dot_dimension_numbers<[1], [0], [0], [1], [0, 0, 1, 1], [], []>} : vector<64x64xbf16>, vector<64x128xbf16>, vector<64x128xf32> -> vector<64x128xf32>
    %c0_7 = arith.constant 0 : index
    %c0_8 = arith.constant 0 : index
    %c0_9 = arith.constant 0 : index
    %7 = vector.load %arg12[%c0_7, %c0_8, %c0_9] : memref<5x64x128xf32, #tpu.memory_space<vmem>>, vector<1x64x128xf32>
    %8 = vector.shape_cast %7 : vector<1x64x128xf32> to vector<64x128xf32>
    %9 = arith.addf %6, %8 : vector<64x128xf32>
    %c1 = arith.constant 1 : index
    %c0_10 = arith.constant 0 : index
    %c0_11 = arith.constant 0 : index
    %10 = vector.load %arg6[%c1, %c0_10, %c0_11] : memref<5x64x64xbf16, #tpu.memory_space<vmem>>, vector<1x64x64xbf16>
    %11 = vector.shape_cast %10 : vector<1x64x64xbf16> to vector<64x64xbf16>
    %cst_12 = arith.constant dense<0.000000e+00> : vector<64x128xf32>
    %12 = tpu.matmul %11, %3, %cst_12 {dimension_numbers = #tpu.dot_dimension_numbers<[1], [0], [0], [1], [0, 0, 1, 1], [], []>} : vector<64x64xbf16>, vector<64x128xbf16>, vector<64x128xf32> -> vector<64x128xf32>
    %c1_13 = arith.constant 1 : index
    %c0_14 = arith.constant 0 : index
    %c0_15 = arith.constant 0 : index
    %13 = vector.load %arg12[%c1_13, %c0_14, %c0_15] : memref<5x64x128xf32, #tpu.memory_space<vmem>>, vector<1x64x128xf32>
    %14 = vector.shape_cast %13 : vector<1x64x128xf32> to vector<64x128xf32>
    %15 = arith.addf %12, %14 : vector<64x128xf32>
    %16 = arith.maximumf %9, %15 : vector<64x128xf32>
    %c2 = arith.constant 2 : index
    %c0_16 = arith.constant 0 : index
    %c0_17 = arith.constant 0 : index
    %17 = vector.load %arg6[%c2, %c0_16, %c0_17] : memref<5x64x64xbf16, #tpu.memory_space<vmem>>, vector<1x64x64xbf16>
    %18 = vector.shape_cast %17 : vector<1x64x64xbf16> to vector<64x64xbf16>
    %cst_18 = arith.constant dense<0.000000e+00> : vector<64x128xf32>
    %19 = tpu.matmul %18, %3, %cst_18 {dimension_numbers = #tpu.dot_dimension_numbers<[1], [0], [0], [1], [0, 0, 1, 1], [], []>} : vector<64x64xbf16>, vector<64x128xbf16>, vector<64x128xf32> -> vector<64x128xf32>
    %c2_19 = arith.constant 2 : index
    %c0_20 = arith.constant 0 : index
    %c0_21 = arith.constant 0 : index
    %20 = vector.load %arg12[%c2_19, %c0_20, %c0_21] : memref<5x64x128xf32, #tpu.memory_space<vmem>>, vector<1x64x128xf32>
    %21 = vector.shape_cast %20 : vector<1x64x128xf32> to vector<64x128xf32>
    %22 = arith.addf %19, %21 : vector<64x128xf32>
    %23 = arith.maximumf %16, %22 : vector<64x128xf32>
    %c3 = arith.constant 3 : index
    %c0_22 = arith.constant 0 : index
    %c0_23 = arith.constant 0 : index
    %24 = vector.load %arg6[%c3, %c0_22, %c0_23] : memref<5x64x64xbf16, #tpu.memory_space<vmem>>, vector<1x64x64xbf16>
    %25 = vector.shape_cast %24 : vector<1x64x64xbf16> to vector<64x64xbf16>
    %cst_24 = arith.constant dense<0.000000e+00> : vector<64x128xf32>
    %26 = tpu.matmul %25, %3, %cst_24 {dimension_numbers = #tpu.dot_dimension_numbers<[1], [0], [0], [1], [0, 0, 1, 1], [], []>} : vector<64x64xbf16>, vector<64x128xbf16>, vector<64x128xf32> -> vector<64x128xf32>
    %c3_25 = arith.constant 3 : index
    %c0_26 = arith.constant 0 : index
    %c0_27 = arith.constant 0 : index
    %27 = vector.load %arg12[%c3_25, %c0_26, %c0_27] : memref<5x64x128xf32, #tpu.memory_space<vmem>>, vector<1x64x128xf32>
    %28 = vector.shape_cast %27 : vector<1x64x128xf32> to vector<64x128xf32>
    %29 = arith.addf %26, %28 : vector<64x128xf32>
    %30 = arith.maximumf %23, %29 : vector<64x128xf32>
    %c4 = arith.constant 4 : index
    %c0_28 = arith.constant 0 : index
    %c0_29 = arith.constant 0 : index
    %31 = vector.load %arg6[%c4, %c0_28, %c0_29] : memref<5x64x64xbf16, #tpu.memory_space<vmem>>, vector<1x64x64xbf16>
    %32 = vector.shape_cast %31 : vector<1x64x64xbf16> to vector<64x64xbf16>
    %cst_30 = arith.constant dense<0.000000e+00> : vector<64x128xf32>
    %33 = tpu.matmul %32, %3, %cst_30 {dimension_numbers = #tpu.dot_dimension_numbers<[1], [0], [0], [1], [0, 0, 1, 1], [], []>} : vector<64x64xbf16>, vector<64x128xbf16>, vector<64x128xf32> -> vector<64x128xf32>
    %c4_31 = arith.constant 4 : index
    %c0_32 = arith.constant 0 : index
    %c0_33 = arith.constant 0 : index
    %34 = vector.load %arg12[%c4_31, %c0_32, %c0_33] : memref<5x64x128xf32, #tpu.memory_space<vmem>>, vector<1x64x128xf32>
    %35 = vector.shape_cast %34 : vector<1x64x128xf32> to vector<64x128xf32>
    %36 = arith.addf %33, %35 : vector<64x128xf32>
    %37 = arith.maximumf %30, %36 : vector<64x128xf32>
    %cst_34 = arith.constant 0.000000e+00 : f32
    %38 = vector.broadcast %cst_34 : f32 to vector<64x128xf32>
    %39 = arith.maximumf %37, %38 : vector<64x128xf32>
    %40 = arith.truncf %39 : vector<64x128xf32> to vector<64x128xbf16>
    %c0_35 = arith.constant 0 : index
    %c0_36 = arith.constant 0 : index
    %c0_37 = arith.constant 0 : index
    %41 = vector.load %arg9[%c0_35, %c0_36, %c0_37] : memref<1x64x64xbf16, #tpu.memory_space<vmem>>, vector<1x64x64xbf16>
    %42 = vector.shape_cast %41 : vector<1x64x64xbf16> to vector<64x64xbf16>
    %cst_38 = arith.constant dense<0.000000e+00> : vector<64x128xf32>
    %43 = tpu.matmul %42, %40, %cst_38 {dimension_numbers = #tpu.dot_dimension_numbers<[1], [0], [0], [1], [0, 0, 1, 1], [], []>} : vector<64x64xbf16>, vector<64x128xbf16>, vector<64x128xf32> -> vector<64x128xf32>
    %44 = arith.truncf %43 : vector<64x128xf32> to vector<64x128xbf16>
    %c0_39 = arith.constant 0 : index
    %c0_40 = arith.constant 0 : index
    %45 = vector.load %arg2[%c0_39, %c0_40] : memref<128x128xbf16, #tpu.memory_space<vmem>>, vector<128x128xbf16>
    %cst_41 = arith.constant dense<0.000000e+00> : vector<64x128xf32>
    %46 = tpu.matmul %44, %45, %cst_41 {dimension_numbers = #tpu.dot_dimension_numbers<[1], [0], [0], [1], [0, 0, 1, 1], [], []>} : vector<64x128xbf16>, vector<128x128xbf16>, vector<64x128xf32> -> vector<64x128xf32>
    %47 = arith.truncf %46 : vector<64x128xf32> to vector<64x128xbf16>
    %c0_42 = arith.constant 0 : index
    %c0_43 = arith.constant 0 : index
    %c0_44 = arith.constant 0 : index
    %48 = vector.load %arg7[%c0_42, %c0_43, %c0_44] : memref<5x64x64xbf16, #tpu.memory_space<vmem>>, vector<1x64x64xbf16>
    %49 = vector.shape_cast %48 : vector<1x64x64xbf16> to vector<64x64xbf16>
    %cst_45 = arith.constant dense<0.000000e+00> : vector<64x128xf32>
    %50 = tpu.matmul %49, %47, %cst_45 {dimension_numbers = #tpu.dot_dimension_numbers<[1], [0], [0], [1], [0, 0, 1, 1], [], []>} : vector<64x64xbf16>, vector<64x128xbf16>, vector<64x128xf32> -> vector<64x128xf32>
    %c0_46 = arith.constant 0 : index
    %c0_47 = arith.constant 0 : index
    %c0_48 = arith.constant 0 : index
    %51 = vector.load %arg13[%c0_46, %c0_47, %c0_48] : memref<5x64x128xf32, #tpu.memory_space<vmem>>, vector<1x64x128xf32>
    %52 = vector.shape_cast %51 : vector<1x64x128xf32> to vector<64x128xf32>
    %53 = arith.addf %50, %52 : vector<64x128xf32>
    %c1_49 = arith.constant 1 : index
    %c0_50 = arith.constant 0 : index
    %c0_51 = arith.constant 0 : index
    %54 = vector.load %arg7[%c1_49, %c0_50, %c0_51] : memref<5x64x64xbf16, #tpu.memory_space<vmem>>, vector<1x64x64xbf16>
    %55 = vector.shape_cast %54 : vector<1x64x64xbf16> to vector<64x64xbf16>
    %cst_52 = arith.constant dense<0.000000e+00> : vector<64x128xf32>
    %56 = tpu.matmul %55, %47, %cst_52 {dimension_numbers = #tpu.dot_dimension_numbers<[1], [0], [0], [1], [0, 0, 1, 1], [], []>} : vector<64x64xbf16>, vector<64x128xbf16>, vector<64x128xf32> -> vector<64x128xf32>
    %c1_53 = arith.constant 1 : index
    %c0_54 = arith.constant 0 : index
    %c0_55 = arith.constant 0 : index
    %57 = vector.load %arg13[%c1_53, %c0_54, %c0_55] : memref<5x64x128xf32, #tpu.memory_space<vmem>>, vector<1x64x128xf32>
    %58 = vector.shape_cast %57 : vector<1x64x128xf32> to vector<64x128xf32>
    %59 = arith.addf %56, %58 : vector<64x128xf32>
    %60 = arith.maximumf %53, %59 : vector<64x128xf32>
    %c2_56 = arith.constant 2 : index
    %c0_57 = arith.constant 0 : index
    %c0_58 = arith.constant 0 : index
    %61 = vector.load %arg7[%c2_56, %c0_57, %c0_58] : memref<5x64x64xbf16, #tpu.memory_space<vmem>>, vector<1x64x64xbf16>
    %62 = vector.shape_cast %61 : vector<1x64x64xbf16> to vector<64x64xbf16>
    %cst_59 = arith.constant dense<0.000000e+00> : vector<64x128xf32>
    %63 = tpu.matmul %62, %47, %cst_59 {dimension_numbers = #tpu.dot_dimension_numbers<[1], [0], [0], [1], [0, 0, 1, 1], [], []>} : vector<64x64xbf16>, vector<64x128xbf16>, vector<64x128xf32> -> vector<64x128xf32>
    %c2_60 = arith.constant 2 : index
    %c0_61 = arith.constant 0 : index
    %c0_62 = arith.constant 0 : index
    %64 = vector.load %arg13[%c2_60, %c0_61, %c0_62] : memref<5x64x128xf32, #tpu.memory_space<vmem>>, vector<1x64x128xf32>
    %65 = vector.shape_cast %64 : vector<1x64x128xf32> to vector<64x128xf32>
    %66 = arith.addf %63, %65 : vector<64x128xf32>
    %67 = arith.maximumf %60, %66 : vector<64x128xf32>
    %c3_63 = arith.constant 3 : index
    %c0_64 = arith.constant 0 : index
    %c0_65 = arith.constant 0 : index
    %68 = vector.load %arg7[%c3_63, %c0_64, %c0_65] : memref<5x64x64xbf16, #tpu.memory_space<vmem>>, vector<1x64x64xbf16>
    %69 = vector.shape_cast %68 : vector<1x64x64xbf16> to vector<64x64xbf16>
    %cst_66 = arith.constant dense<0.000000e+00> : vector<64x128xf32>
    %70 = tpu.matmul %69, %47, %cst_66 {dimension_numbers = #tpu.dot_dimension_numbers<[1], [0], [0], [1], [0, 0, 1, 1], [], []>} : vector<64x64xbf16>, vector<64x128xbf16>, vector<64x128xf32> -> vector<64x128xf32>
    %c3_67 = arith.constant 3 : index
    %c0_68 = arith.constant 0 : index
    %c0_69 = arith.constant 0 : index
    %71 = vector.load %arg13[%c3_67, %c0_68, %c0_69] : memref<5x64x128xf32, #tpu.memory_space<vmem>>, vector<1x64x128xf32>
    %72 = vector.shape_cast %71 : vector<1x64x128xf32> to vector<64x128xf32>
    %73 = arith.addf %70, %72 : vector<64x128xf32>
    %74 = arith.maximumf %67, %73 : vector<64x128xf32>
    %c4_70 = arith.constant 4 : index
    %c0_71 = arith.constant 0 : index
    %c0_72 = arith.constant 0 : index
    %75 = vector.load %arg7[%c4_70, %c0_71, %c0_72] : memref<5x64x64xbf16, #tpu.memory_space<vmem>>, vector<1x64x64xbf16>
    %76 = vector.shape_cast %75 : vector<1x64x64xbf16> to vector<64x64xbf16>
    %cst_73 = arith.constant dense<0.000000e+00> : vector<64x128xf32>
    %77 = tpu.matmul %76, %47, %cst_73 {dimension_numbers = #tpu.dot_dimension_numbers<[1], [0], [0], [1], [0, 0, 1, 1], [], []>} : vector<64x64xbf16>, vector<64x128xbf16>, vector<64x128xf32> -> vector<64x128xf32>
    %c4_74 = arith.constant 4 : index
    %c0_75 = arith.constant 0 : index
    %c0_76 = arith.constant 0 : index
    %78 = vector.load %arg13[%c4_74, %c0_75, %c0_76] : memref<5x64x128xf32, #tpu.memory_space<vmem>>, vector<1x64x128xf32>
    %79 = vector.shape_cast %78 : vector<1x64x128xf32> to vector<64x128xf32>
    %80 = arith.addf %77, %79 : vector<64x128xf32>
    %81 = arith.maximumf %74, %80 : vector<64x128xf32>
    %cst_77 = arith.constant 0.000000e+00 : f32
    %82 = vector.broadcast %cst_77 : f32 to vector<64x128xf32>
    %83 = arith.maximumf %81, %82 : vector<64x128xf32>
    %84 = arith.truncf %83 : vector<64x128xf32> to vector<64x128xbf16>
    %c0_78 = arith.constant 0 : index
    %c0_79 = arith.constant 0 : index
    %85 = vector.load %arg3[%c0_78, %c0_79] : memref<128x128xbf16, #tpu.memory_space<vmem>>, vector<128x128xbf16>
    %cst_80 = arith.constant dense<0.000000e+00> : vector<64x128xf32>
    %86 = tpu.matmul %84, %85, %cst_80 {dimension_numbers = #tpu.dot_dimension_numbers<[1], [0], [0], [1], [0, 0, 1, 1], [], []>} : vector<64x128xbf16>, vector<128x128xbf16>, vector<64x128xf32> -> vector<64x128xf32>
    %87 = arith.truncf %86 : vector<64x128xf32> to vector<64x128xbf16>
    %c0_81 = arith.constant 0 : index
    %c0_82 = arith.constant 0 : index
    %c0_83 = arith.constant 0 : index
    %88 = vector.load %arg7[%c0_81, %c0_82, %c0_83] : memref<5x64x64xbf16, #tpu.memory_space<vmem>>, vector<1x64x64xbf16>
    %89 = vector.shape_cast %88 : vector<1x64x64xbf16> to vector<64x64xbf16>
    %cst_84 = arith.constant dense<0.000000e+00> : vector<64x128xf32>
    %90 = tpu.matmul %89, %87, %cst_84 {dimension_numbers = #tpu.dot_dimension_numbers<[1], [0], [0], [1], [0, 0, 1, 1], [], []>} : vector<64x64xbf16>, vector<64x128xbf16>, vector<64x128xf32> -> vector<64x128xf32>
    %c0_85 = arith.constant 0 : index
    %c0_86 = arith.constant 0 : index
    %c0_87 = arith.constant 0 : index
    %91 = vector.load %arg14[%c0_85, %c0_86, %c0_87] : memref<5x64x128xf32, #tpu.memory_space<vmem>>, vector<1x64x128xf32>
    %92 = vector.shape_cast %91 : vector<1x64x128xf32> to vector<64x128xf32>
    %93 = arith.addf %90, %92 : vector<64x128xf32>
    %c1_88 = arith.constant 1 : index
    %c0_89 = arith.constant 0 : index
    %c0_90 = arith.constant 0 : index
    %94 = vector.load %arg7[%c1_88, %c0_89, %c0_90] : memref<5x64x64xbf16, #tpu.memory_space<vmem>>, vector<1x64x64xbf16>
    %95 = vector.shape_cast %94 : vector<1x64x64xbf16> to vector<64x64xbf16>
    %cst_91 = arith.constant dense<0.000000e+00> : vector<64x128xf32>
    %96 = tpu.matmul %95, %87, %cst_91 {dimension_numbers = #tpu.dot_dimension_numbers<[1], [0], [0], [1], [0, 0, 1, 1], [], []>} : vector<64x64xbf16>, vector<64x128xbf16>, vector<64x128xf32> -> vector<64x128xf32>
    %c1_92 = arith.constant 1 : index
    %c0_93 = arith.constant 0 : index
    %c0_94 = arith.constant 0 : index
    %97 = vector.load %arg14[%c1_92, %c0_93, %c0_94] : memref<5x64x128xf32, #tpu.memory_space<vmem>>, vector<1x64x128xf32>
    %98 = vector.shape_cast %97 : vector<1x64x128xf32> to vector<64x128xf32>
    %99 = arith.addf %96, %98 : vector<64x128xf32>
    %100 = arith.maximumf %93, %99 : vector<64x128xf32>
    %c2_95 = arith.constant 2 : index
    %c0_96 = arith.constant 0 : index
    %c0_97 = arith.constant 0 : index
    %101 = vector.load %arg7[%c2_95, %c0_96, %c0_97] : memref<5x64x64xbf16, #tpu.memory_space<vmem>>, vector<1x64x64xbf16>
    %102 = vector.shape_cast %101 : vector<1x64x64xbf16> to vector<64x64xbf16>
    %cst_98 = arith.constant dense<0.000000e+00> : vector<64x128xf32>
    %103 = tpu.matmul %102, %87, %cst_98 {dimension_numbers = #tpu.dot_dimension_numbers<[1], [0], [0], [1], [0, 0, 1, 1], [], []>} : vector<64x64xbf16>, vector<64x128xbf16>, vector<64x128xf32> -> vector<64x128xf32>
    %c2_99 = arith.constant 2 : index
    %c0_100 = arith.constant 0 : index
    %c0_101 = arith.constant 0 : index
    %104 = vector.load %arg14[%c2_99, %c0_100, %c0_101] : memref<5x64x128xf32, #tpu.memory_space<vmem>>, vector<1x64x128xf32>
    %105 = vector.shape_cast %104 : vector<1x64x128xf32> to vector<64x128xf32>
    %106 = arith.addf %103, %105 : vector<64x128xf32>
    %107 = arith.maximumf %100, %106 : vector<64x128xf32>
    %c3_102 = arith.constant 3 : index
    %c0_103 = arith.constant 0 : index
    %c0_104 = arith.constant 0 : index
    %108 = vector.load %arg7[%c3_102, %c0_103, %c0_104] : memref<5x64x64xbf16, #tpu.memory_space<vmem>>, vector<1x64x64xbf16>
    %109 = vector.shape_cast %108 : vector<1x64x64xbf16> to vector<64x64xbf16>
    %cst_105 = arith.constant dense<0.000000e+00> : vector<64x128xf32>
    %110 = tpu.matmul %109, %87, %cst_105 {dimension_numbers = #tpu.dot_dimension_numbers<[1], [0], [0], [1], [0, 0, 1, 1], [], []>} : vector<64x64xbf16>, vector<64x128xbf16>, vector<64x128xf32> -> vector<64x128xf32>
    %c3_106 = arith.constant 3 : index
    %c0_107 = arith.constant 0 : index
    %c0_108 = arith.constant 0 : index
    %111 = vector.load %arg14[%c3_106, %c0_107, %c0_108] : memref<5x64x128xf32, #tpu.memory_space<vmem>>, vector<1x64x128xf32>
    %112 = vector.shape_cast %111 : vector<1x64x128xf32> to vector<64x128xf32>
    %113 = arith.addf %110, %112 : vector<64x128xf32>
    %114 = arith.maximumf %107, %113 : vector<64x128xf32>
    %c4_109 = arith.constant 4 : index
    %c0_110 = arith.constant 0 : index
    %c0_111 = arith.constant 0 : index
    %115 = vector.load %arg7[%c4_109, %c0_110, %c0_111] : memref<5x64x64xbf16, #tpu.memory_space<vmem>>, vector<1x64x64xbf16>
    %116 = vector.shape_cast %115 : vector<1x64x64xbf16> to vector<64x64xbf16>
    %cst_112 = arith.constant dense<0.000000e+00> : vector<64x128xf32>
    %117 = tpu.matmul %116, %87, %cst_112 {dimension_numbers = #tpu.dot_dimension_numbers<[1], [0], [0], [1], [0, 0, 1, 1], [], []>} : vector<64x64xbf16>, vector<64x128xbf16>, vector<64x128xf32> -> vector<64x128xf32>
    %c4_113 = arith.constant 4 : index
    %c0_114 = arith.constant 0 : index
    %c0_115 = arith.constant 0 : index
    %118 = vector.load %arg14[%c4_113, %c0_114, %c0_115] : memref<5x64x128xf32, #tpu.memory_space<vmem>>, vector<1x64x128xf32>
    %119 = vector.shape_cast %118 : vector<1x64x128xf32> to vector<64x128xf32>
    %120 = arith.addf %117, %119 : vector<64x128xf32>
    %121 = arith.maximumf %114, %120 : vector<64x128xf32>
    %cst_116 = arith.constant 0.000000e+00 : f32
    %122 = vector.broadcast %cst_116 : f32 to vector<64x128xf32>
    %123 = arith.maximumf %121, %122 : vector<64x128xf32>
    %124 = arith.truncf %123 : vector<64x128xf32> to vector<64x128xbf16>
    %c0_117 = arith.constant 0 : index
    %c0_118 = arith.constant 0 : index
    %c0_119 = arith.constant 0 : index
    %125 = vector.load %arg10[%c0_117, %c0_118, %c0_119] : memref<2x64x64xbf16, #tpu.memory_space<vmem>>, vector<1x64x64xbf16>
    %126 = vector.shape_cast %125 : vector<1x64x64xbf16> to vector<64x64xbf16>
    %cst_120 = arith.constant dense<0.000000e+00> : vector<64x128xf32>
    %127 = tpu.matmul %126, %124, %cst_120 {dimension_numbers = #tpu.dot_dimension_numbers<[1], [0], [0], [1], [0, 0, 1, 1], [], []>} : vector<64x64xbf16>, vector<64x128xbf16>, vector<64x128xf32> -> vector<64x128xf32>
    %c1_121 = arith.constant 1 : index
    %c0_122 = arith.constant 0 : index
    %c0_123 = arith.constant 0 : index
    %128 = vector.load %arg10[%c1_121, %c0_122, %c0_123] : memref<2x64x64xbf16, #tpu.memory_space<vmem>>, vector<1x64x64xbf16>
    %129 = vector.shape_cast %128 : vector<1x64x64xbf16> to vector<64x64xbf16>
    %cst_124 = arith.constant dense<0.000000e+00> : vector<64x128xf32>
    %130 = tpu.matmul %129, %124, %cst_124 {dimension_numbers = #tpu.dot_dimension_numbers<[1], [0], [0], [1], [0, 0, 1, 1], [], []>} : vector<64x64xbf16>, vector<64x128xbf16>, vector<64x128xf32> -> vector<64x128xf32>
    %131 = arith.maximumf %127, %130 : vector<64x128xf32>
    %132 = arith.truncf %131 : vector<64x128xf32> to vector<64x128xbf16>
    %c0_125 = arith.constant 0 : index
    %c0_126 = arith.constant 0 : index
    %133 = vector.load %arg4[%c0_125, %c0_126] : memref<128x128xbf16, #tpu.memory_space<vmem>>, vector<128x128xbf16>
    %cst_127 = arith.constant dense<0.000000e+00> : vector<64x128xf32>
    %134 = tpu.matmul %132, %133, %cst_127 {dimension_numbers = #tpu.dot_dimension_numbers<[1], [0], [0], [1], [0, 0, 1, 1], [], []>} : vector<64x128xbf16>, vector<128x128xbf16>, vector<64x128xf32> -> vector<64x128xf32>
    %135 = arith.truncf %134 : vector<64x128xf32> to vector<64x128xbf16>
    %c0_128 = arith.constant 0 : index
    %c0_129 = arith.constant 0 : index
    %c0_130 = arith.constant 0 : index
    %136 = vector.load %arg8[%c0_128, %c0_129, %c0_130] : memref<5x64x64xbf16, #tpu.memory_space<vmem>>, vector<1x64x64xbf16>
    %137 = vector.shape_cast %136 : vector<1x64x64xbf16> to vector<64x64xbf16>
    %cst_131 = arith.constant dense<0.000000e+00> : vector<64x128xf32>
    %138 = tpu.matmul %137, %135, %cst_131 {dimension_numbers = #tpu.dot_dimension_numbers<[1], [0], [0], [1], [0, 0, 1, 1], [], []>} : vector<64x64xbf16>, vector<64x128xbf16>, vector<64x128xf32> -> vector<64x128xf32>
    %c0_132 = arith.constant 0 : index
    %c0_133 = arith.constant 0 : index
    %c0_134 = arith.constant 0 : index
    %139 = vector.load %arg15[%c0_132, %c0_133, %c0_134] : memref<5x64x128xf32, #tpu.memory_space<vmem>>, vector<1x64x128xf32>
    %140 = vector.shape_cast %139 : vector<1x64x128xf32> to vector<64x128xf32>
    %141 = arith.addf %138, %140 : vector<64x128xf32>
    %c1_135 = arith.constant 1 : index
    %c0_136 = arith.constant 0 : index
    %c0_137 = arith.constant 0 : index
    %142 = vector.load %arg8[%c1_135, %c0_136, %c0_137] : memref<5x64x64xbf16, #tpu.memory_space<vmem>>, vector<1x64x64xbf16>
    %143 = vector.shape_cast %142 : vector<1x64x64xbf16> to vector<64x64xbf16>
    %cst_138 = arith.constant dense<0.000000e+00> : vector<64x128xf32>
    %144 = tpu.matmul %143, %135, %cst_138 {dimension_numbers = #tpu.dot_dimension_numbers<[1], [0], [0], [1], [0, 0, 1, 1], [], []>} : vector<64x64xbf16>, vector<64x128xbf16>, vector<64x128xf32> -> vector<64x128xf32>
    %c1_139 = arith.constant 1 : index
    %c0_140 = arith.constant 0 : index
    %c0_141 = arith.constant 0 : index
    %145 = vector.load %arg15[%c1_139, %c0_140, %c0_141] : memref<5x64x128xf32, #tpu.memory_space<vmem>>, vector<1x64x128xf32>
    %146 = vector.shape_cast %145 : vector<1x64x128xf32> to vector<64x128xf32>
    %147 = arith.addf %144, %146 : vector<64x128xf32>
    %148 = arith.maximumf %141, %147 : vector<64x128xf32>
    %c2_142 = arith.constant 2 : index
    %c0_143 = arith.constant 0 : index
    %c0_144 = arith.constant 0 : index
    %149 = vector.load %arg8[%c2_142, %c0_143, %c0_144] : memref<5x64x64xbf16, #tpu.memory_space<vmem>>, vector<1x64x64xbf16>
    %150 = vector.shape_cast %149 : vector<1x64x64xbf16> to vector<64x64xbf16>
    %cst_145 = arith.constant dense<0.000000e+00> : vector<64x128xf32>
    %151 = tpu.matmul %150, %135, %cst_145 {dimension_numbers = #tpu.dot_dimension_numbers<[1], [0], [0], [1], [0, 0, 1, 1], [], []>} : vector<64x64xbf16>, vector<64x128xbf16>, vector<64x128xf32> -> vector<64x128xf32>
    %c2_146 = arith.constant 2 : index
    %c0_147 = arith.constant 0 : index
    %c0_148 = arith.constant 0 : index
    %152 = vector.load %arg15[%c2_146, %c0_147, %c0_148] : memref<5x64x128xf32, #tpu.memory_space<vmem>>, vector<1x64x128xf32>
    %153 = vector.shape_cast %152 : vector<1x64x128xf32> to vector<64x128xf32>
    %154 = arith.addf %151, %153 : vector<64x128xf32>
    %155 = arith.maximumf %148, %154 : vector<64x128xf32>
    %c3_149 = arith.constant 3 : index
    %c0_150 = arith.constant 0 : index
    %c0_151 = arith.constant 0 : index
    %156 = vector.load %arg8[%c3_149, %c0_150, %c0_151] : memref<5x64x64xbf16, #tpu.memory_space<vmem>>, vector<1x64x64xbf16>
    %157 = vector.shape_cast %156 : vector<1x64x64xbf16> to vector<64x64xbf16>
    %cst_152 = arith.constant dense<0.000000e+00> : vector<64x128xf32>
    %158 = tpu.matmul %157, %135, %cst_152 {dimension_numbers = #tpu.dot_dimension_numbers<[1], [0], [0], [1], [0, 0, 1, 1], [], []>} : vector<64x64xbf16>, vector<64x128xbf16>, vector<64x128xf32> -> vector<64x128xf32>
    %c3_153 = arith.constant 3 : index
    %c0_154 = arith.constant 0 : index
    %c0_155 = arith.constant 0 : index
    %159 = vector.load %arg15[%c3_153, %c0_154, %c0_155] : memref<5x64x128xf32, #tpu.memory_space<vmem>>, vector<1x64x128xf32>
    %160 = vector.shape_cast %159 : vector<1x64x128xf32> to vector<64x128xf32>
    %161 = arith.addf %158, %160 : vector<64x128xf32>
    %162 = arith.maximumf %155, %161 : vector<64x128xf32>
    %c4_156 = arith.constant 4 : index
    %c0_157 = arith.constant 0 : index
    %c0_158 = arith.constant 0 : index
    %163 = vector.load %arg8[%c4_156, %c0_157, %c0_158] : memref<5x64x64xbf16, #tpu.memory_space<vmem>>, vector<1x64x64xbf16>
    %164 = vector.shape_cast %163 : vector<1x64x64xbf16> to vector<64x64xbf16>
    %cst_159 = arith.constant dense<0.000000e+00> : vector<64x128xf32>
    %165 = tpu.matmul %164, %135, %cst_159 {dimension_numbers = #tpu.dot_dimension_numbers<[1], [0], [0], [1], [0, 0, 1, 1], [], []>} : vector<64x64xbf16>, vector<64x128xbf16>, vector<64x128xf32> -> vector<64x128xf32>
    %c4_160 = arith.constant 4 : index
    %c0_161 = arith.constant 0 : index
    %c0_162 = arith.constant 0 : index
    %166 = vector.load %arg15[%c4_160, %c0_161, %c0_162] : memref<5x64x128xf32, #tpu.memory_space<vmem>>, vector<1x64x128xf32>
    %167 = vector.shape_cast %166 : vector<1x64x128xf32> to vector<64x128xf32>
    %168 = arith.addf %165, %167 : vector<64x128xf32>
    %169 = arith.maximumf %162, %168 : vector<64x128xf32>
    %cst_163 = arith.constant 0.000000e+00 : f32
    %170 = vector.broadcast %cst_163 : f32 to vector<64x128xf32>
    %171 = arith.maximumf %169, %170 : vector<64x128xf32>
    %172 = arith.truncf %171 : vector<64x128xf32> to vector<64x128xbf16>
    %c0_164 = arith.constant 0 : index
    %c0_165 = arith.constant 0 : index
    %173 = vector.load %arg5[%c0_164, %c0_165] : memref<128x128xbf16, #tpu.memory_space<vmem>>, vector<128x128xbf16>
    %cst_166 = arith.constant dense<0.000000e+00> : vector<64x128xf32>
    %174 = tpu.matmul %172, %173, %cst_166 {dimension_numbers = #tpu.dot_dimension_numbers<[1], [0], [0], [1], [0, 0, 1, 1], [], []>} : vector<64x128xbf16>, vector<128x128xbf16>, vector<64x128xf32> -> vector<64x128xf32>
    %175 = arith.truncf %174 : vector<64x128xf32> to vector<64x128xbf16>
    %c0_167 = arith.constant 0 : index
    %c0_168 = arith.constant 0 : index
    %c0_169 = arith.constant 0 : index
    %176 = vector.load %arg8[%c0_167, %c0_168, %c0_169] : memref<5x64x64xbf16, #tpu.memory_space<vmem>>, vector<1x64x64xbf16>
    %177 = vector.shape_cast %176 : vector<1x64x64xbf16> to vector<64x64xbf16>
    %cst_170 = arith.constant dense<0.000000e+00> : vector<64x128xf32>
    %178 = tpu.matmul %177, %175, %cst_170 {dimension_numbers = #tpu.dot_dimension_numbers<[1], [0], [0], [1], [0, 0, 1, 1], [], []>} : vector<64x64xbf16>, vector<64x128xbf16>, vector<64x128xf32> -> vector<64x128xf32>
    %c0_171 = arith.constant 0 : index
    %c0_172 = arith.constant 0 : index
    %c0_173 = arith.constant 0 : index
    %179 = vector.load %arg16[%c0_171, %c0_172, %c0_173] : memref<5x64x128xf32, #tpu.memory_space<vmem>>, vector<1x64x128xf32>
    %180 = vector.shape_cast %179 : vector<1x64x128xf32> to vector<64x128xf32>
    %181 = arith.addf %178, %180 : vector<64x128xf32>
    %c1_174 = arith.constant 1 : index
    %c0_175 = arith.constant 0 : index
    %c0_176 = arith.constant 0 : index
    %182 = vector.load %arg8[%c1_174, %c0_175, %c0_176] : memref<5x64x64xbf16, #tpu.memory_space<vmem>>, vector<1x64x64xbf16>
    %183 = vector.shape_cast %182 : vector<1x64x64xbf16> to vector<64x64xbf16>
    %cst_177 = arith.constant dense<0.000000e+00> : vector<64x128xf32>
    %184 = tpu.matmul %183, %175, %cst_177 {dimension_numbers = #tpu.dot_dimension_numbers<[1], [0], [0], [1], [0, 0, 1, 1], [], []>} : vector<64x64xbf16>, vector<64x128xbf16>, vector<64x128xf32> -> vector<64x128xf32>
    %c1_178 = arith.constant 1 : index
    %c0_179 = arith.constant 0 : index
    %c0_180 = arith.constant 0 : index
    %185 = vector.load %arg16[%c1_178, %c0_179, %c0_180] : memref<5x64x128xf32, #tpu.memory_space<vmem>>, vector<1x64x128xf32>
    %186 = vector.shape_cast %185 : vector<1x64x128xf32> to vector<64x128xf32>
    %187 = arith.addf %184, %186 : vector<64x128xf32>
    %188 = arith.maximumf %181, %187 : vector<64x128xf32>
    %c2_181 = arith.constant 2 : index
    %c0_182 = arith.constant 0 : index
    %c0_183 = arith.constant 0 : index
    %189 = vector.load %arg8[%c2_181, %c0_182, %c0_183] : memref<5x64x64xbf16, #tpu.memory_space<vmem>>, vector<1x64x64xbf16>
    %190 = vector.shape_cast %189 : vector<1x64x64xbf16> to vector<64x64xbf16>
    %cst_184 = arith.constant dense<0.000000e+00> : vector<64x128xf32>
    %191 = tpu.matmul %190, %175, %cst_184 {dimension_numbers = #tpu.dot_dimension_numbers<[1], [0], [0], [1], [0, 0, 1, 1], [], []>} : vector<64x64xbf16>, vector<64x128xbf16>, vector<64x128xf32> -> vector<64x128xf32>
    %c2_185 = arith.constant 2 : index
    %c0_186 = arith.constant 0 : index
    %c0_187 = arith.constant 0 : index
    %192 = vector.load %arg16[%c2_185, %c0_186, %c0_187] : memref<5x64x128xf32, #tpu.memory_space<vmem>>, vector<1x64x128xf32>
    %193 = vector.shape_cast %192 : vector<1x64x128xf32> to vector<64x128xf32>
    %194 = arith.addf %191, %193 : vector<64x128xf32>
    %195 = arith.maximumf %188, %194 : vector<64x128xf32>
    %c3_188 = arith.constant 3 : index
    %c0_189 = arith.constant 0 : index
    %c0_190 = arith.constant 0 : index
    %196 = vector.load %arg8[%c3_188, %c0_189, %c0_190] : memref<5x64x64xbf16, #tpu.memory_space<vmem>>, vector<1x64x64xbf16>
    %197 = vector.shape_cast %196 : vector<1x64x64xbf16> to vector<64x64xbf16>
    %cst_191 = arith.constant dense<0.000000e+00> : vector<64x128xf32>
    %198 = tpu.matmul %197, %175, %cst_191 {dimension_numbers = #tpu.dot_dimension_numbers<[1], [0], [0], [1], [0, 0, 1, 1], [], []>} : vector<64x64xbf16>, vector<64x128xbf16>, vector<64x128xf32> -> vector<64x128xf32>
    %c3_192 = arith.constant 3 : index
    %c0_193 = arith.constant 0 : index
    %c0_194 = arith.constant 0 : index
    %199 = vector.load %arg16[%c3_192, %c0_193, %c0_194] : memref<5x64x128xf32, #tpu.memory_space<vmem>>, vector<1x64x128xf32>
    %200 = vector.shape_cast %199 : vector<1x64x128xf32> to vector<64x128xf32>
    %201 = arith.addf %198, %200 : vector<64x128xf32>
    %202 = arith.maximumf %195, %201 : vector<64x128xf32>
    %c4_195 = arith.constant 4 : index
    %c0_196 = arith.constant 0 : index
    %c0_197 = arith.constant 0 : index
    %203 = vector.load %arg8[%c4_195, %c0_196, %c0_197] : memref<5x64x64xbf16, #tpu.memory_space<vmem>>, vector<1x64x64xbf16>
    %204 = vector.shape_cast %203 : vector<1x64x64xbf16> to vector<64x64xbf16>
    %cst_198 = arith.constant dense<0.000000e+00> : vector<64x128xf32>
    %205 = tpu.matmul %204, %175, %cst_198 {dimension_numbers = #tpu.dot_dimension_numbers<[1], [0], [0], [1], [0, 0, 1, 1], [], []>} : vector<64x64xbf16>, vector<64x128xbf16>, vector<64x128xf32> -> vector<64x128xf32>
    %c4_199 = arith.constant 4 : index
    %c0_200 = arith.constant 0 : index
    %c0_201 = arith.constant 0 : index
    %206 = vector.load %arg16[%c4_199, %c0_200, %c0_201] : memref<5x64x128xf32, #tpu.memory_space<vmem>>, vector<1x64x128xf32>
    %207 = vector.shape_cast %206 : vector<1x64x128xf32> to vector<64x128xf32>
    %208 = arith.addf %205, %207 : vector<64x128xf32>
    %209 = arith.maximumf %202, %208 : vector<64x128xf32>
    %cst_202 = arith.constant 0.000000e+00 : f32
    %210 = vector.broadcast %cst_202 : f32 to vector<64x128xf32>
    %211 = arith.maximumf %209, %210 : vector<64x128xf32>
    %212 = arith.truncf %211 : vector<64x128xf32> to vector<64x128xbf16>
    %c0_203 = arith.constant 0 : index
    %c0_204 = arith.constant 0 : index
    %c0_205 = arith.constant 0 : index
    %213 = vector.load %arg11[%c0_203, %c0_204, %c0_205] : memref<3x64x64xbf16, #tpu.memory_space<vmem>>, vector<1x64x64xbf16>
    %214 = vector.shape_cast %213 : vector<1x64x64xbf16> to vector<64x64xbf16>
    %cst_206 = arith.constant dense<0.000000e+00> : vector<64x128xf32>
    %215 = tpu.matmul %214, %212, %cst_206 {dimension_numbers = #tpu.dot_dimension_numbers<[1], [0], [0], [1], [0, 0, 1, 1], [], []>} : vector<64x64xbf16>, vector<64x128xbf16>, vector<64x128xf32> -> vector<64x128xf32>
    %c1_207 = arith.constant 1 : index
    %c0_208 = arith.constant 0 : index
    %c0_209 = arith.constant 0 : index
    %216 = vector.load %arg11[%c1_207, %c0_208, %c0_209] : memref<3x64x64xbf16, #tpu.memory_space<vmem>>, vector<1x64x64xbf16>
    %217 = vector.shape_cast %216 : vector<1x64x64xbf16> to vector<64x64xbf16>
    %cst_210 = arith.constant dense<0.000000e+00> : vector<64x128xf32>
    %218 = tpu.matmul %217, %212, %cst_210 {dimension_numbers = #tpu.dot_dimension_numbers<[1], [0], [0], [1], [0, 0, 1, 1], [], []>} : vector<64x64xbf16>, vector<64x128xbf16>, vector<64x128xf32> -> vector<64x128xf32>
    %219 = arith.maximumf %215, %218 : vector<64x128xf32>
    %c2_211 = arith.constant 2 : index
    %c0_212 = arith.constant 0 : index
    %c0_213 = arith.constant 0 : index
    %220 = vector.load %arg11[%c2_211, %c0_212, %c0_213] : memref<3x64x64xbf16, #tpu.memory_space<vmem>>, vector<1x64x64xbf16>
    %221 = vector.shape_cast %220 : vector<1x64x64xbf16> to vector<64x64xbf16>
    %cst_214 = arith.constant dense<0.000000e+00> : vector<64x128xf32>
    %222 = tpu.matmul %221, %212, %cst_214 {dimension_numbers = #tpu.dot_dimension_numbers<[1], [0], [0], [1], [0, 0, 1, 1], [], []>} : vector<64x64xbf16>, vector<64x128xbf16>, vector<64x128xf32> -> vector<64x128xf32>
    %223 = arith.maximumf %219, %222 : vector<64x128xf32>
    %224 = arith.truncf %223 : vector<64x128xf32> to vector<64x128xbf16>
    %cst_215 = arith.constant 0.000000e+00 : f32
    %225 = vector.broadcast %cst_215 : f32 to vector<1x128xf32>
    %226 = vector.extract_strided_slice %224 {offsets = [0, 0], sizes = [1, 128], strides = [1, 1]} : vector<64x128xbf16> to vector<1x128xbf16>
    %c0_216 = arith.constant 0 : index
    %c0_217 = arith.constant 0 : index
    %c0_218 = arith.constant 0 : index
    %227 = vector.load %arg17[%c0_216, %c0_217, %c0_218] : memref<64x128x128xbf16, #tpu.memory_space<vmem>>, vector<1x128x128xbf16>
    %228 = vector.shape_cast %227 : vector<1x128x128xbf16> to vector<128x128xbf16>
    %cst_219 = arith.constant dense<0.000000e+00> : vector<1x128xf32>
    %229 = tpu.matmul %226, %228, %cst_219 {dimension_numbers = #tpu.dot_dimension_numbers<[1], [0], [0], [1], [0, 0, 1, 1], [], []>} : vector<1x128xbf16>, vector<128x128xbf16>, vector<1x128xf32> -> vector<1x128xf32>
    %230 = arith.addf %225, %229 : vector<1x128xf32>
    %231 = vector.extract_strided_slice %224 {offsets = [1, 0], sizes = [1, 128], strides = [1, 1]} : vector<64x128xbf16> to vector<1x128xbf16>
    %c1_220 = arith.constant 1 : index
    %c0_221 = arith.constant 0 : index
    %c0_222 = arith.constant 0 : index
    %232 = vector.load %arg17[%c1_220, %c0_221, %c0_222] : memref<64x128x128xbf16, #tpu.memory_space<vmem>>, vector<1x128x128xbf16>
    %233 = vector.shape_cast %232 : vector<1x128x128xbf16> to vector<128x128xbf16>
    %cst_223 = arith.constant dense<0.000000e+00> : vector<1x128xf32>
    %234 = tpu.matmul %231, %233, %cst_223 {dimension_numbers = #tpu.dot_dimension_numbers<[1], [0], [0], [1], [0, 0, 1, 1], [], []>} : vector<1x128xbf16>, vector<128x128xbf16>, vector<1x128xf32> -> vector<1x128xf32>
    %235 = arith.addf %230, %234 : vector<1x128xf32>
    %236 = vector.extract_strided_slice %224 {offsets = [2, 0], sizes = [1, 128], strides = [1, 1]} : vector<64x128xbf16> to vector<1x128xbf16>
    %c2_224 = arith.constant 2 : index
    %c0_225 = arith.constant 0 : index
    %c0_226 = arith.constant 0 : index
    %237 = vector.load %arg17[%c2_224, %c0_225, %c0_226] : memref<64x128x128xbf16, #tpu.memory_space<vmem>>, vector<1x128x128xbf16>
    %238 = vector.shape_cast %237 : vector<1x128x128xbf16> to vector<128x128xbf16>
    %cst_227 = arith.constant dense<0.000000e+00> : vector<1x128xf32>
    %239 = tpu.matmul %236, %238, %cst_227 {dimension_numbers = #tpu.dot_dimension_numbers<[1], [0], [0], [1], [0, 0, 1, 1], [], []>} : vector<1x128xbf16>, vector<128x128xbf16>, vector<1x128xf32> -> vector<1x128xf32>
    %240 = arith.addf %235, %239 : vector<1x128xf32>
    %241 = vector.extract_strided_slice %224 {offsets = [3, 0], sizes = [1, 128], strides = [1, 1]} : vector<64x128xbf16> to vector<1x128xbf16>
    %c3_228 = arith.constant 3 : index
    %c0_229 = arith.constant 0 : index
    %c0_230 = arith.constant 0 : index
    %242 = vector.load %arg17[%c3_228, %c0_229, %c0_230] : memref<64x128x128xbf16, #tpu.memory_space<vmem>>, vector<1x128x128xbf16>
    %243 = vector.shape_cast %242 : vector<1x128x128xbf16> to vector<128x128xbf16>
    %cst_231 = arith.constant dense<0.000000e+00> : vector<1x128xf32>
    %244 = tpu.matmul %241, %243, %cst_231 {dimension_numbers = #tpu.dot_dimension_numbers<[1], [0], [0], [1], [0, 0, 1, 1], [], []>} : vector<1x128xbf16>, vector<128x128xbf16>, vector<1x128xf32> -> vector<1x128xf32>
    %245 = arith.addf %240, %244 : vector<1x128xf32>
    %246 = vector.extract_strided_slice %224 {offsets = [4, 0], sizes = [1, 128], strides = [1, 1]} : vector<64x128xbf16> to vector<1x128xbf16>
    %c4_232 = arith.constant 4 : index
    %c0_233 = arith.constant 0 : index
    %c0_234 = arith.constant 0 : index
    %247 = vector.load %arg17[%c4_232, %c0_233, %c0_234] : memref<64x128x128xbf16, #tpu.memory_space<vmem>>, vector<1x128x128xbf16>
    %248 = vector.shape_cast %247 : vector<1x128x128xbf16> to vector<128x128xbf16>
    %cst_235 = arith.constant dense<0.000000e+00> : vector<1x128xf32>
    %249 = tpu.matmul %246, %248, %cst_235 {dimension_numbers = #tpu.dot_dimension_numbers<[1], [0], [0], [1], [0, 0, 1, 1], [], []>} : vector<1x128xbf16>, vector<128x128xbf16>, vector<1x128xf32> -> vector<1x128xf32>
    %250 = arith.addf %245, %249 : vector<1x128xf32>
    %251 = vector.extract_strided_slice %224 {offsets = [5, 0], sizes = [1, 128], strides = [1, 1]} : vector<64x128xbf16> to vector<1x128xbf16>
    %c5 = arith.constant 5 : index
    %c0_236 = arith.constant 0 : index
    %c0_237 = arith.constant 0 : index
    %252 = vector.load %arg17[%c5, %c0_236, %c0_237] : memref<64x128x128xbf16, #tpu.memory_space<vmem>>, vector<1x128x128xbf16>
    %253 = vector.shape_cast %252 : vector<1x128x128xbf16> to vector<128x128xbf16>
    %cst_238 = arith.constant dense<0.000000e+00> : vector<1x128xf32>
    %254 = tpu.matmul %251, %253, %cst_238 {dimension_numbers = #tpu.dot_dimension_numbers<[1], [0], [0], [1], [0, 0, 1, 1], [], []>} : vector<1x128xbf16>, vector<128x128xbf16>, vector<1x128xf32> -> vector<1x128xf32>
    %255 = arith.addf %250, %254 : vector<1x128xf32>
    %256 = vector.extract_strided_slice %224 {offsets = [6, 0], sizes = [1, 128], strides = [1, 1]} : vector<64x128xbf16> to vector<1x128xbf16>
    %c6 = arith.constant 6 : index
    %c0_239 = arith.constant 0 : index
    %c0_240 = arith.constant 0 : index
    %257 = vector.load %arg17[%c6, %c0_239, %c0_240] : memref<64x128x128xbf16, #tpu.memory_space<vmem>>, vector<1x128x128xbf16>
    %258 = vector.shape_cast %257 : vector<1x128x128xbf16> to vector<128x128xbf16>
    %cst_241 = arith.constant dense<0.000000e+00> : vector<1x128xf32>
    %259 = tpu.matmul %256, %258, %cst_241 {dimension_numbers = #tpu.dot_dimension_numbers<[1], [0], [0], [1], [0, 0, 1, 1], [], []>} : vector<1x128xbf16>, vector<128x128xbf16>, vector<1x128xf32> -> vector<1x128xf32>
    %260 = arith.addf %255, %259 : vector<1x128xf32>
    %261 = vector.extract_strided_slice %224 {offsets = [7, 0], sizes = [1, 128], strides = [1, 1]} : vector<64x128xbf16> to vector<1x128xbf16>
    %c7 = arith.constant 7 : index
    %c0_242 = arith.constant 0 : index
    %c0_243 = arith.constant 0 : index
    %262 = vector.load %arg17[%c7, %c0_242, %c0_243] : memref<64x128x128xbf16, #tpu.memory_space<vmem>>, vector<1x128x128xbf16>
    %263 = vector.shape_cast %262 : vector<1x128x128xbf16> to vector<128x128xbf16>
    %cst_244 = arith.constant dense<0.000000e+00> : vector<1x128xf32>
    %264 = tpu.matmul %261, %263, %cst_244 {dimension_numbers = #tpu.dot_dimension_numbers<[1], [0], [0], [1], [0, 0, 1, 1], [], []>} : vector<1x128xbf16>, vector<128x128xbf16>, vector<1x128xf32> -> vector<1x128xf32>
    %265 = arith.addf %260, %264 : vector<1x128xf32>
    %266 = vector.extract_strided_slice %224 {offsets = [8, 0], sizes = [1, 128], strides = [1, 1]} : vector<64x128xbf16> to vector<1x128xbf16>
    %c8 = arith.constant 8 : index
    %c0_245 = arith.constant 0 : index
    %c0_246 = arith.constant 0 : index
    %267 = vector.load %arg17[%c8, %c0_245, %c0_246] : memref<64x128x128xbf16, #tpu.memory_space<vmem>>, vector<1x128x128xbf16>
    %268 = vector.shape_cast %267 : vector<1x128x128xbf16> to vector<128x128xbf16>
    %cst_247 = arith.constant dense<0.000000e+00> : vector<1x128xf32>
    %269 = tpu.matmul %266, %268, %cst_247 {dimension_numbers = #tpu.dot_dimension_numbers<[1], [0], [0], [1], [0, 0, 1, 1], [], []>} : vector<1x128xbf16>, vector<128x128xbf16>, vector<1x128xf32> -> vector<1x128xf32>
    %270 = arith.addf %265, %269 : vector<1x128xf32>
    %271 = vector.extract_strided_slice %224 {offsets = [9, 0], sizes = [1, 128], strides = [1, 1]} : vector<64x128xbf16> to vector<1x128xbf16>
    %c9 = arith.constant 9 : index
    %c0_248 = arith.constant 0 : index
    %c0_249 = arith.constant 0 : index
    %272 = vector.load %arg17[%c9, %c0_248, %c0_249] : memref<64x128x128xbf16, #tpu.memory_space<vmem>>, vector<1x128x128xbf16>
    %273 = vector.shape_cast %272 : vector<1x128x128xbf16> to vector<128x128xbf16>
    %cst_250 = arith.constant dense<0.000000e+00> : vector<1x128xf32>
    %274 = tpu.matmul %271, %273, %cst_250 {dimension_numbers = #tpu.dot_dimension_numbers<[1], [0], [0], [1], [0, 0, 1, 1], [], []>} : vector<1x128xbf16>, vector<128x128xbf16>, vector<1x128xf32> -> vector<1x128xf32>
    %275 = arith.addf %270, %274 : vector<1x128xf32>
    %276 = vector.extract_strided_slice %224 {offsets = [10, 0], sizes = [1, 128], strides = [1, 1]} : vector<64x128xbf16> to vector<1x128xbf16>
    %c10 = arith.constant 10 : index
    %c0_251 = arith.constant 0 : index
    %c0_252 = arith.constant 0 : index
    %277 = vector.load %arg17[%c10, %c0_251, %c0_252] : memref<64x128x128xbf16, #tpu.memory_space<vmem>>, vector<1x128x128xbf16>
    %278 = vector.shape_cast %277 : vector<1x128x128xbf16> to vector<128x128xbf16>
    %cst_253 = arith.constant dense<0.000000e+00> : vector<1x128xf32>
    %279 = tpu.matmul %276, %278, %cst_253 {dimension_numbers = #tpu.dot_dimension_numbers<[1], [0], [0], [1], [0, 0, 1, 1], [], []>} : vector<1x128xbf16>, vector<128x128xbf16>, vector<1x128xf32> -> vector<1x128xf32>
    %280 = arith.addf %275, %279 : vector<1x128xf32>
    %281 = vector.extract_strided_slice %224 {offsets = [11, 0], sizes = [1, 128], strides = [1, 1]} : vector<64x128xbf16> to vector<1x128xbf16>
    %c11 = arith.constant 11 : index
    %c0_254 = arith.constant 0 : index
    %c0_255 = arith.constant 0 : index
    %282 = vector.load %arg17[%c11, %c0_254, %c0_255] : memref<64x128x128xbf16, #tpu.memory_space<vmem>>, vector<1x128x128xbf16>
    %283 = vector.shape_cast %282 : vector<1x128x128xbf16> to vector<128x128xbf16>
    %cst_256 = arith.constant dense<0.000000e+00> : vector<1x128xf32>
    %284 = tpu.matmul %281, %283, %cst_256 {dimension_numbers = #tpu.dot_dimension_numbers<[1], [0], [0], [1], [0, 0, 1, 1], [], []>} : vector<1x128xbf16>, vector<128x128xbf16>, vector<1x128xf32> -> vector<1x128xf32>
    %285 = arith.addf %280, %284 : vector<1x128xf32>
    %286 = vector.extract_strided_slice %224 {offsets = [12, 0], sizes = [1, 128], strides = [1, 1]} : vector<64x128xbf16> to vector<1x128xbf16>
    %c12 = arith.constant 12 : index
    %c0_257 = arith.constant 0 : index
    %c0_258 = arith.constant 0 : index
    %287 = vector.load %arg17[%c12, %c0_257, %c0_258] : memref<64x128x128xbf16, #tpu.memory_space<vmem>>, vector<1x128x128xbf16>
    %288 = vector.shape_cast %287 : vector<1x128x128xbf16> to vector<128x128xbf16>
    %cst_259 = arith.constant dense<0.000000e+00> : vector<1x128xf32>
    %289 = tpu.matmul %286, %288, %cst_259 {dimension_numbers = #tpu.dot_dimension_numbers<[1], [0], [0], [1], [0, 0, 1, 1], [], []>} : vector<1x128xbf16>, vector<128x128xbf16>, vector<1x128xf32> -> vector<1x128xf32>
    %290 = arith.addf %285, %289 : vector<1x128xf32>
    %291 = vector.extract_strided_slice %224 {offsets = [13, 0], sizes = [1, 128], strides = [1, 1]} : vector<64x128xbf16> to vector<1x128xbf16>
    %c13 = arith.constant 13 : index
    %c0_260 = arith.constant 0 : index
    %c0_261 = arith.constant 0 : index
    %292 = vector.load %arg17[%c13, %c0_260, %c0_261] : memref<64x128x128xbf16, #tpu.memory_space<vmem>>, vector<1x128x128xbf16>
    %293 = vector.shape_cast %292 : vector<1x128x128xbf16> to vector<128x128xbf16>
    %cst_262 = arith.constant dense<0.000000e+00> : vector<1x128xf32>
    %294 = tpu.matmul %291, %293, %cst_262 {dimension_numbers = #tpu.dot_dimension_numbers<[1], [0], [0], [1], [0, 0, 1, 1], [], []>} : vector<1x128xbf16>, vector<128x128xbf16>, vector<1x128xf32> -> vector<1x128xf32>
    %295 = arith.addf %290, %294 : vector<1x128xf32>
    %296 = vector.extract_strided_slice %224 {offsets = [14, 0], sizes = [1, 128], strides = [1, 1]} : vector<64x128xbf16> to vector<1x128xbf16>
    %c14 = arith.constant 14 : index
    %c0_263 = arith.constant 0 : index
    %c0_264 = arith.constant 0 : index
    %297 = vector.load %arg17[%c14, %c0_263, %c0_264] : memref<64x128x128xbf16, #tpu.memory_space<vmem>>, vector<1x128x128xbf16>
    %298 = vector.shape_cast %297 : vector<1x128x128xbf16> to vector<128x128xbf16>
    %cst_265 = arith.constant dense<0.000000e+00> : vector<1x128xf32>
    %299 = tpu.matmul %296, %298, %cst_265 {dimension_numbers = #tpu.dot_dimension_numbers<[1], [0], [0], [1], [0, 0, 1, 1], [], []>} : vector<1x128xbf16>, vector<128x128xbf16>, vector<1x128xf32> -> vector<1x128xf32>
    %300 = arith.addf %295, %299 : vector<1x128xf32>
    %301 = vector.extract_strided_slice %224 {offsets = [15, 0], sizes = [1, 128], strides = [1, 1]} : vector<64x128xbf16> to vector<1x128xbf16>
    %c15 = arith.constant 15 : index
    %c0_266 = arith.constant 0 : index
    %c0_267 = arith.constant 0 : index
    %302 = vector.load %arg17[%c15, %c0_266, %c0_267] : memref<64x128x128xbf16, #tpu.memory_space<vmem>>, vector<1x128x128xbf16>
    %303 = vector.shape_cast %302 : vector<1x128x128xbf16> to vector<128x128xbf16>
    %cst_268 = arith.constant dense<0.000000e+00> : vector<1x128xf32>
    %304 = tpu.matmul %301, %303, %cst_268 {dimension_numbers = #tpu.dot_dimension_numbers<[1], [0], [0], [1], [0, 0, 1, 1], [], []>} : vector<1x128xbf16>, vector<128x128xbf16>, vector<1x128xf32> -> vector<1x128xf32>
    %305 = arith.addf %300, %304 : vector<1x128xf32>
    %306 = vector.extract_strided_slice %224 {offsets = [16, 0], sizes = [1, 128], strides = [1, 1]} : vector<64x128xbf16> to vector<1x128xbf16>
    %c16 = arith.constant 16 : index
    %c0_269 = arith.constant 0 : index
    %c0_270 = arith.constant 0 : index
    %307 = vector.load %arg17[%c16, %c0_269, %c0_270] : memref<64x128x128xbf16, #tpu.memory_space<vmem>>, vector<1x128x128xbf16>
    %308 = vector.shape_cast %307 : vector<1x128x128xbf16> to vector<128x128xbf16>
    %cst_271 = arith.constant dense<0.000000e+00> : vector<1x128xf32>
    %309 = tpu.matmul %306, %308, %cst_271 {dimension_numbers = #tpu.dot_dimension_numbers<[1], [0], [0], [1], [0, 0, 1, 1], [], []>} : vector<1x128xbf16>, vector<128x128xbf16>, vector<1x128xf32> -> vector<1x128xf32>
    %310 = arith.addf %305, %309 : vector<1x128xf32>
    %311 = vector.extract_strided_slice %224 {offsets = [17, 0], sizes = [1, 128], strides = [1, 1]} : vector<64x128xbf16> to vector<1x128xbf16>
    %c17 = arith.constant 17 : index
    %c0_272 = arith.constant 0 : index
    %c0_273 = arith.constant 0 : index
    %312 = vector.load %arg17[%c17, %c0_272, %c0_273] : memref<64x128x128xbf16, #tpu.memory_space<vmem>>, vector<1x128x128xbf16>
    %313 = vector.shape_cast %312 : vector<1x128x128xbf16> to vector<128x128xbf16>
    %cst_274 = arith.constant dense<0.000000e+00> : vector<1x128xf32>
    %314 = tpu.matmul %311, %313, %cst_274 {dimension_numbers = #tpu.dot_dimension_numbers<[1], [0], [0], [1], [0, 0, 1, 1], [], []>} : vector<1x128xbf16>, vector<128x128xbf16>, vector<1x128xf32> -> vector<1x128xf32>
    %315 = arith.addf %310, %314 : vector<1x128xf32>
    %316 = vector.extract_strided_slice %224 {offsets = [18, 0], sizes = [1, 128], strides = [1, 1]} : vector<64x128xbf16> to vector<1x128xbf16>
    %c18 = arith.constant 18 : index
    %c0_275 = arith.constant 0 : index
    %c0_276 = arith.constant 0 : index
    %317 = vector.load %arg17[%c18, %c0_275, %c0_276] : memref<64x128x128xbf16, #tpu.memory_space<vmem>>, vector<1x128x128xbf16>
    %318 = vector.shape_cast %317 : vector<1x128x128xbf16> to vector<128x128xbf16>
    %cst_277 = arith.constant dense<0.000000e+00> : vector<1x128xf32>
    %319 = tpu.matmul %316, %318, %cst_277 {dimension_numbers = #tpu.dot_dimension_numbers<[1], [0], [0], [1], [0, 0, 1, 1], [], []>} : vector<1x128xbf16>, vector<128x128xbf16>, vector<1x128xf32> -> vector<1x128xf32>
    %320 = arith.addf %315, %319 : vector<1x128xf32>
    %321 = vector.extract_strided_slice %224 {offsets = [19, 0], sizes = [1, 128], strides = [1, 1]} : vector<64x128xbf16> to vector<1x128xbf16>
    %c19 = arith.constant 19 : index
    %c0_278 = arith.constant 0 : index
    %c0_279 = arith.constant 0 : index
    %322 = vector.load %arg17[%c19, %c0_278, %c0_279] : memref<64x128x128xbf16, #tpu.memory_space<vmem>>, vector<1x128x128xbf16>
    %323 = vector.shape_cast %322 : vector<1x128x128xbf16> to vector<128x128xbf16>
    %cst_280 = arith.constant dense<0.000000e+00> : vector<1x128xf32>
    %324 = tpu.matmul %321, %323, %cst_280 {dimension_numbers = #tpu.dot_dimension_numbers<[1], [0], [0], [1], [0, 0, 1, 1], [], []>} : vector<1x128xbf16>, vector<128x128xbf16>, vector<1x128xf32> -> vector<1x128xf32>
    %325 = arith.addf %320, %324 : vector<1x128xf32>
    %326 = vector.extract_strided_slice %224 {offsets = [20, 0], sizes = [1, 128], strides = [1, 1]} : vector<64x128xbf16> to vector<1x128xbf16>
    %c20 = arith.constant 20 : index
    %c0_281 = arith.constant 0 : index
    %c0_282 = arith.constant 0 : index
    %327 = vector.load %arg17[%c20, %c0_281, %c0_282] : memref<64x128x128xbf16, #tpu.memory_space<vmem>>, vector<1x128x128xbf16>
    %328 = vector.shape_cast %327 : vector<1x128x128xbf16> to vector<128x128xbf16>
    %cst_283 = arith.constant dense<0.000000e+00> : vector<1x128xf32>
    %329 = tpu.matmul %326, %328, %cst_283 {dimension_numbers = #tpu.dot_dimension_numbers<[1], [0], [0], [1], [0, 0, 1, 1], [], []>} : vector<1x128xbf16>, vector<128x128xbf16>, vector<1x128xf32> -> vector<1x128xf32>
    %330 = arith.addf %325, %329 : vector<1x128xf32>
    %331 = vector.extract_strided_slice %224 {offsets = [21, 0], sizes = [1, 128], strides = [1, 1]} : vector<64x128xbf16> to vector<1x128xbf16>
    %c21 = arith.constant 21 : index
    %c0_284 = arith.constant 0 : index
    %c0_285 = arith.constant 0 : index
    %332 = vector.load %arg17[%c21, %c0_284, %c0_285] : memref<64x128x128xbf16, #tpu.memory_space<vmem>>, vector<1x128x128xbf16>
    %333 = vector.shape_cast %332 : vector<1x128x128xbf16> to vector<128x128xbf16>
    %cst_286 = arith.constant dense<0.000000e+00> : vector<1x128xf32>
    %334 = tpu.matmul %331, %333, %cst_286 {dimension_numbers = #tpu.dot_dimension_numbers<[1], [0], [0], [1], [0, 0, 1, 1], [], []>} : vector<1x128xbf16>, vector<128x128xbf16>, vector<1x128xf32> -> vector<1x128xf32>
    %335 = arith.addf %330, %334 : vector<1x128xf32>
    %336 = vector.extract_strided_slice %224 {offsets = [22, 0], sizes = [1, 128], strides = [1, 1]} : vector<64x128xbf16> to vector<1x128xbf16>
    %c22 = arith.constant 22 : index
    %c0_287 = arith.constant 0 : index
    %c0_288 = arith.constant 0 : index
    %337 = vector.load %arg17[%c22, %c0_287, %c0_288] : memref<64x128x128xbf16, #tpu.memory_space<vmem>>, vector<1x128x128xbf16>
    %338 = vector.shape_cast %337 : vector<1x128x128xbf16> to vector<128x128xbf16>
    %cst_289 = arith.constant dense<0.000000e+00> : vector<1x128xf32>
    %339 = tpu.matmul %336, %338, %cst_289 {dimension_numbers = #tpu.dot_dimension_numbers<[1], [0], [0], [1], [0, 0, 1, 1], [], []>} : vector<1x128xbf16>, vector<128x128xbf16>, vector<1x128xf32> -> vector<1x128xf32>
    %340 = arith.addf %335, %339 : vector<1x128xf32>
    %341 = vector.extract_strided_slice %224 {offsets = [23, 0], sizes = [1, 128], strides = [1, 1]} : vector<64x128xbf16> to vector<1x128xbf16>
    %c23 = arith.constant 23 : index
    %c0_290 = arith.constant 0 : index
    %c0_291 = arith.constant 0 : index
    %342 = vector.load %arg17[%c23, %c0_290, %c0_291] : memref<64x128x128xbf16, #tpu.memory_space<vmem>>, vector<1x128x128xbf16>
    %343 = vector.shape_cast %342 : vector<1x128x128xbf16> to vector<128x128xbf16>
    %cst_292 = arith.constant dense<0.000000e+00> : vector<1x128xf32>
    %344 = tpu.matmul %341, %343, %cst_292 {dimension_numbers = #tpu.dot_dimension_numbers<[1], [0], [0], [1], [0, 0, 1, 1], [], []>} : vector<1x128xbf16>, vector<128x128xbf16>, vector<1x128xf32> -> vector<1x128xf32>
    %345 = arith.addf %340, %344 : vector<1x128xf32>
    %346 = vector.extract_strided_slice %224 {offsets = [24, 0], sizes = [1, 128], strides = [1, 1]} : vector<64x128xbf16> to vector<1x128xbf16>
    %c24 = arith.constant 24 : index
    %c0_293 = arith.constant 0 : index
    %c0_294 = arith.constant 0 : index
    %347 = vector.load %arg17[%c24, %c0_293, %c0_294] : memref<64x128x128xbf16, #tpu.memory_space<vmem>>, vector<1x128x128xbf16>
    %348 = vector.shape_cast %347 : vector<1x128x128xbf16> to vector<128x128xbf16>
    %cst_295 = arith.constant dense<0.000000e+00> : vector<1x128xf32>
    %349 = tpu.matmul %346, %348, %cst_295 {dimension_numbers = #tpu.dot_dimension_numbers<[1], [0], [0], [1], [0, 0, 1, 1], [], []>} : vector<1x128xbf16>, vector<128x128xbf16>, vector<1x128xf32> -> vector<1x128xf32>
    %350 = arith.addf %345, %349 : vector<1x128xf32>
    %351 = vector.extract_strided_slice %224 {offsets = [25, 0], sizes = [1, 128], strides = [1, 1]} : vector<64x128xbf16> to vector<1x128xbf16>
    %c25 = arith.constant 25 : index
    %c0_296 = arith.constant 0 : index
    %c0_297 = arith.constant 0 : index
    %352 = vector.load %arg17[%c25, %c0_296, %c0_297] : memref<64x128x128xbf16, #tpu.memory_space<vmem>>, vector<1x128x128xbf16>
    %353 = vector.shape_cast %352 : vector<1x128x128xbf16> to vector<128x128xbf16>
    %cst_298 = arith.constant dense<0.000000e+00> : vector<1x128xf32>
    %354 = tpu.matmul %351, %353, %cst_298 {dimension_numbers = #tpu.dot_dimension_numbers<[1], [0], [0], [1], [0, 0, 1, 1], [], []>} : vector<1x128xbf16>, vector<128x128xbf16>, vector<1x128xf32> -> vector<1x128xf32>
    %355 = arith.addf %350, %354 : vector<1x128xf32>
    %356 = vector.extract_strided_slice %224 {offsets = [26, 0], sizes = [1, 128], strides = [1, 1]} : vector<64x128xbf16> to vector<1x128xbf16>
    %c26 = arith.constant 26 : index
    %c0_299 = arith.constant 0 : index
    %c0_300 = arith.constant 0 : index
    %357 = vector.load %arg17[%c26, %c0_299, %c0_300] : memref<64x128x128xbf16, #tpu.memory_space<vmem>>, vector<1x128x128xbf16>
    %358 = vector.shape_cast %357 : vector<1x128x128xbf16> to vector<128x128xbf16>
    %cst_301 = arith.constant dense<0.000000e+00> : vector<1x128xf32>
    %359 = tpu.matmul %356, %358, %cst_301 {dimension_numbers = #tpu.dot_dimension_numbers<[1], [0], [0], [1], [0, 0, 1, 1], [], []>} : vector<1x128xbf16>, vector<128x128xbf16>, vector<1x128xf32> -> vector<1x128xf32>
    %360 = arith.addf %355, %359 : vector<1x128xf32>
    %361 = vector.extract_strided_slice %224 {offsets = [27, 0], sizes = [1, 128], strides = [1, 1]} : vector<64x128xbf16> to vector<1x128xbf16>
    %c27 = arith.constant 27 : index
    %c0_302 = arith.constant 0 : index
    %c0_303 = arith.constant 0 : index
    %362 = vector.load %arg17[%c27, %c0_302, %c0_303] : memref<64x128x128xbf16, #tpu.memory_space<vmem>>, vector<1x128x128xbf16>
    %363 = vector.shape_cast %362 : vector<1x128x128xbf16> to vector<128x128xbf16>
    %cst_304 = arith.constant dense<0.000000e+00> : vector<1x128xf32>
    %364 = tpu.matmul %361, %363, %cst_304 {dimension_numbers = #tpu.dot_dimension_numbers<[1], [0], [0], [1], [0, 0, 1, 1], [], []>} : vector<1x128xbf16>, vector<128x128xbf16>, vector<1x128xf32> -> vector<1x128xf32>
    %365 = arith.addf %360, %364 : vector<1x128xf32>
    %366 = vector.extract_strided_slice %224 {offsets = [28, 0], sizes = [1, 128], strides = [1, 1]} : vector<64x128xbf16> to vector<1x128xbf16>
    %c28 = arith.constant 28 : index
    %c0_305 = arith.constant 0 : index
    %c0_306 = arith.constant 0 : index
    %367 = vector.load %arg17[%c28, %c0_305, %c0_306] : memref<64x128x128xbf16, #tpu.memory_space<vmem>>, vector<1x128x128xbf16>
    %368 = vector.shape_cast %367 : vector<1x128x128xbf16> to vector<128x128xbf16>
    %cst_307 = arith.constant dense<0.000000e+00> : vector<1x128xf32>
    %369 = tpu.matmul %366, %368, %cst_307 {dimension_numbers = #tpu.dot_dimension_numbers<[1], [0], [0], [1], [0, 0, 1, 1], [], []>} : vector<1x128xbf16>, vector<128x128xbf16>, vector<1x128xf32> -> vector<1x128xf32>
    %370 = arith.addf %365, %369 : vector<1x128xf32>
    %371 = vector.extract_strided_slice %224 {offsets = [29, 0], sizes = [1, 128], strides = [1, 1]} : vector<64x128xbf16> to vector<1x128xbf16>
    %c29 = arith.constant 29 : index
    %c0_308 = arith.constant 0 : index
    %c0_309 = arith.constant 0 : index
    %372 = vector.load %arg17[%c29, %c0_308, %c0_309] : memref<64x128x128xbf16, #tpu.memory_space<vmem>>, vector<1x128x128xbf16>
    %373 = vector.shape_cast %372 : vector<1x128x128xbf16> to vector<128x128xbf16>
    %cst_310 = arith.constant dense<0.000000e+00> : vector<1x128xf32>
    %374 = tpu.matmul %371, %373, %cst_310 {dimension_numbers = #tpu.dot_dimension_numbers<[1], [0], [0], [1], [0, 0, 1, 1], [], []>} : vector<1x128xbf16>, vector<128x128xbf16>, vector<1x128xf32> -> vector<1x128xf32>
    %375 = arith.addf %370, %374 : vector<1x128xf32>
    %376 = vector.extract_strided_slice %224 {offsets = [30, 0], sizes = [1, 128], strides = [1, 1]} : vector<64x128xbf16> to vector<1x128xbf16>
    %c30 = arith.constant 30 : index
    %c0_311 = arith.constant 0 : index
    %c0_312 = arith.constant 0 : index
    %377 = vector.load %arg17[%c30, %c0_311, %c0_312] : memref<64x128x128xbf16, #tpu.memory_space<vmem>>, vector<1x128x128xbf16>
    %378 = vector.shape_cast %377 : vector<1x128x128xbf16> to vector<128x128xbf16>
    %cst_313 = arith.constant dense<0.000000e+00> : vector<1x128xf32>
    %379 = tpu.matmul %376, %378, %cst_313 {dimension_numbers = #tpu.dot_dimension_numbers<[1], [0], [0], [1], [0, 0, 1, 1], [], []>} : vector<1x128xbf16>, vector<128x128xbf16>, vector<1x128xf32> -> vector<1x128xf32>
    %380 = arith.addf %375, %379 : vector<1x128xf32>
    %381 = vector.extract_strided_slice %224 {offsets = [31, 0], sizes = [1, 128], strides = [1, 1]} : vector<64x128xbf16> to vector<1x128xbf16>
    %c31 = arith.constant 31 : index
    %c0_314 = arith.constant 0 : index
    %c0_315 = arith.constant 0 : index
    %382 = vector.load %arg17[%c31, %c0_314, %c0_315] : memref<64x128x128xbf16, #tpu.memory_space<vmem>>, vector<1x128x128xbf16>
    %383 = vector.shape_cast %382 : vector<1x128x128xbf16> to vector<128x128xbf16>
    %cst_316 = arith.constant dense<0.000000e+00> : vector<1x128xf32>
    %384 = tpu.matmul %381, %383, %cst_316 {dimension_numbers = #tpu.dot_dimension_numbers<[1], [0], [0], [1], [0, 0, 1, 1], [], []>} : vector<1x128xbf16>, vector<128x128xbf16>, vector<1x128xf32> -> vector<1x128xf32>
    %385 = arith.addf %380, %384 : vector<1x128xf32>
    %386 = vector.extract_strided_slice %224 {offsets = [32, 0], sizes = [1, 128], strides = [1, 1]} : vector<64x128xbf16> to vector<1x128xbf16>
    %c32 = arith.constant 32 : index
    %c0_317 = arith.constant 0 : index
    %c0_318 = arith.constant 0 : index
    %387 = vector.load %arg17[%c32, %c0_317, %c0_318] : memref<64x128x128xbf16, #tpu.memory_space<vmem>>, vector<1x128x128xbf16>
    %388 = vector.shape_cast %387 : vector<1x128x128xbf16> to vector<128x128xbf16>
    %cst_319 = arith.constant dense<0.000000e+00> : vector<1x128xf32>
    %389 = tpu.matmul %386, %388, %cst_319 {dimension_numbers = #tpu.dot_dimension_numbers<[1], [0], [0], [1], [0, 0, 1, 1], [], []>} : vector<1x128xbf16>, vector<128x128xbf16>, vector<1x128xf32> -> vector<1x128xf32>
    %390 = arith.addf %385, %389 : vector<1x128xf32>
    %391 = vector.extract_strided_slice %224 {offsets = [33, 0], sizes = [1, 128], strides = [1, 1]} : vector<64x128xbf16> to vector<1x128xbf16>
    %c33 = arith.constant 33 : index
    %c0_320 = arith.constant 0 : index
    %c0_321 = arith.constant 0 : index
    %392 = vector.load %arg17[%c33, %c0_320, %c0_321] : memref<64x128x128xbf16, #tpu.memory_space<vmem>>, vector<1x128x128xbf16>
    %393 = vector.shape_cast %392 : vector<1x128x128xbf16> to vector<128x128xbf16>
    %cst_322 = arith.constant dense<0.000000e+00> : vector<1x128xf32>
    %394 = tpu.matmul %391, %393, %cst_322 {dimension_numbers = #tpu.dot_dimension_numbers<[1], [0], [0], [1], [0, 0, 1, 1], [], []>} : vector<1x128xbf16>, vector<128x128xbf16>, vector<1x128xf32> -> vector<1x128xf32>
    %395 = arith.addf %390, %394 : vector<1x128xf32>
    %396 = vector.extract_strided_slice %224 {offsets = [34, 0], sizes = [1, 128], strides = [1, 1]} : vector<64x128xbf16> to vector<1x128xbf16>
    %c34 = arith.constant 34 : index
    %c0_323 = arith.constant 0 : index
    %c0_324 = arith.constant 0 : index
    %397 = vector.load %arg17[%c34, %c0_323, %c0_324] : memref<64x128x128xbf16, #tpu.memory_space<vmem>>, vector<1x128x128xbf16>
    %398 = vector.shape_cast %397 : vector<1x128x128xbf16> to vector<128x128xbf16>
    %cst_325 = arith.constant dense<0.000000e+00> : vector<1x128xf32>
    %399 = tpu.matmul %396, %398, %cst_325 {dimension_numbers = #tpu.dot_dimension_numbers<[1], [0], [0], [1], [0, 0, 1, 1], [], []>} : vector<1x128xbf16>, vector<128x128xbf16>, vector<1x128xf32> -> vector<1x128xf32>
    %400 = arith.addf %395, %399 : vector<1x128xf32>
    %401 = vector.extract_strided_slice %224 {offsets = [35, 0], sizes = [1, 128], strides = [1, 1]} : vector<64x128xbf16> to vector<1x128xbf16>
    %c35 = arith.constant 35 : index
    %c0_326 = arith.constant 0 : index
    %c0_327 = arith.constant 0 : index
    %402 = vector.load %arg17[%c35, %c0_326, %c0_327] : memref<64x128x128xbf16, #tpu.memory_space<vmem>>, vector<1x128x128xbf16>
    %403 = vector.shape_cast %402 : vector<1x128x128xbf16> to vector<128x128xbf16>
    %cst_328 = arith.constant dense<0.000000e+00> : vector<1x128xf32>
    %404 = tpu.matmul %401, %403, %cst_328 {dimension_numbers = #tpu.dot_dimension_numbers<[1], [0], [0], [1], [0, 0, 1, 1], [], []>} : vector<1x128xbf16>, vector<128x128xbf16>, vector<1x128xf32> -> vector<1x128xf32>
    %405 = arith.addf %400, %404 : vector<1x128xf32>
    %406 = vector.extract_strided_slice %224 {offsets = [36, 0], sizes = [1, 128], strides = [1, 1]} : vector<64x128xbf16> to vector<1x128xbf16>
    %c36 = arith.constant 36 : index
    %c0_329 = arith.constant 0 : index
    %c0_330 = arith.constant 0 : index
    %407 = vector.load %arg17[%c36, %c0_329, %c0_330] : memref<64x128x128xbf16, #tpu.memory_space<vmem>>, vector<1x128x128xbf16>
    %408 = vector.shape_cast %407 : vector<1x128x128xbf16> to vector<128x128xbf16>
    %cst_331 = arith.constant dense<0.000000e+00> : vector<1x128xf32>
    %409 = tpu.matmul %406, %408, %cst_331 {dimension_numbers = #tpu.dot_dimension_numbers<[1], [0], [0], [1], [0, 0, 1, 1], [], []>} : vector<1x128xbf16>, vector<128x128xbf16>, vector<1x128xf32> -> vector<1x128xf32>
    %410 = arith.addf %405, %409 : vector<1x128xf32>
    %411 = vector.extract_strided_slice %224 {offsets = [37, 0], sizes = [1, 128], strides = [1, 1]} : vector<64x128xbf16> to vector<1x128xbf16>
    %c37 = arith.constant 37 : index
    %c0_332 = arith.constant 0 : index
    %c0_333 = arith.constant 0 : index
    %412 = vector.load %arg17[%c37, %c0_332, %c0_333] : memref<64x128x128xbf16, #tpu.memory_space<vmem>>, vector<1x128x128xbf16>
    %413 = vector.shape_cast %412 : vector<1x128x128xbf16> to vector<128x128xbf16>
    %cst_334 = arith.constant dense<0.000000e+00> : vector<1x128xf32>
    %414 = tpu.matmul %411, %413, %cst_334 {dimension_numbers = #tpu.dot_dimension_numbers<[1], [0], [0], [1], [0, 0, 1, 1], [], []>} : vector<1x128xbf16>, vector<128x128xbf16>, vector<1x128xf32> -> vector<1x128xf32>
    %415 = arith.addf %410, %414 : vector<1x128xf32>
    %416 = vector.extract_strided_slice %224 {offsets = [38, 0], sizes = [1, 128], strides = [1, 1]} : vector<64x128xbf16> to vector<1x128xbf16>
    %c38 = arith.constant 38 : index
    %c0_335 = arith.constant 0 : index
    %c0_336 = arith.constant 0 : index
    %417 = vector.load %arg17[%c38, %c0_335, %c0_336] : memref<64x128x128xbf16, #tpu.memory_space<vmem>>, vector<1x128x128xbf16>
    %418 = vector.shape_cast %417 : vector<1x128x128xbf16> to vector<128x128xbf16>
    %cst_337 = arith.constant dense<0.000000e+00> : vector<1x128xf32>
    %419 = tpu.matmul %416, %418, %cst_337 {dimension_numbers = #tpu.dot_dimension_numbers<[1], [0], [0], [1], [0, 0, 1, 1], [], []>} : vector<1x128xbf16>, vector<128x128xbf16>, vector<1x128xf32> -> vector<1x128xf32>
    %420 = arith.addf %415, %419 : vector<1x128xf32>
    %421 = vector.extract_strided_slice %224 {offsets = [39, 0], sizes = [1, 128], strides = [1, 1]} : vector<64x128xbf16> to vector<1x128xbf16>
    %c39 = arith.constant 39 : index
    %c0_338 = arith.constant 0 : index
    %c0_339 = arith.constant 0 : index
    %422 = vector.load %arg17[%c39, %c0_338, %c0_339] : memref<64x128x128xbf16, #tpu.memory_space<vmem>>, vector<1x128x128xbf16>
    %423 = vector.shape_cast %422 : vector<1x128x128xbf16> to vector<128x128xbf16>
    %cst_340 = arith.constant dense<0.000000e+00> : vector<1x128xf32>
    %424 = tpu.matmul %421, %423, %cst_340 {dimension_numbers = #tpu.dot_dimension_numbers<[1], [0], [0], [1], [0, 0, 1, 1], [], []>} : vector<1x128xbf16>, vector<128x128xbf16>, vector<1x128xf32> -> vector<1x128xf32>
    %425 = arith.addf %420, %424 : vector<1x128xf32>
    %426 = vector.extract_strided_slice %224 {offsets = [40, 0], sizes = [1, 128], strides = [1, 1]} : vector<64x128xbf16> to vector<1x128xbf16>
    %c40 = arith.constant 40 : index
    %c0_341 = arith.constant 0 : index
    %c0_342 = arith.constant 0 : index
    %427 = vector.load %arg17[%c40, %c0_341, %c0_342] : memref<64x128x128xbf16, #tpu.memory_space<vmem>>, vector<1x128x128xbf16>
    %428 = vector.shape_cast %427 : vector<1x128x128xbf16> to vector<128x128xbf16>
    %cst_343 = arith.constant dense<0.000000e+00> : vector<1x128xf32>
    %429 = tpu.matmul %426, %428, %cst_343 {dimension_numbers = #tpu.dot_dimension_numbers<[1], [0], [0], [1], [0, 0, 1, 1], [], []>} : vector<1x128xbf16>, vector<128x128xbf16>, vector<1x128xf32> -> vector<1x128xf32>
    %430 = arith.addf %425, %429 : vector<1x128xf32>
    %431 = vector.extract_strided_slice %224 {offsets = [41, 0], sizes = [1, 128], strides = [1, 1]} : vector<64x128xbf16> to vector<1x128xbf16>
    %c41 = arith.constant 41 : index
    %c0_344 = arith.constant 0 : index
    %c0_345 = arith.constant 0 : index
    %432 = vector.load %arg17[%c41, %c0_344, %c0_345] : memref<64x128x128xbf16, #tpu.memory_space<vmem>>, vector<1x128x128xbf16>
    %433 = vector.shape_cast %432 : vector<1x128x128xbf16> to vector<128x128xbf16>
    %cst_346 = arith.constant dense<0.000000e+00> : vector<1x128xf32>
    %434 = tpu.matmul %431, %433, %cst_346 {dimension_numbers = #tpu.dot_dimension_numbers<[1], [0], [0], [1], [0, 0, 1, 1], [], []>} : vector<1x128xbf16>, vector<128x128xbf16>, vector<1x128xf32> -> vector<1x128xf32>
    %435 = arith.addf %430, %434 : vector<1x128xf32>
    %436 = vector.extract_strided_slice %224 {offsets = [42, 0], sizes = [1, 128], strides = [1, 1]} : vector<64x128xbf16> to vector<1x128xbf16>
    %c42 = arith.constant 42 : index
    %c0_347 = arith.constant 0 : index
    %c0_348 = arith.constant 0 : index
    %437 = vector.load %arg17[%c42, %c0_347, %c0_348] : memref<64x128x128xbf16, #tpu.memory_space<vmem>>, vector<1x128x128xbf16>
    %438 = vector.shape_cast %437 : vector<1x128x128xbf16> to vector<128x128xbf16>
    %cst_349 = arith.constant dense<0.000000e+00> : vector<1x128xf32>
    %439 = tpu.matmul %436, %438, %cst_349 {dimension_numbers = #tpu.dot_dimension_numbers<[1], [0], [0], [1], [0, 0, 1, 1], [], []>} : vector<1x128xbf16>, vector<128x128xbf16>, vector<1x128xf32> -> vector<1x128xf32>
    %440 = arith.addf %435, %439 : vector<1x128xf32>
    %441 = vector.extract_strided_slice %224 {offsets = [43, 0], sizes = [1, 128], strides = [1, 1]} : vector<64x128xbf16> to vector<1x128xbf16>
    %c43 = arith.constant 43 : index
    %c0_350 = arith.constant 0 : index
    %c0_351 = arith.constant 0 : index
    %442 = vector.load %arg17[%c43, %c0_350, %c0_351] : memref<64x128x128xbf16, #tpu.memory_space<vmem>>, vector<1x128x128xbf16>
    %443 = vector.shape_cast %442 : vector<1x128x128xbf16> to vector<128x128xbf16>
    %cst_352 = arith.constant dense<0.000000e+00> : vector<1x128xf32>
    %444 = tpu.matmul %441, %443, %cst_352 {dimension_numbers = #tpu.dot_dimension_numbers<[1], [0], [0], [1], [0, 0, 1, 1], [], []>} : vector<1x128xbf16>, vector<128x128xbf16>, vector<1x128xf32> -> vector<1x128xf32>
    %445 = arith.addf %440, %444 : vector<1x128xf32>
    %446 = vector.extract_strided_slice %224 {offsets = [44, 0], sizes = [1, 128], strides = [1, 1]} : vector<64x128xbf16> to vector<1x128xbf16>
    %c44 = arith.constant 44 : index
    %c0_353 = arith.constant 0 : index
    %c0_354 = arith.constant 0 : index
    %447 = vector.load %arg17[%c44, %c0_353, %c0_354] : memref<64x128x128xbf16, #tpu.memory_space<vmem>>, vector<1x128x128xbf16>
    %448 = vector.shape_cast %447 : vector<1x128x128xbf16> to vector<128x128xbf16>
    %cst_355 = arith.constant dense<0.000000e+00> : vector<1x128xf32>
    %449 = tpu.matmul %446, %448, %cst_355 {dimension_numbers = #tpu.dot_dimension_numbers<[1], [0], [0], [1], [0, 0, 1, 1], [], []>} : vector<1x128xbf16>, vector<128x128xbf16>, vector<1x128xf32> -> vector<1x128xf32>
    %450 = arith.addf %445, %449 : vector<1x128xf32>
    %451 = vector.extract_strided_slice %224 {offsets = [45, 0], sizes = [1, 128], strides = [1, 1]} : vector<64x128xbf16> to vector<1x128xbf16>
    %c45 = arith.constant 45 : index
    %c0_356 = arith.constant 0 : index
    %c0_357 = arith.constant 0 : index
    %452 = vector.load %arg17[%c45, %c0_356, %c0_357] : memref<64x128x128xbf16, #tpu.memory_space<vmem>>, vector<1x128x128xbf16>
    %453 = vector.shape_cast %452 : vector<1x128x128xbf16> to vector<128x128xbf16>
    %cst_358 = arith.constant dense<0.000000e+00> : vector<1x128xf32>
    %454 = tpu.matmul %451, %453, %cst_358 {dimension_numbers = #tpu.dot_dimension_numbers<[1], [0], [0], [1], [0, 0, 1, 1], [], []>} : vector<1x128xbf16>, vector<128x128xbf16>, vector<1x128xf32> -> vector<1x128xf32>
    %455 = arith.addf %450, %454 : vector<1x128xf32>
    %456 = vector.extract_strided_slice %224 {offsets = [46, 0], sizes = [1, 128], strides = [1, 1]} : vector<64x128xbf16> to vector<1x128xbf16>
    %c46 = arith.constant 46 : index
    %c0_359 = arith.constant 0 : index
    %c0_360 = arith.constant 0 : index
    %457 = vector.load %arg17[%c46, %c0_359, %c0_360] : memref<64x128x128xbf16, #tpu.memory_space<vmem>>, vector<1x128x128xbf16>
    %458 = vector.shape_cast %457 : vector<1x128x128xbf16> to vector<128x128xbf16>
    %cst_361 = arith.constant dense<0.000000e+00> : vector<1x128xf32>
    %459 = tpu.matmul %456, %458, %cst_361 {dimension_numbers = #tpu.dot_dimension_numbers<[1], [0], [0], [1], [0, 0, 1, 1], [], []>} : vector<1x128xbf16>, vector<128x128xbf16>, vector<1x128xf32> -> vector<1x128xf32>
    %460 = arith.addf %455, %459 : vector<1x128xf32>
    %461 = vector.extract_strided_slice %224 {offsets = [47, 0], sizes = [1, 128], strides = [1, 1]} : vector<64x128xbf16> to vector<1x128xbf16>
    %c47 = arith.constant 47 : index
    %c0_362 = arith.constant 0 : index
    %c0_363 = arith.constant 0 : index
    %462 = vector.load %arg17[%c47, %c0_362, %c0_363] : memref<64x128x128xbf16, #tpu.memory_space<vmem>>, vector<1x128x128xbf16>
    %463 = vector.shape_cast %462 : vector<1x128x128xbf16> to vector<128x128xbf16>
    %cst_364 = arith.constant dense<0.000000e+00> : vector<1x128xf32>
    %464 = tpu.matmul %461, %463, %cst_364 {dimension_numbers = #tpu.dot_dimension_numbers<[1], [0], [0], [1], [0, 0, 1, 1], [], []>} : vector<1x128xbf16>, vector<128x128xbf16>, vector<1x128xf32> -> vector<1x128xf32>
    %465 = arith.addf %460, %464 : vector<1x128xf32>
    %466 = vector.extract_strided_slice %224 {offsets = [48, 0], sizes = [1, 128], strides = [1, 1]} : vector<64x128xbf16> to vector<1x128xbf16>
    %c48 = arith.constant 48 : index
    %c0_365 = arith.constant 0 : index
    %c0_366 = arith.constant 0 : index
    %467 = vector.load %arg17[%c48, %c0_365, %c0_366] : memref<64x128x128xbf16, #tpu.memory_space<vmem>>, vector<1x128x128xbf16>
    %468 = vector.shape_cast %467 : vector<1x128x128xbf16> to vector<128x128xbf16>
    %cst_367 = arith.constant dense<0.000000e+00> : vector<1x128xf32>
    %469 = tpu.matmul %466, %468, %cst_367 {dimension_numbers = #tpu.dot_dimension_numbers<[1], [0], [0], [1], [0, 0, 1, 1], [], []>} : vector<1x128xbf16>, vector<128x128xbf16>, vector<1x128xf32> -> vector<1x128xf32>
    %470 = arith.addf %465, %469 : vector<1x128xf32>
    %471 = vector.extract_strided_slice %224 {offsets = [49, 0], sizes = [1, 128], strides = [1, 1]} : vector<64x128xbf16> to vector<1x128xbf16>
    %c49 = arith.constant 49 : index
    %c0_368 = arith.constant 0 : index
    %c0_369 = arith.constant 0 : index
    %472 = vector.load %arg17[%c49, %c0_368, %c0_369] : memref<64x128x128xbf16, #tpu.memory_space<vmem>>, vector<1x128x128xbf16>
    %473 = vector.shape_cast %472 : vector<1x128x128xbf16> to vector<128x128xbf16>
    %cst_370 = arith.constant dense<0.000000e+00> : vector<1x128xf32>
    %474 = tpu.matmul %471, %473, %cst_370 {dimension_numbers = #tpu.dot_dimension_numbers<[1], [0], [0], [1], [0, 0, 1, 1], [], []>} : vector<1x128xbf16>, vector<128x128xbf16>, vector<1x128xf32> -> vector<1x128xf32>
    %475 = arith.addf %470, %474 : vector<1x128xf32>
    %476 = vector.extract_strided_slice %224 {offsets = [50, 0], sizes = [1, 128], strides = [1, 1]} : vector<64x128xbf16> to vector<1x128xbf16>
    %c50 = arith.constant 50 : index
    %c0_371 = arith.constant 0 : index
    %c0_372 = arith.constant 0 : index
    %477 = vector.load %arg17[%c50, %c0_371, %c0_372] : memref<64x128x128xbf16, #tpu.memory_space<vmem>>, vector<1x128x128xbf16>
    %478 = vector.shape_cast %477 : vector<1x128x128xbf16> to vector<128x128xbf16>
    %cst_373 = arith.constant dense<0.000000e+00> : vector<1x128xf32>
    %479 = tpu.matmul %476, %478, %cst_373 {dimension_numbers = #tpu.dot_dimension_numbers<[1], [0], [0], [1], [0, 0, 1, 1], [], []>} : vector<1x128xbf16>, vector<128x128xbf16>, vector<1x128xf32> -> vector<1x128xf32>
    %480 = arith.addf %475, %479 : vector<1x128xf32>
    %481 = vector.extract_strided_slice %224 {offsets = [51, 0], sizes = [1, 128], strides = [1, 1]} : vector<64x128xbf16> to vector<1x128xbf16>
    %c51 = arith.constant 51 : index
    %c0_374 = arith.constant 0 : index
    %c0_375 = arith.constant 0 : index
    %482 = vector.load %arg17[%c51, %c0_374, %c0_375] : memref<64x128x128xbf16, #tpu.memory_space<vmem>>, vector<1x128x128xbf16>
    %483 = vector.shape_cast %482 : vector<1x128x128xbf16> to vector<128x128xbf16>
    %cst_376 = arith.constant dense<0.000000e+00> : vector<1x128xf32>
    %484 = tpu.matmul %481, %483, %cst_376 {dimension_numbers = #tpu.dot_dimension_numbers<[1], [0], [0], [1], [0, 0, 1, 1], [], []>} : vector<1x128xbf16>, vector<128x128xbf16>, vector<1x128xf32> -> vector<1x128xf32>
    %485 = arith.addf %480, %484 : vector<1x128xf32>
    %486 = vector.extract_strided_slice %224 {offsets = [52, 0], sizes = [1, 128], strides = [1, 1]} : vector<64x128xbf16> to vector<1x128xbf16>
    %c52 = arith.constant 52 : index
    %c0_377 = arith.constant 0 : index
    %c0_378 = arith.constant 0 : index
    %487 = vector.load %arg17[%c52, %c0_377, %c0_378] : memref<64x128x128xbf16, #tpu.memory_space<vmem>>, vector<1x128x128xbf16>
    %488 = vector.shape_cast %487 : vector<1x128x128xbf16> to vector<128x128xbf16>
    %cst_379 = arith.constant dense<0.000000e+00> : vector<1x128xf32>
    %489 = tpu.matmul %486, %488, %cst_379 {dimension_numbers = #tpu.dot_dimension_numbers<[1], [0], [0], [1], [0, 0, 1, 1], [], []>} : vector<1x128xbf16>, vector<128x128xbf16>, vector<1x128xf32> -> vector<1x128xf32>
    %490 = arith.addf %485, %489 : vector<1x128xf32>
    %491 = vector.extract_strided_slice %224 {offsets = [53, 0], sizes = [1, 128], strides = [1, 1]} : vector<64x128xbf16> to vector<1x128xbf16>
    %c53 = arith.constant 53 : index
    %c0_380 = arith.constant 0 : index
    %c0_381 = arith.constant 0 : index
    %492 = vector.load %arg17[%c53, %c0_380, %c0_381] : memref<64x128x128xbf16, #tpu.memory_space<vmem>>, vector<1x128x128xbf16>
    %493 = vector.shape_cast %492 : vector<1x128x128xbf16> to vector<128x128xbf16>
    %cst_382 = arith.constant dense<0.000000e+00> : vector<1x128xf32>
    %494 = tpu.matmul %491, %493, %cst_382 {dimension_numbers = #tpu.dot_dimension_numbers<[1], [0], [0], [1], [0, 0, 1, 1], [], []>} : vector<1x128xbf16>, vector<128x128xbf16>, vector<1x128xf32> -> vector<1x128xf32>
    %495 = arith.addf %490, %494 : vector<1x128xf32>
    %496 = vector.extract_strided_slice %224 {offsets = [54, 0], sizes = [1, 128], strides = [1, 1]} : vector<64x128xbf16> to vector<1x128xbf16>
    %c54 = arith.constant 54 : index
    %c0_383 = arith.constant 0 : index
    %c0_384 = arith.constant 0 : index
    %497 = vector.load %arg17[%c54, %c0_383, %c0_384] : memref<64x128x128xbf16, #tpu.memory_space<vmem>>, vector<1x128x128xbf16>
    %498 = vector.shape_cast %497 : vector<1x128x128xbf16> to vector<128x128xbf16>
    %cst_385 = arith.constant dense<0.000000e+00> : vector<1x128xf32>
    %499 = tpu.matmul %496, %498, %cst_385 {dimension_numbers = #tpu.dot_dimension_numbers<[1], [0], [0], [1], [0, 0, 1, 1], [], []>} : vector<1x128xbf16>, vector<128x128xbf16>, vector<1x128xf32> -> vector<1x128xf32>
    %500 = arith.addf %495, %499 : vector<1x128xf32>
    %501 = vector.extract_strided_slice %224 {offsets = [55, 0], sizes = [1, 128], strides = [1, 1]} : vector<64x128xbf16> to vector<1x128xbf16>
    %c55 = arith.constant 55 : index
    %c0_386 = arith.constant 0 : index
    %c0_387 = arith.constant 0 : index
    %502 = vector.load %arg17[%c55, %c0_386, %c0_387] : memref<64x128x128xbf16, #tpu.memory_space<vmem>>, vector<1x128x128xbf16>
    %503 = vector.shape_cast %502 : vector<1x128x128xbf16> to vector<128x128xbf16>
    %cst_388 = arith.constant dense<0.000000e+00> : vector<1x128xf32>
    %504 = tpu.matmul %501, %503, %cst_388 {dimension_numbers = #tpu.dot_dimension_numbers<[1], [0], [0], [1], [0, 0, 1, 1], [], []>} : vector<1x128xbf16>, vector<128x128xbf16>, vector<1x128xf32> -> vector<1x128xf32>
    %505 = arith.addf %500, %504 : vector<1x128xf32>
    %506 = vector.extract_strided_slice %224 {offsets = [56, 0], sizes = [1, 128], strides = [1, 1]} : vector<64x128xbf16> to vector<1x128xbf16>
    %c56 = arith.constant 56 : index
    %c0_389 = arith.constant 0 : index
    %c0_390 = arith.constant 0 : index
    %507 = vector.load %arg17[%c56, %c0_389, %c0_390] : memref<64x128x128xbf16, #tpu.memory_space<vmem>>, vector<1x128x128xbf16>
    %508 = vector.shape_cast %507 : vector<1x128x128xbf16> to vector<128x128xbf16>
    %cst_391 = arith.constant dense<0.000000e+00> : vector<1x128xf32>
    %509 = tpu.matmul %506, %508, %cst_391 {dimension_numbers = #tpu.dot_dimension_numbers<[1], [0], [0], [1], [0, 0, 1, 1], [], []>} : vector<1x128xbf16>, vector<128x128xbf16>, vector<1x128xf32> -> vector<1x128xf32>
    %510 = arith.addf %505, %509 : vector<1x128xf32>
    %511 = vector.extract_strided_slice %224 {offsets = [57, 0], sizes = [1, 128], strides = [1, 1]} : vector<64x128xbf16> to vector<1x128xbf16>
    %c57 = arith.constant 57 : index
    %c0_392 = arith.constant 0 : index
    %c0_393 = arith.constant 0 : index
    %512 = vector.load %arg17[%c57, %c0_392, %c0_393] : memref<64x128x128xbf16, #tpu.memory_space<vmem>>, vector<1x128x128xbf16>
    %513 = vector.shape_cast %512 : vector<1x128x128xbf16> to vector<128x128xbf16>
    %cst_394 = arith.constant dense<0.000000e+00> : vector<1x128xf32>
    %514 = tpu.matmul %511, %513, %cst_394 {dimension_numbers = #tpu.dot_dimension_numbers<[1], [0], [0], [1], [0, 0, 1, 1], [], []>} : vector<1x128xbf16>, vector<128x128xbf16>, vector<1x128xf32> -> vector<1x128xf32>
    %515 = arith.addf %510, %514 : vector<1x128xf32>
    %516 = vector.extract_strided_slice %224 {offsets = [58, 0], sizes = [1, 128], strides = [1, 1]} : vector<64x128xbf16> to vector<1x128xbf16>
    %c58 = arith.constant 58 : index
    %c0_395 = arith.constant 0 : index
    %c0_396 = arith.constant 0 : index
    %517 = vector.load %arg17[%c58, %c0_395, %c0_396] : memref<64x128x128xbf16, #tpu.memory_space<vmem>>, vector<1x128x128xbf16>
    %518 = vector.shape_cast %517 : vector<1x128x128xbf16> to vector<128x128xbf16>
    %cst_397 = arith.constant dense<0.000000e+00> : vector<1x128xf32>
    %519 = tpu.matmul %516, %518, %cst_397 {dimension_numbers = #tpu.dot_dimension_numbers<[1], [0], [0], [1], [0, 0, 1, 1], [], []>} : vector<1x128xbf16>, vector<128x128xbf16>, vector<1x128xf32> -> vector<1x128xf32>
    %520 = arith.addf %515, %519 : vector<1x128xf32>
    %521 = vector.extract_strided_slice %224 {offsets = [59, 0], sizes = [1, 128], strides = [1, 1]} : vector<64x128xbf16> to vector<1x128xbf16>
    %c59 = arith.constant 59 : index
    %c0_398 = arith.constant 0 : index
    %c0_399 = arith.constant 0 : index
    %522 = vector.load %arg17[%c59, %c0_398, %c0_399] : memref<64x128x128xbf16, #tpu.memory_space<vmem>>, vector<1x128x128xbf16>
    %523 = vector.shape_cast %522 : vector<1x128x128xbf16> to vector<128x128xbf16>
    %cst_400 = arith.constant dense<0.000000e+00> : vector<1x128xf32>
    %524 = tpu.matmul %521, %523, %cst_400 {dimension_numbers = #tpu.dot_dimension_numbers<[1], [0], [0], [1], [0, 0, 1, 1], [], []>} : vector<1x128xbf16>, vector<128x128xbf16>, vector<1x128xf32> -> vector<1x128xf32>
    %525 = arith.addf %520, %524 : vector<1x128xf32>
    %526 = vector.extract_strided_slice %224 {offsets = [60, 0], sizes = [1, 128], strides = [1, 1]} : vector<64x128xbf16> to vector<1x128xbf16>
    %c60 = arith.constant 60 : index
    %c0_401 = arith.constant 0 : index
    %c0_402 = arith.constant 0 : index
    %527 = vector.load %arg17[%c60, %c0_401, %c0_402] : memref<64x128x128xbf16, #tpu.memory_space<vmem>>, vector<1x128x128xbf16>
    %528 = vector.shape_cast %527 : vector<1x128x128xbf16> to vector<128x128xbf16>
    %cst_403 = arith.constant dense<0.000000e+00> : vector<1x128xf32>
    %529 = tpu.matmul %526, %528, %cst_403 {dimension_numbers = #tpu.dot_dimension_numbers<[1], [0], [0], [1], [0, 0, 1, 1], [], []>} : vector<1x128xbf16>, vector<128x128xbf16>, vector<1x128xf32> -> vector<1x128xf32>
    %530 = arith.addf %525, %529 : vector<1x128xf32>
    %531 = vector.extract_strided_slice %224 {offsets = [61, 0], sizes = [1, 128], strides = [1, 1]} : vector<64x128xbf16> to vector<1x128xbf16>
    %c61 = arith.constant 61 : index
    %c0_404 = arith.constant 0 : index
    %c0_405 = arith.constant 0 : index
    %532 = vector.load %arg17[%c61, %c0_404, %c0_405] : memref<64x128x128xbf16, #tpu.memory_space<vmem>>, vector<1x128x128xbf16>
    %533 = vector.shape_cast %532 : vector<1x128x128xbf16> to vector<128x128xbf16>
    %cst_406 = arith.constant dense<0.000000e+00> : vector<1x128xf32>
    %534 = tpu.matmul %531, %533, %cst_406 {dimension_numbers = #tpu.dot_dimension_numbers<[1], [0], [0], [1], [0, 0, 1, 1], [], []>} : vector<1x128xbf16>, vector<128x128xbf16>, vector<1x128xf32> -> vector<1x128xf32>
    %535 = arith.addf %530, %534 : vector<1x128xf32>
    %536 = vector.extract_strided_slice %224 {offsets = [62, 0], sizes = [1, 128], strides = [1, 1]} : vector<64x128xbf16> to vector<1x128xbf16>
    %c62 = arith.constant 62 : index
    %c0_407 = arith.constant 0 : index
    %c0_408 = arith.constant 0 : index
    %537 = vector.load %arg17[%c62, %c0_407, %c0_408] : memref<64x128x128xbf16, #tpu.memory_space<vmem>>, vector<1x128x128xbf16>
    %538 = vector.shape_cast %537 : vector<1x128x128xbf16> to vector<128x128xbf16>
    %cst_409 = arith.constant dense<0.000000e+00> : vector<1x128xf32>
    %539 = tpu.matmul %536, %538, %cst_409 {dimension_numbers = #tpu.dot_dimension_numbers<[1], [0], [0], [1], [0, 0, 1, 1], [], []>} : vector<1x128xbf16>, vector<128x128xbf16>, vector<1x128xf32> -> vector<1x128xf32>
    %540 = arith.addf %535, %539 : vector<1x128xf32>
    %541 = vector.extract_strided_slice %224 {offsets = [63, 0], sizes = [1, 128], strides = [1, 1]} : vector<64x128xbf16> to vector<1x128xbf16>
    %c63 = arith.constant 63 : index
    %c0_410 = arith.constant 0 : index
    %c0_411 = arith.constant 0 : index
    %542 = vector.load %arg17[%c63, %c0_410, %c0_411] : memref<64x128x128xbf16, #tpu.memory_space<vmem>>, vector<1x128x128xbf16>
    %543 = vector.shape_cast %542 : vector<1x128x128xbf16> to vector<128x128xbf16>
    %cst_412 = arith.constant dense<0.000000e+00> : vector<1x128xf32>
    %544 = tpu.matmul %541, %543, %cst_412 {dimension_numbers = #tpu.dot_dimension_numbers<[1], [0], [0], [1], [0, 0, 1, 1], [], []>} : vector<1x128xbf16>, vector<128x128xbf16>, vector<1x128xf32> -> vector<1x128xf32>
    %545 = arith.addf %540, %544 : vector<1x128xf32>
    %546 = vector.shape_cast %545 : vector<1x128xf32> to vector<1x128xf32>
    %547 = vector.broadcast %546 : vector<1x128xf32> to vector<8x128xf32>
    %c0_413 = arith.constant 0 : index
    %c0_414 = arith.constant 0 : index
    %548 = vector.load %arg18[%c0_413, %c0_414] : memref<8x128xf32, #tpu.memory_space<vmem>>, vector<8x128xf32>
    tpu.vector_store %arg18[%c0_413, %c0_414], %547 {strides = array<i32>} : memref<8x128xf32, #tpu.memory_space<vmem>>, vector<8x128xf32>,
    return
  }
}

</mosaic_0001>

<llo_original>
// kernel: _efgcn_fused_call.1
$region0: #{_efgcn_fused_call.1}
  #allocation0 [shape = 'u32[]', space=smem, size = 0x4, offset = 0x4, fixed_abs, tag = 'smem constant byte address 0x4 - core index']
  #allocation1 [shape = 'u32[72,128]{1,0:T(1,128)}', space=vmem, size = 0x9000, scoped, tag = 'internal scratch']
  %s0 = inlined_call_operand.hbm [shape: bf16[64,128], index: 0, kind: input, shape index: {}]
  %s1 = inlined_call_operand.hbm [shape: bf16[128,128], index: 1, kind: input, shape index: {}]
  %s2 = inlined_call_operand.hbm [shape: bf16[128,128], index: 2, kind: input, shape index: {}]
  %s3 = inlined_call_operand.hbm [shape: bf16[128,128], index: 3, kind: input, shape index: {}]
  %s4 = inlined_call_operand.hbm [shape: bf16[128,128], index: 4, kind: input, shape index: {}]
  %s5 = inlined_call_operand.hbm [shape: bf16[128,128], index: 5, kind: input, shape index: {}]
  %s6 = inlined_call_operand.hbm [shape: bf16[5,64,64], index: 6, kind: input, shape index: {}]
  %s7 = inlined_call_operand.hbm [shape: bf16[5,64,64], index: 7, kind: input, shape index: {}]
  %s8 = inlined_call_operand.hbm [shape: bf16[5,64,64], index: 8, kind: input, shape index: {}]
  %s9 = inlined_call_operand.hbm [shape: bf16[1,64,64], index: 9, kind: input, shape index: {}]
  %s10 = inlined_call_operand.hbm [shape: bf16[2,64,64], index: 10, kind: input, shape index: {}]
  %s11 = inlined_call_operand.hbm [shape: bf16[3,64,64], index: 11, kind: input, shape index: {}]
  %s12 = inlined_call_operand.hbm [shape: f32[5,64,128], index: 12, kind: input, shape index: {}]
  %s13 = inlined_call_operand.hbm [shape: f32[5,64,128], index: 13, kind: input, shape index: {}]
  %s14 = inlined_call_operand.hbm [shape: f32[5,64,128], index: 14, kind: input, shape index: {}]
  %s15 = inlined_call_operand.hbm [shape: f32[5,64,128], index: 15, kind: input, shape index: {}]
  %s16 = inlined_call_operand.hbm [shape: f32[5,64,128], index: 16, kind: input, shape index: {}]
  %s17 = inlined_call_operand.hbm [shape: bf16[64,128,128], index: 17, kind: input, shape index: {}]
  %s18 = inlined_call_operand.vmem [shape: f32[8,128], index: 18, kind: output, shape index: {}]
  %s19 = sld [smem:[#allocation0]]
  $region154: #{_efgcn_fused_call.1} parent=0
    _
  %s21 = ssub.s32 1, %s19
  %s22 = scalar_select 0, %s21, %s19
  $region1: #{_efgcn_fused_call.1} parent=0
    #allocation2 [shape = 'u8[16384]{0}', space=vmem, size = 0x4000, scoped, tag = 'input window, operand 0, single buffered']
    #allocation3 [shape = 's32[1]{0}', space=sflag, size = 0x4, scoped, tag = 'scoped memory for _efgcn_fused_call.1']
    #allocation4 [shape = 'u8[32768]{0}', space=vmem, size = 0x8000, scoped, tag = 'input window, operand 1, single buffered']
    #allocation5 [shape = 's32[1]{0}', space=sflag, size = 0x4, scoped, tag = 'scoped memory for _efgcn_fused_call.1']
    #allocation6 [shape = 'u8[32768]{0}', space=vmem, size = 0x8000, scoped, tag = 'input window, operand 2, single buffered']
    #allocation7 [shape = 'u8[32768]{0}', space=vmem, size = 0x8000, scoped, tag = 'input window, operand 3, single buffered']
    #allocation8 [shape = 's32[1]{0}', space=sflag, size = 0x4, scoped, tag = 'scoped memory for _efgcn_fused_call.1']
    #allocation9 [shape = 'u8[32768]{0}', space=vmem, size = 0x8000, scoped, tag = 'input window, operand 4, single buffered']
    #allocation10 [shape = 'u8[32768]{0}', space=vmem, size = 0x8000, scoped, tag = 'input window, operand 5, single buffered']
    #allocation11 [shape = 's32[1]{0}', space=sflag, size = 0x4, scoped, tag = 'scoped memory for _efgcn_fused_call.1']
    #allocation12 [shape = 'u8[81920]{0}', space=vmem, size = 0x14000, scoped, tag = 'input window, operand 6, single buffered']
    #allocation13 [shape = 'u8[81920]{0}', space=vmem, size = 0x14000, scoped, tag = 'input window, operand 7, single buffered']
    #allocation14 [shape = 's32[1]{0}', space=sflag, size = 0x4, scoped, tag = 'scoped memory for _efgcn_fused_call.1']
    #allocation15 [shape = 'u8[81920]{0}', space=vmem, size = 0x14000, scoped, tag = 'input window, operand 8, single buffered']
    #allocation16 [shape = 'u8[16384]{0}', space=vmem, size = 0x4000, scoped, tag = 'input window, operand 9, single buffered']
    #allocation17 [shape = 's32[1]{0}', space=sflag, size = 0x4, scoped, tag = 'scoped memory for _efgcn_fused_call.1']
    #allocation18 [shape = 'u8[32768]{0}', space=vmem, size = 0x8000, scoped, tag = 'input window, operand 10, single buffered']
    #allocation19 [shape = 'u8[49152]{0}', space=vmem, size = 0xc000, scoped, tag = 'input window, operand 11, single buffered']
    #allocation20 [shape = 's32[1]{0}', space=sflag, size = 0x4, scoped, tag = 'scoped memory for _efgcn_fused_call.1']
    #allocation21 [shape = 'u8[163840]{0}', space=vmem, size = 0x28000, scoped, tag = 'input window, operand 12, single buffered']
    #allocation22 [shape = 'u8[163840]{0}', space=vmem, size = 0x28000, scoped, tag = 'input window, operand 13, single buffered']
    #allocation23 [shape = 's32[1]{0}', space=sflag, size = 0x4, scoped, tag = 'scoped memory for _efgcn_fused_call.1']
    #allocation24 [shape = 'u8[163840]{0}', space=vmem, size = 0x28000, scoped, tag = 'input window, operand 14, single buffered']
    #allocation25 [shape = 'u8[163840]{0}', space=vmem, size = 0x28000, scoped, tag = 'input window, operand 15, single buffered']
    #allocation26 [shape = 's32[1]{0}', space=sflag, size = 0x4, scoped, tag = 'scoped memory for _efgcn_fused_call.1']
    #allocation27 [shape = 'u8[163840]{0}', space=vmem, size = 0x28000, scoped, tag = 'input window, operand 16, single buffered']
    #allocation28 [shape = 'u8[2097152]{0}', space=vmem, size = 0x200000, scoped, tag = 'input window, operand 17, single buffered']
    #allocation29 [shape = 's32[1]{0}', space=sflag, size = 0x4, scoped, tag = 'scoped memory for _efgcn_fused_call.1']
    %23 = vsyncpa [#allocation3], 0
    %24 = vsyncpa [#allocation5], 0
    %25 = vsyncpa [#allocation8], 0
    %26 = vsyncpa [#allocation11], 0
    %27 = vsyncpa [#allocation14], 0
    %28 = vsyncpa [#allocation17], 0
    %29 = vsyncpa [#allocation20], 0
    %30 = vsyncpa [#allocation23], 0
    %31 = vsyncpa [#allocation26], 0
    %32 = vsyncpa [#allocation29], 0
    // Predicated region
    $region2: #{_efgcn_fused_call.1} parent=1 // pred_check
      _
    $region3: #{_efgcn_fused_call.1} parent=1 // pred_check_branch
      %34 = sbr.rel (0) target = $region5
    $region4: #{_efgcn_fused_call.1} parent=1 // pred_region
      %36 = vsyncadd [#allocation3], 0
      %s37 = sshll.u32 %s0, 4
      %s38 = int_to_ptr.hbm [resolvable:$true] %s37
      %s39 = sshll.u32 [#allocation2], 4
      %s40 = int_to_ptr.vmem [resolvable:$true] %s39
      %45 = dma.hbm_to_vmem [thread:$0]  %s38, 512, %s40, [#allocation3], 64, 64, 4
    $region5: #{_efgcn_fused_call.1} parent=1 // pred_fallthru
      _
    // Predicated region
    $region6: #{_efgcn_fused_call.1} parent=1 // pred_check
      _
    $region7: #{_efgcn_fused_call.1} parent=1 // pred_check_branch
      %47 = sbr.rel (0) target = $region9
    $region8: #{_efgcn_fused_call.1} parent=1 // pred_region
      %49 = vsyncadd [#allocation5], 0
      %s50 = sshll.u32 %s1, 4
      %s51 = int_to_ptr.hbm [resolvable:$true] %s50
      %s52 = sshll.u32 [#allocation4], 4
      %s53 = int_to_ptr.vmem [resolvable:$true] %s52
      %58 = dma.hbm_to_vmem [thread:$0]  %s51, 1024, %s53, [#allocation5], 64, 64, 4
    $region9: #{_efgcn_fused_call.1} parent=1 // pred_fallthru
      _
    // Predicated region
    $region10: #{_efgcn_fused_call.1} parent=1 // pred_check
      _
    $region11: #{_efgcn_fused_call.1} parent=1 // pred_check_branch
      %60 = sbr.rel (0) target = $region13
    $region12: #{_efgcn_fused_call.1} parent=1 // pred_region
      %62 = vsyncadd [#allocation5], 0
      %s63 = sshll.u32 %s2, 4
      %s64 = int_to_ptr.hbm [resolvable:$true] %s63
      %s65 = sshll.u32 [#allocation6], 4
      %s66 = int_to_ptr.vmem [resolvable:$true] %s65
      %71 = dma.hbm_to_vmem [thread:$0]  %s64, 1024, %s66, [#allocation5], 64, 64, 4
    $region13: #{_efgcn_fused_call.1} parent=1 // pred_fallthru
      _
    // Predicated region
    $region14: #{_efgcn_fused_call.1} parent=1 // pred_check
      _
    $region15: #{_efgcn_fused_call.1} parent=1 // pred_check_branch
      %73 = sbr.rel (0) target = $region17
    $region16: #{_efgcn_fused_call.1} parent=1 // pred_region
      %75 = vsyncadd [#allocation8], 0
      %s76 = sshll.u32 %s3, 4
      %s77 = int_to_ptr.hbm [resolvable:$true] %s76
      %s78 = sshll.u32 [#allocation7], 4
      %s79 = int_to_ptr.vmem [resolvable:$true] %s78
      %84 = dma.hbm_to_vmem [thread:$0]  %s77, 1024, %s79, [#allocation8], 64, 64, 4
    $region17: #{_efgcn_fused_call.1} parent=1 // pred_fallthru
      _
    // Predicated region
    $region18: #{_efgcn_fused_call.1} parent=1 // pred_check
      _
    $region19: #{_efgcn_fused_call.1} parent=1 // pred_check_branch
      %86 = sbr.rel (0) target = $region21
    $region20: #{_efgcn_fused_call.1} parent=1 // pred_region
      %88 = vsyncadd [#allocation8], 0
      %s89 = sshll.u32 %s4, 4
      %s90 = int_to_ptr.hbm [resolvable:$true] %s89
      %s91 = sshll.u32 [#allocation9], 4
      %s92 = int_to_ptr.vmem [resolvable:$true] %s91
      %97 = dma.hbm_to_vmem [thread:$0]  %s90, 1024, %s92, [#allocation8], 64, 64, 4
    $region21: #{_efgcn_fused_call.1} parent=1 // pred_fallthru
      _
    // Predicated region
    $region22: #{_efgcn_fused_call.1} parent=1 // pred_check
      _
    $region23: #{_efgcn_fused_call.1} parent=1 // pred_check_branch
      %99 = sbr.rel (0) target = $region25
    $region24: #{_efgcn_fused_call.1} parent=1 // pred_region
      %101 = vsyncadd [#allocation11], 0
      %s102 = sshll.u32 %s5, 4
      %s103 = int_to_ptr.hbm [resolvable:$true] %s102
      %s104 = sshll.u32 [#allocation10], 4
      %s105 = int_to_ptr.vmem [resolvable:$true] %s104
      %110 = dma.hbm_to_vmem [thread:$0]  %s103, 1024, %s105, [#allocation11], 64, 64, 4
    $region25: #{_efgcn_fused_call.1} parent=1 // pred_fallthru
      _
    // Predicated region
    $region26: #{_efgcn_fused_call.1} parent=1 // pred_check
      _
    $region27: #{_efgcn_fused_call.1} parent=1 // pred_check_branch
      %112 = sbr.rel (0) target = $region29
    $region28: #{_efgcn_fused_call.1} parent=1 // pred_region
      %114 = vsyncadd [#allocation11], 0
      %s115 = sshll.u32 %s6, 4
      %s116 = int_to_ptr.hbm [resolvable:$true] %s115
      %s117 = sshll.u32 [#allocation12], 4
      %s118 = int_to_ptr.vmem [resolvable:$true] %s117
      %123 = dma.hbm_to_vmem [thread:$0]  %s116, 2560, %s118, [#allocation11], 64, 64, 4
    $region29: #{_efgcn_fused_call.1} parent=1 // pred_fallthru
      _
    // Predicated region
    $region30: #{_efgcn_fused_call.1} parent=1 // pred_check
      _
    $region31: #{_efgcn_fused_call.1} parent=1 // pred_check_branch
      %125 = sbr.rel (0) target = $region33
    $region32: #{_efgcn_fused_call.1} parent=1 // pred_region
      %127 = vsyncadd [#allocation14], 0
      %s128 = sshll.u32 %s7, 4
      %s129 = int_to_ptr.hbm [resolvable:$true] %s128
      %s130 = sshll.u32 [#allocation13], 4
      %s131 = int_to_ptr.vmem [resolvable:$true] %s130
      %136 = dma.hbm_to_vmem [thread:$0]  %s129, 2560, %s131, [#allocation14], 64, 64, 4
    $region33: #{_efgcn_fused_call.1} parent=1 // pred_fallthru
      _
    // Predicated region
    $region34: #{_efgcn_fused_call.1} parent=1 // pred_check
      _
    $region35: #{_efgcn_fused_call.1} parent=1 // pred_check_branch
      %138 = sbr.rel (0) target = $region37
    $region36: #{_efgcn_fused_call.1} parent=1 // pred_region
      %140 = vsyncadd [#allocation14], 0
      %s141 = sshll.u32 %s8, 4
      %s142 = int_to_ptr.hbm [resolvable:$true] %s141
      %s143 = sshll.u32 [#allocation15], 4
      %s144 = int_to_ptr.vmem [resolvable:$true] %s143
      %149 = dma.hbm_to_vmem [thread:$0]  %s142, 2560, %s144, [#allocation14], 64, 64, 4
    $region37: #{_efgcn_fused_call.1} parent=1 // pred_fallthru
      _
    // Predicated region
    $region38: #{_efgcn_fused_call.1} parent=1 // pred_check
      _
    $region39: #{_efgcn_fused_call.1} parent=1 // pred_check_branch
      %151 = sbr.rel (0) target = $region41
    $region40: #{_efgcn_fused_call.1} parent=1 // pred_region
      %153 = vsyncadd [#allocation17], 0
      %s154 = sshll.u32 %s9, 4
      %s155 = int_to_ptr.hbm [resolvable:$true] %s154
      %s156 = sshll.u32 [#allocation16], 4
      %s157 = int_to_ptr.vmem [resolvable:$true] %s156
      %162 = dma.hbm_to_vmem [thread:$0]  %s155, 512, %s157, [#allocation17], 64, 64, 4
    $region41: #{_efgcn_fused_call.1} parent=1 // pred_fallthru
      _
    // Predicated region
    $region42: #{_efgcn_fused_call.1} parent=1 // pred_check
      _
    $region43: #{_efgcn_fused_call.1} parent=1 // pred_check_branch
      %164 = sbr.rel (0) target = $region45
    $region44: #{_efgcn_fused_call.1} parent=1 // pred_region
      %166 = vsyncadd [#allocation17], 0
      %s167 = sshll.u32 %s10, 4
      %s168 = int_to_ptr.hbm [resolvable:$true] %s167
      %s169 = sshll.u32 [#allocation18], 4
      %s170 = int_to_ptr.vmem [resolvable:$true] %s169
      %175 = dma.hbm_to_vmem [thread:$0]  %s168, 1024, %s170, [#allocation17], 64, 64, 4
    $region45: #{_efgcn_fused_call.1} parent=1 // pred_fallthru
      _
    // Predicated region
    $region46: #{_efgcn_fused_call.1} parent=1 // pred_check
      _
    $region47: #{_efgcn_fused_call.1} parent=1 // pred_check_branch
      %177 = sbr.rel (0) target = $region49
    $region48: #{_efgcn_fused_call.1} parent=1 // pred_region
      %179 = vsyncadd [#allocation20], 0
      %s180 = sshll.u32 %s11, 4
      %s181 = int_to_ptr.hbm [resolvable:$true] %s180
      %s182 = sshll.u32 [#allocation19], 4
      %s183 = int_to_ptr.vmem [resolvable:$true] %s182
      %188 = dma.hbm_to_vmem [thread:$0]  %s181, 1536, %s183, [#allocation20], 64, 64, 4
    $region49: #{_efgcn_fused_call.1} parent=1 // pred_fallthru
      _
    // Predicated region
    $region50: #{_efgcn_fused_call.1} parent=1 // pred_check
      _
    $region51: #{_efgcn_fused_call.1} parent=1 // pred_check_branch
      %190 = sbr.rel (0) target = $region53
    $region52: #{_efgcn_fused_call.1} parent=1 // pred_region
      %192 = vsyncadd [#allocation20], 0
      %s193 = sshll.u32 %s12, 4
      %s194 = int_to_ptr.hbm [resolvable:$true] %s193
      %s195 = sshll.u32 [#allocation21], 4
      %s196 = int_to_ptr.vmem [resolvable:$true] %s195
      %201 = dma.hbm_to_vmem [thread:$0]  %s194, 5120, %s196, [#allocation20], 128, 128, 8
    $region53: #{_efgcn_fused_call.1} parent=1 // pred_fallthru
      _
    // Predicated region
    $region54: #{_efgcn_fused_call.1} parent=1 // pred_check
      _
    $region55: #{_efgcn_fused_call.1} parent=1 // pred_check_branch
      %203 = sbr.rel (0) target = $region57
    $region56: #{_efgcn_fused_call.1} parent=1 // pred_region
      %205 = vsyncadd [#allocation23], 0
      %s206 = sshll.u32 %s13, 4
      %s207 = int_to_ptr.hbm [resolvable:$true] %s206
      %s208 = sshll.u32 [#allocation22], 4
      %s209 = int_to_ptr.vmem [resolvable:$true] %s208
      %214 = dma.hbm_to_vmem [thread:$0]  %s207, 5120, %s209, [#allocation23], 128, 128, 8
    $region57: #{_efgcn_fused_call.1} parent=1 // pred_fallthru
      _
    // Predicated region
    $region58: #{_efgcn_fused_call.1} parent=1 // pred_check
      _
    $region59: #{_efgcn_fused_call.1} parent=1 // pred_check_branch
      %216 = sbr.rel (0) target = $region61
    $region60: #{_efgcn_fused_call.1} parent=1 // pred_region
      %218 = vsyncadd [#allocation23], 0
      %s219 = sshll.u32 %s14, 4
      %s220 = int_to_ptr.hbm [resolvable:$true] %s219
      %s221 = sshll.u32 [#allocation24], 4
      %s222 = int_to_ptr.vmem [resolvable:$true] %s221
      %227 = dma.hbm_to_vmem [thread:$0]  %s220, 5120, %s222, [#allocation23], 128, 128, 8
    $region61: #{_efgcn_fused_call.1} parent=1 // pred_fallthru
      _
    // Predicated region
    $region62: #{_efgcn_fused_call.1} parent=1 // pred_check
      _
    $region63: #{_efgcn_fused_call.1} parent=1 // pred_check_branch
      %229 = sbr.rel (0) target = $region65
    $region64: #{_efgcn_fused_call.1} parent=1 // pred_region
      %231 = vsyncadd [#allocation26], 0
      %s232 = sshll.u32 %s15, 4
      %s233 = int_to_ptr.hbm [resolvable:$true] %s232
      %s234 = sshll.u32 [#allocation25], 4
      %s235 = int_to_ptr.vmem [resolvable:$true] %s234
      %240 = dma.hbm_to_vmem [thread:$0]  %s233, 5120, %s235, [#allocation26], 128, 128, 8
    $region65: #{_efgcn_fused_call.1} parent=1 // pred_fallthru
      _
    // Predicated region
    $region66: #{_efgcn_fused_call.1} parent=1 // pred_check
      _
    $region67: #{_efgcn_fused_call.1} parent=1 // pred_check_branch
      %242 = sbr.rel (0) target = $region69
    $region68: #{_efgcn_fused_call.1} parent=1 // pred_region
      %244 = vsyncadd [#allocation26], 0
      %s245 = sshll.u32 %s16, 4
      %s246 = int_to_ptr.hbm [resolvable:$true] %s245
      %s247 = sshll.u32 [#allocation27], 4
      %s248 = int_to_ptr.vmem [resolvable:$true] %s247
      %253 = dma.hbm_to_vmem [thread:$0]  %s246, 5120, %s248, [#allocation26], 128, 128, 8
    $region69: #{_efgcn_fused_call.1} parent=1 // pred_fallthru
      _
    // Predicated region
    $region70: #{_efgcn_fused_call.1} parent=1 // pred_check
      _
    $region71: #{_efgcn_fused_call.1} parent=1 // pred_check_branch
      %255 = sbr.rel (0) target = $region73
    $region72: #{_efgcn_fused_call.1} parent=1 // pred_region
      %257 = vsyncadd [#allocation29], 0
      %s258 = sshll.u32 %s17, 4
      %s259 = int_to_ptr.hbm [resolvable:$true] %s258
      %s260 = sshll.u32 [#allocation28], 4
      %s261 = int_to_ptr.vmem [resolvable:$true] %s260
      %266 = dma.hbm_to_vmem [thread:$0]  %s259, 65536, %s261, [#allocation29], 64, 64, 4
    $region73: #{_efgcn_fused_call.1} parent=1 // pred_fallthru
      _
    // Predicated region
    $region74: #{_efgcn_fused_call.1} parent=1 // pred_check
      _
    $region75: #{_efgcn_fused_call.1} parent=1 // pred_check_branch
      %268 = sbr.rel (0) target = $region77
    $region76: #{_efgcn_fused_call.1} parent=1 // pred_region
      %270 = dma.done [#allocation3], 512
    $region77: #{_efgcn_fused_call.1} parent=1 // pred_fallthru
      _
    // Predicated region
    $region78: #{_efgcn_fused_call.1} parent=1 // pred_check
      _
    $region79: #{_efgcn_fused_call.1} parent=1 // pred_check_branch
      %272 = sbr.rel (0) target = $region81
    $region80: #{_efgcn_fused_call.1} parent=1 // pred_region
      %274 = dma.done [#allocation5], 1024
    $region81: #{_efgcn_fused_call.1} parent=1 // pred_fallthru
      _
    // Predicated region
    $region82: #{_efgcn_fused_call.1} parent=1 // pred_check
      _
    $region83: #{_efgcn_fused_call.1} parent=1 // pred_check_branch
      %276 = sbr.rel (0) target = $region85
    $region84: #{_efgcn_fused_call.1} parent=1 // pred_region
      %278 = dma.done [#allocation5], 1024
    $region85: #{_efgcn_fused_call.1} parent=1 // pred_fallthru
      _
    // Predicated region
    $region86: #{_efgcn_fused_call.1} parent=1 // pred_check
      _
    $region87: #{_efgcn_fused_call.1} parent=1 // pred_check_branch
      %280 = sbr.rel (0) target = $region89
    $region88: #{_efgcn_fused_call.1} parent=1 // pred_region
      %282 = dma.done [#allocation8], 1024
    $region89: #{_efgcn_fused_call.1} parent=1 // pred_fallthru
      _
    // Predicated region
    $region90: #{_efgcn_fused_call.1} parent=1 // pred_check
      _
    $region91: #{_efgcn_fused_call.1} parent=1 // pred_check_branch
      %284 = sbr.rel (0) target = $region93
    $region92: #{_efgcn_fused_call.1} parent=1 // pred_region
      %286 = dma.done [#allocation8], 1024
    $region93: #{_efgcn_fused_call.1} parent=1 // pred_fallthru
      _
    // Predicated region
    $region94: #{_efgcn_fused_call.1} parent=1 // pred_check
      _
    $region95: #{_efgcn_fused_call.1} parent=1 // pred_check_branch
      %288 = sbr.rel (0) target = $region97
    $region96: #{_efgcn_fused_call.1} parent=1 // pred_region
      %290 = dma.done [#allocation11], 1024
    $region97: #{_efgcn_fused_call.1} parent=1 // pred_fallthru
      _
    // Predicated region
    $region98: #{_efgcn_fused_call.1} parent=1 // pred_check
      _
    $region99: #{_efgcn_fused_call.1} parent=1 // pred_check_branch
      %292 = sbr.rel (0) target = $region101
    $region100: #{_efgcn_fused_call.1} parent=1 // pred_region
      %294 = dma.done [#allocation11], 2560
    $region101: #{_efgcn_fused_call.1} parent=1 // pred_fallthru
      _
    // Predicated region
    $region102: #{_efgcn_fused_call.1} parent=1 // pred_check
      _
    $region103: #{_efgcn_fused_call.1} parent=1 // pred_check_branch
      %296 = sbr.rel (0) target = $region105
    $region104: #{_efgcn_fused_call.1} parent=1 // pred_region
      %298 = dma.done [#allocation14], 2560
    $region105: #{_efgcn_fused_call.1} parent=1 // pred_fallthru
      _
    // Predicated region
    $region106: #{_efgcn_fused_call.1} parent=1 // pred_check
      _
    $region107: #{_efgcn_fused_call.1} parent=1 // pred_check_branch
      %300 = sbr.rel (0) target = $region109
    $region108: #{_efgcn_fused_call.1} parent=1 // pred_region
      %302 = dma.done [#allocation14], 2560
    $region109: #{_efgcn_fused_call.1} parent=1 // pred_fallthru
      _
    // Predicated region
    $region110: #{_efgcn_fused_call.1} parent=1 // pred_check
      _
    $region111: #{_efgcn_fused_call.1} parent=1 // pred_check_branch
      %304 = sbr.rel (0) target = $region113
    $region112: #{_efgcn_fused_call.1} parent=1 // pred_region
      %306 = dma.done [#allocation17], 512
    $region113: #{_efgcn_fused_call.1} parent=1 // pred_fallthru
      _
    // Predicated region
    $region114: #{_efgcn_fused_call.1} parent=1 // pred_check
      _
    $region115: #{_efgcn_fused_call.1} parent=1 // pred_check_branch
      %308 = sbr.rel (0) target = $region117
    $region116: #{_efgcn_fused_call.1} parent=1 // pred_region
      %310 = dma.done [#allocation17], 1024
    $region117: #{_efgcn_fused_call.1} parent=1 // pred_fallthru
      _
    // Predicated region
    $region118: #{_efgcn_fused_call.1} parent=1 // pred_check
      _
    $region119: #{_efgcn_fused_call.1} parent=1 // pred_check_branch
      %312 = sbr.rel (0) target = $region121
    $region120: #{_efgcn_fused_call.1} parent=1 // pred_region
      %314 = dma.done [#allocation20], 1536
    $region121: #{_efgcn_fused_call.1} parent=1 // pred_fallthru
      _
    // Predicated region
    $region122: #{_efgcn_fused_call.1} parent=1 // pred_check
      _
    $region123: #{_efgcn_fused_call.1} parent=1 // pred_check_branch
      %316 = sbr.rel (0) target = $region125
    $region124: #{_efgcn_fused_call.1} parent=1 // pred_region
      %318 = dma.done [#allocation20], 5120
    $region125: #{_efgcn_fused_call.1} parent=1 // pred_fallthru
      _
    // Predicated region
    $region126: #{_efgcn_fused_call.1} parent=1 // pred_check
      _
    $region127: #{_efgcn_fused_call.1} parent=1 // pred_check_branch
      %320 = sbr.rel (0) target = $region129
    $region128: #{_efgcn_fused_call.1} parent=1 // pred_region
      %322 = dma.done [#allocation23], 5120
    $region129: #{_efgcn_fused_call.1} parent=1 // pred_fallthru
      _
    // Predicated region
    $region130: #{_efgcn_fused_call.1} parent=1 // pred_check
      _
    $region131: #{_efgcn_fused_call.1} parent=1 // pred_check_branch
      %324 = sbr.rel (0) target = $region133
    $region132: #{_efgcn_fused_call.1} parent=1 // pred_region
      %326 = dma.done [#allocation23], 5120
    $region133: #{_efgcn_fused_call.1} parent=1 // pred_fallthru
      _
    // Predicated region
    $region134: #{_efgcn_fused_call.1} parent=1 // pred_check
      _
    $region135: #{_efgcn_fused_call.1} parent=1 // pred_check_branch
      %328 = sbr.rel (0) target = $region137
    $region136: #{_efgcn_fused_call.1} parent=1 // pred_region
      %330 = dma.done [#allocation26], 5120
    $region137: #{_efgcn_fused_call.1} parent=1 // pred_fallthru
      _
    // Predicated region
    $region138: #{_efgcn_fused_call.1} parent=1 // pred_check
      _
    $region139: #{_efgcn_fused_call.1} parent=1 // pred_check_branch
      %332 = sbr.rel (0) target = $region141
    $region140: #{_efgcn_fused_call.1} parent=1 // pred_region
      %334 = dma.done [#allocation26], 5120
    $region141: #{_efgcn_fused_call.1} parent=1 // pred_fallthru
      _
    // Predicated region
    $region142: #{_efgcn_fused_call.1} parent=1 // pred_check
      _
    $region143: #{_efgcn_fused_call.1} parent=1 // pred_check_branch
      %336 = sbr.rel (0) target = $region145
    $region144: #{_efgcn_fused_call.1} parent=1 // pred_region
      %338 = dma.done [#allocation29], 65536
    $region145: #{_efgcn_fused_call.1} parent=1 // pred_fallthru
      _
    %v340 = vld [vmem:[#allocation2] sm:$0xf]
    %v341 = vld [vmem:[#allocation2 + $0x4] sm:$0xf]
    %v342 = vld [vmem:[#allocation2 + $0x8] sm:$0xf]
    %v343 = vld [vmem:[#allocation2 + $0xc] sm:$0xf]
    %v344 = vld [vmem:[#allocation2 + $0x10] sm:$0xf]
    %v345 = vld [vmem:[#allocation2 + $0x14] sm:$0xf]
    %v346 = vld [vmem:[#allocation2 + $0x18] sm:$0xf]
    %v347 = vld [vmem:[#allocation2 + $0x1c] sm:$0xf]
    %v348 = vld [vmem:[#allocation4] sm:$0xf]
    %v349 = vld [vmem:[#allocation4 + $0x4] sm:$0xf]
    %v350 = vld [vmem:[#allocation4 + $0x8] sm:$0xf]
    %v351 = vld [vmem:[#allocation4 + $0xc] sm:$0xf]
    %v352 = vld [vmem:[#allocation4 + $0x10] sm:$0xf]
    %v353 = vld [vmem:[#allocation4 + $0x14] sm:$0xf]
    %v354 = vld [vmem:[#allocation4 + $0x18] sm:$0xf]
    %v355 = vld [vmem:[#allocation4 + $0x1c] sm:$0xf]
    %v356 = vld [vmem:[#allocation4 + $0x20] sm:$0xf]
    %v357 = vld [vmem:[#allocation4 + $0x24] sm:$0xf]
    %v358 = vld [vmem:[#allocation4 + $0x28] sm:$0xf]
    %v359 = vld [vmem:[#allocation4 + $0x2c] sm:$0xf]
    %v360 = vld [vmem:[#allocation4 + $0x30] sm:$0xf]
    %v361 = vld [vmem:[#allocation4 + $0x34] sm:$0xf]
    %v362 = vld [vmem:[#allocation4 + $0x38] sm:$0xf]
    %v363 = vld [vmem:[#allocation4 + $0x3c] sm:$0xf]
    %v372 = vunpack.c.l.b16 %v340
    %v373 = vunpack.c.l.b16 %v341
    %v374 = vunpack.c.l.b16 %v342
    %v375 = vunpack.c.l.b16 %v343
    %v376 = vunpack.c.l.b16 %v344
    %v377 = vunpack.c.l.b16 %v345
    %v378 = vunpack.c.l.b16 %v346
    %v379 = vunpack.c.l.b16 %v347
    %v380 = vpack.c.b16 %v373, %v372
    %v381 = vpack.c.b16 %v375, %v374
    %v382 = vpack.c.b16 %v377, %v376
    %v383 = vpack.c.b16 %v379, %v378
    %v404 = vunpack.c.l.b16 %v348
    %v405 = vunpack.c.l.b16 %v349
    %v406 = vunpack.c.l.b16 %v350
    %v407 = vunpack.c.l.b16 %v351
    %v408 = vunpack.c.l.b16 %v352
    %v409 = vunpack.c.l.b16 %v353
    %v410 = vunpack.c.l.b16 %v354
    %v411 = vunpack.c.l.b16 %v355
    %v412 = vunpack.c.l.b16 %v356
    %v413 = vunpack.c.l.b16 %v357
    %v414 = vunpack.c.l.b16 %v358
    %v415 = vunpack.c.l.b16 %v359
    %v416 = vunpack.c.l.b16 %v360
    %v417 = vunpack.c.l.b16 %v361
    %v418 = vunpack.c.l.b16 %v362
    %v419 = vunpack.c.l.b16 %v363
    %v420 = vpack.c.b16 %v405, %v404
    %v421 = vpack.c.b16 %v407, %v406
    %v422 = vpack.c.b16 %v409, %v408
    %v423 = vpack.c.b16 %v411, %v410
    %v424 = vpack.c.b16 %v413, %v412
    %v425 = vpack.c.b16 %v415, %v414
    %v426 = vpack.c.b16 %v417, %v416
    %v427 = vpack.c.b16 %v419, %v418
    %436 = vmatpush.bf16.msra.mxu0 %v427
    %437 = vmatpush.bf16.msra.mxu0 %v426
    %438 = vmatpush.bf16.msra.mxu0 %v425
    %439 = vmatpush.bf16.msra.mxu0 %v424
    %440 = vmatpush.bf16.msra.mxu0 %v423
    %441 = vmatpush.bf16.msra.mxu0 %v422
    %442 = vmatpush.bf16.msra.mxu0 %v421
    %443 = vmatpush.bf16.msra.mxu0 %v420
    %444 = vmatmul.bf16.gmra.mxu0 %v380
    %v445 = vpop.f32.mrf.mxu0
    %v446 = vadd.f32 0.0, %v445
    %v447 = vpop.f32.mrf.mxu0
    %v448 = vadd.f32 0.0, %v447
    %449 = vmatmul.bf16.gmra.mxu0 %v381
    %v450 = vpop.f32.mrf.mxu0
    %v451 = vadd.f32 0.0, %v450
    %v452 = vpop.f32.mrf.mxu0
    %v453 = vadd.f32 0.0, %v452
    %454 = vmatmul.bf16.gmra.mxu0 %v382
    %v455 = vpop.f32.mrf.mxu0
    %v456 = vadd.f32 0.0, %v455
    %v457 = vpop.f32.mrf.mxu0
    %v458 = vadd.f32 0.0, %v457
    %459 = vmatmul.bf16.gmra.mxu0 %v383
    %v460 = vpop.f32.mrf.mxu0
    %v461 = vadd.f32 0.0, %v460
    %v462 = vpop.f32.mrf.mxu0
    %v463 = vadd.f32 0.0, %v462
    %464 = vdwg.mxu0
    %v465 = vpack.c.bf16 %v448, %v446
    %v466 = vpack.c.bf16 %v453, %v451
    %v467 = vpack.c.bf16 %v458, %v456
    %v468 = vpack.c.bf16 %v463, %v461
    %v469 = vld [vmem:[#allocation12] sm:$0xf]
    %v470 = vld [vmem:[#allocation12 + $0x4] sm:$0xf]
    %v471 = vld [vmem:[#allocation12 + $0x8] sm:$0xf]
    %v472 = vld [vmem:[#allocation12 + $0xc] sm:$0xf]
    %v473 = vld [vmem:[#allocation12 + $0x10] sm:$0xf]
    %v474 = vld [vmem:[#allocation12 + $0x14] sm:$0xf]
    %v475 = vld [vmem:[#allocation12 + $0x18] sm:$0xf]
    %v476 = vld [vmem:[#allocation12 + $0x1c] sm:$0xf]
    %v477 = vld [vmem:[#allocation21] sm:$0xff]
    %v478 = vld [vmem:[#allocation21 + $0x8] sm:$0xff]
    %v479 = vld [vmem:[#allocation21 + $0x10] sm:$0xff]
    %v480 = vld [vmem:[#allocation21 + $0x18] sm:$0xff]
    %v481 = vld [vmem:[#allocation21 + $0x20] sm:$0xff]
    %v482 = vld [vmem:[#allocation21 + $0x28] sm:$0xff]
    %v483 = vld [vmem:[#allocation21 + $0x30] sm:$0xff]
    %v484 = vld [vmem:[#allocation21 + $0x38] sm:$0xff]
    %v493 = vunpack.c.l.b16 %v469
    %v494 = vunpack.c.l.b16 %v470
    %v495 = vunpack.c.l.b16 %v471
    %v496 = vunpack.c.l.b16 %v472
    %v497 = vunpack.c.l.b16 %v473
    %v498 = vunpack.c.l.b16 %v474
    %v499 = vunpack.c.l.b16 %v475
    %v500 = vunpack.c.l.b16 %v476
    %v501 = vpack.c.b16 %v494, %v493
    %v502 = vpack.c.b16 %v496, %v495
    %v503 = vpack.c.b16 %v498, %v497
    %v504 = vpack.c.b16 %v500, %v499
    %vm505 = vcmask 523264
    %v507 = vsel %vm505, %v501, 0
    %v510 = vsel %vm505, %v502, 0
    %v513 = vsel %vm505, %v503, 0
    %v516 = vsel %vm505, %v504, 0
    %518 = vmatpush.bf16.msra.mxu0 0
    %519 = vmatpush.bf16.msra.mxu0 0
    %520 = vmatpush.bf16.msra.mxu0 0
    %521 = vmatpush.bf16.msra.mxu0 0
    %522 = vmatpush.bf16.msra.mxu0 %v468
    %523 = vmatpush.bf16.msra.mxu0 %v467
    %524 = vmatpush.bf16.msra.mxu0 %v466
    %525 = vmatpush.bf16.msra.mxu0 %v465
    %526 = vmatmul.bf16.gmra.mxu0 %v507
    %v527 = vpop.f32.mrf.mxu0
    %v528 = vadd.f32 %v477, %v527
    %v529 = vpop.f32.mrf.mxu0
    %v530 = vadd.f32 %v478, %v529
    %531 = vmatmul.bf16.gmra.mxu0 %v510
    %v532 = vpop.f32.mrf.mxu0
    %v533 = vadd.f32 %v479, %v532
    %v534 = vpop.f32.mrf.mxu0
    %v535 = vadd.f32 %v480, %v534
    %536 = vmatmul.bf16.gmra.mxu0 %v513
    %v537 = vpop.f32.mrf.mxu0
    %v538 = vadd.f32 %v481, %v537
    %v539 = vpop.f32.mrf.mxu0
    %v540 = vadd.f32 %v482, %v539
    %541 = vmatmul.bf16.gmra.mxu0 %v516
    %v542 = vpop.f32.mrf.mxu0
    %v543 = vadd.f32 %v483, %v542
    %v544 = vpop.f32.mrf.mxu0
    %v545 = vadd.f32 %v484, %v544
    %546 = vdwg.mxu0
    %s547 = scalar_lea.vmem [#allocation12], 32
    %v548 = vld [vmem:[%s547] sm:$0xf]
    %v549 = vld [vmem:[%s547 + $0x4] sm:$0xf]
    %v550 = vld [vmem:[%s547 + $0x8] sm:$0xf]
    %v551 = vld [vmem:[%s547 + $0xc] sm:$0xf]
    %v552 = vld [vmem:[%s547 + $0x10] sm:$0xf]
    %v553 = vld [vmem:[%s547 + $0x14] sm:$0xf]
    %v554 = vld [vmem:[%s547 + $0x18] sm:$0xf]
    %v555 = vld [vmem:[%s547 + $0x1c] sm:$0xf]
    %s556 = scalar_lea.vmem [#allocation21], 64
    %v557 = vld [vmem:[%s556] sm:$0xff]
    %v558 = vld [vmem:[%s556 + $0x8] sm:$0xff]
    %v559 = vld [vmem:[%s556 + $0x10] sm:$0xff]
    %v560 = vld [vmem:[%s556 + $0x18] sm:$0xff]
    %v561 = vld [vmem:[%s556 + $0x20] sm:$0xff]
    %v562 = vld [vmem:[%s556 + $0x28] sm:$0xff]
    %v563 = vld [vmem:[%s556 + $0x30] sm:$0xff]
    %v564 = vld [vmem:[%s556 + $0x38] sm:$0xff]
    %v573 = vunpack.c.l.b16 %v548
    %v574 = vunpack.c.l.b16 %v549
    %v575 = vunpack.c.l.b16 %v550
    %v576 = vunpack.c.l.b16 %v551
    %v577 = vunpack.c.l.b16 %v552
    %v578 = vunpack.c.l.b16 %v553
    %v579 = vunpack.c.l.b16 %v554
    %v580 = vunpack.c.l.b16 %v555
    %v581 = vpack.c.b16 %v574, %v573
    %v582 = vpack.c.b16 %v576, %v575
    %v583 = vpack.c.b16 %v578, %v577
    %v584 = vpack.c.b16 %v580, %v579
    %v586 = vsel %vm505, %v581, 0
    %v589 = vsel %vm505, %v582, 0
    %v592 = vsel %vm505, %v583, 0
    %v595 = vsel %vm505, %v584, 0
    %597 = vmatpush.bf16.msra.mxu0 0
    %598 = vmatpush.bf16.msra.mxu0 0
    %599 = vmatpush.bf16.msra.mxu0 0
    %600 = vmatpush.bf16.msra.mxu0 0
    %601 = vmatpush.bf16.msra.mxu0 %v468
    %602 = vmatpush.bf16.msra.mxu0 %v467
    %603 = vmatpush.bf16.msra.mxu0 %v466
    %604 = vmatpush.bf16.msra.mxu0 %v465
    %605 = vmatmul.bf16.gmra.mxu0 %v586
    %v606 = vpop.f32.mrf.mxu0
    %v607 = vadd.f32 %v557, %v606
    %v608 = vpop.f32.mrf.mxu0
    %v609 = vadd.f32 %v558, %v608
    %610 = vmatmul.bf16.gmra.mxu0 %v589
    %v611 = vpop.f32.mrf.mxu0
    %v612 = vadd.f32 %v559, %v611
    %v613 = vpop.f32.mrf.mxu0
    %v614 = vadd.f32 %v560, %v613
    %615 = vmatmul.bf16.gmra.mxu0 %v592
    %v616 = vpop.f32.mrf.mxu0
    %v617 = vadd.f32 %v561, %v616
    %v618 = vpop.f32.mrf.mxu0
    %v619 = vadd.f32 %v562, %v618
    %620 = vmatmul.bf16.gmra.mxu0 %v595
    %v621 = vpop.f32.mrf.mxu0
    %v622 = vadd.f32 %v563, %v621
    %v623 = vpop.f32.mrf.mxu0
    %v624 = vadd.f32 %v564, %v623
    %625 = vdwg.mxu0
    %v626 = vmax.f32 %v528, %v607
    %v627 = vmax.f32 %v530, %v609
    %v628 = vmax.f32 %v533, %v612
    %v629 = vmax.f32 %v535, %v614
    %v630 = vmax.f32 %v538, %v617
    %v631 = vmax.f32 %v540, %v619
    %v632 = vmax.f32 %v543, %v622
    %v633 = vmax.f32 %v545, %v624
    %s634 = scalar_lea.vmem [#allocation12], 64
    %v635 = vld [vmem:[%s634] sm:$0xf]
    %v636 = vld [vmem:[%s634 + $0x4] sm:$0xf]
    %v637 = vld [vmem:[%s634 + $0x8] sm:$0xf]
    %v638 = vld [vmem:[%s634 + $0xc] sm:$0xf]
    %v639 = vld [vmem:[%s634 + $0x10] sm:$0xf]
    %v640 = vld [vmem:[%s634 + $0x14] sm:$0xf]
    %v641 = vld [vmem:[%s634 + $0x18] sm:$0xf]
    %v642 = vld [vmem:[%s634 + $0x1c] sm:$0xf]
    %s643 = scalar_lea.vmem [#allocation21], 128
    %v644 = vld [vmem:[%s643] sm:$0xff]
    %v645 = vld [vmem:[%s643 + $0x8] sm:$0xff]
    %v646 = vld [vmem:[%s643 + $0x10] sm:$0xff]
    %v647 = vld [vmem:[%s643 + $0x18] sm:$0xff]
    %v648 = vld [vmem:[%s643 + $0x20] sm:$0xff]
    %v649 = vld [vmem:[%s643 + $0x28] sm:$0xff]
    %v650 = vld [vmem:[%s643 + $0x30] sm:$0xff]
    %v651 = vld [vmem:[%s643 + $0x38] sm:$0xff]
    %v660 = vunpack.c.l.b16 %v635
    %v661 = vunpack.c.l.b16 %v636
    %v662 = vunpack.c.l.b16 %v637
    %v663 = vunpack.c.l.b16 %v638
    %v664 = vunpack.c.l.b16 %v639
    %v665 = vunpack.c.l.b16 %v640
    %v666 = vunpack.c.l.b16 %v641
    %v667 = vunpack.c.l.b16 %v642
    %v668 = vpack.c.b16 %v661, %v660
    %v669 = vpack.c.b16 %v663, %v662
    %v670 = vpack.c.b16 %v665, %v664
    %v671 = vpack.c.b16 %v667, %v666
    %v673 = vsel %vm505, %v668, 0
    %v676 = vsel %vm505, %v669, 0
    %v679 = vsel %vm505, %v670, 0
    %v682 = vsel %vm505, %v671, 0
    %684 = vmatpush.bf16.msra.mxu0 0
    %685 = vmatpush.bf16.msra.mxu0 0
    %686 = vmatpush.bf16.msra.mxu0 0
    %687 = vmatpush.bf16.msra.mxu0 0
    %688 = vmatpush.bf16.msra.mxu0 %v468
    %689 = vmatpush.bf16.msra.mxu0 %v467
    %690 = vmatpush.bf16.msra.mxu0 %v466
    %691 = vmatpush.bf16.msra.mxu0 %v465
    %692 = vmatmul.bf16.gmra.mxu0 %v673
    %v693 = vpop.f32.mrf.mxu0
    %v694 = vadd.f32 %v644, %v693
    %v695 = vpop.f32.mrf.mxu0
    %v696 = vadd.f32 %v645, %v695
    %697 = vmatmul.bf16.gmra.mxu0 %v676
    %v698 = vpop.f32.mrf.mxu0
    %v699 = vadd.f32 %v646, %v698
    %v700 = vpop.f32.mrf.mxu0
    %v701 = vadd.f32 %v647, %v700
    %702 = vmatmul.bf16.gmra.mxu0 %v679
    %v703 = vpop.f32.mrf.mxu0
    %v704 = vadd.f32 %v648, %v703
    %v705 = vpop.f32.mrf.mxu0
    %v706 = vadd.f32 %v649, %v705
    %707 = vmatmul.bf16.gmra.mxu0 %v682
    %v708 = vpop.f32.mrf.mxu0
    %v709 = vadd.f32 %v650, %v708
    %v710 = vpop.f32.mrf.mxu0
    %v711 = vadd.f32 %v651, %v710
    %712 = vdwg.mxu0
    %v713 = vmax.f32 %v626, %v694
    %v714 = vmax.f32 %v627, %v696
    %v715 = vmax.f32 %v628, %v699
    %v716 = vmax.f32 %v629, %v701
    %v717 = vmax.f32 %v630, %v704
    %v718 = vmax.f32 %v631, %v706
    %v719 = vmax.f32 %v632, %v709
    %v720 = vmax.f32 %v633, %v711
    %s721 = scalar_lea.vmem [#allocation12], 96
    %v722 = vld [vmem:[%s721] sm:$0xf]
    %v723 = vld [vmem:[%s721 + $0x4] sm:$0xf]
    %v724 = vld [vmem:[%s721 + $0x8] sm:$0xf]
    %v725 = vld [vmem:[%s721 + $0xc] sm:$0xf]
    %v726 = vld [vmem:[%s721 + $0x10] sm:$0xf]
    %v727 = vld [vmem:[%s721 + $0x14] sm:$0xf]
    %v728 = vld [vmem:[%s721 + $0x18] sm:$0xf]
    %v729 = vld [vmem:[%s721 + $0x1c] sm:$0xf]
    %s730 = scalar_lea.vmem [#allocation21], 192
    %v731 = vld [vmem:[%s730] sm:$0xff]
    %v732 = vld [vmem:[%s730 + $0x8] sm:$0xff]
    %v733 = vld [vmem:[%s730 + $0x10] sm:$0xff]
    %v734 = vld [vmem:[%s730 + $0x18] sm:$0xff]
    %v735 = vld [vmem:[%s730 + $0x20] sm:$0xff]
    %v736 = vld [vmem:[%s730 + $0x28] sm:$0xff]
    %v737 = vld [vmem:[%s730 + $0x30] sm:$0xff]
    %v738 = vld [vmem:[%s730 + $0x38] sm:$0xff]
    %v747 = vunpack.c.l.b16 %v722
    %v748 = vunpack.c.l.b16 %v723
    %v749 = vunpack.c.l.b16 %v724
    %v750 = vunpack.c.l.b16 %v725
    %v751 = vunpack.c.l.b16 %v726
    %v752 = vunpack.c.l.b16 %v727
    %v753 = vunpack.c.l.b16 %v728
    %v754 = vunpack.c.l.b16 %v729
    %v755 = vpack.c.b16 %v748, %v747
    %v756 = vpack.c.b16 %v750, %v749
    %v757 = vpack.c.b16 %v752, %v751
    %v758 = vpack.c.b16 %v754, %v753
    %v760 = vsel %vm505, %v755, 0
    %v763 = vsel %vm505, %v756, 0
    %v766 = vsel %vm505, %v757, 0
    %v769 = vsel %vm505, %v758, 0
    %771 = vmatpush.bf16.msra.mxu0 0
    %772 = vmatpush.bf16.msra.mxu0 0
    %773 = vmatpush.bf16.msra.mxu0 0
    %774 = vmatpush.bf16.msra.mxu0 0
    %775 = vmatpush.bf16.msra.mxu0 %v468
    %776 = vmatpush.bf16.msra.mxu0 %v467
    %777 = vmatpush.bf16.msra.mxu0 %v466
    %778 = vmatpush.bf16.msra.mxu0 %v465
    %779 = vmatmul.bf16.gmra.mxu0 %v760
    %v780 = vpop.f32.mrf.mxu0
    %v781 = vadd.f32 %v731, %v780
    %v782 = vpop.f32.mrf.mxu0
    %v783 = vadd.f32 %v732, %v782
    %784 = vmatmul.bf16.gmra.mxu0 %v763
    %v785 = vpop.f32.mrf.mxu0
    %v786 = vadd.f32 %v733, %v785
    %v787 = vpop.f32.mrf.mxu0
    %v788 = vadd.f32 %v734, %v787
    %789 = vmatmul.bf16.gmra.mxu0 %v766
    %v790 = vpop.f32.mrf.mxu0
    %v791 = vadd.f32 %v735, %v790
    %v792 = vpop.f32.mrf.mxu0
    %v793 = vadd.f32 %v736, %v792
    %794 = vmatmul.bf16.gmra.mxu0 %v769
    %v795 = vpop.f32.mrf.mxu0
    %v796 = vadd.f32 %v737, %v795
    %v797 = vpop.f32.mrf.mxu0
    %v798 = vadd.f32 %v738, %v797
    %799 = vdwg.mxu0
    %v800 = vmax.f32 %v713, %v781
    %v801 = vmax.f32 %v714, %v783
    %v802 = vmax.f32 %v715, %v786
    %v803 = vmax.f32 %v716, %v788
    %v804 = vmax.f32 %v717, %v791
    %v805 = vmax.f32 %v718, %v793
    %v806 = vmax.f32 %v719, %v796
    %v807 = vmax.f32 %v720, %v798
    %s808 = scalar_lea.vmem [#allocation12], 128
    %v809 = vld [vmem:[%s808] sm:$0xf]
    %v810 = vld [vmem:[%s808 + $0x4] sm:$0xf]
    %v811 = vld [vmem:[%s808 + $0x8] sm:$0xf]
    %v812 = vld [vmem:[%s808 + $0xc] sm:$0xf]
    %v813 = vld [vmem:[%s808 + $0x10] sm:$0xf]
    %v814 = vld [vmem:[%s808 + $0x14] sm:$0xf]
    %v815 = vld [vmem:[%s808 + $0x18] sm:$0xf]
    %v816 = vld [vmem:[%s808 + $0x1c] sm:$0xf]
    %s817 = scalar_lea.vmem [#allocation21], 256
    %v818 = vld [vmem:[%s817] sm:$0xff]
    %v819 = vld [vmem:[%s817 + $0x8] sm:$0xff]
    %v820 = vld [vmem:[%s817 + $0x10] sm:$0xff]
    %v821 = vld [vmem:[%s817 + $0x18] sm:$0xff]
    %v822 = vld [vmem:[%s817 + $0x20] sm:$0xff]
    %v823 = vld [vmem:[%s817 + $0x28] sm:$0xff]
    %v824 = vld [vmem:[%s817 + $0x30] sm:$0xff]
    %v825 = vld [vmem:[%s817 + $0x38] sm:$0xff]
    %v834 = vunpack.c.l.b16 %v809
    %v835 = vunpack.c.l.b16 %v810
    %v836 = vunpack.c.l.b16 %v811
    %v837 = vunpack.c.l.b16 %v812
    %v838 = vunpack.c.l.b16 %v813
    %v839 = vunpack.c.l.b16 %v814
    %v840 = vunpack.c.l.b16 %v815
    %v841 = vunpack.c.l.b16 %v816
    %v842 = vpack.c.b16 %v835, %v834
    %v843 = vpack.c.b16 %v837, %v836
    %v844 = vpack.c.b16 %v839, %v838
    %v845 = vpack.c.b16 %v841, %v840
    %v847 = vsel %vm505, %v842, 0
    %v850 = vsel %vm505, %v843, 0
    %v853 = vsel %vm505, %v844, 0
    %v856 = vsel %vm505, %v845, 0
    %858 = vmatpush.bf16.msra.mxu0 0
    %859 = vmatpush.bf16.msra.mxu0 0
    %860 = vmatpush.bf16.msra.mxu0 0
    %861 = vmatpush.bf16.msra.mxu0 0
    %862 = vmatpush.bf16.msra.mxu0 %v468
    %863 = vmatpush.bf16.msra.mxu0 %v467
    %864 = vmatpush.bf16.msra.mxu0 %v466
    %865 = vmatpush.bf16.msra.mxu0 %v465
    %866 = vmatmul.bf16.gmra.mxu0 %v847
    %v867 = vpop.f32.mrf.mxu0
    %v868 = vadd.f32 %v818, %v867
    %v869 = vpop.f32.mrf.mxu0
    %v870 = vadd.f32 %v819, %v869
    %871 = vmatmul.bf16.gmra.mxu0 %v850
    %v872 = vpop.f32.mrf.mxu0
    %v873 = vadd.f32 %v820, %v872
    %v874 = vpop.f32.mrf.mxu0
    %v875 = vadd.f32 %v821, %v874
    %876 = vmatmul.bf16.gmra.mxu0 %v853
    %v877 = vpop.f32.mrf.mxu0
    %v878 = vadd.f32 %v822, %v877
    %v879 = vpop.f32.mrf.mxu0
    %v880 = vadd.f32 %v823, %v879
    %881 = vmatmul.bf16.gmra.mxu0 %v856
    %v882 = vpop.f32.mrf.mxu0
    %v883 = vadd.f32 %v824, %v882
    %v884 = vpop.f32.mrf.mxu0
    %v885 = vadd.f32 %v825, %v884
    %886 = vdwg.mxu0
    %v887 = vmax.f32 %v800, %v868
    %v888 = vmax.f32 %v801, %v870
    %v889 = vmax.f32 %v802, %v873
    %v890 = vmax.f32 %v803, %v875
    %v891 = vmax.f32 %v804, %v878
    %v892 = vmax.f32 %v805, %v880
    %v893 = vmax.f32 %v806, %v883
    %v894 = vmax.f32 %v807, %v885
    %v895 = vmax.f32 %v887, 0.0
    %v896 = vmax.f32 %v888, 0.0
    %v897 = vmax.f32 %v889, 0.0
    %v898 = vmax.f32 %v890, 0.0
    %v899 = vmax.f32 %v891, 0.0
    %v900 = vmax.f32 %v892, 0.0
    %v901 = vmax.f32 %v893, 0.0
    %v902 = vmax.f32 %v894, 0.0
    %v903 = vpack.c.bf16 %v896, %v895
    %v904 = vpack.c.bf16 %v898, %v897
    %v905 = vpack.c.bf16 %v900, %v899
    %v906 = vpack.c.bf16 %v902, %v901
    %v907 = vld [vmem:[#allocation16] sm:$0xf]
    %v908 = vld [vmem:[#allocation16 + $0x4] sm:$0xf]
    %v909 = vld [vmem:[#allocation16 + $0x8] sm:$0xf]
    %v910 = vld [vmem:[#allocation16 + $0xc] sm:$0xf]
    %v911 = vld [vmem:[#allocation16 + $0x10] sm:$0xf]
    %v912 = vld [vmem:[#allocation16 + $0x14] sm:$0xf]
    %v913 = vld [vmem:[#allocation16 + $0x18] sm:$0xf]
    %v914 = vld [vmem:[#allocation16 + $0x1c] sm:$0xf]
    %v923 = vunpack.c.l.b16 %v907
    %v924 = vunpack.c.l.b16 %v908
    %v925 = vunpack.c.l.b16 %v909
    %v926 = vunpack.c.l.b16 %v910
    %v927 = vunpack.c.l.b16 %v911
    %v928 = vunpack.c.l.b16 %v912
    %v929 = vunpack.c.l.b16 %v913
    %v930 = vunpack.c.l.b16 %v914
    %v931 = vpack.c.b16 %v924, %v923
    %v932 = vpack.c.b16 %v926, %v925
    %v933 = vpack.c.b16 %v928, %v927
    %v934 = vpack.c.b16 %v930, %v929
    %v936 = vsel %vm505, %v931, 0
    %v939 = vsel %vm505, %v932, 0
    %v942 = vsel %vm505, %v933, 0
    %v945 = vsel %vm505, %v934, 0
    %947 = vmatpush.bf16.msra.mxu0 0
    %948 = vmatpush.bf16.msra.mxu0 0
    %949 = vmatpush.bf16.msra.mxu0 0
    %950 = vmatpush.bf16.msra.mxu0 0
    %951 = vmatpush.bf16.msra.mxu0 %v906
    %952 = vmatpush.bf16.msra.mxu0 %v905
    %953 = vmatpush.bf16.msra.mxu0 %v904
    %954 = vmatpush.bf16.msra.mxu0 %v903
    %955 = vmatmul.bf16.gmra.mxu0 %v936
    %v956 = vpop.f32.mrf.mxu0
    %v957 = vadd.f32 0.0, %v956
    %v958 = vpop.f32.mrf.mxu0
    %v959 = vadd.f32 0.0, %v958
    %960 = vmatmul.bf16.gmra.mxu0 %v939
    %v961 = vpop.f32.mrf.mxu0
    %v962 = vadd.f32 0.0, %v961
    %v963 = vpop.f32.mrf.mxu0
    %v964 = vadd.f32 0.0, %v963
    %965 = vmatmul.bf16.gmra.mxu0 %v942
    %v966 = vpop.f32.mrf.mxu0
    %v967 = vadd.f32 0.0, %v966
    %v968 = vpop.f32.mrf.mxu0
    %v969 = vadd.f32 0.0, %v968
    %970 = vmatmul.bf16.gmra.mxu0 %v945
    %v971 = vpop.f32.mrf.mxu0
    %v972 = vadd.f32 0.0, %v971
    %v973 = vpop.f32.mrf.mxu0
    %v974 = vadd.f32 0.0, %v973
    %975 = vdwg.mxu0
    %v976 = vpack.c.bf16 %v959, %v957
    %v977 = vpack.c.bf16 %v964, %v962
    %v978 = vpack.c.bf16 %v969, %v967
    %v979 = vpack.c.bf16 %v974, %v972
    %v980 = vld [vmem:[#allocation6] sm:$0xf]
    %v981 = vld [vmem:[#allocation6 + $0x4] sm:$0xf]
    %v982 = vld [vmem:[#allocation6 + $0x8] sm:$0xf]
    %v983 = vld [vmem:[#allocation6 + $0xc] sm:$0xf]
    %v984 = vld [vmem:[#allocation6 + $0x10] sm:$0xf]
    %v985 = vld [vmem:[#allocation6 + $0x14] sm:$0xf]
    %v986 = vld [vmem:[#allocation6 + $0x18] sm:$0xf]
    %v987 = vld [vmem:[#allocation6 + $0x1c] sm:$0xf]
    %v988 = vld [vmem:[#allocation6 + $0x20] sm:$0xf]
    %v989 = vld [vmem:[#allocation6 + $0x24] sm:$0xf]
    %v990 = vld [vmem:[#allocation6 + $0x28] sm:$0xf]
    %v991 = vld [vmem:[#allocation6 + $0x2c] sm:$0xf]
    %v992 = vld [vmem:[#allocation6 + $0x30] sm:$0xf]
    %v993 = vld [vmem:[#allocation6 + $0x34] sm:$0xf]
    %v994 = vld [vmem:[#allocation6 + $0x38] sm:$0xf]
    %v995 = vld [vmem:[#allocation6 + $0x3c] sm:$0xf]
    %v1012 = vunpack.c.l.b16 %v980
    %v1013 = vunpack.c.l.b16 %v981
    %v1014 = vunpack.c.l.b16 %v982
    %v1015 = vunpack.c.l.b16 %v983
    %v1016 = vunpack.c.l.b16 %v984
    %v1017 = vunpack.c.l.b16 %v985
    %v1018 = vunpack.c.l.b16 %v986
    %v1019 = vunpack.c.l.b16 %v987
    %v1020 = vunpack.c.l.b16 %v988
    %v1021 = vunpack.c.l.b16 %v989
    %v1022 = vunpack.c.l.b16 %v990
    %v1023 = vunpack.c.l.b16 %v991
    %v1024 = vunpack.c.l.b16 %v992
    %v1025 = vunpack.c.l.b16 %v993
    %v1026 = vunpack.c.l.b16 %v994
    %v1027 = vunpack.c.l.b16 %v995
    %v1028 = vpack.c.b16 %v1013, %v1012
    %v1029 = vpack.c.b16 %v1015, %v1014
    %v1030 = vpack.c.b16 %v1017, %v1016
    %v1031 = vpack.c.b16 %v1019, %v1018
    %v1032 = vpack.c.b16 %v1021, %v1020
    %v1033 = vpack.c.b16 %v1023, %v1022
    %v1034 = vpack.c.b16 %v1025, %v1024
    %v1035 = vpack.c.b16 %v1027, %v1026
    %1044 = vmatpush.bf16.msra.mxu0 %v1035
    %1045 = vmatpush.bf16.msra.mxu0 %v1034
    %1046 = vmatpush.bf16.msra.mxu0 %v1033
    %1047 = vmatpush.bf16.msra.mxu0 %v1032
    %1048 = vmatpush.bf16.msra.mxu0 %v1031
    %1049 = vmatpush.bf16.msra.mxu0 %v1030
    %1050 = vmatpush.bf16.msra.mxu0 %v1029
    %1051 = vmatpush.bf16.msra.mxu0 %v1028
    %1052 = vmatmul.bf16.gmra.mxu0 %v976
    %v1053 = vpop.f32.mrf.mxu0
    %v1054 = vadd.f32 0.0, %v1053
    %v1055 = vpop.f32.mrf.mxu0
    %v1056 = vadd.f32 0.0, %v1055
    %1057 = vmatmul.bf16.gmra.mxu0 %v977
    %v1058 = vpop.f32.mrf.mxu0
    %v1059 = vadd.f32 0.0, %v1058
    %v1060 = vpop.f32.mrf.mxu0
    %v1061 = vadd.f32 0.0, %v1060
    %1062 = vmatmul.bf16.gmra.mxu0 %v978
    %v1063 = vpop.f32.mrf.mxu0
    %v1064 = vadd.f32 0.0, %v1063
    %v1065 = vpop.f32.mrf.mxu0
    %v1066 = vadd.f32 0.0, %v1065
    %1067 = vmatmul.bf16.gmra.mxu0 %v979
    %v1068 = vpop.f32.mrf.mxu0
    %v1069 = vadd.f32 0.0, %v1068
    %v1070 = vpop.f32.mrf.mxu0
    %v1071 = vadd.f32 0.0, %v1070
    %1072 = vdwg.mxu0
    %v1073 = vpack.c.bf16 %v1056, %v1054
    %v1074 = vpack.c.bf16 %v1061, %v1059
    %v1075 = vpack.c.bf16 %v1066, %v1064
    %v1076 = vpack.c.bf16 %v1071, %v1069
    %v1077 = vld [vmem:[#allocation13] sm:$0xf]
    %v1078 = vld [vmem:[#allocation13 + $0x4] sm:$0xf]
    %v1079 = vld [vmem:[#allocation13 + $0x8] sm:$0xf]
    %v1080 = vld [vmem:[#allocation13 + $0xc] sm:$0xf]
    %v1081 = vld [vmem:[#allocation13 + $0x10] sm:$0xf]
    %v1082 = vld [vmem:[#allocation13 + $0x14] sm:$0xf]
    %v1083 = vld [vmem:[#allocation13 + $0x18] sm:$0xf]
    %v1084 = vld [vmem:[#allocation13 + $0x1c] sm:$0xf]
    %v1085 = vld [vmem:[#allocation22] sm:$0xff]
    %v1086 = vld [vmem:[#allocation22 + $0x8] sm:$0xff]
    %v1087 = vld [vmem:[#allocation22 + $0x10] sm:$0xff]
    %v1088 = vld [vmem:[#allocation22 + $0x18] sm:$0xff]
    %v1089 = vld [vmem:[#allocation22 + $0x20] sm:$0xff]
    %v1090 = vld [vmem:[#allocation22 + $0x28] sm:$0xff]
    %v1091 = vld [vmem:[#allocation22 + $0x30] sm:$0xff]
    %v1092 = vld [vmem:[#allocation22 + $0x38] sm:$0xff]
    %v1101 = vunpack.c.l.b16 %v1077
    %v1102 = vunpack.c.l.b16 %v1078
    %v1103 = vunpack.c.l.b16 %v1079
    %v1104 = vunpack.c.l.b16 %v1080
    %v1105 = vunpack.c.l.b16 %v1081
    %v1106 = vunpack.c.l.b16 %v1082
    %v1107 = vunpack.c.l.b16 %v1083
    %v1108 = vunpack.c.l.b16 %v1084
    %v1109 = vpack.c.b16 %v1102, %v1101
    %v1110 = vpack.c.b16 %v1104, %v1103
    %v1111 = vpack.c.b16 %v1106, %v1105
    %v1112 = vpack.c.b16 %v1108, %v1107
    %v1114 = vsel %vm505, %v1109, 0
    %v1117 = vsel %vm505, %v1110, 0
    %v1120 = vsel %vm505, %v1111, 0
    %v1123 = vsel %vm505, %v1112, 0
    %1125 = vmatpush.bf16.msra.mxu0 0
    %1126 = vmatpush.bf16.msra.mxu0 0
    %1127 = vmatpush.bf16.msra.mxu0 0
    %1128 = vmatpush.bf16.msra.mxu0 0
    %1129 = vmatpush.bf16.msra.mxu0 %v1076
    %1130 = vmatpush.bf16.msra.mxu0 %v1075
    %1131 = vmatpush.bf16.msra.mxu0 %v1074
    %1132 = vmatpush.bf16.msra.mxu0 %v1073
    %1133 = vmatmul.bf16.gmra.mxu0 %v1114
    %v1134 = vpop.f32.mrf.mxu0
    %v1135 = vadd.f32 %v1085, %v1134
    %v1136 = vpop.f32.mrf.mxu0
    %v1137 = vadd.f32 %v1086, %v1136
    %1138 = vmatmul.bf16.gmra.mxu0 %v1117
    %v1139 = vpop.f32.mrf.mxu0
    %v1140 = vadd.f32 %v1087, %v1139
    %v1141 = vpop.f32.mrf.mxu0
    %v1142 = vadd.f32 %v1088, %v1141
    %1143 = vmatmul.bf16.gmra.mxu0 %v1120
    %v1144 = vpop.f32.mrf.mxu0
    %v1145 = vadd.f32 %v1089, %v1144
    %v1146 = vpop.f32.mrf.mxu0
    %v1147 = vadd.f32 %v1090, %v1146
    %1148 = vmatmul.bf16.gmra.mxu0 %v1123
    %v1149 = vpop.f32.mrf.mxu0
    %v1150 = vadd.f32 %v1091, %v1149
    %v1151 = vpop.f32.mrf.mxu0
    %v1152 = vadd.f32 %v1092, %v1151
    %1153 = vdwg.mxu0
    %s1154 = scalar_lea.vmem [#allocation13], 32
    %v1155 = vld [vmem:[%s1154] sm:$0xf]
    %v1156 = vld [vmem:[%s1154 + $0x4] sm:$0xf]
    %v1157 = vld [vmem:[%s1154 + $0x8] sm:$0xf]
    %v1158 = vld [vmem:[%s1154 + $0xc] sm:$0xf]
    %v1159 = vld [vmem:[%s1154 + $0x10] sm:$0xf]
    %v1160 = vld [vmem:[%s1154 + $0x14] sm:$0xf]
    %v1161 = vld [vmem:[%s1154 + $0x18] sm:$0xf]
    %v1162 = vld [vmem:[%s1154 + $0x1c] sm:$0xf]
    %s1163 = scalar_lea.vmem [#allocation22], 64
    %v1164 = vld [vmem:[%s1163] sm:$0xff]
    %v1165 = vld [vmem:[%s1163 + $0x8] sm:$0xff]
    %v1166 = vld [vmem:[%s1163 + $0x10] sm:$0xff]
    %v1167 = vld [vmem:[%s1163 + $0x18] sm:$0xff]
    %v1168 = vld [vmem:[%s1163 + $0x20] sm:$0xff]
    %v1169 = vld [vmem:[%s1163 + $0x28] sm:$0xff]
    %v1170 = vld [vmem:[%s1163 + $0x30] sm:$0xff]
    %v1171 = vld [vmem:[%s1163 + $0x38] sm:$0xff]
    %v1180 = vunpack.c.l.b16 %v1155
    %v1181 = vunpack.c.l.b16 %v1156
    %v1182 = vunpack.c.l.b16 %v1157
    %v1183 = vunpack.c.l.b16 %v1158
    %v1184 = vunpack.c.l.b16 %v1159
    %v1185 = vunpack.c.l.b16 %v1160
    %v1186 = vunpack.c.l.b16 %v1161
    %v1187 = vunpack.c.l.b16 %v1162
    %v1188 = vpack.c.b16 %v1181, %v1180
    %v1189 = vpack.c.b16 %v1183, %v1182
    %v1190 = vpack.c.b16 %v1185, %v1184
    %v1191 = vpack.c.b16 %v1187, %v1186
    %v1193 = vsel %vm505, %v1188, 0
    %v1196 = vsel %vm505, %v1189, 0
    %v1199 = vsel %vm505, %v1190, 0
    %v1202 = vsel %vm505, %v1191, 0
    %1204 = vmatpush.bf16.msra.mxu0 0
    %1205 = vmatpush.bf16.msra.mxu0 0
    %1206 = vmatpush.bf16.msra.mxu0 0
    %1207 = vmatpush.bf16.msra.mxu0 0
    %1208 = vmatpush.bf16.msra.mxu0 %v1076
    %1209 = vmatpush.bf16.msra.mxu0 %v1075
    %1210 = vmatpush.bf16.msra.mxu0 %v1074
    %1211 = vmatpush.bf16.msra.mxu0 %v1073
    %1212 = vmatmul.bf16.gmra.mxu0 %v1193
    %v1213 = vpop.f32.mrf.mxu0
    %v1214 = vadd.f32 %v1164, %v1213
    %v1215 = vpop.f32.mrf.mxu0
    %v1216 = vadd.f32 %v1165, %v1215
    %1217 = vmatmul.bf16.gmra.mxu0 %v1196
    %v1218 = vpop.f32.mrf.mxu0
    %v1219 = vadd.f32 %v1166, %v1218
    %v1220 = vpop.f32.mrf.mxu0
    %v1221 = vadd.f32 %v1167, %v1220
    %1222 = vmatmul.bf16.gmra.mxu0 %v1199
    %v1223 = vpop.f32.mrf.mxu0
    %v1224 = vadd.f32 %v1168, %v1223
    %v1225 = vpop.f32.mrf.mxu0
    %v1226 = vadd.f32 %v1169, %v1225
    %1227 = vmatmul.bf16.gmra.mxu0 %v1202
    %v1228 = vpop.f32.mrf.mxu0
    %v1229 = vadd.f32 %v1170, %v1228
    %v1230 = vpop.f32.mrf.mxu0
    %v1231 = vadd.f32 %v1171, %v1230
    %1232 = vdwg.mxu0
    %v1233 = vmax.f32 %v1135, %v1214
    %v1234 = vmax.f32 %v1137, %v1216
    %v1235 = vmax.f32 %v1140, %v1219
    %v1236 = vmax.f32 %v1142, %v1221
    %v1237 = vmax.f32 %v1145, %v1224
    %v1238 = vmax.f32 %v1147, %v1226
    %v1239 = vmax.f32 %v1150, %v1229
    %v1240 = vmax.f32 %v1152, %v1231
    %s1241 = scalar_lea.vmem [#allocation13], 64
    %v1242 = vld [vmem:[%s1241] sm:$0xf]
    %v1243 = vld [vmem:[%s1241 + $0x4] sm:$0xf]
    %v1244 = vld [vmem:[%s1241 + $0x8] sm:$0xf]
    %v1245 = vld [vmem:[%s1241 + $0xc] sm:$0xf]
    %v1246 = vld [vmem:[%s1241 + $0x10] sm:$0xf]
    %v1247 = vld [vmem:[%s1241 + $0x14] sm:$0xf]
    %v1248 = vld [vmem:[%s1241 + $0x18] sm:$0xf]
    %v1249 = vld [vmem:[%s1241 + $0x1c] sm:$0xf]
    %s1250 = scalar_lea.vmem [#allocation22], 128
    %v1251 = vld [vmem:[%s1250] sm:$0xff]
    %v1252 = vld [vmem:[%s1250 + $0x8] sm:$0xff]
    %v1253 = vld [vmem:[%s1250 + $0x10] sm:$0xff]
    %v1254 = vld [vmem:[%s1250 + $0x18] sm:$0xff]
    %v1255 = vld [vmem:[%s1250 + $0x20] sm:$0xff]
    %v1256 = vld [vmem:[%s1250 + $0x28] sm:$0xff]
    %v1257 = vld [vmem:[%s1250 + $0x30] sm:$0xff]
    %v1258 = vld [vmem:[%s1250 + $0x38] sm:$0xff]
    %v1267 = vunpack.c.l.b16 %v1242
    %v1268 = vunpack.c.l.b16 %v1243
    %v1269 = vunpack.c.l.b16 %v1244
    %v1270 = vunpack.c.l.b16 %v1245
    %v1271 = vunpack.c.l.b16 %v1246
    %v1272 = vunpack.c.l.b16 %v1247
    %v1273 = vunpack.c.l.b16 %v1248
    %v1274 = vunpack.c.l.b16 %v1249
    %v1275 = vpack.c.b16 %v1268, %v1267
    %v1276 = vpack.c.b16 %v1270, %v1269
    %v1277 = vpack.c.b16 %v1272, %v1271
    %v1278 = vpack.c.b16 %v1274, %v1273
    %v1280 = vsel %vm505, %v1275, 0
    %v1283 = vsel %vm505, %v1276, 0
    %v1286 = vsel %vm505, %v1277, 0
    %v1289 = vsel %vm505, %v1278, 0
    %1291 = vmatpush.bf16.msra.mxu0 0
    %1292 = vmatpush.bf16.msra.mxu0 0
    %1293 = vmatpush.bf16.msra.mxu0 0
    %1294 = vmatpush.bf16.msra.mxu0 0
    %1295 = vmatpush.bf16.msra.mxu0 %v1076
    %1296 = vmatpush.bf16.msra.mxu0 %v1075
    %1297 = vmatpush.bf16.msra.mxu0 %v1074
    %1298 = vmatpush.bf16.msra.mxu0 %v1073
    %1299 = vmatmul.bf16.gmra.mxu0 %v1280
    %v1300 = vpop.f32.mrf.mxu0
    %v1301 = vadd.f32 %v1251, %v1300
    %v1302 = vpop.f32.mrf.mxu0
    %v1303 = vadd.f32 %v1252, %v1302
    %1304 = vmatmul.bf16.gmra.mxu0 %v1283
    %v1305 = vpop.f32.mrf.mxu0
    %v1306 = vadd.f32 %v1253, %v1305
    %v1307 = vpop.f32.mrf.mxu0
    %v1308 = vadd.f32 %v1254, %v1307
    %1309 = vmatmul.bf16.gmra.mxu0 %v1286
    %v1310 = vpop.f32.mrf.mxu0
    %v1311 = vadd.f32 %v1255, %v1310
    %v1312 = vpop.f32.mrf.mxu0
    %v1313 = vadd.f32 %v1256, %v1312
    %1314 = vmatmul.bf16.gmra.mxu0 %v1289
    %v1315 = vpop.f32.mrf.mxu0
    %v1316 = vadd.f32 %v1257, %v1315
    %v1317 = vpop.f32.mrf.mxu0
    %v1318 = vadd.f32 %v1258, %v1317
    %1319 = vdwg.mxu0
    %v1320 = vmax.f32 %v1233, %v1301
    %v1321 = vmax.f32 %v1234, %v1303
    %v1322 = vmax.f32 %v1235, %v1306
    %v1323 = vmax.f32 %v1236, %v1308
    %v1324 = vmax.f32 %v1237, %v1311
    %v1325 = vmax.f32 %v1238, %v1313
    %v1326 = vmax.f32 %v1239, %v1316
    %v1327 = vmax.f32 %v1240, %v1318
    %s1328 = scalar_lea.vmem [#allocation13], 96
    %v1329 = vld [vmem:[%s1328] sm:$0xf]
    %v1330 = vld [vmem:[%s1328 + $0x4] sm:$0xf]
    %v1331 = vld [vmem:[%s1328 + $0x8] sm:$0xf]
    %v1332 = vld [vmem:[%s1328 + $0xc] sm:$0xf]
    %v1333 = vld [vmem:[%s1328 + $0x10] sm:$0xf]
    %v1334 = vld [vmem:[%s1328 + $0x14] sm:$0xf]
    %v1335 = vld [vmem:[%s1328 + $0x18] sm:$0xf]
    %v1336 = vld [vmem:[%s1328 + $0x1c] sm:$0xf]
    %s1337 = scalar_lea.vmem [#allocation22], 192
    %v1338 = vld [vmem:[%s1337] sm:$0xff]
    %v1339 = vld [vmem:[%s1337 + $0x8] sm:$0xff]
    %v1340 = vld [vmem:[%s1337 + $0x10] sm:$0xff]
    %v1341 = vld [vmem:[%s1337 + $0x18] sm:$0xff]
    %v1342 = vld [vmem:[%s1337 + $0x20] sm:$0xff]
    %v1343 = vld [vmem:[%s1337 + $0x28] sm:$0xff]
    %v1344 = vld [vmem:[%s1337 + $0x30] sm:$0xff]
    %v1345 = vld [vmem:[%s1337 + $0x38] sm:$0xff]
    %v1354 = vunpack.c.l.b16 %v1329
    %v1355 = vunpack.c.l.b16 %v1330
    %v1356 = vunpack.c.l.b16 %v1331
    %v1357 = vunpack.c.l.b16 %v1332
    %v1358 = vunpack.c.l.b16 %v1333
    %v1359 = vunpack.c.l.b16 %v1334
    %v1360 = vunpack.c.l.b16 %v1335
    %v1361 = vunpack.c.l.b16 %v1336
    %v1362 = vpack.c.b16 %v1355, %v1354
    %v1363 = vpack.c.b16 %v1357, %v1356
    %v1364 = vpack.c.b16 %v1359, %v1358
    %v1365 = vpack.c.b16 %v1361, %v1360
    %v1367 = vsel %vm505, %v1362, 0
    %v1370 = vsel %vm505, %v1363, 0
    %v1373 = vsel %vm505, %v1364, 0
    %v1376 = vsel %vm505, %v1365, 0
    %1378 = vmatpush.bf16.msra.mxu0 0
    %1379 = vmatpush.bf16.msra.mxu0 0
    %1380 = vmatpush.bf16.msra.mxu0 0
    %1381 = vmatpush.bf16.msra.mxu0 0
    %1382 = vmatpush.bf16.msra.mxu0 %v1076
    %1383 = vmatpush.bf16.msra.mxu0 %v1075
    %1384 = vmatpush.bf16.msra.mxu0 %v1074
    %1385 = vmatpush.bf16.msra.mxu0 %v1073
    %1386 = vmatmul.bf16.gmra.mxu0 %v1367
    %v1387 = vpop.f32.mrf.mxu0
    %v1388 = vadd.f32 %v1338, %v1387
    %v1389 = vpop.f32.mrf.mxu0
    %v1390 = vadd.f32 %v1339, %v1389
    %1391 = vmatmul.bf16.gmra.mxu0 %v1370
    %v1392 = vpop.f32.mrf.mxu0
    %v1393 = vadd.f32 %v1340, %v1392
    %v1394 = vpop.f32.mrf.mxu0
    %v1395 = vadd.f32 %v1341, %v1394
    %1396 = vmatmul.bf16.gmra.mxu0 %v1373
    %v1397 = vpop.f32.mrf.mxu0
    %v1398 = vadd.f32 %v1342, %v1397
    %v1399 = vpop.f32.mrf.mxu0
    %v1400 = vadd.f32 %v1343, %v1399
    %1401 = vmatmul.bf16.gmra.mxu0 %v1376
    %v1402 = vpop.f32.mrf.mxu0
    %v1403 = vadd.f32 %v1344, %v1402
    %v1404 = vpop.f32.mrf.mxu0
    %v1405 = vadd.f32 %v1345, %v1404
    %1406 = vdwg.mxu0
    %v1407 = vmax.f32 %v1320, %v1388
    %v1408 = vmax.f32 %v1321, %v1390
    %v1409 = vmax.f32 %v1322, %v1393
    %v1410 = vmax.f32 %v1323, %v1395
    %v1411 = vmax.f32 %v1324, %v1398
    %v1412 = vmax.f32 %v1325, %v1400
    %v1413 = vmax.f32 %v1326, %v1403
    %v1414 = vmax.f32 %v1327, %v1405
    %s1415 = scalar_lea.vmem [#allocation13], 128
    %v1416 = vld [vmem:[%s1415] sm:$0xf]
    %v1417 = vld [vmem:[%s1415 + $0x4] sm:$0xf]
    %v1418 = vld [vmem:[%s1415 + $0x8] sm:$0xf]
    %v1419 = vld [vmem:[%s1415 + $0xc] sm:$0xf]
    %v1420 = vld [vmem:[%s1415 + $0x10] sm:$0xf]
    %v1421 = vld [vmem:[%s1415 + $0x14] sm:$0xf]
    %v1422 = vld [vmem:[%s1415 + $0x18] sm:$0xf]
    %v1423 = vld [vmem:[%s1415 + $0x1c] sm:$0xf]
    %s1424 = scalar_lea.vmem [#allocation22], 256
    %v1425 = vld [vmem:[%s1424] sm:$0xff]
    %v1426 = vld [vmem:[%s1424 + $0x8] sm:$0xff]
    %v1427 = vld [vmem:[%s1424 + $0x10] sm:$0xff]
    %v1428 = vld [vmem:[%s1424 + $0x18] sm:$0xff]
    %v1429 = vld [vmem:[%s1424 + $0x20] sm:$0xff]
    %v1430 = vld [vmem:[%s1424 + $0x28] sm:$0xff]
    %v1431 = vld [vmem:[%s1424 + $0x30] sm:$0xff]
    %v1432 = vld [vmem:[%s1424 + $0x38] sm:$0xff]
    %v1441 = vunpack.c.l.b16 %v1416
    %v1442 = vunpack.c.l.b16 %v1417
    %v1443 = vunpack.c.l.b16 %v1418
    %v1444 = vunpack.c.l.b16 %v1419
    %v1445 = vunpack.c.l.b16 %v1420
    %v1446 = vunpack.c.l.b16 %v1421
    %v1447 = vunpack.c.l.b16 %v1422
    %v1448 = vunpack.c.l.b16 %v1423
    %v1449 = vpack.c.b16 %v1442, %v1441
    %v1450 = vpack.c.b16 %v1444, %v1443
    %v1451 = vpack.c.b16 %v1446, %v1445
    %v1452 = vpack.c.b16 %v1448, %v1447
    %v1454 = vsel %vm505, %v1449, 0
    %v1457 = vsel %vm505, %v1450, 0
    %v1460 = vsel %vm505, %v1451, 0
    %v1463 = vsel %vm505, %v1452, 0
    %1465 = vmatpush.bf16.msra.mxu0 0
    %1466 = vmatpush.bf16.msra.mxu0 0
    %1467 = vmatpush.bf16.msra.mxu0 0
    %1468 = vmatpush.bf16.msra.mxu0 0
    %1469 = vmatpush.bf16.msra.mxu0 %v1076
    %1470 = vmatpush.bf16.msra.mxu0 %v1075
    %1471 = vmatpush.bf16.msra.mxu0 %v1074
    %1472 = vmatpush.bf16.msra.mxu0 %v1073
    %1473 = vmatmul.bf16.gmra.mxu0 %v1454
    %v1474 = vpop.f32.mrf.mxu0
    %v1475 = vadd.f32 %v1425, %v1474
    %v1476 = vpop.f32.mrf.mxu0
    %v1477 = vadd.f32 %v1426, %v1476
    %1478 = vmatmul.bf16.gmra.mxu0 %v1457
    %v1479 = vpop.f32.mrf.mxu0
    %v1480 = vadd.f32 %v1427, %v1479
    %v1481 = vpop.f32.mrf.mxu0
    %v1482 = vadd.f32 %v1428, %v1481
    %1483 = vmatmul.bf16.gmra.mxu0 %v1460
    %v1484 = vpop.f32.mrf.mxu0
    %v1485 = vadd.f32 %v1429, %v1484
    %v1486 = vpop.f32.mrf.mxu0
    %v1487 = vadd.f32 %v1430, %v1486
    %1488 = vmatmul.bf16.gmra.mxu0 %v1463
    %v1489 = vpop.f32.mrf.mxu0
    %v1490 = vadd.f32 %v1431, %v1489
    %v1491 = vpop.f32.mrf.mxu0
    %v1492 = vadd.f32 %v1432, %v1491
    %1493 = vdwg.mxu0
    %v1494 = vmax.f32 %v1407, %v1475
    %v1495 = vmax.f32 %v1408, %v1477
    %v1496 = vmax.f32 %v1409, %v1480
    %v1497 = vmax.f32 %v1410, %v1482
    %v1498 = vmax.f32 %v1411, %v1485
    %v1499 = vmax.f32 %v1412, %v1487
    %v1500 = vmax.f32 %v1413, %v1490
    %v1501 = vmax.f32 %v1414, %v1492
    %v1502 = vmax.f32 %v1494, 0.0
    %v1503 = vmax.f32 %v1495, 0.0
    %v1504 = vmax.f32 %v1496, 0.0
    %v1505 = vmax.f32 %v1497, 0.0
    %v1506 = vmax.f32 %v1498, 0.0
    %v1507 = vmax.f32 %v1499, 0.0
    %v1508 = vmax.f32 %v1500, 0.0
    %v1509 = vmax.f32 %v1501, 0.0
    %v1510 = vpack.c.bf16 %v1503, %v1502
    %v1511 = vpack.c.bf16 %v1505, %v1504
    %v1512 = vpack.c.bf16 %v1507, %v1506
    %v1513 = vpack.c.bf16 %v1509, %v1508
    %v1514 = vld [vmem:[#allocation7] sm:$0xf]
    %v1515 = vld [vmem:[#allocation7 + $0x4] sm:$0xf]
    %v1516 = vld [vmem:[#allocation7 + $0x8] sm:$0xf]
    %v1517 = vld [vmem:[#allocation7 + $0xc] sm:$0xf]
    %v1518 = vld [vmem:[#allocation7 + $0x10] sm:$0xf]
    %v1519 = vld [vmem:[#allocation7 + $0x14] sm:$0xf]
    %v1520 = vld [vmem:[#allocation7 + $0x18] sm:$0xf]
    %v1521 = vld [vmem:[#allocation7 + $0x1c] sm:$0xf]
    %v1522 = vld [vmem:[#allocation7 + $0x20] sm:$0xf]
    %v1523 = vld [vmem:[#allocation7 + $0x24] sm:$0xf]
    %v1524 = vld [vmem:[#allocation7 + $0x28] sm:$0xf]
    %v1525 = vld [vmem:[#allocation7 + $0x2c] sm:$0xf]
    %v1526 = vld [vmem:[#allocation7 + $0x30] sm:$0xf]
    %v1527 = vld [vmem:[#allocation7 + $0x34] sm:$0xf]
    %v1528 = vld [vmem:[#allocation7 + $0x38] sm:$0xf]
    %v1529 = vld [vmem:[#allocation7 + $0x3c] sm:$0xf]
    %v1546 = vunpack.c.l.b16 %v1514
    %v1547 = vunpack.c.l.b16 %v1515
    %v1548 = vunpack.c.l.b16 %v1516
    %v1549 = vunpack.c.l.b16 %v1517
    %v1550 = vunpack.c.l.b16 %v1518
    %v1551 = vunpack.c.l.b16 %v1519
    %v1552 = vunpack.c.l.b16 %v1520
    %v1553 = vunpack.c.l.b16 %v1521
    %v1554 = vunpack.c.l.b16 %v1522
    %v1555 = vunpack.c.l.b16 %v1523
    %v1556 = vunpack.c.l.b16 %v1524
    %v1557 = vunpack.c.l.b16 %v1525
    %v1558 = vunpack.c.l.b16 %v1526
    %v1559 = vunpack.c.l.b16 %v1527
    %v1560 = vunpack.c.l.b16 %v1528
    %v1561 = vunpack.c.l.b16 %v1529
    %v1562 = vpack.c.b16 %v1547, %v1546
    %v1563 = vpack.c.b16 %v1549, %v1548
    %v1564 = vpack.c.b16 %v1551, %v1550
    %v1565 = vpack.c.b16 %v1553, %v1552
    %v1566 = vpack.c.b16 %v1555, %v1554
    %v1567 = vpack.c.b16 %v1557, %v1556
    %v1568 = vpack.c.b16 %v1559, %v1558
    %v1569 = vpack.c.b16 %v1561, %v1560
    %1578 = vmatpush.bf16.msra.mxu0 %v1569
    %1579 = vmatpush.bf16.msra.mxu0 %v1568
    %1580 = vmatpush.bf16.msra.mxu0 %v1567
    %1581 = vmatpush.bf16.msra.mxu0 %v1566
    %1582 = vmatpush.bf16.msra.mxu0 %v1565
    %1583 = vmatpush.bf16.msra.mxu0 %v1564
    %1584 = vmatpush.bf16.msra.mxu0 %v1563
    %1585 = vmatpush.bf16.msra.mxu0 %v1562
    %1586 = vmatmul.bf16.gmra.mxu0 %v1510
    %v1587 = vpop.f32.mrf.mxu0
    %v1588 = vadd.f32 0.0, %v1587
    %v1589 = vpop.f32.mrf.mxu0
    %v1590 = vadd.f32 0.0, %v1589
    %1591 = vmatmul.bf16.gmra.mxu0 %v1511
    %v1592 = vpop.f32.mrf.mxu0
    %v1593 = vadd.f32 0.0, %v1592
    %v1594 = vpop.f32.mrf.mxu0
    %v1595 = vadd.f32 0.0, %v1594
    %1596 = vmatmul.bf16.gmra.mxu0 %v1512
    %v1597 = vpop.f32.mrf.mxu0
    %v1598 = vadd.f32 0.0, %v1597
    %v1599 = vpop.f32.mrf.mxu0
    %v1600 = vadd.f32 0.0, %v1599
    %1601 = vmatmul.bf16.gmra.mxu0 %v1513
    %v1602 = vpop.f32.mrf.mxu0
    %v1603 = vadd.f32 0.0, %v1602
    %v1604 = vpop.f32.mrf.mxu0
    %v1605 = vadd.f32 0.0, %v1604
    %1606 = vdwg.mxu0
    %v1607 = vpack.c.bf16 %v1590, %v1588
    %v1608 = vpack.c.bf16 %v1595, %v1593
    %v1609 = vpack.c.bf16 %v1600, %v1598
    %v1610 = vpack.c.bf16 %v1605, %v1603
    %v1611 = vld [vmem:[#allocation24] sm:$0xff]
    %v1612 = vld [vmem:[#allocation24 + $0x8] sm:$0xff]
    %v1613 = vld [vmem:[#allocation24 + $0x10] sm:$0xff]
    %v1614 = vld [vmem:[#allocation24 + $0x18] sm:$0xff]
    %v1615 = vld [vmem:[#allocation24 + $0x20] sm:$0xff]
    %v1616 = vld [vmem:[#allocation24 + $0x28] sm:$0xff]
    %v1617 = vld [vmem:[#allocation24 + $0x30] sm:$0xff]
    %v1618 = vld [vmem:[#allocation24 + $0x38] sm:$0xff]
    %1619 = vmatpush.bf16.msra.mxu0 0
    %1620 = vmatpush.bf16.msra.mxu0 0
    %1621 = vmatpush.bf16.msra.mxu0 0
    %1622 = vmatpush.bf16.msra.mxu0 0
    %1623 = vmatpush.bf16.msra.mxu0 %v1610
    %1624 = vmatpush.bf16.msra.mxu0 %v1609
    %1625 = vmatpush.bf16.msra.mxu0 %v1608
    %1626 = vmatpush.bf16.msra.mxu0 %v1607
    %1627 = vmatmul.bf16.gmra.mxu0 %v1114
    %v1628 = vpop.f32.mrf.mxu0
    %v1629 = vadd.f32 %v1611, %v1628
    %v1630 = vpop.f32.mrf.mxu0
    %v1631 = vadd.f32 %v1612, %v1630
    %1632 = vmatmul.bf16.gmra.mxu0 %v1117
    %v1633 = vpop.f32.mrf.mxu0
    %v1634 = vadd.f32 %v1613, %v1633
    %v1635 = vpop.f32.mrf.mxu0
    %v1636 = vadd.f32 %v1614, %v1635
    %1637 = vmatmul.bf16.gmra.mxu0 %v1120
    %v1638 = vpop.f32.mrf.mxu0
    %v1639 = vadd.f32 %v1615, %v1638
    %v1640 = vpop.f32.mrf.mxu0
    %v1641 = vadd.f32 %v1616, %v1640
    %1642 = vmatmul.bf16.gmra.mxu0 %v1123
    %v1643 = vpop.f32.mrf.mxu0
    %v1644 = vadd.f32 %v1617, %v1643
    %v1645 = vpop.f32.mrf.mxu0
    %v1646 = vadd.f32 %v1618, %v1645
    %1647 = vdwg.mxu0
    %s1648 = scalar_lea.vmem [#allocation24], 64
    %v1649 = vld [vmem:[%s1648] sm:$0xff]
    %v1650 = vld [vmem:[%s1648 + $0x8] sm:$0xff]
    %v1651 = vld [vmem:[%s1648 + $0x10] sm:$0xff]
    %v1652 = vld [vmem:[%s1648 + $0x18] sm:$0xff]
    %v1653 = vld [vmem:[%s1648 + $0x20] sm:$0xff]
    %v1654 = vld [vmem:[%s1648 + $0x28] sm:$0xff]
    %v1655 = vld [vmem:[%s1648 + $0x30] sm:$0xff]
    %v1656 = vld [vmem:[%s1648 + $0x38] sm:$0xff]
    %1657 = vmatpush.bf16.msra.mxu0 0
    %1658 = vmatpush.bf16.msra.mxu0 0
    %1659 = vmatpush.bf16.msra.mxu0 0
    %1660 = vmatpush.bf16.msra.mxu0 0
    %1661 = vmatpush.bf16.msra.mxu0 %v1610
    %1662 = vmatpush.bf16.msra.mxu0 %v1609
    %1663 = vmatpush.bf16.msra.mxu0 %v1608
    %1664 = vmatpush.bf16.msra.mxu0 %v1607
    %1665 = vmatmul.bf16.gmra.mxu0 %v1193
    %v1666 = vpop.f32.mrf.mxu0
    %v1667 = vadd.f32 %v1649, %v1666
    %v1668 = vpop.f32.mrf.mxu0
    %v1669 = vadd.f32 %v1650, %v1668
    %1670 = vmatmul.bf16.gmra.mxu0 %v1196
    %v1671 = vpop.f32.mrf.mxu0
    %v1672 = vadd.f32 %v1651, %v1671
    %v1673 = vpop.f32.mrf.mxu0
    %v1674 = vadd.f32 %v1652, %v1673
    %1675 = vmatmul.bf16.gmra.mxu0 %v1199
    %v1676 = vpop.f32.mrf.mxu0
    %v1677 = vadd.f32 %v1653, %v1676
    %v1678 = vpop.f32.mrf.mxu0
    %v1679 = vadd.f32 %v1654, %v1678
    %1680 = vmatmul.bf16.gmra.mxu0 %v1202
    %v1681 = vpop.f32.mrf.mxu0
    %v1682 = vadd.f32 %v1655, %v1681
    %v1683 = vpop.f32.mrf.mxu0
    %v1684 = vadd.f32 %v1656, %v1683
    %1685 = vdwg.mxu0
    %v1686 = vmax.f32 %v1629, %v1667
    %v1687 = vmax.f32 %v1631, %v1669
    %v1688 = vmax.f32 %v1634, %v1672
    %v1689 = vmax.f32 %v1636, %v1674
    %v1690 = vmax.f32 %v1639, %v1677
    %v1691 = vmax.f32 %v1641, %v1679
    %v1692 = vmax.f32 %v1644, %v1682
    %v1693 = vmax.f32 %v1646, %v1684
    %s1694 = scalar_lea.vmem [#allocation24], 128
    %v1695 = vld [vmem:[%s1694] sm:$0xff]
    %v1696 = vld [vmem:[%s1694 + $0x8] sm:$0xff]
    %v1697 = vld [vmem:[%s1694 + $0x10] sm:$0xff]
    %v1698 = vld [vmem:[%s1694 + $0x18] sm:$0xff]
    %v1699 = vld [vmem:[%s1694 + $0x20] sm:$0xff]
    %v1700 = vld [vmem:[%s1694 + $0x28] sm:$0xff]
    %v1701 = vld [vmem:[%s1694 + $0x30] sm:$0xff]
    %v1702 = vld [vmem:[%s1694 + $0x38] sm:$0xff]
    %1703 = vmatpush.bf16.msra.mxu0 0
    %1704 = vmatpush.bf16.msra.mxu0 0
    %1705 = vmatpush.bf16.msra.mxu0 0
    %1706 = vmatpush.bf16.msra.mxu0 0
    %1707 = vmatpush.bf16.msra.mxu0 %v1610
    %1708 = vmatpush.bf16.msra.mxu0 %v1609
    %1709 = vmatpush.bf16.msra.mxu0 %v1608
    %1710 = vmatpush.bf16.msra.mxu0 %v1607
    %1711 = vmatmul.bf16.gmra.mxu0 %v1280
    %v1712 = vpop.f32.mrf.mxu0
    %v1713 = vadd.f32 %v1695, %v1712
    %v1714 = vpop.f32.mrf.mxu0
    %v1715 = vadd.f32 %v1696, %v1714
    %1716 = vmatmul.bf16.gmra.mxu0 %v1283
    %v1717 = vpop.f32.mrf.mxu0
    %v1718 = vadd.f32 %v1697, %v1717
    %v1719 = vpop.f32.mrf.mxu0
    %v1720 = vadd.f32 %v1698, %v1719
    %1721 = vmatmul.bf16.gmra.mxu0 %v1286
    %v1722 = vpop.f32.mrf.mxu0
    %v1723 = vadd.f32 %v1699, %v1722
    %v1724 = vpop.f32.mrf.mxu0
    %v1725 = vadd.f32 %v1700, %v1724
    %1726 = vmatmul.bf16.gmra.mxu0 %v1289
    %v1727 = vpop.f32.mrf.mxu0
    %v1728 = vadd.f32 %v1701, %v1727
    %v1729 = vpop.f32.mrf.mxu0
    %v1730 = vadd.f32 %v1702, %v1729
    %1731 = vdwg.mxu0
    %v1732 = vmax.f32 %v1686, %v1713
    %v1733 = vmax.f32 %v1687, %v1715
    %v1734 = vmax.f32 %v1688, %v1718
    %v1735 = vmax.f32 %v1689, %v1720
    %v1736 = vmax.f32 %v1690, %v1723
    %v1737 = vmax.f32 %v1691, %v1725
    %v1738 = vmax.f32 %v1692, %v1728
    %v1739 = vmax.f32 %v1693, %v1730
    %s1740 = scalar_lea.vmem [#allocation24], 192
    %v1741 = vld [vmem:[%s1740] sm:$0xff]
    %v1742 = vld [vmem:[%s1740 + $0x8] sm:$0xff]
    %v1743 = vld [vmem:[%s1740 + $0x10] sm:$0xff]
    %v1744 = vld [vmem:[%s1740 + $0x18] sm:$0xff]
    %v1745 = vld [vmem:[%s1740 + $0x20] sm:$0xff]
    %v1746 = vld [vmem:[%s1740 + $0x28] sm:$0xff]
    %v1747 = vld [vmem:[%s1740 + $0x30] sm:$0xff]
    %v1748 = vld [vmem:[%s1740 + $0x38] sm:$0xff]
    %1749 = vmatpush.bf16.msra.mxu0 0
    %1750 = vmatpush.bf16.msra.mxu0 0
    %1751 = vmatpush.bf16.msra.mxu0 0
    %1752 = vmatpush.bf16.msra.mxu0 0
    %1753 = vmatpush.bf16.msra.mxu0 %v1610
    %1754 = vmatpush.bf16.msra.mxu0 %v1609
    %1755 = vmatpush.bf16.msra.mxu0 %v1608
    %1756 = vmatpush.bf16.msra.mxu0 %v1607
    %1757 = vmatmul.bf16.gmra.mxu0 %v1367
    %v1758 = vpop.f32.mrf.mxu0
    %v1759 = vadd.f32 %v1741, %v1758
    %v1760 = vpop.f32.mrf.mxu0
    %v1761 = vadd.f32 %v1742, %v1760
    %1762 = vmatmul.bf16.gmra.mxu0 %v1370
    %v1763 = vpop.f32.mrf.mxu0
    %v1764 = vadd.f32 %v1743, %v1763
    %v1765 = vpop.f32.mrf.mxu0
    %v1766 = vadd.f32 %v1744, %v1765
    %1767 = vmatmul.bf16.gmra.mxu0 %v1373
    %v1768 = vpop.f32.mrf.mxu0
    %v1769 = vadd.f32 %v1745, %v1768
    %v1770 = vpop.f32.mrf.mxu0
    %v1771 = vadd.f32 %v1746, %v1770
    %1772 = vmatmul.bf16.gmra.mxu0 %v1376
    %v1773 = vpop.f32.mrf.mxu0
    %v1774 = vadd.f32 %v1747, %v1773
    %v1775 = vpop.f32.mrf.mxu0
    %v1776 = vadd.f32 %v1748, %v1775
    %1777 = vdwg.mxu0
    %v1778 = vmax.f32 %v1732, %v1759
    %v1779 = vmax.f32 %v1733, %v1761
    %v1780 = vmax.f32 %v1734, %v1764
    %v1781 = vmax.f32 %v1735, %v1766
    %v1782 = vmax.f32 %v1736, %v1769
    %v1783 = vmax.f32 %v1737, %v1771
    %v1784 = vmax.f32 %v1738, %v1774
    %v1785 = vmax.f32 %v1739, %v1776
    %s1786 = scalar_lea.vmem [#allocation24], 256
    %v1787 = vld [vmem:[%s1786] sm:$0xff]
    %v1788 = vld [vmem:[%s1786 + $0x8] sm:$0xff]
    %v1789 = vld [vmem:[%s1786 + $0x10] sm:$0xff]
    %v1790 = vld [vmem:[%s1786 + $0x18] sm:$0xff]
    %v1791 = vld [vmem:[%s1786 + $0x20] sm:$0xff]
    %v1792 = vld [vmem:[%s1786 + $0x28] sm:$0xff]
    %v1793 = vld [vmem:[%s1786 + $0x30] sm:$0xff]
    %v1794 = vld [vmem:[%s1786 + $0x38] sm:$0xff]
    %1795 = vmatpush.bf16.msra.mxu0 0
    %1796 = vmatpush.bf16.msra.mxu0 0
    %1797 = vmatpush.bf16.msra.mxu0 0
    %1798 = vmatpush.bf16.msra.mxu0 0
    %1799 = vmatpush.bf16.msra.mxu0 %v1610
    %1800 = vmatpush.bf16.msra.mxu0 %v1609
    %1801 = vmatpush.bf16.msra.mxu0 %v1608
    %1802 = vmatpush.bf16.msra.mxu0 %v1607
    %1803 = vmatmul.bf16.gmra.mxu0 %v1454
    %v1804 = vpop.f32.mrf.mxu0
    %v1805 = vadd.f32 %v1787, %v1804
    %v1806 = vpop.f32.mrf.mxu0
    %v1807 = vadd.f32 %v1788, %v1806
    %1808 = vmatmul.bf16.gmra.mxu0 %v1457
    %v1809 = vpop.f32.mrf.mxu0
    %v1810 = vadd.f32 %v1789, %v1809
    %v1811 = vpop.f32.mrf.mxu0
    %v1812 = vadd.f32 %v1790, %v1811
    %1813 = vmatmul.bf16.gmra.mxu0 %v1460
    %v1814 = vpop.f32.mrf.mxu0
    %v1815 = vadd.f32 %v1791, %v1814
    %v1816 = vpop.f32.mrf.mxu0
    %v1817 = vadd.f32 %v1792, %v1816
    %1818 = vmatmul.bf16.gmra.mxu0 %v1463
    %v1819 = vpop.f32.mrf.mxu0
    %v1820 = vadd.f32 %v1793, %v1819
    %v1821 = vpop.f32.mrf.mxu0
    %v1822 = vadd.f32 %v1794, %v1821
    %1823 = vdwg.mxu0
    %v1824 = vmax.f32 %v1778, %v1805
    %v1825 = vmax.f32 %v1779, %v1807
    %v1826 = vmax.f32 %v1780, %v1810
    %v1827 = vmax.f32 %v1781, %v1812
    %v1828 = vmax.f32 %v1782, %v1815
    %v1829 = vmax.f32 %v1783, %v1817
    %v1830 = vmax.f32 %v1784, %v1820
    %v1831 = vmax.f32 %v1785, %v1822
    %v1832 = vmax.f32 %v1824, 0.0
    %v1833 = vmax.f32 %v1825, 0.0
    %v1834 = vmax.f32 %v1826, 0.0
    %v1835 = vmax.f32 %v1827, 0.0
    %v1836 = vmax.f32 %v1828, 0.0
    %v1837 = vmax.f32 %v1829, 0.0
    %v1838 = vmax.f32 %v1830, 0.0
    %v1839 = vmax.f32 %v1831, 0.0
    %v1840 = vpack.c.bf16 %v1833, %v1832
    %v1841 = vpack.c.bf16 %v1835, %v1834
    %v1842 = vpack.c.bf16 %v1837, %v1836
    %v1843 = vpack.c.bf16 %v1839, %v1838
    %v1844 = vld [vmem:[#allocation18] sm:$0xf]
    %v1845 = vld [vmem:[#allocation18 + $0x4] sm:$0xf]
    %v1846 = vld [vmem:[#allocation18 + $0x8] sm:$0xf]
    %v1847 = vld [vmem:[#allocation18 + $0xc] sm:$0xf]
    %v1848 = vld [vmem:[#allocation18 + $0x10] sm:$0xf]
    %v1849 = vld [vmem:[#allocation18 + $0x14] sm:$0xf]
    %v1850 = vld [vmem:[#allocation18 + $0x18] sm:$0xf]
    %v1851 = vld [vmem:[#allocation18 + $0x1c] sm:$0xf]
    %v1860 = vunpack.c.l.b16 %v1844
    %v1861 = vunpack.c.l.b16 %v1845
    %v1862 = vunpack.c.l.b16 %v1846
    %v1863 = vunpack.c.l.b16 %v1847
    %v1864 = vunpack.c.l.b16 %v1848
    %v1865 = vunpack.c.l.b16 %v1849
    %v1866 = vunpack.c.l.b16 %v1850
    %v1867 = vunpack.c.l.b16 %v1851
    %v1868 = vpack.c.b16 %v1861, %v1860
    %v1869 = vpack.c.b16 %v1863, %v1862
    %v1870 = vpack.c.b16 %v1865, %v1864
    %v1871 = vpack.c.b16 %v1867, %v1866
    %v1873 = vsel %vm505, %v1868, 0
    %v1876 = vsel %vm505, %v1869, 0
    %v1879 = vsel %vm505, %v1870, 0
    %v1882 = vsel %vm505, %v1871, 0
    %1884 = vmatpush.bf16.msra.mxu0 0
    %1885 = vmatpush.bf16.msra.mxu0 0
    %1886 = vmatpush.bf16.msra.mxu0 0
    %1887 = vmatpush.bf16.msra.mxu0 0
    %1888 = vmatpush.bf16.msra.mxu0 %v1843
    %1889 = vmatpush.bf16.msra.mxu0 %v1842
    %1890 = vmatpush.bf16.msra.mxu0 %v1841
    %1891 = vmatpush.bf16.msra.mxu0 %v1840
    %1892 = vmatmul.bf16.gmra.mxu0 %v1873
    %v1893 = vpop.f32.mrf.mxu0
    %v1894 = vadd.f32 0.0, %v1893
    %v1895 = vpop.f32.mrf.mxu0
    %v1896 = vadd.f32 0.0, %v1895
    %1897 = vmatmul.bf16.gmra.mxu0 %v1876
    %v1898 = vpop.f32.mrf.mxu0
    %v1899 = vadd.f32 0.0, %v1898
    %v1900 = vpop.f32.mrf.mxu0
    %v1901 = vadd.f32 0.0, %v1900
    %1902 = vmatmul.bf16.gmra.mxu0 %v1879
    %v1903 = vpop.f32.mrf.mxu0
    %v1904 = vadd.f32 0.0, %v1903
    %v1905 = vpop.f32.mrf.mxu0
    %v1906 = vadd.f32 0.0, %v1905
    %1907 = vmatmul.bf16.gmra.mxu0 %v1882
    %v1908 = vpop.f32.mrf.mxu0
    %v1909 = vadd.f32 0.0, %v1908
    %v1910 = vpop.f32.mrf.mxu0
    %v1911 = vadd.f32 0.0, %v1910
    %1912 = vdwg.mxu0
    %s1913 = scalar_lea.vmem [#allocation18], 32
    %v1914 = vld [vmem:[%s1913] sm:$0xf]
    %v1915 = vld [vmem:[%s1913 + $0x4] sm:$0xf]
    %v1916 = vld [vmem:[%s1913 + $0x8] sm:$0xf]
    %v1917 = vld [vmem:[%s1913 + $0xc] sm:$0xf]
    %v1918 = vld [vmem:[%s1913 + $0x10] sm:$0xf]
    %v1919 = vld [vmem:[%s1913 + $0x14] sm:$0xf]
    %v1920 = vld [vmem:[%s1913 + $0x18] sm:$0xf]
    %v1921 = vld [vmem:[%s1913 + $0x1c] sm:$0xf]
    %v1930 = vunpack.c.l.b16 %v1914
    %v1931 = vunpack.c.l.b16 %v1915
    %v1932 = vunpack.c.l.b16 %v1916
    %v1933 = vunpack.c.l.b16 %v1917
    %v1934 = vunpack.c.l.b16 %v1918
    %v1935 = vunpack.c.l.b16 %v1919
    %v1936 = vunpack.c.l.b16 %v1920
    %v1937 = vunpack.c.l.b16 %v1921
    %v1938 = vpack.c.b16 %v1931, %v1930
    %v1939 = vpack.c.b16 %v1933, %v1932
    %v1940 = vpack.c.b16 %v1935, %v1934
    %v1941 = vpack.c.b16 %v1937, %v1936
    %v1943 = vsel %vm505, %v1938, 0
    %v1946 = vsel %vm505, %v1939, 0
    %v1949 = vsel %vm505, %v1940, 0
    %v1952 = vsel %vm505, %v1941, 0
    %1954 = vmatpush.bf16.msra.mxu0 0
    %1955 = vmatpush.bf16.msra.mxu0 0
    %1956 = vmatpush.bf16.msra.mxu0 0
    %1957 = vmatpush.bf16.msra.mxu0 0
    %1958 = vmatpush.bf16.msra.mxu0 %v1843
    %1959 = vmatpush.bf16.msra.mxu0 %v1842
    %1960 = vmatpush.bf16.msra.mxu0 %v1841
    %1961 = vmatpush.bf16.msra.mxu0 %v1840
    %1962 = vmatmul.bf16.gmra.mxu0 %v1943
    %v1963 = vpop.f32.mrf.mxu0
    %v1964 = vadd.f32 0.0, %v1963
    %v1965 = vpop.f32.mrf.mxu0
    %v1966 = vadd.f32 0.0, %v1965
    %1967 = vmatmul.bf16.gmra.mxu0 %v1946
    %v1968 = vpop.f32.mrf.mxu0
    %v1969 = vadd.f32 0.0, %v1968
    %v1970 = vpop.f32.mrf.mxu0
    %v1971 = vadd.f32 0.0, %v1970
    %1972 = vmatmul.bf16.gmra.mxu0 %v1949
    %v1973 = vpop.f32.mrf.mxu0
    %v1974 = vadd.f32 0.0, %v1973
    %v1975 = vpop.f32.mrf.mxu0
    %v1976 = vadd.f32 0.0, %v1975
    %1977 = vmatmul.bf16.gmra.mxu0 %v1952
    %v1978 = vpop.f32.mrf.mxu0
    %v1979 = vadd.f32 0.0, %v1978
    %v1980 = vpop.f32.mrf.mxu0
    %v1981 = vadd.f32 0.0, %v1980
    %1982 = vdwg.mxu0
    %v1983 = vmax.f32 %v1894, %v1964
    %v1984 = vmax.f32 %v1896, %v1966
    %v1985 = vmax.f32 %v1899, %v1969
    %v1986 = vmax.f32 %v1901, %v1971
    %v1987 = vmax.f32 %v1904, %v1974
    %v1988 = vmax.f32 %v1906, %v1976
    %v1989 = vmax.f32 %v1909, %v1979
    %v1990 = vmax.f32 %v1911, %v1981
    %v1991 = vpack.c.bf16 %v1984, %v1983
    %v1992 = vpack.c.bf16 %v1986, %v1985
    %v1993 = vpack.c.bf16 %v1988, %v1987
    %v1994 = vpack.c.bf16 %v1990, %v1989
    %v1995 = vld [vmem:[#allocation9] sm:$0xf]
    %v1996 = vld [vmem:[#allocation9 + $0x4] sm:$0xf]
    %v1997 = vld [vmem:[#allocation9 + $0x8] sm:$0xf]
    %v1998 = vld [vmem:[#allocation9 + $0xc] sm:$0xf]
    %v1999 = vld [vmem:[#allocation9 + $0x10] sm:$0xf]
    %v2000 = vld [vmem:[#allocation9 + $0x14] sm:$0xf]
    %v2001 = vld [vmem:[#allocation9 + $0x18] sm:$0xf]
    %v2002 = vld [vmem:[#allocation9 + $0x1c] sm:$0xf]
    %v2003 = vld [vmem:[#allocation9 + $0x20] sm:$0xf]
    %v2004 = vld [vmem:[#allocation9 + $0x24] sm:$0xf]
    %v2005 = vld [vmem:[#allocation9 + $0x28] sm:$0xf]
    %v2006 = vld [vmem:[#allocation9 + $0x2c] sm:$0xf]
    %v2007 = vld [vmem:[#allocation9 + $0x30] sm:$0xf]
    %v2008 = vld [vmem:[#allocation9 + $0x34] sm:$0xf]
    %v2009 = vld [vmem:[#allocation9 + $0x38] sm:$0xf]
    %v2010 = vld [vmem:[#allocation9 + $0x3c] sm:$0xf]
    %v2027 = vunpack.c.l.b16 %v1995
    %v2028 = vunpack.c.l.b16 %v1996
    %v2029 = vunpack.c.l.b16 %v1997
    %v2030 = vunpack.c.l.b16 %v1998
    %v2031 = vunpack.c.l.b16 %v1999
    %v2032 = vunpack.c.l.b16 %v2000
    %v2033 = vunpack.c.l.b16 %v2001
    %v2034 = vunpack.c.l.b16 %v2002
    %v2035 = vunpack.c.l.b16 %v2003
    %v2036 = vunpack.c.l.b16 %v2004
    %v2037 = vunpack.c.l.b16 %v2005
    %v2038 = vunpack.c.l.b16 %v2006
    %v2039 = vunpack.c.l.b16 %v2007
    %v2040 = vunpack.c.l.b16 %v2008
    %v2041 = vunpack.c.l.b16 %v2009
    %v2042 = vunpack.c.l.b16 %v2010
    %v2043 = vpack.c.b16 %v2028, %v2027
    %v2044 = vpack.c.b16 %v2030, %v2029
    %v2045 = vpack.c.b16 %v2032, %v2031
    %v2046 = vpack.c.b16 %v2034, %v2033
    %v2047 = vpack.c.b16 %v2036, %v2035
    %v2048 = vpack.c.b16 %v2038, %v2037
    %v2049 = vpack.c.b16 %v2040, %v2039
    %v2050 = vpack.c.b16 %v2042, %v2041
    %2059 = vmatpush.bf16.msra.mxu0 %v2050
    %2060 = vmatpush.bf16.msra.mxu0 %v2049
    %2061 = vmatpush.bf16.msra.mxu0 %v2048
    %2062 = vmatpush.bf16.msra.mxu0 %v2047
    %2063 = vmatpush.bf16.msra.mxu0 %v2046
    %2064 = vmatpush.bf16.msra.mxu0 %v2045
    %2065 = vmatpush.bf16.msra.mxu0 %v2044
    %2066 = vmatpush.bf16.msra.mxu0 %v2043
    %2067 = vmatmul.bf16.gmra.mxu0 %v1991
    %v2068 = vpop.f32.mrf.mxu0
    %v2069 = vadd.f32 0.0, %v2068
    %v2070 = vpop.f32.mrf.mxu0
    %v2071 = vadd.f32 0.0, %v2070
    %2072 = vmatmul.bf16.gmra.mxu0 %v1992
    %v2073 = vpop.f32.mrf.mxu0
    %v2074 = vadd.f32 0.0, %v2073
    %v2075 = vpop.f32.mrf.mxu0
    %v2076 = vadd.f32 0.0, %v2075
    %2077 = vmatmul.bf16.gmra.mxu0 %v1993
    %v2078 = vpop.f32.mrf.mxu0
    %v2079 = vadd.f32 0.0, %v2078
    %v2080 = vpop.f32.mrf.mxu0
    %v2081 = vadd.f32 0.0, %v2080
    %2082 = vmatmul.bf16.gmra.mxu0 %v1994
    %v2083 = vpop.f32.mrf.mxu0
    %v2084 = vadd.f32 0.0, %v2083
    %v2085 = vpop.f32.mrf.mxu0
    %v2086 = vadd.f32 0.0, %v2085
    %2087 = vdwg.mxu0
    %v2088 = vpack.c.bf16 %v2071, %v2069
    %v2089 = vpack.c.bf16 %v2076, %v2074
    %v2090 = vpack.c.bf16 %v2081, %v2079
    %v2091 = vpack.c.bf16 %v2086, %v2084
    %v2092 = vld [vmem:[#allocation15] sm:$0xf]
    %v2093 = vld [vmem:[#allocation15 + $0x4] sm:$0xf]
    %v2094 = vld [vmem:[#allocation15 + $0x8] sm:$0xf]
    %v2095 = vld [vmem:[#allocation15 + $0xc] sm:$0xf]
    %v2096 = vld [vmem:[#allocation15 + $0x10] sm:$0xf]
    %v2097 = vld [vmem:[#allocation15 + $0x14] sm:$0xf]
    %v2098 = vld [vmem:[#allocation15 + $0x18] sm:$0xf]
    %v2099 = vld [vmem:[#allocation15 + $0x1c] sm:$0xf]
    %v2100 = vld [vmem:[#allocation25] sm:$0xff]
    %v2101 = vld [vmem:[#allocation25 + $0x8] sm:$0xff]
    %v2102 = vld [vmem:[#allocation25 + $0x10] sm:$0xff]
    %v2103 = vld [vmem:[#allocation25 + $0x18] sm:$0xff]
    %v2104 = vld [vmem:[#allocation25 + $0x20] sm:$0xff]
    %v2105 = vld [vmem:[#allocation25 + $0x28] sm:$0xff]
    %v2106 = vld [vmem:[#allocation25 + $0x30] sm:$0xff]
    %v2107 = vld [vmem:[#allocation25 + $0x38] sm:$0xff]
    %v2116 = vunpack.c.l.b16 %v2092
    %v2117 = vunpack.c.l.b16 %v2093
    %v2118 = vunpack.c.l.b16 %v2094
    %v2119 = vunpack.c.l.b16 %v2095
    %v2120 = vunpack.c.l.b16 %v2096
    %v2121 = vunpack.c.l.b16 %v2097
    %v2122 = vunpack.c.l.b16 %v2098
    %v2123 = vunpack.c.l.b16 %v2099
    %v2124 = vpack.c.b16 %v2117, %v2116
    %v2125 = vpack.c.b16 %v2119, %v2118
    %v2126 = vpack.c.b16 %v2121, %v2120
    %v2127 = vpack.c.b16 %v2123, %v2122
    %v2129 = vsel %vm505, %v2124, 0
    %v2132 = vsel %vm505, %v2125, 0
    %v2135 = vsel %vm505, %v2126, 0
    %v2138 = vsel %vm505, %v2127, 0
    %2140 = vmatpush.bf16.msra.mxu0 0
    %2141 = vmatpush.bf16.msra.mxu0 0
    %2142 = vmatpush.bf16.msra.mxu0 0
    %2143 = vmatpush.bf16.msra.mxu0 0
    %2144 = vmatpush.bf16.msra.mxu0 %v2091
    %2145 = vmatpush.bf16.msra.mxu0 %v2090
    %2146 = vmatpush.bf16.msra.mxu0 %v2089
    %2147 = vmatpush.bf16.msra.mxu0 %v2088
    %2148 = vmatmul.bf16.gmra.mxu0 %v2129
    %v2149 = vpop.f32.mrf.mxu0
    %v2150 = vadd.f32 %v2100, %v2149
    %v2151 = vpop.f32.mrf.mxu0
    %v2152 = vadd.f32 %v2101, %v2151
    %2153 = vmatmul.bf16.gmra.mxu0 %v2132
    %v2154 = vpop.f32.mrf.mxu0
    %v2155 = vadd.f32 %v2102, %v2154
    %v2156 = vpop.f32.mrf.mxu0
    %v2157 = vadd.f32 %v2103, %v2156
    %2158 = vmatmul.bf16.gmra.mxu0 %v2135
    %v2159 = vpop.f32.mrf.mxu0
    %v2160 = vadd.f32 %v2104, %v2159
    %v2161 = vpop.f32.mrf.mxu0
    %v2162 = vadd.f32 %v2105, %v2161
    %2163 = vmatmul.bf16.gmra.mxu0 %v2138
    %v2164 = vpop.f32.mrf.mxu0
    %v2165 = vadd.f32 %v2106, %v2164
    %v2166 = vpop.f32.mrf.mxu0
    %v2167 = vadd.f32 %v2107, %v2166
    %2168 = vdwg.mxu0
    %s2169 = scalar_lea.vmem [#allocation15], 32
    %v2170 = vld [vmem:[%s2169] sm:$0xf]
    %v2171 = vld [vmem:[%s2169 + $0x4] sm:$0xf]
    %v2172 = vld [vmem:[%s2169 + $0x8] sm:$0xf]
    %v2173 = vld [vmem:[%s2169 + $0xc] sm:$0xf]
    %v2174 = vld [vmem:[%s2169 + $0x10] sm:$0xf]
    %v2175 = vld [vmem:[%s2169 + $0x14] sm:$0xf]
    %v2176 = vld [vmem:[%s2169 + $0x18] sm:$0xf]
    %v2177 = vld [vmem:[%s2169 + $0x1c] sm:$0xf]
    %s2178 = scalar_lea.vmem [#allocation25], 64
    %v2179 = vld [vmem:[%s2178] sm:$0xff]
    %v2180 = vld [vmem:[%s2178 + $0x8] sm:$0xff]
    %v2181 = vld [vmem:[%s2178 + $0x10] sm:$0xff]
    %v2182 = vld [vmem:[%s2178 + $0x18] sm:$0xff]
    %v2183 = vld [vmem:[%s2178 + $0x20] sm:$0xff]
    %v2184 = vld [vmem:[%s2178 + $0x28] sm:$0xff]
    %v2185 = vld [vmem:[%s2178 + $0x30] sm:$0xff]
    %v2186 = vld [vmem:[%s2178 + $0x38] sm:$0xff]
    %v2195 = vunpack.c.l.b16 %v2170
    %v2196 = vunpack.c.l.b16 %v2171
    %v2197 = vunpack.c.l.b16 %v2172
    %v2198 = vunpack.c.l.b16 %v2173
    %v2199 = vunpack.c.l.b16 %v2174
    %v2200 = vunpack.c.l.b16 %v2175
    %v2201 = vunpack.c.l.b16 %v2176
    %v2202 = vunpack.c.l.b16 %v2177
    %v2203 = vpack.c.b16 %v2196, %v2195
    %v2204 = vpack.c.b16 %v2198, %v2197
    %v2205 = vpack.c.b16 %v2200, %v2199
    %v2206 = vpack.c.b16 %v2202, %v2201
    %v2208 = vsel %vm505, %v2203, 0
    %v2211 = vsel %vm505, %v2204, 0
    %v2214 = vsel %vm505, %v2205, 0
    %v2217 = vsel %vm505, %v2206, 0
    %2219 = vmatpush.bf16.msra.mxu0 0
    %2220 = vmatpush.bf16.msra.mxu0 0
    %2221 = vmatpush.bf16.msra.mxu0 0
    %2222 = vmatpush.bf16.msra.mxu0 0
    %2223 = vmatpush.bf16.msra.mxu0 %v2091
    %2224 = vmatpush.bf16.msra.mxu0 %v2090
    %2225 = vmatpush.bf16.msra.mxu0 %v2089
    %2226 = vmatpush.bf16.msra.mxu0 %v2088
    %2227 = vmatmul.bf16.gmra.mxu0 %v2208
    %v2228 = vpop.f32.mrf.mxu0
    %v2229 = vadd.f32 %v2179, %v2228
    %v2230 = vpop.f32.mrf.mxu0
    %v2231 = vadd.f32 %v2180, %v2230
    %2232 = vmatmul.bf16.gmra.mxu0 %v2211
    %v2233 = vpop.f32.mrf.mxu0
    %v2234 = vadd.f32 %v2181, %v2233
    %v2235 = vpop.f32.mrf.mxu0
    %v2236 = vadd.f32 %v2182, %v2235
    %2237 = vmatmul.bf16.gmra.mxu0 %v2214
    %v2238 = vpop.f32.mrf.mxu0
    %v2239 = vadd.f32 %v2183, %v2238
    %v2240 = vpop.f32.mrf.mxu0
    %v2241 = vadd.f32 %v2184, %v2240
    %2242 = vmatmul.bf16.gmra.mxu0 %v2217
    %v2243 = vpop.f32.mrf.mxu0
    %v2244 = vadd.f32 %v2185, %v2243
    %v2245 = vpop.f32.mrf.mxu0
    %v2246 = vadd.f32 %v2186, %v2245
    %2247 = vdwg.mxu0
    %v2248 = vmax.f32 %v2150, %v2229
    %v2249 = vmax.f32 %v2152, %v2231
    %v2250 = vmax.f32 %v2155, %v2234
    %v2251 = vmax.f32 %v2157, %v2236
    %v2252 = vmax.f32 %v2160, %v2239
    %v2253 = vmax.f32 %v2162, %v2241
    %v2254 = vmax.f32 %v2165, %v2244
    %v2255 = vmax.f32 %v2167, %v2246
    %s2256 = scalar_lea.vmem [#allocation15], 64
    %v2257 = vld [vmem:[%s2256] sm:$0xf]
    %v2258 = vld [vmem:[%s2256 + $0x4] sm:$0xf]
    %v2259 = vld [vmem:[%s2256 + $0x8] sm:$0xf]
    %v2260 = vld [vmem:[%s2256 + $0xc] sm:$0xf]
    %v2261 = vld [vmem:[%s2256 + $0x10] sm:$0xf]
    %v2262 = vld [vmem:[%s2256 + $0x14] sm:$0xf]
    %v2263 = vld [vmem:[%s2256 + $0x18] sm:$0xf]
    %v2264 = vld [vmem:[%s2256 + $0x1c] sm:$0xf]
    %s2265 = scalar_lea.vmem [#allocation25], 128
    %v2266 = vld [vmem:[%s2265] sm:$0xff]
    %v2267 = vld [vmem:[%s2265 + $0x8] sm:$0xff]
    %v2268 = vld [vmem:[%s2265 + $0x10] sm:$0xff]
    %v2269 = vld [vmem:[%s2265 + $0x18] sm:$0xff]
    %v2270 = vld [vmem:[%s2265 + $0x20] sm:$0xff]
    %v2271 = vld [vmem:[%s2265 + $0x28] sm:$0xff]
    %v2272 = vld [vmem:[%s2265 + $0x30] sm:$0xff]
    %v2273 = vld [vmem:[%s2265 + $0x38] sm:$0xff]
    %v2282 = vunpack.c.l.b16 %v2257
    %v2283 = vunpack.c.l.b16 %v2258
    %v2284 = vunpack.c.l.b16 %v2259
    %v2285 = vunpack.c.l.b16 %v2260
    %v2286 = vunpack.c.l.b16 %v2261
    %v2287 = vunpack.c.l.b16 %v2262
    %v2288 = vunpack.c.l.b16 %v2263
    %v2289 = vunpack.c.l.b16 %v2264
    %v2290 = vpack.c.b16 %v2283, %v2282
    %v2291 = vpack.c.b16 %v2285, %v2284
    %v2292 = vpack.c.b16 %v2287, %v2286
    %v2293 = vpack.c.b16 %v2289, %v2288
    %v2295 = vsel %vm505, %v2290, 0
    %v2298 = vsel %vm505, %v2291, 0
    %v2301 = vsel %vm505, %v2292, 0
    %v2304 = vsel %vm505, %v2293, 0
    %2306 = vmatpush.bf16.msra.mxu0 0
    %2307 = vmatpush.bf16.msra.mxu0 0
    %2308 = vmatpush.bf16.msra.mxu0 0
    %2309 = vmatpush.bf16.msra.mxu0 0
    %2310 = vmatpush.bf16.msra.mxu0 %v2091
    %2311 = vmatpush.bf16.msra.mxu0 %v2090
    %2312 = vmatpush.bf16.msra.mxu0 %v2089
    %2313 = vmatpush.bf16.msra.mxu0 %v2088
    %2314 = vmatmul.bf16.gmra.mxu0 %v2295
    %v2315 = vpop.f32.mrf.mxu0
    %v2316 = vadd.f32 %v2266, %v2315
    %v2317 = vpop.f32.mrf.mxu0
    %v2318 = vadd.f32 %v2267, %v2317
    %2319 = vmatmul.bf16.gmra.mxu0 %v2298
    %v2320 = vpop.f32.mrf.mxu0
    %v2321 = vadd.f32 %v2268, %v2320
    %v2322 = vpop.f32.mrf.mxu0
    %v2323 = vadd.f32 %v2269, %v2322
    %2324 = vmatmul.bf16.gmra.mxu0 %v2301
    %v2325 = vpop.f32.mrf.mxu0
    %v2326 = vadd.f32 %v2270, %v2325
    %v2327 = vpop.f32.mrf.mxu0
    %v2328 = vadd.f32 %v2271, %v2327
    %2329 = vmatmul.bf16.gmra.mxu0 %v2304
    %v2330 = vpop.f32.mrf.mxu0
    %v2331 = vadd.f32 %v2272, %v2330
    %v2332 = vpop.f32.mrf.mxu0
    %v2333 = vadd.f32 %v2273, %v2332
    %2334 = vdwg.mxu0
    %v2335 = vmax.f32 %v2248, %v2316
    %v2336 = vmax.f32 %v2249, %v2318
    %v2337 = vmax.f32 %v2250, %v2321
    %v2338 = vmax.f32 %v2251, %v2323
    %v2339 = vmax.f32 %v2252, %v2326
    %v2340 = vmax.f32 %v2253, %v2328
    %v2341 = vmax.f32 %v2254, %v2331
    %v2342 = vmax.f32 %v2255, %v2333
    %s2343 = scalar_lea.vmem [#allocation15], 96
    %v2344 = vld [vmem:[%s2343] sm:$0xf]
    %v2345 = vld [vmem:[%s2343 + $0x4] sm:$0xf]
    %v2346 = vld [vmem:[%s2343 + $0x8] sm:$0xf]
    %v2347 = vld [vmem:[%s2343 + $0xc] sm:$0xf]
    %v2348 = vld [vmem:[%s2343 + $0x10] sm:$0xf]
    %v2349 = vld [vmem:[%s2343 + $0x14] sm:$0xf]
    %v2350 = vld [vmem:[%s2343 + $0x18] sm:$0xf]
    %v2351 = vld [vmem:[%s2343 + $0x1c] sm:$0xf]
    %s2352 = scalar_lea.vmem [#allocation25], 192
    %v2353 = vld [vmem:[%s2352] sm:$0xff]
    %v2354 = vld [vmem:[%s2352 + $0x8] sm:$0xff]
    %v2355 = vld [vmem:[%s2352 + $0x10] sm:$0xff]
    %v2356 = vld [vmem:[%s2352 + $0x18] sm:$0xff]
    %v2357 = vld [vmem:[%s2352 + $0x20] sm:$0xff]
    %v2358 = vld [vmem:[%s2352 + $0x28] sm:$0xff]
    %v2359 = vld [vmem:[%s2352 + $0x30] sm:$0xff]
    %v2360 = vld [vmem:[%s2352 + $0x38] sm:$0xff]
    %v2369 = vunpack.c.l.b16 %v2344
    %v2370 = vunpack.c.l.b16 %v2345
    %v2371 = vunpack.c.l.b16 %v2346
    %v2372 = vunpack.c.l.b16 %v2347
    %v2373 = vunpack.c.l.b16 %v2348
    %v2374 = vunpack.c.l.b16 %v2349
    %v2375 = vunpack.c.l.b16 %v2350
    %v2376 = vunpack.c.l.b16 %v2351
    %v2377 = vpack.c.b16 %v2370, %v2369
    %v2378 = vpack.c.b16 %v2372, %v2371
    %v2379 = vpack.c.b16 %v2374, %v2373
    %v2380 = vpack.c.b16 %v2376, %v2375
    %v2382 = vsel %vm505, %v2377, 0
    %v2385 = vsel %vm505, %v2378, 0
    %v2388 = vsel %vm505, %v2379, 0
    %v2391 = vsel %vm505, %v2380, 0
    %2393 = vmatpush.bf16.msra.mxu0 0
    %2394 = vmatpush.bf16.msra.mxu0 0
    %2395 = vmatpush.bf16.msra.mxu0 0
    %2396 = vmatpush.bf16.msra.mxu0 0
    %2397 = vmatpush.bf16.msra.mxu0 %v2091
    %2398 = vmatpush.bf16.msra.mxu0 %v2090
    %2399 = vmatpush.bf16.msra.mxu0 %v2089
    %2400 = vmatpush.bf16.msra.mxu0 %v2088
    %2401 = vmatmul.bf16.gmra.mxu0 %v2382
    %v2402 = vpop.f32.mrf.mxu0
    %v2403 = vadd.f32 %v2353, %v2402
    %v2404 = vpop.f32.mrf.mxu0
    %v2405 = vadd.f32 %v2354, %v2404
    %2406 = vmatmul.bf16.gmra.mxu0 %v2385
    %v2407 = vpop.f32.mrf.mxu0
    %v2408 = vadd.f32 %v2355, %v2407
    %v2409 = vpop.f32.mrf.mxu0
    %v2410 = vadd.f32 %v2356, %v2409
    %2411 = vmatmul.bf16.gmra.mxu0 %v2388
    %v2412 = vpop.f32.mrf.mxu0
    %v2413 = vadd.f32 %v2357, %v2412
    %v2414 = vpop.f32.mrf.mxu0
    %v2415 = vadd.f32 %v2358, %v2414
    %2416 = vmatmul.bf16.gmra.mxu0 %v2391
    %v2417 = vpop.f32.mrf.mxu0
    %v2418 = vadd.f32 %v2359, %v2417
    %v2419 = vpop.f32.mrf.mxu0
    %v2420 = vadd.f32 %v2360, %v2419
    %2421 = vdwg.mxu0
    %v2422 = vmax.f32 %v2335, %v2403
    %v2423 = vmax.f32 %v2336, %v2405
    %v2424 = vmax.f32 %v2337, %v2408
    %v2425 = vmax.f32 %v2338, %v2410
    %v2426 = vmax.f32 %v2339, %v2413
    %v2427 = vmax.f32 %v2340, %v2415
    %v2428 = vmax.f32 %v2341, %v2418
    %v2429 = vmax.f32 %v2342, %v2420
    %s2430 = scalar_lea.vmem [#allocation15], 128
    %v2431 = vld [vmem:[%s2430] sm:$0xf]
    %v2432 = vld [vmem:[%s2430 + $0x4] sm:$0xf]
    %v2433 = vld [vmem:[%s2430 + $0x8] sm:$0xf]
    %v2434 = vld [vmem:[%s2430 + $0xc] sm:$0xf]
    %v2435 = vld [vmem:[%s2430 + $0x10] sm:$0xf]
    %v2436 = vld [vmem:[%s2430 + $0x14] sm:$0xf]
    %v2437 = vld [vmem:[%s2430 + $0x18] sm:$0xf]
    %v2438 = vld [vmem:[%s2430 + $0x1c] sm:$0xf]
    %s2439 = scalar_lea.vmem [#allocation25], 256
    %v2440 = vld [vmem:[%s2439] sm:$0xff]
    %v2441 = vld [vmem:[%s2439 + $0x8] sm:$0xff]
    %v2442 = vld [vmem:[%s2439 + $0x10] sm:$0xff]
    %v2443 = vld [vmem:[%s2439 + $0x18] sm:$0xff]
    %v2444 = vld [vmem:[%s2439 + $0x20] sm:$0xff]
    %v2445 = vld [vmem:[%s2439 + $0x28] sm:$0xff]
    %v2446 = vld [vmem:[%s2439 + $0x30] sm:$0xff]
    %v2447 = vld [vmem:[%s2439 + $0x38] sm:$0xff]
    %v2456 = vunpack.c.l.b16 %v2431
    %v2457 = vunpack.c.l.b16 %v2432
    %v2458 = vunpack.c.l.b16 %v2433
    %v2459 = vunpack.c.l.b16 %v2434
    %v2460 = vunpack.c.l.b16 %v2435
    %v2461 = vunpack.c.l.b16 %v2436
    %v2462 = vunpack.c.l.b16 %v2437
    %v2463 = vunpack.c.l.b16 %v2438
    %v2464 = vpack.c.b16 %v2457, %v2456
    %v2465 = vpack.c.b16 %v2459, %v2458
    %v2466 = vpack.c.b16 %v2461, %v2460
    %v2467 = vpack.c.b16 %v2463, %v2462
    %v2469 = vsel %vm505, %v2464, 0
    %v2472 = vsel %vm505, %v2465, 0
    %v2475 = vsel %vm505, %v2466, 0
    %v2478 = vsel %vm505, %v2467, 0
    %2480 = vmatpush.bf16.msra.mxu0 0
    %2481 = vmatpush.bf16.msra.mxu0 0
    %2482 = vmatpush.bf16.msra.mxu0 0
    %2483 = vmatpush.bf16.msra.mxu0 0
    %2484 = vmatpush.bf16.msra.mxu0 %v2091
    %2485 = vmatpush.bf16.msra.mxu0 %v2090
    %2486 = vmatpush.bf16.msra.mxu0 %v2089
    %2487 = vmatpush.bf16.msra.mxu0 %v2088
    %2488 = vmatmul.bf16.gmra.mxu0 %v2469
    %v2489 = vpop.f32.mrf.mxu0
    %v2490 = vadd.f32 %v2440, %v2489
    %v2491 = vpop.f32.mrf.mxu0
    %v2492 = vadd.f32 %v2441, %v2491
    %2493 = vmatmul.bf16.gmra.mxu0 %v2472
    %v2494 = vpop.f32.mrf.mxu0
    %v2495 = vadd.f32 %v2442, %v2494
    %v2496 = vpop.f32.mrf.mxu0
    %v2497 = vadd.f32 %v2443, %v2496
    %2498 = vmatmul.bf16.gmra.mxu0 %v2475
    %v2499 = vpop.f32.mrf.mxu0
    %v2500 = vadd.f32 %v2444, %v2499
    %v2501 = vpop.f32.mrf.mxu0
    %v2502 = vadd.f32 %v2445, %v2501
    %2503 = vmatmul.bf16.gmra.mxu0 %v2478
    %v2504 = vpop.f32.mrf.mxu0
    %v2505 = vadd.f32 %v2446, %v2504
    %v2506 = vpop.f32.mrf.mxu0
    %v2507 = vadd.f32 %v2447, %v2506
    %2508 = vdwg.mxu0
    %v2509 = vmax.f32 %v2422, %v2490
    %v2510 = vmax.f32 %v2423, %v2492
    %v2511 = vmax.f32 %v2424, %v2495
    %v2512 = vmax.f32 %v2425, %v2497
    %v2513 = vmax.f32 %v2426, %v2500
    %v2514 = vmax.f32 %v2427, %v2502
    %v2515 = vmax.f32 %v2428, %v2505
    %v2516 = vmax.f32 %v2429, %v2507
    %v2517 = vmax.f32 %v2509, 0.0
    %v2518 = vmax.f32 %v2510, 0.0
    %v2519 = vmax.f32 %v2511, 0.0
    %v2520 = vmax.f32 %v2512, 0.0
    %v2521 = vmax.f32 %v2513, 0.0
    %v2522 = vmax.f32 %v2514, 0.0
    %v2523 = vmax.f32 %v2515, 0.0
    %v2524 = vmax.f32 %v2516, 0.0
    %v2525 = vpack.c.bf16 %v2518, %v2517
    %v2526 = vpack.c.bf16 %v2520, %v2519
    %v2527 = vpack.c.bf16 %v2522, %v2521
    %v2528 = vpack.c.bf16 %v2524, %v2523
    %v2529 = vld [vmem:[#allocation10] sm:$0xf]
    %v2530 = vld [vmem:[#allocation10 + $0x4] sm:$0xf]
    %v2531 = vld [vmem:[#allocation10 + $0x8] sm:$0xf]
    %v2532 = vld [vmem:[#allocation10 + $0xc] sm:$0xf]
    %v2533 = vld [vmem:[#allocation10 + $0x10] sm:$0xf]
    %v2534 = vld [vmem:[#allocation10 + $0x14] sm:$0xf]
    %v2535 = vld [vmem:[#allocation10 + $0x18] sm:$0xf]
    %v2536 = vld [vmem:[#allocation10 + $0x1c] sm:$0xf]
    %v2537 = vld [vmem:[#allocation10 + $0x20] sm:$0xf]
    %v2538 = vld [vmem:[#allocation10 + $0x24] sm:$0xf]
    %v2539 = vld [vmem:[#allocation10 + $0x28] sm:$0xf]
    %v2540 = vld [vmem:[#allocation10 + $0x2c] sm:$0xf]
    %v2541 = vld [vmem:[#allocation10 + $0x30] sm:$0xf]
    %v2542 = vld [vmem:[#allocation10 + $0x34] sm:$0xf]
    %v2543 = vld [vmem:[#allocation10 + $0x38] sm:$0xf]
    %v2544 = vld [vmem:[#allocation10 + $0x3c] sm:$0xf]
    %v2561 = vunpack.c.l.b16 %v2529
    %v2562 = vunpack.c.l.b16 %v2530
    %v2563 = vunpack.c.l.b16 %v2531
    %v2564 = vunpack.c.l.b16 %v2532
    %v2565 = vunpack.c.l.b16 %v2533
    %v2566 = vunpack.c.l.b16 %v2534
    %v2567 = vunpack.c.l.b16 %v2535
    %v2568 = vunpack.c.l.b16 %v2536
    %v2569 = vunpack.c.l.b16 %v2537
    %v2570 = vunpack.c.l.b16 %v2538
    %v2571 = vunpack.c.l.b16 %v2539
    %v2572 = vunpack.c.l.b16 %v2540
    %v2573 = vunpack.c.l.b16 %v2541
    %v2574 = vunpack.c.l.b16 %v2542
    %v2575 = vunpack.c.l.b16 %v2543
    %v2576 = vunpack.c.l.b16 %v2544
    %v2577 = vpack.c.b16 %v2562, %v2561
    %v2578 = vpack.c.b16 %v2564, %v2563
    %v2579 = vpack.c.b16 %v2566, %v2565
    %v2580 = vpack.c.b16 %v2568, %v2567
    %v2581 = vpack.c.b16 %v2570, %v2569
    %v2582 = vpack.c.b16 %v2572, %v2571
    %v2583 = vpack.c.b16 %v2574, %v2573
    %v2584 = vpack.c.b16 %v2576, %v2575
    %2593 = vmatpush.bf16.msra.mxu0 %v2584
    %2594 = vmatpush.bf16.msra.mxu0 %v2583
    %2595 = vmatpush.bf16.msra.mxu0 %v2582
    %2596 = vmatpush.bf16.msra.mxu0 %v2581
    %2597 = vmatpush.bf16.msra.mxu0 %v2580
    %2598 = vmatpush.bf16.msra.mxu0 %v2579
    %2599 = vmatpush.bf16.msra.mxu0 %v2578
    %2600 = vmatpush.bf16.msra.mxu0 %v2577
    %2601 = vmatmul.bf16.gmra.mxu0 %v2525
    %v2602 = vpop.f32.mrf.mxu0
    %v2603 = vadd.f32 0.0, %v2602
    %v2604 = vpop.f32.mrf.mxu0
    %v2605 = vadd.f32 0.0, %v2604
    %2606 = vmatmul.bf16.gmra.mxu0 %v2526
    %v2607 = vpop.f32.mrf.mxu0
    %v2608 = vadd.f32 0.0, %v2607
    %v2609 = vpop.f32.mrf.mxu0
    %v2610 = vadd.f32 0.0, %v2609
    %2611 = vmatmul.bf16.gmra.mxu0 %v2527
    %v2612 = vpop.f32.mrf.mxu0
    %v2613 = vadd.f32 0.0, %v2612
    %v2614 = vpop.f32.mrf.mxu0
    %v2615 = vadd.f32 0.0, %v2614
    %2616 = vmatmul.bf16.gmra.mxu0 %v2528
    %v2617 = vpop.f32.mrf.mxu0
    %v2618 = vadd.f32 0.0, %v2617
    %v2619 = vpop.f32.mrf.mxu0
    %v2620 = vadd.f32 0.0, %v2619
    %2621 = vdwg.mxu0
    %v2622 = vpack.c.bf16 %v2605, %v2603
    %v2623 = vpack.c.bf16 %v2610, %v2608
    %v2624 = vpack.c.bf16 %v2615, %v2613
    %v2625 = vpack.c.bf16 %v2620, %v2618
    %v2626 = vld [vmem:[#allocation27] sm:$0xff]
    %v2627 = vld [vmem:[#allocation27 + $0x8] sm:$0xff]
    %v2628 = vld [vmem:[#allocation27 + $0x10] sm:$0xff]
    %v2629 = vld [vmem:[#allocation27 + $0x18] sm:$0xff]
    %v2630 = vld [vmem:[#allocation27 + $0x20] sm:$0xff]
    %v2631 = vld [vmem:[#allocation27 + $0x28] sm:$0xff]
    %v2632 = vld [vmem:[#allocation27 + $0x30] sm:$0xff]
    %v2633 = vld [vmem:[#allocation27 + $0x38] sm:$0xff]
    %2634 = vmatpush.bf16.msra.mxu0 0
    %2635 = vmatpush.bf16.msra.mxu0 0
    %2636 = vmatpush.bf16.msra.mxu0 0
    %2637 = vmatpush.bf16.msra.mxu0 0
    %2638 = vmatpush.bf16.msra.mxu0 %v2625
    %2639 = vmatpush.bf16.msra.mxu0 %v2624
    %2640 = vmatpush.bf16.msra.mxu0 %v2623
    %2641 = vmatpush.bf16.msra.mxu0 %v2622
    %2642 = vmatmul.bf16.gmra.mxu0 %v2129
    %v2643 = vpop.f32.mrf.mxu0
    %v2644 = vadd.f32 %v2626, %v2643
    %v2645 = vpop.f32.mrf.mxu0
    %v2646 = vadd.f32 %v2627, %v2645
    %2647 = vmatmul.bf16.gmra.mxu0 %v2132
    %v2648 = vpop.f32.mrf.mxu0
    %v2649 = vadd.f32 %v2628, %v2648
    %v2650 = vpop.f32.mrf.mxu0
    %v2651 = vadd.f32 %v2629, %v2650
    %2652 = vmatmul.bf16.gmra.mxu0 %v2135
    %v2653 = vpop.f32.mrf.mxu0
    %v2654 = vadd.f32 %v2630, %v2653
    %v2655 = vpop.f32.mrf.mxu0
    %v2656 = vadd.f32 %v2631, %v2655
    %2657 = vmatmul.bf16.gmra.mxu0 %v2138
    %v2658 = vpop.f32.mrf.mxu0
    %v2659 = vadd.f32 %v2632, %v2658
    %v2660 = vpop.f32.mrf.mxu0
    %v2661 = vadd.f32 %v2633, %v2660
    %2662 = vdwg.mxu0
    %s2663 = scalar_lea.vmem [#allocation27], 64
    %v2664 = vld [vmem:[%s2663] sm:$0xff]
    %v2665 = vld [vmem:[%s2663 + $0x8] sm:$0xff]
    %v2666 = vld [vmem:[%s2663 + $0x10] sm:$0xff]
    %v2667 = vld [vmem:[%s2663 + $0x18] sm:$0xff]
    %v2668 = vld [vmem:[%s2663 + $0x20] sm:$0xff]
    %v2669 = vld [vmem:[%s2663 + $0x28] sm:$0xff]
    %v2670 = vld [vmem:[%s2663 + $0x30] sm:$0xff]
    %v2671 = vld [vmem:[%s2663 + $0x38] sm:$0xff]
    %2672 = vmatpush.bf16.msra.mxu0 0
    %2673 = vmatpush.bf16.msra.mxu0 0
    %2674 = vmatpush.bf16.msra.mxu0 0
    %2675 = vmatpush.bf16.msra.mxu0 0
    %2676 = vmatpush.bf16.msra.mxu0 %v2625
    %2677 = vmatpush.bf16.msra.mxu0 %v2624
    %2678 = vmatpush.bf16.msra.mxu0 %v2623
    %2679 = vmatpush.bf16.msra.mxu0 %v2622
    %2680 = vmatmul.bf16.gmra.mxu0 %v2208
    %v2681 = vpop.f32.mrf.mxu0
    %v2682 = vadd.f32 %v2664, %v2681
    %v2683 = vpop.f32.mrf.mxu0
    %v2684 = vadd.f32 %v2665, %v2683
    %2685 = vmatmul.bf16.gmra.mxu0 %v2211
    %v2686 = vpop.f32.mrf.mxu0
    %v2687 = vadd.f32 %v2666, %v2686
    %v2688 = vpop.f32.mrf.mxu0
    %v2689 = vadd.f32 %v2667, %v2688
    %2690 = vmatmul.bf16.gmra.mxu0 %v2214
    %v2691 = vpop.f32.mrf.mxu0
    %v2692 = vadd.f32 %v2668, %v2691
    %v2693 = vpop.f32.mrf.mxu0
    %v2694 = vadd.f32 %v2669, %v2693
    %2695 = vmatmul.bf16.gmra.mxu0 %v2217
    %v2696 = vpop.f32.mrf.mxu0
    %v2697 = vadd.f32 %v2670, %v2696
    %v2698 = vpop.f32.mrf.mxu0
    %v2699 = vadd.f32 %v2671, %v2698
    %2700 = vdwg.mxu0
    %v2701 = vmax.f32 %v2644, %v2682
    %v2702 = vmax.f32 %v2646, %v2684
    %v2703 = vmax.f32 %v2649, %v2687
    %v2704 = vmax.f32 %v2651, %v2689
    %v2705 = vmax.f32 %v2654, %v2692
    %v2706 = vmax.f32 %v2656, %v2694
    %v2707 = vmax.f32 %v2659, %v2697
    %v2708 = vmax.f32 %v2661, %v2699
    %s2709 = scalar_lea.vmem [#allocation27], 128
    %v2710 = vld [vmem:[%s2709] sm:$0xff]
    %v2711 = vld [vmem:[%s2709 + $0x8] sm:$0xff]
    %v2712 = vld [vmem:[%s2709 + $0x10] sm:$0xff]
    %v2713 = vld [vmem:[%s2709 + $0x18] sm:$0xff]
    %v2714 = vld [vmem:[%s2709 + $0x20] sm:$0xff]
    %v2715 = vld [vmem:[%s2709 + $0x28] sm:$0xff]
    %v2716 = vld [vmem:[%s2709 + $0x30] sm:$0xff]
    %v2717 = vld [vmem:[%s2709 + $0x38] sm:$0xff]
    %2718 = vmatpush.bf16.msra.mxu0 0
    %2719 = vmatpush.bf16.msra.mxu0 0
    %2720 = vmatpush.bf16.msra.mxu0 0
    %2721 = vmatpush.bf16.msra.mxu0 0
    %2722 = vmatpush.bf16.msra.mxu0 %v2625
    %2723 = vmatpush.bf16.msra.mxu0 %v2624
    %2724 = vmatpush.bf16.msra.mxu0 %v2623
    %2725 = vmatpush.bf16.msra.mxu0 %v2622
    %2726 = vmatmul.bf16.gmra.mxu0 %v2295
    %v2727 = vpop.f32.mrf.mxu0
    %v2728 = vadd.f32 %v2710, %v2727
    %v2729 = vpop.f32.mrf.mxu0
    %v2730 = vadd.f32 %v2711, %v2729
    %2731 = vmatmul.bf16.gmra.mxu0 %v2298
    %v2732 = vpop.f32.mrf.mxu0
    %v2733 = vadd.f32 %v2712, %v2732
    %v2734 = vpop.f32.mrf.mxu0
    %v2735 = vadd.f32 %v2713, %v2734
    %2736 = vmatmul.bf16.gmra.mxu0 %v2301
    %v2737 = vpop.f32.mrf.mxu0
    %v2738 = vadd.f32 %v2714, %v2737
    %v2739 = vpop.f32.mrf.mxu0
    %v2740 = vadd.f32 %v2715, %v2739
    %2741 = vmatmul.bf16.gmra.mxu0 %v2304
    %v2742 = vpop.f32.mrf.mxu0
    %v2743 = vadd.f32 %v2716, %v2742
    %v2744 = vpop.f32.mrf.mxu0
    %v2745 = vadd.f32 %v2717, %v2744
    %2746 = vdwg.mxu0
    %v2747 = vmax.f32 %v2701, %v2728
    %v2748 = vmax.f32 %v2702, %v2730
    %v2749 = vmax.f32 %v2703, %v2733
    %v2750 = vmax.f32 %v2704, %v2735
    %v2751 = vmax.f32 %v2705, %v2738
    %v2752 = vmax.f32 %v2706, %v2740
    %v2753 = vmax.f32 %v2707, %v2743
    %v2754 = vmax.f32 %v2708, %v2745
    %s2755 = scalar_lea.vmem [#allocation27], 192
    %v2756 = vld [vmem:[%s2755] sm:$0xff]
    %v2757 = vld [vmem:[%s2755 + $0x8] sm:$0xff]
    %v2758 = vld [vmem:[%s2755 + $0x10] sm:$0xff]
    %v2759 = vld [vmem:[%s2755 + $0x18] sm:$0xff]
    %v2760 = vld [vmem:[%s2755 + $0x20] sm:$0xff]
    %v2761 = vld [vmem:[%s2755 + $0x28] sm:$0xff]
    %v2762 = vld [vmem:[%s2755 + $0x30] sm:$0xff]
    %v2763 = vld [vmem:[%s2755 + $0x38] sm:$0xff]
    %2764 = vmatpush.bf16.msra.mxu0 0
    %2765 = vmatpush.bf16.msra.mxu0 0
    %2766 = vmatpush.bf16.msra.mxu0 0
    %2767 = vmatpush.bf16.msra.mxu0 0
    %2768 = vmatpush.bf16.msra.mxu0 %v2625
    %2769 = vmatpush.bf16.msra.mxu0 %v2624
    %2770 = vmatpush.bf16.msra.mxu0 %v2623
    %2771 = vmatpush.bf16.msra.mxu0 %v2622
    %2772 = vmatmul.bf16.gmra.mxu0 %v2382
    %v2773 = vpop.f32.mrf.mxu0
    %v2774 = vadd.f32 %v2756, %v2773
    %v2775 = vpop.f32.mrf.mxu0
    %v2776 = vadd.f32 %v2757, %v2775
    %2777 = vmatmul.bf16.gmra.mxu0 %v2385
    %v2778 = vpop.f32.mrf.mxu0
    %v2779 = vadd.f32 %v2758, %v2778
    %v2780 = vpop.f32.mrf.mxu0
    %v2781 = vadd.f32 %v2759, %v2780
    %2782 = vmatmul.bf16.gmra.mxu0 %v2388
    %v2783 = vpop.f32.mrf.mxu0
    %v2784 = vadd.f32 %v2760, %v2783
    %v2785 = vpop.f32.mrf.mxu0
    %v2786 = vadd.f32 %v2761, %v2785
    %2787 = vmatmul.bf16.gmra.mxu0 %v2391
    %v2788 = vpop.f32.mrf.mxu0
    %v2789 = vadd.f32 %v2762, %v2788
    %v2790 = vpop.f32.mrf.mxu0
    %v2791 = vadd.f32 %v2763, %v2790
    %2792 = vdwg.mxu0
    %v2793 = vmax.f32 %v2747, %v2774
    %v2794 = vmax.f32 %v2748, %v2776
    %v2795 = vmax.f32 %v2749, %v2779
    %v2796 = vmax.f32 %v2750, %v2781
    %v2797 = vmax.f32 %v2751, %v2784
    %v2798 = vmax.f32 %v2752, %v2786
    %v2799 = vmax.f32 %v2753, %v2789
    %v2800 = vmax.f32 %v2754, %v2791
    %s2801 = scalar_lea.vmem [#allocation27], 256
    %v2802 = vld [vmem:[%s2801] sm:$0xff]
    %v2803 = vld [vmem:[%s2801 + $0x8] sm:$0xff]
    %v2804 = vld [vmem:[%s2801 + $0x10] sm:$0xff]
    %v2805 = vld [vmem:[%s2801 + $0x18] sm:$0xff]
    %v2806 = vld [vmem:[%s2801 + $0x20] sm:$0xff]
    %v2807 = vld [vmem:[%s2801 + $0x28] sm:$0xff]
    %v2808 = vld [vmem:[%s2801 + $0x30] sm:$0xff]
    %v2809 = vld [vmem:[%s2801 + $0x38] sm:$0xff]
    %2810 = vmatpush.bf16.msra.mxu0 0
    %2811 = vmatpush.bf16.msra.mxu0 0
    %2812 = vmatpush.bf16.msra.mxu0 0
    %2813 = vmatpush.bf16.msra.mxu0 0
    %2814 = vmatpush.bf16.msra.mxu0 %v2625
    %2815 = vmatpush.bf16.msra.mxu0 %v2624
    %2816 = vmatpush.bf16.msra.mxu0 %v2623
    %2817 = vmatpush.bf16.msra.mxu0 %v2622
    %2818 = vmatmul.bf16.gmra.mxu0 %v2469
    %v2819 = vpop.f32.mrf.mxu0
    %v2820 = vadd.f32 %v2802, %v2819
    %v2821 = vpop.f32.mrf.mxu0
    %v2822 = vadd.f32 %v2803, %v2821
    %2823 = vmatmul.bf16.gmra.mxu0 %v2472
    %v2824 = vpop.f32.mrf.mxu0
    %v2825 = vadd.f32 %v2804, %v2824
    %v2826 = vpop.f32.mrf.mxu0
    %v2827 = vadd.f32 %v2805, %v2826
    %2828 = vmatmul.bf16.gmra.mxu0 %v2475
    %v2829 = vpop.f32.mrf.mxu0
    %v2830 = vadd.f32 %v2806, %v2829
    %v2831 = vpop.f32.mrf.mxu0
    %v2832 = vadd.f32 %v2807, %v2831
    %2833 = vmatmul.bf16.gmra.mxu0 %v2478
    %v2834 = vpop.f32.mrf.mxu0
    %v2835 = vadd.f32 %v2808, %v2834
    %v2836 = vpop.f32.mrf.mxu0
    %v2837 = vadd.f32 %v2809, %v2836
    %2838 = vdwg.mxu0
    %v2839 = vmax.f32 %v2793, %v2820
    %v2840 = vmax.f32 %v2794, %v2822
    %v2841 = vmax.f32 %v2795, %v2825
    %v2842 = vmax.f32 %v2796, %v2827
    %v2843 = vmax.f32 %v2797, %v2830
    %v2844 = vmax.f32 %v2798, %v2832
    %v2845 = vmax.f32 %v2799, %v2835
    %v2846 = vmax.f32 %v2800, %v2837
    %v2847 = vmax.f32 %v2839, 0.0
    %v2848 = vmax.f32 %v2840, 0.0
    %v2849 = vmax.f32 %v2841, 0.0
    %v2850 = vmax.f32 %v2842, 0.0
    %v2851 = vmax.f32 %v2843, 0.0
    %v2852 = vmax.f32 %v2844, 0.0
    %v2853 = vmax.f32 %v2845, 0.0
    %v2854 = vmax.f32 %v2846, 0.0
    %v2855 = vpack.c.bf16 %v2848, %v2847
    %v2856 = vpack.c.bf16 %v2850, %v2849
    %v2857 = vpack.c.bf16 %v2852, %v2851
    %v2858 = vpack.c.bf16 %v2854, %v2853
    %v2859 = vld [vmem:[#allocation19] sm:$0xf]
    %v2860 = vld [vmem:[#allocation19 + $0x4] sm:$0xf]
    %v2861 = vld [vmem:[#allocation19 + $0x8] sm:$0xf]
    %v2862 = vld [vmem:[#allocation19 + $0xc] sm:$0xf]
    %v2863 = vld [vmem:[#allocation19 + $0x10] sm:$0xf]
    %v2864 = vld [vmem:[#allocation19 + $0x14] sm:$0xf]
    %v2865 = vld [vmem:[#allocation19 + $0x18] sm:$0xf]
    %v2866 = vld [vmem:[#allocation19 + $0x1c] sm:$0xf]
    %v2875 = vunpack.c.l.b16 %v2859
    %v2876 = vunpack.c.l.b16 %v2860
    %v2877 = vunpack.c.l.b16 %v2861
    %v2878 = vunpack.c.l.b16 %v2862
    %v2879 = vunpack.c.l.b16 %v2863
    %v2880 = vunpack.c.l.b16 %v2864
    %v2881 = vunpack.c.l.b16 %v2865
    %v2882 = vunpack.c.l.b16 %v2866
    %v2883 = vpack.c.b16 %v2876, %v2875
    %v2884 = vpack.c.b16 %v2878, %v2877
    %v2885 = vpack.c.b16 %v2880, %v2879
    %v2886 = vpack.c.b16 %v2882, %v2881
    %v2888 = vsel %vm505, %v2883, 0
    %v2891 = vsel %vm505, %v2884, 0
    %v2894 = vsel %vm505, %v2885, 0
    %v2897 = vsel %vm505, %v2886, 0
    %2899 = vmatpush.bf16.msra.mxu0 0
    %2900 = vmatpush.bf16.msra.mxu0 0
    %2901 = vmatpush.bf16.msra.mxu0 0
    %2902 = vmatpush.bf16.msra.mxu0 0
    %2903 = vmatpush.bf16.msra.mxu0 %v2858
    %2904 = vmatpush.bf16.msra.mxu0 %v2857
    %2905 = vmatpush.bf16.msra.mxu0 %v2856
    %2906 = vmatpush.bf16.msra.mxu0 %v2855
    %2907 = vmatmul.bf16.gmra.mxu0 %v2888
    %v2908 = vpop.f32.mrf.mxu0
    %v2909 = vadd.f32 0.0, %v2908
    %v2910 = vpop.f32.mrf.mxu0
    %v2911 = vadd.f32 0.0, %v2910
    %2912 = vmatmul.bf16.gmra.mxu0 %v2891
    %v2913 = vpop.f32.mrf.mxu0
    %v2914 = vadd.f32 0.0, %v2913
    %v2915 = vpop.f32.mrf.mxu0
    %v2916 = vadd.f32 0.0, %v2915
    %2917 = vmatmul.bf16.gmra.mxu0 %v2894
    %v2918 = vpop.f32.mrf.mxu0
    %v2919 = vadd.f32 0.0, %v2918
    %v2920 = vpop.f32.mrf.mxu0
    %v2921 = vadd.f32 0.0, %v2920
    %2922 = vmatmul.bf16.gmra.mxu0 %v2897
    %v2923 = vpop.f32.mrf.mxu0
    %v2924 = vadd.f32 0.0, %v2923
    %v2925 = vpop.f32.mrf.mxu0
    %v2926 = vadd.f32 0.0, %v2925
    %2927 = vdwg.mxu0
    %s2928 = scalar_lea.vmem [#allocation19], 32
    %v2929 = vld [vmem:[%s2928] sm:$0xf]
    %v2930 = vld [vmem:[%s2928 + $0x4] sm:$0xf]
    %v2931 = vld [vmem:[%s2928 + $0x8] sm:$0xf]
    %v2932 = vld [vmem:[%s2928 + $0xc] sm:$0xf]
    %v2933 = vld [vmem:[%s2928 + $0x10] sm:$0xf]
    %v2934 = vld [vmem:[%s2928 + $0x14] sm:$0xf]
    %v2935 = vld [vmem:[%s2928 + $0x18] sm:$0xf]
    %v2936 = vld [vmem:[%s2928 + $0x1c] sm:$0xf]
    %v2945 = vunpack.c.l.b16 %v2929
    %v2946 = vunpack.c.l.b16 %v2930
    %v2947 = vunpack.c.l.b16 %v2931
    %v2948 = vunpack.c.l.b16 %v2932
    %v2949 = vunpack.c.l.b16 %v2933
    %v2950 = vunpack.c.l.b16 %v2934
    %v2951 = vunpack.c.l.b16 %v2935
    %v2952 = vunpack.c.l.b16 %v2936
    %v2953 = vpack.c.b16 %v2946, %v2945
    %v2954 = vpack.c.b16 %v2948, %v2947
    %v2955 = vpack.c.b16 %v2950, %v2949
    %v2956 = vpack.c.b16 %v2952, %v2951
    %v2958 = vsel %vm505, %v2953, 0
    %v2961 = vsel %vm505, %v2954, 0
    %v2964 = vsel %vm505, %v2955, 0
    %v2967 = vsel %vm505, %v2956, 0
    %2969 = vmatpush.bf16.msra.mxu0 0
    %2970 = vmatpush.bf16.msra.mxu0 0
    %2971 = vmatpush.bf16.msra.mxu0 0
    %2972 = vmatpush.bf16.msra.mxu0 0
    %2973 = vmatpush.bf16.msra.mxu0 %v2858
    %2974 = vmatpush.bf16.msra.mxu0 %v2857
    %2975 = vmatpush.bf16.msra.mxu0 %v2856
    %2976 = vmatpush.bf16.msra.mxu0 %v2855
    %2977 = vmatmul.bf16.gmra.mxu0 %v2958
    %v2978 = vpop.f32.mrf.mxu0
    %v2979 = vadd.f32 0.0, %v2978
    %v2980 = vpop.f32.mrf.mxu0
    %v2981 = vadd.f32 0.0, %v2980
    %2982 = vmatmul.bf16.gmra.mxu0 %v2961
    %v2983 = vpop.f32.mrf.mxu0
    %v2984 = vadd.f32 0.0, %v2983
    %v2985 = vpop.f32.mrf.mxu0
    %v2986 = vadd.f32 0.0, %v2985
    %2987 = vmatmul.bf16.gmra.mxu0 %v2964
    %v2988 = vpop.f32.mrf.mxu0
    %v2989 = vadd.f32 0.0, %v2988
    %v2990 = vpop.f32.mrf.mxu0
    %v2991 = vadd.f32 0.0, %v2990
    %2992 = vmatmul.bf16.gmra.mxu0 %v2967
    %v2993 = vpop.f32.mrf.mxu0
    %v2994 = vadd.f32 0.0, %v2993
    %v2995 = vpop.f32.mrf.mxu0
    %v2996 = vadd.f32 0.0, %v2995
    %2997 = vdwg.mxu0
    %v2998 = vmax.f32 %v2909, %v2979
    %v2999 = vmax.f32 %v2911, %v2981
    %v3000 = vmax.f32 %v2914, %v2984
    %v3001 = vmax.f32 %v2916, %v2986
    %v3002 = vmax.f32 %v2919, %v2989
    %v3003 = vmax.f32 %v2921, %v2991
    %v3004 = vmax.f32 %v2924, %v2994
    %v3005 = vmax.f32 %v2926, %v2996
    %s3006 = scalar_lea.vmem [#allocation19], 64
    %v3007 = vld [vmem:[%s3006] sm:$0xf]
    %v3008 = vld [vmem:[%s3006 + $0x4] sm:$0xf]
    %v3009 = vld [vmem:[%s3006 + $0x8] sm:$0xf]
    %v3010 = vld [vmem:[%s3006 + $0xc] sm:$0xf]
    %v3011 = vld [vmem:[%s3006 + $0x10] sm:$0xf]
    %v3012 = vld [vmem:[%s3006 + $0x14] sm:$0xf]
    %v3013 = vld [vmem:[%s3006 + $0x18] sm:$0xf]
    %v3014 = vld [vmem:[%s3006 + $0x1c] sm:$0xf]
    %v3023 = vunpack.c.l.b16 %v3007
    %v3024 = vunpack.c.l.b16 %v3008
    %v3025 = vunpack.c.l.b16 %v3009
    %v3026 = vunpack.c.l.b16 %v3010
    %v3027 = vunpack.c.l.b16 %v3011
    %v3028 = vunpack.c.l.b16 %v3012
    %v3029 = vunpack.c.l.b16 %v3013
    %v3030 = vunpack.c.l.b16 %v3014
    %v3031 = vpack.c.b16 %v3024, %v3023
    %v3032 = vpack.c.b16 %v3026, %v3025
    %v3033 = vpack.c.b16 %v3028, %v3027
    %v3034 = vpack.c.b16 %v3030, %v3029
    %v3036 = vsel %vm505, %v3031, 0
    %v3039 = vsel %vm505, %v3032, 0
    %v3042 = vsel %vm505, %v3033, 0
    %v3045 = vsel %vm505, %v3034, 0
    %3047 = vmatpush.bf16.msra.mxu0 0
    %3048 = vmatpush.bf16.msra.mxu0 0
    %3049 = vmatpush.bf16.msra.mxu0 0
    %3050 = vmatpush.bf16.msra.mxu0 0
    %3051 = vmatpush.bf16.msra.mxu0 %v2858
    %3052 = vmatpush.bf16.msra.mxu0 %v2857
    %3053 = vmatpush.bf16.msra.mxu0 %v2856
    %3054 = vmatpush.bf16.msra.mxu0 %v2855
    %3055 = vmatmul.bf16.gmra.mxu0 %v3036
    %v3056 = vpop.f32.mrf.mxu0
    %v3057 = vadd.f32 0.0, %v3056
    %v3058 = vpop.f32.mrf.mxu0
    %v3059 = vadd.f32 0.0, %v3058
    %3060 = vmatmul.bf16.gmra.mxu0 %v3039
    %v3061 = vpop.f32.mrf.mxu0
    %v3062 = vadd.f32 0.0, %v3061
    %v3063 = vpop.f32.mrf.mxu0
    %v3064 = vadd.f32 0.0, %v3063
    %3065 = vmatmul.bf16.gmra.mxu0 %v3042
    %v3066 = vpop.f32.mrf.mxu0
    %v3067 = vadd.f32 0.0, %v3066
    %v3068 = vpop.f32.mrf.mxu0
    %v3069 = vadd.f32 0.0, %v3068
    %3070 = vmatmul.bf16.gmra.mxu0 %v3045
    %v3071 = vpop.f32.mrf.mxu0
    %v3072 = vadd.f32 0.0, %v3071
    %v3073 = vpop.f32.mrf.mxu0
    %v3074 = vadd.f32 0.0, %v3073
    %3075 = vdwg.mxu0
    %v3076 = vmax.f32 %v2998, %v3057
    %v3077 = vmax.f32 %v2999, %v3059
    %v3078 = vmax.f32 %v3000, %v3062
    %v3079 = vmax.f32 %v3001, %v3064
    %v3080 = vmax.f32 %v3002, %v3067
    %v3081 = vmax.f32 %v3003, %v3069
    %v3082 = vmax.f32 %v3004, %v3072
    %v3083 = vmax.f32 %v3005, %v3074
    %v3084 = vpack.c.bf16 %v3076, %v3076
    %v3085 = vpack.c.bf16 %v3077, %v3077
    %v3086 = vpack.c.bf16 %v3078, %v3078
    %v3087 = vpack.c.bf16 %v3079, %v3079
    %v3088 = vpack.c.bf16 %v3080, %v3080
    %v3089 = vpack.c.bf16 %v3081, %v3081
    %v3090 = vpack.c.bf16 %v3082, %v3082
    %v3091 = vpack.c.bf16 %v3083, %v3083
    %v3092 = vld [vmem:[#allocation28] sm:$0xf]
    %v3093 = vld [vmem:[#allocation28 + $0x4] sm:$0xf]
    %v3094 = vld [vmem:[#allocation28 + $0x8] sm:$0xf]
    %v3095 = vld [vmem:[#allocation28 + $0xc] sm:$0xf]
    %v3096 = vld [vmem:[#allocation28 + $0x10] sm:$0xf]
    %v3097 = vld [vmem:[#allocation28 + $0x14] sm:$0xf]
    %v3098 = vld [vmem:[#allocation28 + $0x18] sm:$0xf]
    %v3099 = vld [vmem:[#allocation28 + $0x1c] sm:$0xf]
    %v3100 = vld [vmem:[#allocation28 + $0x20] sm:$0xf]
    %v3101 = vld [vmem:[#allocation28 + $0x24] sm:$0xf]
    %v3102 = vld [vmem:[#allocation28 + $0x28] sm:$0xf]
    %v3103 = vld [vmem:[#allocation28 + $0x2c] sm:$0xf]
    %v3104 = vld [vmem:[#allocation28 + $0x30] sm:$0xf]
    %v3105 = vld [vmem:[#allocation28 + $0x34] sm:$0xf]
    %v3106 = vld [vmem:[#allocation28 + $0x38] sm:$0xf]
    %v3107 = vld [vmem:[#allocation28 + $0x3c] sm:$0xf]
    %s3108 = scalar_lea.vmem [#allocation28], 64
    %v3109 = vld [vmem:[%s3108] sm:$0xf]
    %v3110 = vld [vmem:[%s3108 + $0x4] sm:$0xf]
    %v3111 = vld [vmem:[%s3108 + $0x8] sm:$0xf]
    %v3112 = vld [vmem:[%s3108 + $0xc] sm:$0xf]
    %v3113 = vld [vmem:[%s3108 + $0x10] sm:$0xf]
    %v3114 = vld [vmem:[%s3108 + $0x14] sm:$0xf]
    %v3115 = vld [vmem:[%s3108 + $0x18] sm:$0xf]
    %v3116 = vld [vmem:[%s3108 + $0x1c] sm:$0xf]
    %v3117 = vld [vmem:[%s3108 + $0x20] sm:$0xf]
    %v3118 = vld [vmem:[%s3108 + $0x24] sm:$0xf]
    %v3119 = vld [vmem:[%s3108 + $0x28] sm:$0xf]
    %v3120 = vld [vmem:[%s3108 + $0x2c] sm:$0xf]
    %v3121 = vld [vmem:[%s3108 + $0x30] sm:$0xf]
    %v3122 = vld [vmem:[%s3108 + $0x34] sm:$0xf]
    %v3123 = vld [vmem:[%s3108 + $0x38] sm:$0xf]
    %v3124 = vld [vmem:[%s3108 + $0x3c] sm:$0xf]
    %v3126 = vunpack.c.l.b16 %v3084
    %v3127 = vpack.c.b16 %v3126, %v3126
    %v3129 = vshrl.u32 %v3127, 16
    %v3148 = vunpack.c.l.b16 %v3109
    %v3149 = vunpack.c.l.b16 %v3110
    %v3150 = vunpack.c.l.b16 %v3111
    %v3151 = vunpack.c.l.b16 %v3112
    %v3152 = vunpack.c.l.b16 %v3113
    %v3153 = vunpack.c.l.b16 %v3114
    %v3154 = vunpack.c.l.b16 %v3115
    %v3155 = vunpack.c.l.b16 %v3116
    %v3156 = vunpack.c.l.b16 %v3117
    %v3157 = vunpack.c.l.b16 %v3118
    %v3158 = vunpack.c.l.b16 %v3119
    %v3159 = vunpack.c.l.b16 %v3120
    %v3160 = vunpack.c.l.b16 %v3121
    %v3161 = vunpack.c.l.b16 %v3122
    %v3162 = vunpack.c.l.b16 %v3123
    %v3163 = vunpack.c.l.b16 %v3124
    %v3164 = vpack.c.b16 %v3149, %v3148
    %v3165 = vpack.c.b16 %v3151, %v3150
    %v3166 = vpack.c.b16 %v3153, %v3152
    %v3167 = vpack.c.b16 %v3155, %v3154
    %v3168 = vpack.c.b16 %v3157, %v3156
    %v3169 = vpack.c.b16 %v3159, %v3158
    %v3170 = vpack.c.b16 %v3161, %v3160
    %v3171 = vpack.c.b16 %v3163, %v3162
    %3180 = vmatpush.bf16.msra.mxu0 %v3171
    %3181 = vmatpush.bf16.msra.mxu0 %v3170
    %3182 = vmatpush.bf16.msra.mxu0 %v3169
    %3183 = vmatpush.bf16.msra.mxu0 %v3168
    %3184 = vmatpush.bf16.msra.mxu0 %v3167
    %3185 = vmatpush.bf16.msra.mxu0 %v3166
    %3186 = vmatpush.bf16.msra.mxu0 %v3165
    %3187 = vmatpush.bf16.msra.mxu0 %v3164
    %3188 = vmatmul.bf16.gmra.mxu0 %v3129
    %v3189 = vpop.f32.mrf.mxu0
    %v3190 = vadd.f32 0.0, %v3189
    %v3191 = vpop.f32.mrf.mxu0
    %3192 = vdwg.mxu0
    %v3209 = vunpack.c.l.b16 %v3092
    %v3210 = vunpack.c.l.b16 %v3093
    %v3211 = vunpack.c.l.b16 %v3094
    %v3212 = vunpack.c.l.b16 %v3095
    %v3213 = vunpack.c.l.b16 %v3096
    %v3214 = vunpack.c.l.b16 %v3097
    %v3215 = vunpack.c.l.b16 %v3098
    %v3216 = vunpack.c.l.b16 %v3099
    %v3217 = vunpack.c.l.b16 %v3100
    %v3218 = vunpack.c.l.b16 %v3101
    %v3219 = vunpack.c.l.b16 %v3102
    %v3220 = vunpack.c.l.b16 %v3103
    %v3221 = vunpack.c.l.b16 %v3104
    %v3222 = vunpack.c.l.b16 %v3105
    %v3223 = vunpack.c.l.b16 %v3106
    %v3224 = vunpack.c.l.b16 %v3107
    %v3225 = vpack.c.b16 %v3210, %v3209
    %v3226 = vpack.c.b16 %v3212, %v3211
    %v3227 = vpack.c.b16 %v3214, %v3213
    %v3228 = vpack.c.b16 %v3216, %v3215
    %v3229 = vpack.c.b16 %v3218, %v3217
    %v3230 = vpack.c.b16 %v3220, %v3219
    %v3231 = vpack.c.b16 %v3222, %v3221
    %v3232 = vpack.c.b16 %v3224, %v3223
    %3241 = vmatpush.bf16.msra.mxu0 %v3232
    %3242 = vmatpush.bf16.msra.mxu0 %v3231
    %3243 = vmatpush.bf16.msra.mxu0 %v3230
    %3244 = vmatpush.bf16.msra.mxu0 %v3229
    %3245 = vmatpush.bf16.msra.mxu0 %v3228
    %3246 = vmatpush.bf16.msra.mxu0 %v3227
    %3247 = vmatpush.bf16.msra.mxu0 %v3226
    %3248 = vmatpush.bf16.msra.mxu0 %v3225
    %3249 = vmatmul.bf16.gmra.mxu0 %v3084
    %v3250 = vpop.f32.mrf.mxu0
    %v3251 = vadd.f32 %v3190, %v3250
    %v3252 = vpop.f32.mrf.mxu0
    %3253 = vdwg.mxu0
    %s3254 = scalar_lea.vmem [#allocation28], 128
    %v3255 = vld [vmem:[%s3254] sm:$0xf]
    %v3256 = vld [vmem:[%s3254 + $0x4] sm:$0xf]
    %v3257 = vld [vmem:[%s3254 + $0x8] sm:$0xf]
    %v3258 = vld [vmem:[%s3254 + $0xc] sm:$0xf]
    %v3259 = vld [vmem:[%s3254 + $0x10] sm:$0xf]
    %v3260 = vld [vmem:[%s3254 + $0x14] sm:$0xf]
    %v3261 = vld [vmem:[%s3254 + $0x18] sm:$0xf]
    %v3262 = vld [vmem:[%s3254 + $0x1c] sm:$0xf]
    %v3263 = vld [vmem:[%s3254 + $0x20] sm:$0xf]
    %v3264 = vld [vmem:[%s3254 + $0x24] sm:$0xf]
    %v3265 = vld [vmem:[%s3254 + $0x28] sm:$0xf]
    %v3266 = vld [vmem:[%s3254 + $0x2c] sm:$0xf]
    %v3267 = vld [vmem:[%s3254 + $0x30] sm:$0xf]
    %v3268 = vld [vmem:[%s3254 + $0x34] sm:$0xf]
    %v3269 = vld [vmem:[%s3254 + $0x38] sm:$0xf]
    %v3270 = vld [vmem:[%s3254 + $0x3c] sm:$0xf]
    %v3271 = vrot.slane %v3127, 1
    %v3289 = vunpack.c.l.b16 %v3255
    %v3290 = vunpack.c.l.b16 %v3256
    %v3291 = vunpack.c.l.b16 %v3257
    %v3292 = vunpack.c.l.b16 %v3258
    %v3293 = vunpack.c.l.b16 %v3259
    %v3294 = vunpack.c.l.b16 %v3260
    %v3295 = vunpack.c.l.b16 %v3261
    %v3296 = vunpack.c.l.b16 %v3262
    %v3297 = vunpack.c.l.b16 %v3263
    %v3298 = vunpack.c.l.b16 %v3264
    %v3299 = vunpack.c.l.b16 %v3265
    %v3300 = vunpack.c.l.b16 %v3266
    %v3301 = vunpack.c.l.b16 %v3267
    %v3302 = vunpack.c.l.b16 %v3268
    %v3303 = vunpack.c.l.b16 %v3269
    %v3304 = vunpack.c.l.b16 %v3270
    %v3305 = vpack.c.b16 %v3290, %v3289
    %v3306 = vpack.c.b16 %v3292, %v3291
    %v3307 = vpack.c.b16 %v3294, %v3293
    %v3308 = vpack.c.b16 %v3296, %v3295
    %v3309 = vpack.c.b16 %v3298, %v3297
    %v3310 = vpack.c.b16 %v3300, %v3299
    %v3311 = vpack.c.b16 %v3302, %v3301
    %v3312 = vpack.c.b16 %v3304, %v3303
    %3321 = vmatpush.bf16.msra.mxu0 %v3312
    %3322 = vmatpush.bf16.msra.mxu0 %v3311
    %3323 = vmatpush.bf16.msra.mxu0 %v3310
    %3324 = vmatpush.bf16.msra.mxu0 %v3309
    %3325 = vmatpush.bf16.msra.mxu0 %v3308
    %3326 = vmatpush.bf16.msra.mxu0 %v3307
    %3327 = vmatpush.bf16.msra.mxu0 %v3306
    %3328 = vmatpush.bf16.msra.mxu0 %v3305
    %3329 = vmatmul.bf16.gmra.mxu0 %v3271
    %v3330 = vpop.f32.mrf.mxu0
    %v3331 = vadd.f32 0.0, %v3330
    %v3332 = vpop.f32.mrf.mxu0
    %3333 = vdwg.mxu0
    %v3334 = vadd.f32 %v3251, %v3331
    %s3335 = scalar_lea.vmem [#allocation28], 192
    %v3336 = vld [vmem:[%s3335] sm:$0xf]
    %v3337 = vld [vmem:[%s3335 + $0x4] sm:$0xf]
    %v3338 = vld [vmem:[%s3335 + $0x8] sm:$0xf]
    %v3339 = vld [vmem:[%s3335 + $0xc] sm:$0xf]
    %v3340 = vld [vmem:[%s3335 + $0x10] sm:$0xf]
    %v3341 = vld [vmem:[%s3335 + $0x14] sm:$0xf]
    %v3342 = vld [vmem:[%s3335 + $0x18] sm:$0xf]
    %v3343 = vld [vmem:[%s3335 + $0x1c] sm:$0xf]
    %v3344 = vld [vmem:[%s3335 + $0x20] sm:$0xf]
    %v3345 = vld [vmem:[%s3335 + $0x24] sm:$0xf]
    %v3346 = vld [vmem:[%s3335 + $0x28] sm:$0xf]
    %v3347 = vld [vmem:[%s3335 + $0x2c] sm:$0xf]
    %v3348 = vld [vmem:[%s3335 + $0x30] sm:$0xf]
    %v3349 = vld [vmem:[%s3335 + $0x34] sm:$0xf]
    %v3350 = vld [vmem:[%s3335 + $0x38] sm:$0xf]
    %v3351 = vld [vmem:[%s3335 + $0x3c] sm:$0xf]
    %v3352 = vrot.slane %v3129, 1
    %v3370 = vunpack.c.l.b16 %v3336
    %v3371 = vunpack.c.l.b16 %v3337
    %v3372 = vunpack.c.l.b16 %v3338
    %v3373 = vunpack.c.l.b16 %v3339
    %v3374 = vunpack.c.l.b16 %v3340
    %v3375 = vunpack.c.l.b16 %v3341
    %v3376 = vunpack.c.l.b16 %v3342
    %v3377 = vunpack.c.l.b16 %v3343
    %v3378 = vunpack.c.l.b16 %v3344
    %v3379 = vunpack.c.l.b16 %v3345
    %v3380 = vunpack.c.l.b16 %v3346
    %v3381 = vunpack.c.l.b16 %v3347
    %v3382 = vunpack.c.l.b16 %v3348
    %v3383 = vunpack.c.l.b16 %v3349
    %v3384 = vunpack.c.l.b16 %v3350
    %v3385 = vunpack.c.l.b16 %v3351
    %v3386 = vpack.c.b16 %v3371, %v3370
    %v3387 = vpack.c.b16 %v3373, %v3372
    %v3388 = vpack.c.b16 %v3375, %v3374
    %v3389 = vpack.c.b16 %v3377, %v3376
    %v3390 = vpack.c.b16 %v3379, %v3378
    %v3391 = vpack.c.b16 %v3381, %v3380
    %v3392 = vpack.c.b16 %v3383, %v3382
    %v3393 = vpack.c.b16 %v3385, %v3384
    %3402 = vmatpush.bf16.msra.mxu0 %v3393
    %3403 = vmatpush.bf16.msra.mxu0 %v3392
    %3404 = vmatpush.bf16.msra.mxu0 %v3391
    %3405 = vmatpush.bf16.msra.mxu0 %v3390
    %3406 = vmatpush.bf16.msra.mxu0 %v3389
    %3407 = vmatpush.bf16.msra.mxu0 %v3388
    %3408 = vmatpush.bf16.msra.mxu0 %v3387
    %3409 = vmatpush.bf16.msra.mxu0 %v3386
    %3410 = vmatmul.bf16.gmra.mxu0 %v3352
    %v3411 = vpop.f32.mrf.mxu0
    %v3412 = vadd.f32 0.0, %v3411
    %v3413 = vpop.f32.mrf.mxu0
    %3414 = vdwg.mxu0
    %v3415 = vadd.f32 %v3334, %v3412
    %s3416 = scalar_lea.vmem [#allocation28], 256
    %v3417 = vld [vmem:[%s3416] sm:$0xf]
    %v3418 = vld [vmem:[%s3416 + $0x4] sm:$0xf]
    %v3419 = vld [vmem:[%s3416 + $0x8] sm:$0xf]
    %v3420 = vld [vmem:[%s3416 + $0xc] sm:$0xf]
    %v3421 = vld [vmem:[%s3416 + $0x10] sm:$0xf]
    %v3422 = vld [vmem:[%s3416 + $0x14] sm:$0xf]
    %v3423 = vld [vmem:[%s3416 + $0x18] sm:$0xf]
    %v3424 = vld [vmem:[%s3416 + $0x1c] sm:$0xf]
    %v3425 = vld [vmem:[%s3416 + $0x20] sm:$0xf]
    %v3426 = vld [vmem:[%s3416 + $0x24] sm:$0xf]
    %v3427 = vld [vmem:[%s3416 + $0x28] sm:$0xf]
    %v3428 = vld [vmem:[%s3416 + $0x2c] sm:$0xf]
    %v3429 = vld [vmem:[%s3416 + $0x30] sm:$0xf]
    %v3430 = vld [vmem:[%s3416 + $0x34] sm:$0xf]
    %v3431 = vld [vmem:[%s3416 + $0x38] sm:$0xf]
    %v3432 = vld [vmem:[%s3416 + $0x3c] sm:$0xf]
    %v3433 = vrot.slane %v3127, 2
    %v3451 = vunpack.c.l.b16 %v3417
    %v3452 = vunpack.c.l.b16 %v3418
    %v3453 = vunpack.c.l.b16 %v3419
    %v3454 = vunpack.c.l.b16 %v3420
    %v3455 = vunpack.c.l.b16 %v3421
    %v3456 = vunpack.c.l.b16 %v3422
    %v3457 = vunpack.c.l.b16 %v3423
    %v3458 = vunpack.c.l.b16 %v3424
    %v3459 = vunpack.c.l.b16 %v3425
    %v3460 = vunpack.c.l.b16 %v3426
    %v3461 = vunpack.c.l.b16 %v3427
    %v3462 = vunpack.c.l.b16 %v3428
    %v3463 = vunpack.c.l.b16 %v3429
    %v3464 = vunpack.c.l.b16 %v3430
    %v3465 = vunpack.c.l.b16 %v3431
    %v3466 = vunpack.c.l.b16 %v3432
    %v3467 = vpack.c.b16 %v3452, %v3451
    %v3468 = vpack.c.b16 %v3454, %v3453
    %v3469 = vpack.c.b16 %v3456, %v3455
    %v3470 = vpack.c.b16 %v3458, %v3457
    %v3471 = vpack.c.b16 %v3460, %v3459
    %v3472 = vpack.c.b16 %v3462, %v3461
    %v3473 = vpack.c.b16 %v3464, %v3463
    %v3474 = vpack.c.b16 %v3466, %v3465
    %3483 = vmatpush.bf16.msra.mxu0 %v3474
    %3484 = vmatpush.bf16.msra.mxu0 %v3473
    %3485 = vmatpush.bf16.msra.mxu0 %v3472
    %3486 = vmatpush.bf16.msra.mxu0 %v3471
    %3487 = vmatpush.bf16.msra.mxu0 %v3470
    %3488 = vmatpush.bf16.msra.mxu0 %v3469
    %3489 = vmatpush.bf16.msra.mxu0 %v3468
    %3490 = vmatpush.bf16.msra.mxu0 %v3467
    %3491 = vmatmul.bf16.gmra.mxu0 %v3433
    %v3492 = vpop.f32.mrf.mxu0
    %v3493 = vadd.f32 0.0, %v3492
    %v3494 = vpop.f32.mrf.mxu0
    %3495 = vdwg.mxu0
    %v3496 = vadd.f32 %v3415, %v3493
    %s3497 = scalar_lea.vmem [#allocation28], 320
    %v3498 = vld [vmem:[%s3497] sm:$0xf]
    %v3499 = vld [vmem:[%s3497 + $0x4] sm:$0xf]
    %v3500 = vld [vmem:[%s3497 + $0x8] sm:$0xf]
    %v3501 = vld [vmem:[%s3497 + $0xc] sm:$0xf]
    %v3502 = vld [vmem:[%s3497 + $0x10] sm:$0xf]
    %v3503 = vld [vmem:[%s3497 + $0x14] sm:$0xf]
    %v3504 = vld [vmem:[%s3497 + $0x18] sm:$0xf]
    %v3505 = vld [vmem:[%s3497 + $0x1c] sm:$0xf]
    %v3506 = vld [vmem:[%s3497 + $0x20] sm:$0xf]
    %v3507 = vld [vmem:[%s3497 + $0x24] sm:$0xf]
    %v3508 = vld [vmem:[%s3497 + $0x28] sm:$0xf]
    %v3509 = vld [vmem:[%s3497 + $0x2c] sm:$0xf]
    %v3510 = vld [vmem:[%s3497 + $0x30] sm:$0xf]
    %v3511 = vld [vmem:[%s3497 + $0x34] sm:$0xf]
    %v3512 = vld [vmem:[%s3497 + $0x38] sm:$0xf]
    %v3513 = vld [vmem:[%s3497 + $0x3c] sm:$0xf]
    %v3514 = vrot.slane %v3129, 2
    %v3532 = vunpack.c.l.b16 %v3498
    %v3533 = vunpack.c.l.b16 %v3499
    %v3534 = vunpack.c.l.b16 %v3500
    %v3535 = vunpack.c.l.b16 %v3501
    %v3536 = vunpack.c.l.b16 %v3502
    %v3537 = vunpack.c.l.b16 %v3503
    %v3538 = vunpack.c.l.b16 %v3504
    %v3539 = vunpack.c.l.b16 %v3505
    %v3540 = vunpack.c.l.b16 %v3506
    %v3541 = vunpack.c.l.b16 %v3507
    %v3542 = vunpack.c.l.b16 %v3508
    %v3543 = vunpack.c.l.b16 %v3509
    %v3544 = vunpack.c.l.b16 %v3510
    %v3545 = vunpack.c.l.b16 %v3511
    %v3546 = vunpack.c.l.b16 %v3512
    %v3547 = vunpack.c.l.b16 %v3513
    %v3548 = vpack.c.b16 %v3533, %v3532
    %v3549 = vpack.c.b16 %v3535, %v3534
    %v3550 = vpack.c.b16 %v3537, %v3536
    %v3551 = vpack.c.b16 %v3539, %v3538
    %v3552 = vpack.c.b16 %v3541, %v3540
    %v3553 = vpack.c.b16 %v3543, %v3542
    %v3554 = vpack.c.b16 %v3545, %v3544
    %v3555 = vpack.c.b16 %v3547, %v3546
    %3564 = vmatpush.bf16.msra.mxu0 %v3555
    %3565 = vmatpush.bf16.msra.mxu0 %v3554
    %3566 = vmatpush.bf16.msra.mxu0 %v3553
    %3567 = vmatpush.bf16.msra.mxu0 %v3552
    %3568 = vmatpush.bf16.msra.mxu0 %v3551
    %3569 = vmatpush.bf16.msra.mxu0 %v3550
    %3570 = vmatpush.bf16.msra.mxu0 %v3549
    %3571 = vmatpush.bf16.msra.mxu0 %v3548
    %3572 = vmatmul.bf16.gmra.mxu0 %v3514
    %v3573 = vpop.f32.mrf.mxu0
    %v3574 = vadd.f32 0.0, %v3573
    %v3575 = vpop.f32.mrf.mxu0
    %3576 = vdwg.mxu0
    %v3577 = vadd.f32 %v3496, %v3574
    %s3578 = scalar_lea.vmem [#allocation28], 384
    %v3579 = vld [vmem:[%s3578] sm:$0xf]
    %v3580 = vld [vmem:[%s3578 + $0x4] sm:$0xf]
    %v3581 = vld [vmem:[%s3578 + $0x8] sm:$0xf]
    %v3582 = vld [vmem:[%s3578 + $0xc] sm:$0xf]
    %v3583 = vld [vmem:[%s3578 + $0x10] sm:$0xf]
    %v3584 = vld [vmem:[%s3578 + $0x14] sm:$0xf]
    %v3585 = vld [vmem:[%s3578 + $0x18] sm:$0xf]
    %v3586 = vld [vmem:[%s3578 + $0x1c] sm:$0xf]
    %v3587 = vld [vmem:[%s3578 + $0x20] sm:$0xf]
    %v3588 = vld [vmem:[%s3578 + $0x24] sm:$0xf]
    %v3589 = vld [vmem:[%s3578 + $0x28] sm:$0xf]
    %v3590 = vld [vmem:[%s3578 + $0x2c] sm:$0xf]
    %v3591 = vld [vmem:[%s3578 + $0x30] sm:$0xf]
    %v3592 = vld [vmem:[%s3578 + $0x34] sm:$0xf]
    %v3593 = vld [vmem:[%s3578 + $0x38] sm:$0xf]
    %v3594 = vld [vmem:[%s3578 + $0x3c] sm:$0xf]
    %v3595 = vrot.slane %v3127, 3
    %v3613 = vunpack.c.l.b16 %v3579
    %v3614 = vunpack.c.l.b16 %v3580
    %v3615 = vunpack.c.l.b16 %v3581
    %v3616 = vunpack.c.l.b16 %v3582
    %v3617 = vunpack.c.l.b16 %v3583
    %v3618 = vunpack.c.l.b16 %v3584
    %v3619 = vunpack.c.l.b16 %v3585
    %v3620 = vunpack.c.l.b16 %v3586
    %v3621 = vunpack.c.l.b16 %v3587
    %v3622 = vunpack.c.l.b16 %v3588
    %v3623 = vunpack.c.l.b16 %v3589
    %v3624 = vunpack.c.l.b16 %v3590
    %v3625 = vunpack.c.l.b16 %v3591
    %v3626 = vunpack.c.l.b16 %v3592
    %v3627 = vunpack.c.l.b16 %v3593
    %v3628 = vunpack.c.l.b16 %v3594
    %v3629 = vpack.c.b16 %v3614, %v3613
    %v3630 = vpack.c.b16 %v3616, %v3615
    %v3631 = vpack.c.b16 %v3618, %v3617
    %v3632 = vpack.c.b16 %v3620, %v3619
    %v3633 = vpack.c.b16 %v3622, %v3621
    %v3634 = vpack.c.b16 %v3624, %v3623
    %v3635 = vpack.c.b16 %v3626, %v3625
    %v3636 = vpack.c.b16 %v3628, %v3627
    %3645 = vmatpush.bf16.msra.mxu0 %v3636
    %3646 = vmatpush.bf16.msra.mxu0 %v3635
    %3647 = vmatpush.bf16.msra.mxu0 %v3634
    %3648 = vmatpush.bf16.msra.mxu0 %v3633
    %3649 = vmatpush.bf16.msra.mxu0 %v3632
    %3650 = vmatpush.bf16.msra.mxu0 %v3631
    %3651 = vmatpush.bf16.msra.mxu0 %v3630
    %3652 = vmatpush.bf16.msra.mxu0 %v3629
    %3653 = vmatmul.bf16.gmra.mxu0 %v3595
    %v3654 = vpop.f32.mrf.mxu0
    %v3655 = vadd.f32 0.0, %v3654
    %v3656 = vpop.f32.mrf.mxu0
    %3657 = vdwg.mxu0
    %v3658 = vadd.f32 %v3577, %v3655
    %s3659 = scalar_lea.vmem [#allocation28], 448
    %v3660 = vld [vmem:[%s3659] sm:$0xf]
    %v3661 = vld [vmem:[%s3659 + $0x4] sm:$0xf]
    %v3662 = vld [vmem:[%s3659 + $0x8] sm:$0xf]
    %v3663 = vld [vmem:[%s3659 + $0xc] sm:$0xf]
    %v3664 = vld [vmem:[%s3659 + $0x10] sm:$0xf]
    %v3665 = vld [vmem:[%s3659 + $0x14] sm:$0xf]
    %v3666 = vld [vmem:[%s3659 + $0x18] sm:$0xf]
    %v3667 = vld [vmem:[%s3659 + $0x1c] sm:$0xf]
    %v3668 = vld [vmem:[%s3659 + $0x20] sm:$0xf]
    %v3669 = vld [vmem:[%s3659 + $0x24] sm:$0xf]
    %v3670 = vld [vmem:[%s3659 + $0x28] sm:$0xf]
    %v3671 = vld [vmem:[%s3659 + $0x2c] sm:$0xf]
    %v3672 = vld [vmem:[%s3659 + $0x30] sm:$0xf]
    %v3673 = vld [vmem:[%s3659 + $0x34] sm:$0xf]
    %v3674 = vld [vmem:[%s3659 + $0x38] sm:$0xf]
    %v3675 = vld [vmem:[%s3659 + $0x3c] sm:$0xf]
    %v3676 = vrot.slane %v3129, 3
    %v3694 = vunpack.c.l.b16 %v3660
    %v3695 = vunpack.c.l.b16 %v3661
    %v3696 = vunpack.c.l.b16 %v3662
    %v3697 = vunpack.c.l.b16 %v3663
    %v3698 = vunpack.c.l.b16 %v3664
    %v3699 = vunpack.c.l.b16 %v3665
    %v3700 = vunpack.c.l.b16 %v3666
    %v3701 = vunpack.c.l.b16 %v3667
    %v3702 = vunpack.c.l.b16 %v3668
    %v3703 = vunpack.c.l.b16 %v3669
    %v3704 = vunpack.c.l.b16 %v3670
    %v3705 = vunpack.c.l.b16 %v3671
    %v3706 = vunpack.c.l.b16 %v3672
    %v3707 = vunpack.c.l.b16 %v3673
    %v3708 = vunpack.c.l.b16 %v3674
    %v3709 = vunpack.c.l.b16 %v3675
    %v3710 = vpack.c.b16 %v3695, %v3694
    %v3711 = vpack.c.b16 %v3697, %v3696
    %v3712 = vpack.c.b16 %v3699, %v3698
    %v3713 = vpack.c.b16 %v3701, %v3700
    %v3714 = vpack.c.b16 %v3703, %v3702
    %v3715 = vpack.c.b16 %v3705, %v3704
    %v3716 = vpack.c.b16 %v3707, %v3706
    %v3717 = vpack.c.b16 %v3709, %v3708
    %3726 = vmatpush.bf16.msra.mxu0 %v3717
    %3727 = vmatpush.bf16.msra.mxu0 %v3716
    %3728 = vmatpush.bf16.msra.mxu0 %v3715
    %3729 = vmatpush.bf16.msra.mxu0 %v3714
    %3730 = vmatpush.bf16.msra.mxu0 %v3713
    %3731 = vmatpush.bf16.msra.mxu0 %v3712
    %3732 = vmatpush.bf16.msra.mxu0 %v3711
    %3733 = vmatpush.bf16.msra.mxu0 %v3710
    %3734 = vmatmul.bf16.gmra.mxu0 %v3676
    %v3735 = vpop.f32.mrf.mxu0
    %v3736 = vadd.f32 0.0, %v3735
    %v3737 = vpop.f32.mrf.mxu0
    %3738 = vdwg.mxu0
    %v3739 = vadd.f32 %v3658, %v3736
    %s3740 = scalar_lea.vmem [#allocation28], 512
    %v3741 = vld [vmem:[%s3740] sm:$0xf]
    %v3742 = vld [vmem:[%s3740 + $0x4] sm:$0xf]
    %v3743 = vld [vmem:[%s3740 + $0x8] sm:$0xf]
    %v3744 = vld [vmem:[%s3740 + $0xc] sm:$0xf]
    %v3745 = vld [vmem:[%s3740 + $0x10] sm:$0xf]
    %v3746 = vld [vmem:[%s3740 + $0x14] sm:$0xf]
    %v3747 = vld [vmem:[%s3740 + $0x18] sm:$0xf]
    %v3748 = vld [vmem:[%s3740 + $0x1c] sm:$0xf]
    %v3749 = vld [vmem:[%s3740 + $0x20] sm:$0xf]
    %v3750 = vld [vmem:[%s3740 + $0x24] sm:$0xf]
    %v3751 = vld [vmem:[%s3740 + $0x28] sm:$0xf]
    %v3752 = vld [vmem:[%s3740 + $0x2c] sm:$0xf]
    %v3753 = vld [vmem:[%s3740 + $0x30] sm:$0xf]
    %v3754 = vld [vmem:[%s3740 + $0x34] sm:$0xf]
    %v3755 = vld [vmem:[%s3740 + $0x38] sm:$0xf]
    %v3756 = vld [vmem:[%s3740 + $0x3c] sm:$0xf]
    %v3773 = vunpack.c.l.b16 %v3741
    %v3774 = vunpack.c.l.b16 %v3742
    %v3775 = vunpack.c.l.b16 %v3743
    %v3776 = vunpack.c.l.b16 %v3744
    %v3777 = vunpack.c.l.b16 %v3745
    %v3778 = vunpack.c.l.b16 %v3746
    %v3779 = vunpack.c.l.b16 %v3747
    %v3780 = vunpack.c.l.b16 %v3748
    %v3781 = vunpack.c.l.b16 %v3749
    %v3782 = vunpack.c.l.b16 %v3750
    %v3783 = vunpack.c.l.b16 %v3751
    %v3784 = vunpack.c.l.b16 %v3752
    %v3785 = vunpack.c.l.b16 %v3753
    %v3786 = vunpack.c.l.b16 %v3754
    %v3787 = vunpack.c.l.b16 %v3755
    %v3788 = vunpack.c.l.b16 %v3756
    %v3789 = vpack.c.b16 %v3774, %v3773
    %v3790 = vpack.c.b16 %v3776, %v3775
    %v3791 = vpack.c.b16 %v3778, %v3777
    %v3792 = vpack.c.b16 %v3780, %v3779
    %v3793 = vpack.c.b16 %v3782, %v3781
    %v3794 = vpack.c.b16 %v3784, %v3783
    %v3795 = vpack.c.b16 %v3786, %v3785
    %v3796 = vpack.c.b16 %v3788, %v3787
    %3805 = vmatpush.bf16.msra.mxu0 %v3796
    %3806 = vmatpush.bf16.msra.mxu0 %v3795
    %3807 = vmatpush.bf16.msra.mxu0 %v3794
    %3808 = vmatpush.bf16.msra.mxu0 %v3793
    %3809 = vmatpush.bf16.msra.mxu0 %v3792
    %3810 = vmatpush.bf16.msra.mxu0 %v3791
    %3811 = vmatpush.bf16.msra.mxu0 %v3790
    %3812 = vmatpush.bf16.msra.mxu0 %v3789
    %3813 = vmatmul.bf16.gmra.mxu0 %v3085
    %v3814 = vpop.f32.mrf.mxu0
    %v3815 = vadd.f32 0.0, %v3814
    %v3816 = vpop.f32.mrf.mxu0
    %3817 = vdwg.mxu0
    %v3818 = vadd.f32 %v3739, %v3815
    %s3819 = scalar_lea.vmem [#allocation28], 576
    %v3820 = vld [vmem:[%s3819] sm:$0xf]
    %v3821 = vld [vmem:[%s3819 + $0x4] sm:$0xf]
    %v3822 = vld [vmem:[%s3819 + $0x8] sm:$0xf]
    %v3823 = vld [vmem:[%s3819 + $0xc] sm:$0xf]
    %v3824 = vld [vmem:[%s3819 + $0x10] sm:$0xf]
    %v3825 = vld [vmem:[%s3819 + $0x14] sm:$0xf]
    %v3826 = vld [vmem:[%s3819 + $0x18] sm:$0xf]
    %v3827 = vld [vmem:[%s3819 + $0x1c] sm:$0xf]
    %v3828 = vld [vmem:[%s3819 + $0x20] sm:$0xf]
    %v3829 = vld [vmem:[%s3819 + $0x24] sm:$0xf]
    %v3830 = vld [vmem:[%s3819 + $0x28] sm:$0xf]
    %v3831 = vld [vmem:[%s3819 + $0x2c] sm:$0xf]
    %v3832 = vld [vmem:[%s3819 + $0x30] sm:$0xf]
    %v3833 = vld [vmem:[%s3819 + $0x34] sm:$0xf]
    %v3834 = vld [vmem:[%s3819 + $0x38] sm:$0xf]
    %v3835 = vld [vmem:[%s3819 + $0x3c] sm:$0xf]
    %v3837 = vunpack.c.l.b16 %v3085
    %v3838 = vpack.c.b16 %v3837, %v3837
    %v3840 = vshrl.u32 %v3838, 16
    %v3859 = vunpack.c.l.b16 %v3820
    %v3860 = vunpack.c.l.b16 %v3821
    %v3861 = vunpack.c.l.b16 %v3822
    %v3862 = vunpack.c.l.b16 %v3823
    %v3863 = vunpack.c.l.b16 %v3824
    %v3864 = vunpack.c.l.b16 %v3825
    %v3865 = vunpack.c.l.b16 %v3826
    %v3866 = vunpack.c.l.b16 %v3827
    %v3867 = vunpack.c.l.b16 %v3828
    %v3868 = vunpack.c.l.b16 %v3829
    %v3869 = vunpack.c.l.b16 %v3830
    %v3870 = vunpack.c.l.b16 %v3831
    %v3871 = vunpack.c.l.b16 %v3832
    %v3872 = vunpack.c.l.b16 %v3833
    %v3873 = vunpack.c.l.b16 %v3834
    %v3874 = vunpack.c.l.b16 %v3835
    %v3875 = vpack.c.b16 %v3860, %v3859
    %v3876 = vpack.c.b16 %v3862, %v3861
    %v3877 = vpack.c.b16 %v3864, %v3863
    %v3878 = vpack.c.b16 %v3866, %v3865
    %v3879 = vpack.c.b16 %v3868, %v3867
    %v3880 = vpack.c.b16 %v3870, %v3869
    %v3881 = vpack.c.b16 %v3872, %v3871
    %v3882 = vpack.c.b16 %v3874, %v3873
    %3891 = vmatpush.bf16.msra.mxu0 %v3882
    %3892 = vmatpush.bf16.msra.mxu0 %v3881
    %3893 = vmatpush.bf16.msra.mxu0 %v3880
    %3894 = vmatpush.bf16.msra.mxu0 %v3879
    %3895 = vmatpush.bf16.msra.mxu0 %v3878
    %3896 = vmatpush.bf16.msra.mxu0 %v3877
    %3897 = vmatpush.bf16.msra.mxu0 %v3876
    %3898 = vmatpush.bf16.msra.mxu0 %v3875
    %3899 = vmatmul.bf16.gmra.mxu0 %v3840
    %v3900 = vpop.f32.mrf.mxu0
    %v3901 = vadd.f32 0.0, %v3900
    %v3902 = vpop.f32.mrf.mxu0
    %3903 = vdwg.mxu0
    %v3904 = vadd.f32 %v3818, %v3901
    %s3905 = scalar_lea.vmem [#allocation28], 640
    %v3906 = vld [vmem:[%s3905] sm:$0xf]
    %v3907 = vld [vmem:[%s3905 + $0x4] sm:$0xf]
    %v3908 = vld [vmem:[%s3905 + $0x8] sm:$0xf]
    %v3909 = vld [vmem:[%s3905 + $0xc] sm:$0xf]
    %v3910 = vld [vmem:[%s3905 + $0x10] sm:$0xf]
    %v3911 = vld [vmem:[%s3905 + $0x14] sm:$0xf]
    %v3912 = vld [vmem:[%s3905 + $0x18] sm:$0xf]
    %v3913 = vld [vmem:[%s3905 + $0x1c] sm:$0xf]
    %v3914 = vld [vmem:[%s3905 + $0x20] sm:$0xf]
    %v3915 = vld [vmem:[%s3905 + $0x24] sm:$0xf]
    %v3916 = vld [vmem:[%s3905 + $0x28] sm:$0xf]
    %v3917 = vld [vmem:[%s3905 + $0x2c] sm:$0xf]
    %v3918 = vld [vmem:[%s3905 + $0x30] sm:$0xf]
    %v3919 = vld [vmem:[%s3905 + $0x34] sm:$0xf]
    %v3920 = vld [vmem:[%s3905 + $0x38] sm:$0xf]
    %v3921 = vld [vmem:[%s3905 + $0x3c] sm:$0xf]
    %v3922 = vrot.slane %v3838, 1
    %v3940 = vunpack.c.l.b16 %v3906
    %v3941 = vunpack.c.l.b16 %v3907
    %v3942 = vunpack.c.l.b16 %v3908
    %v3943 = vunpack.c.l.b16 %v3909
    %v3944 = vunpack.c.l.b16 %v3910
    %v3945 = vunpack.c.l.b16 %v3911
    %v3946 = vunpack.c.l.b16 %v3912
    %v3947 = vunpack.c.l.b16 %v3913
    %v3948 = vunpack.c.l.b16 %v3914
    %v3949 = vunpack.c.l.b16 %v3915
    %v3950 = vunpack.c.l.b16 %v3916
    %v3951 = vunpack.c.l.b16 %v3917
    %v3952 = vunpack.c.l.b16 %v3918
    %v3953 = vunpack.c.l.b16 %v3919
    %v3954 = vunpack.c.l.b16 %v3920
    %v3955 = vunpack.c.l.b16 %v3921
    %v3956 = vpack.c.b16 %v3941, %v3940
    %v3957 = vpack.c.b16 %v3943, %v3942
    %v3958 = vpack.c.b16 %v3945, %v3944
    %v3959 = vpack.c.b16 %v3947, %v3946
    %v3960 = vpack.c.b16 %v3949, %v3948
    %v3961 = vpack.c.b16 %v3951, %v3950
    %v3962 = vpack.c.b16 %v3953, %v3952
    %v3963 = vpack.c.b16 %v3955, %v3954
    %3972 = vmatpush.bf16.msra.mxu0 %v3963
    %3973 = vmatpush.bf16.msra.mxu0 %v3962
    %3974 = vmatpush.bf16.msra.mxu0 %v3961
    %3975 = vmatpush.bf16.msra.mxu0 %v3960
    %3976 = vmatpush.bf16.msra.mxu0 %v3959
    %3977 = vmatpush.bf16.msra.mxu0 %v3958
    %3978 = vmatpush.bf16.msra.mxu0 %v3957
    %3979 = vmatpush.bf16.msra.mxu0 %v3956
    %3980 = vmatmul.bf16.gmra.mxu0 %v3922
    %v3981 = vpop.f32.mrf.mxu0
    %v3982 = vadd.f32 0.0, %v3981
    %v3983 = vpop.f32.mrf.mxu0
    %3984 = vdwg.mxu0
    %v3985 = vadd.f32 %v3904, %v3982
    %s3986 = scalar_lea.vmem [#allocation28], 704
    %v3987 = vld [vmem:[%s3986] sm:$0xf]
    %v3988 = vld [vmem:[%s3986 + $0x4] sm:$0xf]
    %v3989 = vld [vmem:[%s3986 + $0x8] sm:$0xf]
    %v3990 = vld [vmem:[%s3986 + $0xc] sm:$0xf]
    %v3991 = vld [vmem:[%s3986 + $0x10] sm:$0xf]
    %v3992 = vld [vmem:[%s3986 + $0x14] sm:$0xf]
    %v3993 = vld [vmem:[%s3986 + $0x18] sm:$0xf]
    %v3994 = vld [vmem:[%s3986 + $0x1c] sm:$0xf]
    %v3995 = vld [vmem:[%s3986 + $0x20] sm:$0xf]
    %v3996 = vld [vmem:[%s3986 + $0x24] sm:$0xf]
    %v3997 = vld [vmem:[%s3986 + $0x28] sm:$0xf]
    %v3998 = vld [vmem:[%s3986 + $0x2c] sm:$0xf]
    %v3999 = vld [vmem:[%s3986 + $0x30] sm:$0xf]
    %v4000 = vld [vmem:[%s3986 + $0x34] sm:$0xf]
    %v4001 = vld [vmem:[%s3986 + $0x38] sm:$0xf]
    %v4002 = vld [vmem:[%s3986 + $0x3c] sm:$0xf]
    %v4003 = vrot.slane %v3840, 1
    %v4021 = vunpack.c.l.b16 %v3987
    %v4022 = vunpack.c.l.b16 %v3988
    %v4023 = vunpack.c.l.b16 %v3989
    %v4024 = vunpack.c.l.b16 %v3990
    %v4025 = vunpack.c.l.b16 %v3991
    %v4026 = vunpack.c.l.b16 %v3992
    %v4027 = vunpack.c.l.b16 %v3993
    %v4028 = vunpack.c.l.b16 %v3994
    %v4029 = vunpack.c.l.b16 %v3995
    %v4030 = vunpack.c.l.b16 %v3996
    %v4031 = vunpack.c.l.b16 %v3997
    %v4032 = vunpack.c.l.b16 %v3998
    %v4033 = vunpack.c.l.b16 %v3999
    %v4034 = vunpack.c.l.b16 %v4000
    %v4035 = vunpack.c.l.b16 %v4001
    %v4036 = vunpack.c.l.b16 %v4002
    %v4037 = vpack.c.b16 %v4022, %v4021
    %v4038 = vpack.c.b16 %v4024, %v4023
    %v4039 = vpack.c.b16 %v4026, %v4025
    %v4040 = vpack.c.b16 %v4028, %v4027
    %v4041 = vpack.c.b16 %v4030, %v4029
    %v4042 = vpack.c.b16 %v4032, %v4031
    %v4043 = vpack.c.b16 %v4034, %v4033
    %v4044 = vpack.c.b16 %v4036, %v4035
    %4053 = vmatpush.bf16.msra.mxu0 %v4044
    %4054 = vmatpush.bf16.msra.mxu0 %v4043
    %4055 = vmatpush.bf16.msra.mxu0 %v4042
    %4056 = vmatpush.bf16.msra.mxu0 %v4041
    %4057 = vmatpush.bf16.msra.mxu0 %v4040
    %4058 = vmatpush.bf16.msra.mxu0 %v4039
    %4059 = vmatpush.bf16.msra.mxu0 %v4038
    %4060 = vmatpush.bf16.msra.mxu0 %v4037
    %4061 = vmatmul.bf16.gmra.mxu0 %v4003
    %v4062 = vpop.f32.mrf.mxu0
    %v4063 = vadd.f32 0.0, %v4062
    %v4064 = vpop.f32.mrf.mxu0
    %4065 = vdwg.mxu0
    %v4066 = vadd.f32 %v3985, %v4063
    %s4067 = scalar_lea.vmem [#allocation28], 768
    %v4068 = vld [vmem:[%s4067] sm:$0xf]
    %v4069 = vld [vmem:[%s4067 + $0x4] sm:$0xf]
    %v4070 = vld [vmem:[%s4067 + $0x8] sm:$0xf]
    %v4071 = vld [vmem:[%s4067 + $0xc] sm:$0xf]
    %v4072 = vld [vmem:[%s4067 + $0x10] sm:$0xf]
    %v4073 = vld [vmem:[%s4067 + $0x14] sm:$0xf]
    %v4074 = vld [vmem:[%s4067 + $0x18] sm:$0xf]
    %v4075 = vld [vmem:[%s4067 + $0x1c] sm:$0xf]
    %v4076 = vld [vmem:[%s4067 + $0x20] sm:$0xf]
    %v4077 = vld [vmem:[%s4067 + $0x24] sm:$0xf]
    %v4078 = vld [vmem:[%s4067 + $0x28] sm:$0xf]
    %v4079 = vld [vmem:[%s4067 + $0x2c] sm:$0xf]
    %v4080 = vld [vmem:[%s4067 + $0x30] sm:$0xf]
    %v4081 = vld [vmem:[%s4067 + $0x34] sm:$0xf]
    %v4082 = vld [vmem:[%s4067 + $0x38] sm:$0xf]
    %v4083 = vld [vmem:[%s4067 + $0x3c] sm:$0xf]
    %v4084 = vrot.slane %v3838, 2
    %v4102 = vunpack.c.l.b16 %v4068
    %v4103 = vunpack.c.l.b16 %v4069
    %v4104 = vunpack.c.l.b16 %v4070
    %v4105 = vunpack.c.l.b16 %v4071
    %v4106 = vunpack.c.l.b16 %v4072
    %v4107 = vunpack.c.l.b16 %v4073
    %v4108 = vunpack.c.l.b16 %v4074
    %v4109 = vunpack.c.l.b16 %v4075
    %v4110 = vunpack.c.l.b16 %v4076
    %v4111 = vunpack.c.l.b16 %v4077
    %v4112 = vunpack.c.l.b16 %v4078
    %v4113 = vunpack.c.l.b16 %v4079
    %v4114 = vunpack.c.l.b16 %v4080
    %v4115 = vunpack.c.l.b16 %v4081
    %v4116 = vunpack.c.l.b16 %v4082
    %v4117 = vunpack.c.l.b16 %v4083
    %v4118 = vpack.c.b16 %v4103, %v4102
    %v4119 = vpack.c.b16 %v4105, %v4104
    %v4120 = vpack.c.b16 %v4107, %v4106
    %v4121 = vpack.c.b16 %v4109, %v4108
    %v4122 = vpack.c.b16 %v4111, %v4110
    %v4123 = vpack.c.b16 %v4113, %v4112
    %v4124 = vpack.c.b16 %v4115, %v4114
    %v4125 = vpack.c.b16 %v4117, %v4116
    %4134 = vmatpush.bf16.msra.mxu0 %v4125
    %4135 = vmatpush.bf16.msra.mxu0 %v4124
    %4136 = vmatpush.bf16.msra.mxu0 %v4123
    %4137 = vmatpush.bf16.msra.mxu0 %v4122
    %4138 = vmatpush.bf16.msra.mxu0 %v4121
    %4139 = vmatpush.bf16.msra.mxu0 %v4120
    %4140 = vmatpush.bf16.msra.mxu0 %v4119
    %4141 = vmatpush.bf16.msra.mxu0 %v4118
    %4142 = vmatmul.bf16.gmra.mxu0 %v4084
    %v4143 = vpop.f32.mrf.mxu0
    %v4144 = vadd.f32 0.0, %v4143
    %v4145 = vpop.f32.mrf.mxu0
    %4146 = vdwg.mxu0
    %v4147 = vadd.f32 %v4066, %v4144
    %s4148 = scalar_lea.vmem [#allocation28], 832
    %v4149 = vld [vmem:[%s4148] sm:$0xf]
    %v4150 = vld [vmem:[%s4148 + $0x4] sm:$0xf]
    %v4151 = vld [vmem:[%s4148 + $0x8] sm:$0xf]
    %v4152 = vld [vmem:[%s4148 + $0xc] sm:$0xf]
    %v4153 = vld [vmem:[%s4148 + $0x10] sm:$0xf]
    %v4154 = vld [vmem:[%s4148 + $0x14] sm:$0xf]
    %v4155 = vld [vmem:[%s4148 + $0x18] sm:$0xf]
    %v4156 = vld [vmem:[%s4148 + $0x1c] sm:$0xf]
    %v4157 = vld [vmem:[%s4148 + $0x20] sm:$0xf]
    %v4158 = vld [vmem:[%s4148 + $0x24] sm:$0xf]
    %v4159 = vld [vmem:[%s4148 + $0x28] sm:$0xf]
    %v4160 = vld [vmem:[%s4148 + $0x2c] sm:$0xf]
    %v4161 = vld [vmem:[%s4148 + $0x30] sm:$0xf]
    %v4162 = vld [vmem:[%s4148 + $0x34] sm:$0xf]
    %v4163 = vld [vmem:[%s4148 + $0x38] sm:$0xf]
    %v4164 = vld [vmem:[%s4148 + $0x3c] sm:$0xf]
    %v4165 = vrot.slane %v3840, 2
    %v4183 = vunpack.c.l.b16 %v4149
    %v4184 = vunpack.c.l.b16 %v4150
    %v4185 = vunpack.c.l.b16 %v4151
    %v4186 = vunpack.c.l.b16 %v4152
    %v4187 = vunpack.c.l.b16 %v4153
    %v4188 = vunpack.c.l.b16 %v4154
    %v4189 = vunpack.c.l.b16 %v4155
    %v4190 = vunpack.c.l.b16 %v4156
    %v4191 = vunpack.c.l.b16 %v4157
    %v4192 = vunpack.c.l.b16 %v4158
    %v4193 = vunpack.c.l.b16 %v4159
    %v4194 = vunpack.c.l.b16 %v4160
    %v4195 = vunpack.c.l.b16 %v4161
    %v4196 = vunpack.c.l.b16 %v4162
    %v4197 = vunpack.c.l.b16 %v4163
    %v4198 = vunpack.c.l.b16 %v4164
    %v4199 = vpack.c.b16 %v4184, %v4183
    %v4200 = vpack.c.b16 %v4186, %v4185
    %v4201 = vpack.c.b16 %v4188, %v4187
    %v4202 = vpack.c.b16 %v4190, %v4189
    %v4203 = vpack.c.b16 %v4192, %v4191
    %v4204 = vpack.c.b16 %v4194, %v4193
    %v4205 = vpack.c.b16 %v4196, %v4195
    %v4206 = vpack.c.b16 %v4198, %v4197
    %4215 = vmatpush.bf16.msra.mxu0 %v4206
    %4216 = vmatpush.bf16.msra.mxu0 %v4205
    %4217 = vmatpush.bf16.msra.mxu0 %v4204
    %4218 = vmatpush.bf16.msra.mxu0 %v4203
    %4219 = vmatpush.bf16.msra.mxu0 %v4202
    %4220 = vmatpush.bf16.msra.mxu0 %v4201
    %4221 = vmatpush.bf16.msra.mxu0 %v4200
    %4222 = vmatpush.bf16.msra.mxu0 %v4199
    %4223 = vmatmul.bf16.gmra.mxu0 %v4165
    %v4224 = vpop.f32.mrf.mxu0
    %v4225 = vadd.f32 0.0, %v4224
    %v4226 = vpop.f32.mrf.mxu0
    %4227 = vdwg.mxu0
    %v4228 = vadd.f32 %v4147, %v4225
    %s4229 = scalar_lea.vmem [#allocation28], 896
    %v4230 = vld [vmem:[%s4229] sm:$0xf]
    %v4231 = vld [vmem:[%s4229 + $0x4] sm:$0xf]
    %v4232 = vld [vmem:[%s4229 + $0x8] sm:$0xf]
    %v4233 = vld [vmem:[%s4229 + $0xc] sm:$0xf]
    %v4234 = vld [vmem:[%s4229 + $0x10] sm:$0xf]
    %v4235 = vld [vmem:[%s4229 + $0x14] sm:$0xf]
    %v4236 = vld [vmem:[%s4229 + $0x18] sm:$0xf]
    %v4237 = vld [vmem:[%s4229 + $0x1c] sm:$0xf]
    %v4238 = vld [vmem:[%s4229 + $0x20] sm:$0xf]
    %v4239 = vld [vmem:[%s4229 + $0x24] sm:$0xf]
    %v4240 = vld [vmem:[%s4229 + $0x28] sm:$0xf]
    %v4241 = vld [vmem:[%s4229 + $0x2c] sm:$0xf]
    %v4242 = vld [vmem:[%s4229 + $0x30] sm:$0xf]
    %v4243 = vld [vmem:[%s4229 + $0x34] sm:$0xf]
    %v4244 = vld [vmem:[%s4229 + $0x38] sm:$0xf]
    %v4245 = vld [vmem:[%s4229 + $0x3c] sm:$0xf]
    %v4246 = vrot.slane %v3838, 3
    %v4264 = vunpack.c.l.b16 %v4230
    %v4265 = vunpack.c.l.b16 %v4231
    %v4266 = vunpack.c.l.b16 %v4232
    %v4267 = vunpack.c.l.b16 %v4233
    %v4268 = vunpack.c.l.b16 %v4234
    %v4269 = vunpack.c.l.b16 %v4235
    %v4270 = vunpack.c.l.b16 %v4236
    %v4271 = vunpack.c.l.b16 %v4237
    %v4272 = vunpack.c.l.b16 %v4238
    %v4273 = vunpack.c.l.b16 %v4239
    %v4274 = vunpack.c.l.b16 %v4240
    %v4275 = vunpack.c.l.b16 %v4241
    %v4276 = vunpack.c.l.b16 %v4242
    %v4277 = vunpack.c.l.b16 %v4243
    %v4278 = vunpack.c.l.b16 %v4244
    %v4279 = vunpack.c.l.b16 %v4245
    %v4280 = vpack.c.b16 %v4265, %v4264
    %v4281 = vpack.c.b16 %v4267, %v4266
    %v4282 = vpack.c.b16 %v4269, %v4268
    %v4283 = vpack.c.b16 %v4271, %v4270
    %v4284 = vpack.c.b16 %v4273, %v4272
    %v4285 = vpack.c.b16 %v4275, %v4274
    %v4286 = vpack.c.b16 %v4277, %v4276
    %v4287 = vpack.c.b16 %v4279, %v4278
    %4296 = vmatpush.bf16.msra.mxu0 %v4287
    %4297 = vmatpush.bf16.msra.mxu0 %v4286
    %4298 = vmatpush.bf16.msra.mxu0 %v4285
    %4299 = vmatpush.bf16.msra.mxu0 %v4284
    %4300 = vmatpush.bf16.msra.mxu0 %v4283
    %4301 = vmatpush.bf16.msra.mxu0 %v4282
    %4302 = vmatpush.bf16.msra.mxu0 %v4281
    %4303 = vmatpush.bf16.msra.mxu0 %v4280
    %4304 = vmatmul.bf16.gmra.mxu0 %v4246
    %v4305 = vpop.f32.mrf.mxu0
    %v4306 = vadd.f32 0.0, %v4305
    %v4307 = vpop.f32.mrf.mxu0
    %4308 = vdwg.mxu0
    %v4309 = vadd.f32 %v4228, %v4306
    %s4310 = scalar_lea.vmem [#allocation28], 960
    %v4311 = vld [vmem:[%s4310] sm:$0xf]
    %v4312 = vld [vmem:[%s4310 + $0x4] sm:$0xf]
    %v4313 = vld [vmem:[%s4310 + $0x8] sm:$0xf]
    %v4314 = vld [vmem:[%s4310 + $0xc] sm:$0xf]
    %v4315 = vld [vmem:[%s4310 + $0x10] sm:$0xf]
    %v4316 = vld [vmem:[%s4310 + $0x14] sm:$0xf]
    %v4317 = vld [vmem:[%s4310 + $0x18] sm:$0xf]
    %v4318 = vld [vmem:[%s4310 + $0x1c] sm:$0xf]
    %v4319 = vld [vmem:[%s4310 + $0x20] sm:$0xf]
    %v4320 = vld [vmem:[%s4310 + $0x24] sm:$0xf]
    %v4321 = vld [vmem:[%s4310 + $0x28] sm:$0xf]
    %v4322 = vld [vmem:[%s4310 + $0x2c] sm:$0xf]
    %v4323 = vld [vmem:[%s4310 + $0x30] sm:$0xf]
    %v4324 = vld [vmem:[%s4310 + $0x34] sm:$0xf]
    %v4325 = vld [vmem:[%s4310 + $0x38] sm:$0xf]
    %v4326 = vld [vmem:[%s4310 + $0x3c] sm:$0xf]
    %v4327 = vrot.slane %v3840, 3
    %v4345 = vunpack.c.l.b16 %v4311
    %v4346 = vunpack.c.l.b16 %v4312
    %v4347 = vunpack.c.l.b16 %v4313
    %v4348 = vunpack.c.l.b16 %v4314
    %v4349 = vunpack.c.l.b16 %v4315
    %v4350 = vunpack.c.l.b16 %v4316
    %v4351 = vunpack.c.l.b16 %v4317
    %v4352 = vunpack.c.l.b16 %v4318
    %v4353 = vunpack.c.l.b16 %v4319
    %v4354 = vunpack.c.l.b16 %v4320
    %v4355 = vunpack.c.l.b16 %v4321
    %v4356 = vunpack.c.l.b16 %v4322
    %v4357 = vunpack.c.l.b16 %v4323
    %v4358 = vunpack.c.l.b16 %v4324
    %v4359 = vunpack.c.l.b16 %v4325
    %v4360 = vunpack.c.l.b16 %v4326
    %v4361 = vpack.c.b16 %v4346, %v4345
    %v4362 = vpack.c.b16 %v4348, %v4347
    %v4363 = vpack.c.b16 %v4350, %v4349
    %v4364 = vpack.c.b16 %v4352, %v4351
    %v4365 = vpack.c.b16 %v4354, %v4353
    %v4366 = vpack.c.b16 %v4356, %v4355
    %v4367 = vpack.c.b16 %v4358, %v4357
    %v4368 = vpack.c.b16 %v4360, %v4359
    %4377 = vmatpush.bf16.msra.mxu0 %v4368
    %4378 = vmatpush.bf16.msra.mxu0 %v4367
    %4379 = vmatpush.bf16.msra.mxu0 %v4366
    %4380 = vmatpush.bf16.msra.mxu0 %v4365
    %4381 = vmatpush.bf16.msra.mxu0 %v4364
    %4382 = vmatpush.bf16.msra.mxu0 %v4363
    %4383 = vmatpush.bf16.msra.mxu0 %v4362
    %4384 = vmatpush.bf16.msra.mxu0 %v4361
    %4385 = vmatmul.bf16.gmra.mxu0 %v4327
    %v4386 = vpop.f32.mrf.mxu0
    %v4387 = vadd.f32 0.0, %v4386
    %v4388 = vpop.f32.mrf.mxu0
    %4389 = vdwg.mxu0
    %v4390 = vadd.f32 %v4309, %v4387
    %s4391 = scalar_lea.vmem [#allocation28], 1024
    %v4392 = vld [vmem:[%s4391] sm:$0xf]
    %v4393 = vld [vmem:[%s4391 + $0x4] sm:$0xf]
    %v4394 = vld [vmem:[%s4391 + $0x8] sm:$0xf]
    %v4395 = vld [vmem:[%s4391 + $0xc] sm:$0xf]
    %v4396 = vld [vmem:[%s4391 + $0x10] sm:$0xf]
    %v4397 = vld [vmem:[%s4391 + $0x14] sm:$0xf]
    %v4398 = vld [vmem:[%s4391 + $0x18] sm:$0xf]
    %v4399 = vld [vmem:[%s4391 + $0x1c] sm:$0xf]
    %v4400 = vld [vmem:[%s4391 + $0x20] sm:$0xf]
    %v4401 = vld [vmem:[%s4391 + $0x24] sm:$0xf]
    %v4402 = vld [vmem:[%s4391 + $0x28] sm:$0xf]
    %v4403 = vld [vmem:[%s4391 + $0x2c] sm:$0xf]
    %v4404 = vld [vmem:[%s4391 + $0x30] sm:$0xf]
    %v4405 = vld [vmem:[%s4391 + $0x34] sm:$0xf]
    %v4406 = vld [vmem:[%s4391 + $0x38] sm:$0xf]
    %v4407 = vld [vmem:[%s4391 + $0x3c] sm:$0xf]
    %v4424 = vunpack.c.l.b16 %v4392
    %v4425 = vunpack.c.l.b16 %v4393
    %v4426 = vunpack.c.l.b16 %v4394
    %v4427 = vunpack.c.l.b16 %v4395
    %v4428 = vunpack.c.l.b16 %v4396
    %v4429 = vunpack.c.l.b16 %v4397
    %v4430 = vunpack.c.l.b16 %v4398
    %v4431 = vunpack.c.l.b16 %v4399
    %v4432 = vunpack.c.l.b16 %v4400
    %v4433 = vunpack.c.l.b16 %v4401
    %v4434 = vunpack.c.l.b16 %v4402
    %v4435 = vunpack.c.l.b16 %v4403
    %v4436 = vunpack.c.l.b16 %v4404
    %v4437 = vunpack.c.l.b16 %v4405
    %v4438 = vunpack.c.l.b16 %v4406
    %v4439 = vunpack.c.l.b16 %v4407
    %v4440 = vpack.c.b16 %v4425, %v4424
    %v4441 = vpack.c.b16 %v4427, %v4426
    %v4442 = vpack.c.b16 %v4429, %v4428
    %v4443 = vpack.c.b16 %v4431, %v4430
    %v4444 = vpack.c.b16 %v4433, %v4432
    %v4445 = vpack.c.b16 %v4435, %v4434
    %v4446 = vpack.c.b16 %v4437, %v4436
    %v4447 = vpack.c.b16 %v4439, %v4438
    %4456 = vmatpush.bf16.msra.mxu0 %v4447
    %4457 = vmatpush.bf16.msra.mxu0 %v4446
    %4458 = vmatpush.bf16.msra.mxu0 %v4445
    %4459 = vmatpush.bf16.msra.mxu0 %v4444
    %4460 = vmatpush.bf16.msra.mxu0 %v4443
    %4461 = vmatpush.bf16.msra.mxu0 %v4442
    %4462 = vmatpush.bf16.msra.mxu0 %v4441
    %4463 = vmatpush.bf16.msra.mxu0 %v4440
    %4464 = vmatmul.bf16.gmra.mxu0 %v3086
    %v4465 = vpop.f32.mrf.mxu0
    %v4466 = vadd.f32 0.0, %v4465
    %v4467 = vpop.f32.mrf.mxu0
    %4468 = vdwg.mxu0
    %v4469 = vadd.f32 %v4390, %v4466
    %s4470 = scalar_lea.vmem [#allocation28], 1088
    %v4471 = vld [vmem:[%s4470] sm:$0xf]
    %v4472 = vld [vmem:[%s4470 + $0x4] sm:$0xf]
    %v4473 = vld [vmem:[%s4470 + $0x8] sm:$0xf]
    %v4474 = vld [vmem:[%s4470 + $0xc] sm:$0xf]
    %v4475 = vld [vmem:[%s4470 + $0x10] sm:$0xf]
    %v4476 = vld [vmem:[%s4470 + $0x14] sm:$0xf]
    %v4477 = vld [vmem:[%s4470 + $0x18] sm:$0xf]
    %v4478 = vld [vmem:[%s4470 + $0x1c] sm:$0xf]
    %v4479 = vld [vmem:[%s4470 + $0x20] sm:$0xf]
    %v4480 = vld [vmem:[%s4470 + $0x24] sm:$0xf]
    %v4481 = vld [vmem:[%s4470 + $0x28] sm:$0xf]
    %v4482 = vld [vmem:[%s4470 + $0x2c] sm:$0xf]
    %v4483 = vld [vmem:[%s4470 + $0x30] sm:$0xf]
    %v4484 = vld [vmem:[%s4470 + $0x34] sm:$0xf]
    %v4485 = vld [vmem:[%s4470 + $0x38] sm:$0xf]
    %v4486 = vld [vmem:[%s4470 + $0x3c] sm:$0xf]
    %v4488 = vunpack.c.l.b16 %v3086
    %v4489 = vpack.c.b16 %v4488, %v4488
    %v4491 = vshrl.u32 %v4489, 16
    %v4510 = vunpack.c.l.b16 %v4471
    %v4511 = vunpack.c.l.b16 %v4472
    %v4512 = vunpack.c.l.b16 %v4473
    %v4513 = vunpack.c.l.b16 %v4474
    %v4514 = vunpack.c.l.b16 %v4475
    %v4515 = vunpack.c.l.b16 %v4476
    %v4516 = vunpack.c.l.b16 %v4477
    %v4517 = vunpack.c.l.b16 %v4478
    %v4518 = vunpack.c.l.b16 %v4479
    %v4519 = vunpack.c.l.b16 %v4480
    %v4520 = vunpack.c.l.b16 %v4481
    %v4521 = vunpack.c.l.b16 %v4482
    %v4522 = vunpack.c.l.b16 %v4483
    %v4523 = vunpack.c.l.b16 %v4484
    %v4524 = vunpack.c.l.b16 %v4485
    %v4525 = vunpack.c.l.b16 %v4486
    %v4526 = vpack.c.b16 %v4511, %v4510
    %v4527 = vpack.c.b16 %v4513, %v4512
    %v4528 = vpack.c.b16 %v4515, %v4514
    %v4529 = vpack.c.b16 %v4517, %v4516
    %v4530 = vpack.c.b16 %v4519, %v4518
    %v4531 = vpack.c.b16 %v4521, %v4520
    %v4532 = vpack.c.b16 %v4523, %v4522
    %v4533 = vpack.c.b16 %v4525, %v4524
    %4542 = vmatpush.bf16.msra.mxu0 %v4533
    %4543 = vmatpush.bf16.msra.mxu0 %v4532
    %4544 = vmatpush.bf16.msra.mxu0 %v4531
    %4545 = vmatpush.bf16.msra.mxu0 %v4530
    %4546 = vmatpush.bf16.msra.mxu0 %v4529
    %4547 = vmatpush.bf16.msra.mxu0 %v4528
    %4548 = vmatpush.bf16.msra.mxu0 %v4527
    %4549 = vmatpush.bf16.msra.mxu0 %v4526
    %4550 = vmatmul.bf16.gmra.mxu0 %v4491
    %v4551 = vpop.f32.mrf.mxu0
    %v4552 = vadd.f32 0.0, %v4551
    %v4553 = vpop.f32.mrf.mxu0
    %4554 = vdwg.mxu0
    %v4555 = vadd.f32 %v4469, %v4552
    %s4556 = scalar_lea.vmem [#allocation28], 1152
    %v4557 = vld [vmem:[%s4556] sm:$0xf]
    %v4558 = vld [vmem:[%s4556 + $0x4] sm:$0xf]
    %v4559 = vld [vmem:[%s4556 + $0x8] sm:$0xf]
    %v4560 = vld [vmem:[%s4556 + $0xc] sm:$0xf]
    %v4561 = vld [vmem:[%s4556 + $0x10] sm:$0xf]
    %v4562 = vld [vmem:[%s4556 + $0x14] sm:$0xf]
    %v4563 = vld [vmem:[%s4556 + $0x18] sm:$0xf]
    %v4564 = vld [vmem:[%s4556 + $0x1c] sm:$0xf]
    %v4565 = vld [vmem:[%s4556 + $0x20] sm:$0xf]
    %v4566 = vld [vmem:[%s4556 + $0x24] sm:$0xf]
    %v4567 = vld [vmem:[%s4556 + $0x28] sm:$0xf]
    %v4568 = vld [vmem:[%s4556 + $0x2c] sm:$0xf]
    %v4569 = vld [vmem:[%s4556 + $0x30] sm:$0xf]
    %v4570 = vld [vmem:[%s4556 + $0x34] sm:$0xf]
    %v4571 = vld [vmem:[%s4556 + $0x38] sm:$0xf]
    %v4572 = vld [vmem:[%s4556 + $0x3c] sm:$0xf]
    %v4573 = vrot.slane %v4489, 1
    %v4591 = vunpack.c.l.b16 %v4557
    %v4592 = vunpack.c.l.b16 %v4558
    %v4593 = vunpack.c.l.b16 %v4559
    %v4594 = vunpack.c.l.b16 %v4560
    %v4595 = vunpack.c.l.b16 %v4561
    %v4596 = vunpack.c.l.b16 %v4562
    %v4597 = vunpack.c.l.b16 %v4563
    %v4598 = vunpack.c.l.b16 %v4564
    %v4599 = vunpack.c.l.b16 %v4565
    %v4600 = vunpack.c.l.b16 %v4566
    %v4601 = vunpack.c.l.b16 %v4567
    %v4602 = vunpack.c.l.b16 %v4568
    %v4603 = vunpack.c.l.b16 %v4569
    %v4604 = vunpack.c.l.b16 %v4570
    %v4605 = vunpack.c.l.b16 %v4571
    %v4606 = vunpack.c.l.b16 %v4572
    %v4607 = vpack.c.b16 %v4592, %v4591
    %v4608 = vpack.c.b16 %v4594, %v4593
    %v4609 = vpack.c.b16 %v4596, %v4595
    %v4610 = vpack.c.b16 %v4598, %v4597
    %v4611 = vpack.c.b16 %v4600, %v4599
    %v4612 = vpack.c.b16 %v4602, %v4601
    %v4613 = vpack.c.b16 %v4604, %v4603
    %v4614 = vpack.c.b16 %v4606, %v4605
    %4623 = vmatpush.bf16.msra.mxu0 %v4614
    %4624 = vmatpush.bf16.msra.mxu0 %v4613
    %4625 = vmatpush.bf16.msra.mxu0 %v4612
    %4626 = vmatpush.bf16.msra.mxu0 %v4611
    %4627 = vmatpush.bf16.msra.mxu0 %v4610
    %4628 = vmatpush.bf16.msra.mxu0 %v4609
    %4629 = vmatpush.bf16.msra.mxu0 %v4608
    %4630 = vmatpush.bf16.msra.mxu0 %v4607
    %4631 = vmatmul.bf16.gmra.mxu0 %v4573
    %v4632 = vpop.f32.mrf.mxu0
    %v4633 = vadd.f32 0.0, %v4632
    %v4634 = vpop.f32.mrf.mxu0
    %4635 = vdwg.mxu0
    %v4636 = vadd.f32 %v4555, %v4633
    %s4637 = scalar_lea.vmem [#allocation28], 1216
    %v4638 = vld [vmem:[%s4637] sm:$0xf]
    %v4639 = vld [vmem:[%s4637 + $0x4] sm:$0xf]
    %v4640 = vld [vmem:[%s4637 + $0x8] sm:$0xf]
    %v4641 = vld [vmem:[%s4637 + $0xc] sm:$0xf]
    %v4642 = vld [vmem:[%s4637 + $0x10] sm:$0xf]
    %v4643 = vld [vmem:[%s4637 + $0x14] sm:$0xf]
    %v4644 = vld [vmem:[%s4637 + $0x18] sm:$0xf]
    %v4645 = vld [vmem:[%s4637 + $0x1c] sm:$0xf]
    %v4646 = vld [vmem:[%s4637 + $0x20] sm:$0xf]
    %v4647 = vld [vmem:[%s4637 + $0x24] sm:$0xf]
    %v4648 = vld [vmem:[%s4637 + $0x28] sm:$0xf]
    %v4649 = vld [vmem:[%s4637 + $0x2c] sm:$0xf]
    %v4650 = vld [vmem:[%s4637 + $0x30] sm:$0xf]
    %v4651 = vld [vmem:[%s4637 + $0x34] sm:$0xf]
    %v4652 = vld [vmem:[%s4637 + $0x38] sm:$0xf]
    %v4653 = vld [vmem:[%s4637 + $0x3c] sm:$0xf]
    %v4654 = vrot.slane %v4491, 1
    %v4672 = vunpack.c.l.b16 %v4638
    %v4673 = vunpack.c.l.b16 %v4639
    %v4674 = vunpack.c.l.b16 %v4640
    %v4675 = vunpack.c.l.b16 %v4641
    %v4676 = vunpack.c.l.b16 %v4642
    %v4677 = vunpack.c.l.b16 %v4643
    %v4678 = vunpack.c.l.b16 %v4644
    %v4679 = vunpack.c.l.b16 %v4645
    %v4680 = vunpack.c.l.b16 %v4646
    %v4681 = vunpack.c.l.b16 %v4647
    %v4682 = vunpack.c.l.b16 %v4648
    %v4683 = vunpack.c.l.b16 %v4649
    %v4684 = vunpack.c.l.b16 %v4650
    %v4685 = vunpack.c.l.b16 %v4651
    %v4686 = vunpack.c.l.b16 %v4652
    %v4687 = vunpack.c.l.b16 %v4653
    %v4688 = vpack.c.b16 %v4673, %v4672
    %v4689 = vpack.c.b16 %v4675, %v4674
    %v4690 = vpack.c.b16 %v4677, %v4676
    %v4691 = vpack.c.b16 %v4679, %v4678
    %v4692 = vpack.c.b16 %v4681, %v4680
    %v4693 = vpack.c.b16 %v4683, %v4682
    %v4694 = vpack.c.b16 %v4685, %v4684
    %v4695 = vpack.c.b16 %v4687, %v4686
    %4704 = vmatpush.bf16.msra.mxu0 %v4695
    %4705 = vmatpush.bf16.msra.mxu0 %v4694
    %4706 = vmatpush.bf16.msra.mxu0 %v4693
    %4707 = vmatpush.bf16.msra.mxu0 %v4692
    %4708 = vmatpush.bf16.msra.mxu0 %v4691
    %4709 = vmatpush.bf16.msra.mxu0 %v4690
    %4710 = vmatpush.bf16.msra.mxu0 %v4689
    %4711 = vmatpush.bf16.msra.mxu0 %v4688
    %4712 = vmatmul.bf16.gmra.mxu0 %v4654
    %v4713 = vpop.f32.mrf.mxu0
    %v4714 = vadd.f32 0.0, %v4713
    %v4715 = vpop.f32.mrf.mxu0
    %4716 = vdwg.mxu0
    %v4717 = vadd.f32 %v4636, %v4714
    %s4718 = scalar_lea.vmem [#allocation28], 1280
    %v4719 = vld [vmem:[%s4718] sm:$0xf]
    %v4720 = vld [vmem:[%s4718 + $0x4] sm:$0xf]
    %v4721 = vld [vmem:[%s4718 + $0x8] sm:$0xf]
    %v4722 = vld [vmem:[%s4718 + $0xc] sm:$0xf]
    %v4723 = vld [vmem:[%s4718 + $0x10] sm:$0xf]
    %v4724 = vld [vmem:[%s4718 + $0x14] sm:$0xf]
    %v4725 = vld [vmem:[%s4718 + $0x18] sm:$0xf]
    %v4726 = vld [vmem:[%s4718 + $0x1c] sm:$0xf]
    %v4727 = vld [vmem:[%s4718 + $0x20] sm:$0xf]
    %v4728 = vld [vmem:[%s4718 + $0x24] sm:$0xf]
    %v4729 = vld [vmem:[%s4718 + $0x28] sm:$0xf]
    %v4730 = vld [vmem:[%s4718 + $0x2c] sm:$0xf]
    %v4731 = vld [vmem:[%s4718 + $0x30] sm:$0xf]
    %v4732 = vld [vmem:[%s4718 + $0x34] sm:$0xf]
    %v4733 = vld [vmem:[%s4718 + $0x38] sm:$0xf]
    %v4734 = vld [vmem:[%s4718 + $0x3c] sm:$0xf]
    %v4735 = vrot.slane %v4489, 2
    %v4753 = vunpack.c.l.b16 %v4719
    %v4754 = vunpack.c.l.b16 %v4720
    %v4755 = vunpack.c.l.b16 %v4721
    %v4756 = vunpack.c.l.b16 %v4722
    %v4757 = vunpack.c.l.b16 %v4723
    %v4758 = vunpack.c.l.b16 %v4724
    %v4759 = vunpack.c.l.b16 %v4725
    %v4760 = vunpack.c.l.b16 %v4726
    %v4761 = vunpack.c.l.b16 %v4727
    %v4762 = vunpack.c.l.b16 %v4728
    %v4763 = vunpack.c.l.b16 %v4729
    %v4764 = vunpack.c.l.b16 %v4730
    %v4765 = vunpack.c.l.b16 %v4731
    %v4766 = vunpack.c.l.b16 %v4732
    %v4767 = vunpack.c.l.b16 %v4733
    %v4768 = vunpack.c.l.b16 %v4734
    %v4769 = vpack.c.b16 %v4754, %v4753
    %v4770 = vpack.c.b16 %v4756, %v4755
    %v4771 = vpack.c.b16 %v4758, %v4757
    %v4772 = vpack.c.b16 %v4760, %v4759
    %v4773 = vpack.c.b16 %v4762, %v4761
    %v4774 = vpack.c.b16 %v4764, %v4763
    %v4775 = vpack.c.b16 %v4766, %v4765
    %v4776 = vpack.c.b16 %v4768, %v4767
    %4785 = vmatpush.bf16.msra.mxu0 %v4776
    %4786 = vmatpush.bf16.msra.mxu0 %v4775
    %4787 = vmatpush.bf16.msra.mxu0 %v4774
    %4788 = vmatpush.bf16.msra.mxu0 %v4773
    %4789 = vmatpush.bf16.msra.mxu0 %v4772
    %4790 = vmatpush.bf16.msra.mxu0 %v4771
    %4791 = vmatpush.bf16.msra.mxu0 %v4770
    %4792 = vmatpush.bf16.msra.mxu0 %v4769
    %4793 = vmatmul.bf16.gmra.mxu0 %v4735
    %v4794 = vpop.f32.mrf.mxu0
    %v4795 = vadd.f32 0.0, %v4794
    %v4796 = vpop.f32.mrf.mxu0
    %4797 = vdwg.mxu0
    %v4798 = vadd.f32 %v4717, %v4795
    %s4799 = scalar_lea.vmem [#allocation28], 1344
    %v4800 = vld [vmem:[%s4799] sm:$0xf]
    %v4801 = vld [vmem:[%s4799 + $0x4] sm:$0xf]
    %v4802 = vld [vmem:[%s4799 + $0x8] sm:$0xf]
    %v4803 = vld [vmem:[%s4799 + $0xc] sm:$0xf]
    %v4804 = vld [vmem:[%s4799 + $0x10] sm:$0xf]
    %v4805 = vld [vmem:[%s4799 + $0x14] sm:$0xf]
    %v4806 = vld [vmem:[%s4799 + $0x18] sm:$0xf]
    %v4807 = vld [vmem:[%s4799 + $0x1c] sm:$0xf]
    %v4808 = vld [vmem:[%s4799 + $0x20] sm:$0xf]
    %v4809 = vld [vmem:[%s4799 + $0x24] sm:$0xf]
    %v4810 = vld [vmem:[%s4799 + $0x28] sm:$0xf]
    %v4811 = vld [vmem:[%s4799 + $0x2c] sm:$0xf]
    %v4812 = vld [vmem:[%s4799 + $0x30] sm:$0xf]
    %v4813 = vld [vmem:[%s4799 + $0x34] sm:$0xf]
    %v4814 = vld [vmem:[%s4799 + $0x38] sm:$0xf]
    %v4815 = vld [vmem:[%s4799 + $0x3c] sm:$0xf]
    %v4816 = vrot.slane %v4491, 2
    %v4834 = vunpack.c.l.b16 %v4800
    %v4835 = vunpack.c.l.b16 %v4801
    %v4836 = vunpack.c.l.b16 %v4802
    %v4837 = vunpack.c.l.b16 %v4803
    %v4838 = vunpack.c.l.b16 %v4804
    %v4839 = vunpack.c.l.b16 %v4805
    %v4840 = vunpack.c.l.b16 %v4806
    %v4841 = vunpack.c.l.b16 %v4807
    %v4842 = vunpack.c.l.b16 %v4808
    %v4843 = vunpack.c.l.b16 %v4809
    %v4844 = vunpack.c.l.b16 %v4810
    %v4845 = vunpack.c.l.b16 %v4811
    %v4846 = vunpack.c.l.b16 %v4812
    %v4847 = vunpack.c.l.b16 %v4813
    %v4848 = vunpack.c.l.b16 %v4814
    %v4849 = vunpack.c.l.b16 %v4815
    %v4850 = vpack.c.b16 %v4835, %v4834
    %v4851 = vpack.c.b16 %v4837, %v4836
    %v4852 = vpack.c.b16 %v4839, %v4838
    %v4853 = vpack.c.b16 %v4841, %v4840
    %v4854 = vpack.c.b16 %v4843, %v4842
    %v4855 = vpack.c.b16 %v4845, %v4844
    %v4856 = vpack.c.b16 %v4847, %v4846
    %v4857 = vpack.c.b16 %v4849, %v4848
    %4866 = vmatpush.bf16.msra.mxu0 %v4857
    %4867 = vmatpush.bf16.msra.mxu0 %v4856
    %4868 = vmatpush.bf16.msra.mxu0 %v4855
    %4869 = vmatpush.bf16.msra.mxu0 %v4854
    %4870 = vmatpush.bf16.msra.mxu0 %v4853
    %4871 = vmatpush.bf16.msra.mxu0 %v4852
    %4872 = vmatpush.bf16.msra.mxu0 %v4851
    %4873 = vmatpush.bf16.msra.mxu0 %v4850
    %4874 = vmatmul.bf16.gmra.mxu0 %v4816
    %v4875 = vpop.f32.mrf.mxu0
    %v4876 = vadd.f32 0.0, %v4875
    %v4877 = vpop.f32.mrf.mxu0
    %4878 = vdwg.mxu0
    %v4879 = vadd.f32 %v4798, %v4876
    %s4880 = scalar_lea.vmem [#allocation28], 1408
    %v4881 = vld [vmem:[%s4880] sm:$0xf]
    %v4882 = vld [vmem:[%s4880 + $0x4] sm:$0xf]
    %v4883 = vld [vmem:[%s4880 + $0x8] sm:$0xf]
    %v4884 = vld [vmem:[%s4880 + $0xc] sm:$0xf]
    %v4885 = vld [vmem:[%s4880 + $0x10] sm:$0xf]
    %v4886 = vld [vmem:[%s4880 + $0x14] sm:$0xf]
    %v4887 = vld [vmem:[%s4880 + $0x18] sm:$0xf]
    %v4888 = vld [vmem:[%s4880 + $0x1c] sm:$0xf]
    %v4889 = vld [vmem:[%s4880 + $0x20] sm:$0xf]
    %v4890 = vld [vmem:[%s4880 + $0x24] sm:$0xf]
    %v4891 = vld [vmem:[%s4880 + $0x28] sm:$0xf]
    %v4892 = vld [vmem:[%s4880 + $0x2c] sm:$0xf]
    %v4893 = vld [vmem:[%s4880 + $0x30] sm:$0xf]
    %v4894 = vld [vmem:[%s4880 + $0x34] sm:$0xf]
    %v4895 = vld [vmem:[%s4880 + $0x38] sm:$0xf]
    %v4896 = vld [vmem:[%s4880 + $0x3c] sm:$0xf]
    %v4897 = vrot.slane %v4489, 3
    %v4915 = vunpack.c.l.b16 %v4881
    %v4916 = vunpack.c.l.b16 %v4882
    %v4917 = vunpack.c.l.b16 %v4883
    %v4918 = vunpack.c.l.b16 %v4884
    %v4919 = vunpack.c.l.b16 %v4885
    %v4920 = vunpack.c.l.b16 %v4886
    %v4921 = vunpack.c.l.b16 %v4887
    %v4922 = vunpack.c.l.b16 %v4888
    %v4923 = vunpack.c.l.b16 %v4889
    %v4924 = vunpack.c.l.b16 %v4890
    %v4925 = vunpack.c.l.b16 %v4891
    %v4926 = vunpack.c.l.b16 %v4892
    %v4927 = vunpack.c.l.b16 %v4893
    %v4928 = vunpack.c.l.b16 %v4894
    %v4929 = vunpack.c.l.b16 %v4895
    %v4930 = vunpack.c.l.b16 %v4896
    %v4931 = vpack.c.b16 %v4916, %v4915
    %v4932 = vpack.c.b16 %v4918, %v4917
    %v4933 = vpack.c.b16 %v4920, %v4919
    %v4934 = vpack.c.b16 %v4922, %v4921
    %v4935 = vpack.c.b16 %v4924, %v4923
    %v4936 = vpack.c.b16 %v4926, %v4925
    %v4937 = vpack.c.b16 %v4928, %v4927
    %v4938 = vpack.c.b16 %v4930, %v4929
    %4947 = vmatpush.bf16.msra.mxu0 %v4938
    %4948 = vmatpush.bf16.msra.mxu0 %v4937
    %4949 = vmatpush.bf16.msra.mxu0 %v4936
    %4950 = vmatpush.bf16.msra.mxu0 %v4935
    %4951 = vmatpush.bf16.msra.mxu0 %v4934
    %4952 = vmatpush.bf16.msra.mxu0 %v4933
    %4953 = vmatpush.bf16.msra.mxu0 %v4932
    %4954 = vmatpush.bf16.msra.mxu0 %v4931
    %4955 = vmatmul.bf16.gmra.mxu0 %v4897
    %v4956 = vpop.f32.mrf.mxu0
    %v4957 = vadd.f32 0.0, %v4956
    %v4958 = vpop.f32.mrf.mxu0
    %4959 = vdwg.mxu0
    %v4960 = vadd.f32 %v4879, %v4957
    %s4961 = scalar_lea.vmem [#allocation28], 1472
    %v4962 = vld [vmem:[%s4961] sm:$0xf]
    %v4963 = vld [vmem:[%s4961 + $0x4] sm:$0xf]
    %v4964 = vld [vmem:[%s4961 + $0x8] sm:$0xf]
    %v4965 = vld [vmem:[%s4961 + $0xc] sm:$0xf]
    %v4966 = vld [vmem:[%s4961 + $0x10] sm:$0xf]
    %v4967 = vld [vmem:[%s4961 + $0x14] sm:$0xf]
    %v4968 = vld [vmem:[%s4961 + $0x18] sm:$0xf]
    %v4969 = vld [vmem:[%s4961 + $0x1c] sm:$0xf]
    %v4970 = vld [vmem:[%s4961 + $0x20] sm:$0xf]
    %v4971 = vld [vmem:[%s4961 + $0x24] sm:$0xf]
    %v4972 = vld [vmem:[%s4961 + $0x28] sm:$0xf]
    %v4973 = vld [vmem:[%s4961 + $0x2c] sm:$0xf]
    %v4974 = vld [vmem:[%s4961 + $0x30] sm:$0xf]
    %v4975 = vld [vmem:[%s4961 + $0x34] sm:$0xf]
    %v4976 = vld [vmem:[%s4961 + $0x38] sm:$0xf]
    %v4977 = vld [vmem:[%s4961 + $0x3c] sm:$0xf]
    %v4978 = vrot.slane %v4491, 3
    %v4996 = vunpack.c.l.b16 %v4962
    %v4997 = vunpack.c.l.b16 %v4963
    %v4998 = vunpack.c.l.b16 %v4964
    %v4999 = vunpack.c.l.b16 %v4965
    %v5000 = vunpack.c.l.b16 %v4966
    %v5001 = vunpack.c.l.b16 %v4967
    %v5002 = vunpack.c.l.b16 %v4968
    %v5003 = vunpack.c.l.b16 %v4969
    %v5004 = vunpack.c.l.b16 %v4970
    %v5005 = vunpack.c.l.b16 %v4971
    %v5006 = vunpack.c.l.b16 %v4972
    %v5007 = vunpack.c.l.b16 %v4973
    %v5008 = vunpack.c.l.b16 %v4974
    %v5009 = vunpack.c.l.b16 %v4975
    %v5010 = vunpack.c.l.b16 %v4976
    %v5011 = vunpack.c.l.b16 %v4977
    %v5012 = vpack.c.b16 %v4997, %v4996
    %v5013 = vpack.c.b16 %v4999, %v4998
    %v5014 = vpack.c.b16 %v5001, %v5000
    %v5015 = vpack.c.b16 %v5003, %v5002
    %v5016 = vpack.c.b16 %v5005, %v5004
    %v5017 = vpack.c.b16 %v5007, %v5006
    %v5018 = vpack.c.b16 %v5009, %v5008
    %v5019 = vpack.c.b16 %v5011, %v5010
    %5028 = vmatpush.bf16.msra.mxu0 %v5019
    %5029 = vmatpush.bf16.msra.mxu0 %v5018
    %5030 = vmatpush.bf16.msra.mxu0 %v5017
    %5031 = vmatpush.bf16.msra.mxu0 %v5016
    %5032 = vmatpush.bf16.msra.mxu0 %v5015
    %5033 = vmatpush.bf16.msra.mxu0 %v5014
    %5034 = vmatpush.bf16.msra.mxu0 %v5013
    %5035 = vmatpush.bf16.msra.mxu0 %v5012
    %5036 = vmatmul.bf16.gmra.mxu0 %v4978
    %v5037 = vpop.f32.mrf.mxu0
    %v5038 = vadd.f32 0.0, %v5037
    %v5039 = vpop.f32.mrf.mxu0
    %5040 = vdwg.mxu0
    %v5041 = vadd.f32 %v4960, %v5038
    %s5042 = scalar_lea.vmem [#allocation28], 1536
    %v5043 = vld [vmem:[%s5042] sm:$0xf]
    %v5044 = vld [vmem:[%s5042 + $0x4] sm:$0xf]
    %v5045 = vld [vmem:[%s5042 + $0x8] sm:$0xf]
    %v5046 = vld [vmem:[%s5042 + $0xc] sm:$0xf]
    %v5047 = vld [vmem:[%s5042 + $0x10] sm:$0xf]
    %v5048 = vld [vmem:[%s5042 + $0x14] sm:$0xf]
    %v5049 = vld [vmem:[%s5042 + $0x18] sm:$0xf]
    %v5050 = vld [vmem:[%s5042 + $0x1c] sm:$0xf]
    %v5051 = vld [vmem:[%s5042 + $0x20] sm:$0xf]
    %v5052 = vld [vmem:[%s5042 + $0x24] sm:$0xf]
    %v5053 = vld [vmem:[%s5042 + $0x28] sm:$0xf]
    %v5054 = vld [vmem:[%s5042 + $0x2c] sm:$0xf]
    %v5055 = vld [vmem:[%s5042 + $0x30] sm:$0xf]
    %v5056 = vld [vmem:[%s5042 + $0x34] sm:$0xf]
    %v5057 = vld [vmem:[%s5042 + $0x38] sm:$0xf]
    %v5058 = vld [vmem:[%s5042 + $0x3c] sm:$0xf]
    %v5075 = vunpack.c.l.b16 %v5043
    %v5076 = vunpack.c.l.b16 %v5044
    %v5077 = vunpack.c.l.b16 %v5045
    %v5078 = vunpack.c.l.b16 %v5046
    %v5079 = vunpack.c.l.b16 %v5047
    %v5080 = vunpack.c.l.b16 %v5048
    %v5081 = vunpack.c.l.b16 %v5049
    %v5082 = vunpack.c.l.b16 %v5050
    %v5083 = vunpack.c.l.b16 %v5051
    %v5084 = vunpack.c.l.b16 %v5052
    %v5085 = vunpack.c.l.b16 %v5053
    %v5086 = vunpack.c.l.b16 %v5054
    %v5087 = vunpack.c.l.b16 %v5055
    %v5088 = vunpack.c.l.b16 %v5056
    %v5089 = vunpack.c.l.b16 %v5057
    %v5090 = vunpack.c.l.b16 %v5058
    %v5091 = vpack.c.b16 %v5076, %v5075
    %v5092 = vpack.c.b16 %v5078, %v5077
    %v5093 = vpack.c.b16 %v5080, %v5079
    %v5094 = vpack.c.b16 %v5082, %v5081
    %v5095 = vpack.c.b16 %v5084, %v5083
    %v5096 = vpack.c.b16 %v5086, %v5085
    %v5097 = vpack.c.b16 %v5088, %v5087
    %v5098 = vpack.c.b16 %v5090, %v5089
    %5107 = vmatpush.bf16.msra.mxu0 %v5098
    %5108 = vmatpush.bf16.msra.mxu0 %v5097
    %5109 = vmatpush.bf16.msra.mxu0 %v5096
    %5110 = vmatpush.bf16.msra.mxu0 %v5095
    %5111 = vmatpush.bf16.msra.mxu0 %v5094
    %5112 = vmatpush.bf16.msra.mxu0 %v5093
    %5113 = vmatpush.bf16.msra.mxu0 %v5092
    %5114 = vmatpush.bf16.msra.mxu0 %v5091
    %5115 = vmatmul.bf16.gmra.mxu0 %v3087
    %v5116 = vpop.f32.mrf.mxu0
    %v5117 = vadd.f32 0.0, %v5116
    %v5118 = vpop.f32.mrf.mxu0
    %5119 = vdwg.mxu0
    %v5120 = vadd.f32 %v5041, %v5117
    %s5121 = scalar_lea.vmem [#allocation28], 1600
    %v5122 = vld [vmem:[%s5121] sm:$0xf]
    %v5123 = vld [vmem:[%s5121 + $0x4] sm:$0xf]
    %v5124 = vld [vmem:[%s5121 + $0x8] sm:$0xf]
    %v5125 = vld [vmem:[%s5121 + $0xc] sm:$0xf]
    %v5126 = vld [vmem:[%s5121 + $0x10] sm:$0xf]
    %v5127 = vld [vmem:[%s5121 + $0x14] sm:$0xf]
    %v5128 = vld [vmem:[%s5121 + $0x18] sm:$0xf]
    %v5129 = vld [vmem:[%s5121 + $0x1c] sm:$0xf]
    %v5130 = vld [vmem:[%s5121 + $0x20] sm:$0xf]
    %v5131 = vld [vmem:[%s5121 + $0x24] sm:$0xf]
    %v5132 = vld [vmem:[%s5121 + $0x28] sm:$0xf]
    %v5133 = vld [vmem:[%s5121 + $0x2c] sm:$0xf]
    %v5134 = vld [vmem:[%s5121 + $0x30] sm:$0xf]
    %v5135 = vld [vmem:[%s5121 + $0x34] sm:$0xf]
    %v5136 = vld [vmem:[%s5121 + $0x38] sm:$0xf]
    %v5137 = vld [vmem:[%s5121 + $0x3c] sm:$0xf]
    %v5139 = vunpack.c.l.b16 %v3087
    %v5140 = vpack.c.b16 %v5139, %v5139
    %v5142 = vshrl.u32 %v5140, 16
    %v5161 = vunpack.c.l.b16 %v5122
    %v5162 = vunpack.c.l.b16 %v5123
    %v5163 = vunpack.c.l.b16 %v5124
    %v5164 = vunpack.c.l.b16 %v5125
    %v5165 = vunpack.c.l.b16 %v5126
    %v5166 = vunpack.c.l.b16 %v5127
    %v5167 = vunpack.c.l.b16 %v5128
    %v5168 = vunpack.c.l.b16 %v5129
    %v5169 = vunpack.c.l.b16 %v5130
    %v5170 = vunpack.c.l.b16 %v5131
    %v5171 = vunpack.c.l.b16 %v5132
    %v5172 = vunpack.c.l.b16 %v5133
    %v5173 = vunpack.c.l.b16 %v5134
    %v5174 = vunpack.c.l.b16 %v5135
    %v5175 = vunpack.c.l.b16 %v5136
    %v5176 = vunpack.c.l.b16 %v5137
    %v5177 = vpack.c.b16 %v5162, %v5161
    %v5178 = vpack.c.b16 %v5164, %v5163
    %v5179 = vpack.c.b16 %v5166, %v5165
    %v5180 = vpack.c.b16 %v5168, %v5167
    %v5181 = vpack.c.b16 %v5170, %v5169
    %v5182 = vpack.c.b16 %v5172, %v5171
    %v5183 = vpack.c.b16 %v5174, %v5173
    %v5184 = vpack.c.b16 %v5176, %v5175
    %5193 = vmatpush.bf16.msra.mxu0 %v5184
    %5194 = vmatpush.bf16.msra.mxu0 %v5183
    %5195 = vmatpush.bf16.msra.mxu0 %v5182
    %5196 = vmatpush.bf16.msra.mxu0 %v5181
    %5197 = vmatpush.bf16.msra.mxu0 %v5180
    %5198 = vmatpush.bf16.msra.mxu0 %v5179
    %5199 = vmatpush.bf16.msra.mxu0 %v5178
    %5200 = vmatpush.bf16.msra.mxu0 %v5177
    %5201 = vmatmul.bf16.gmra.mxu0 %v5142
    %v5202 = vpop.f32.mrf.mxu0
    %v5203 = vadd.f32 0.0, %v5202
    %v5204 = vpop.f32.mrf.mxu0
    %5205 = vdwg.mxu0
    %v5206 = vadd.f32 %v5120, %v5203
    %s5207 = scalar_lea.vmem [#allocation28], 1664
    %v5208 = vld [vmem:[%s5207] sm:$0xf]
    %v5209 = vld [vmem:[%s5207 + $0x4] sm:$0xf]
    %v5210 = vld [vmem:[%s5207 + $0x8] sm:$0xf]
    %v5211 = vld [vmem:[%s5207 + $0xc] sm:$0xf]
    %v5212 = vld [vmem:[%s5207 + $0x10] sm:$0xf]
    %v5213 = vld [vmem:[%s5207 + $0x14] sm:$0xf]
    %v5214 = vld [vmem:[%s5207 + $0x18] sm:$0xf]
    %v5215 = vld [vmem:[%s5207 + $0x1c] sm:$0xf]
    %v5216 = vld [vmem:[%s5207 + $0x20] sm:$0xf]
    %v5217 = vld [vmem:[%s5207 + $0x24] sm:$0xf]
    %v5218 = vld [vmem:[%s5207 + $0x28] sm:$0xf]
    %v5219 = vld [vmem:[%s5207 + $0x2c] sm:$0xf]
    %v5220 = vld [vmem:[%s5207 + $0x30] sm:$0xf]
    %v5221 = vld [vmem:[%s5207 + $0x34] sm:$0xf]
    %v5222 = vld [vmem:[%s5207 + $0x38] sm:$0xf]
    %v5223 = vld [vmem:[%s5207 + $0x3c] sm:$0xf]
    %v5224 = vrot.slane %v5140, 1
    %v5242 = vunpack.c.l.b16 %v5208
    %v5243 = vunpack.c.l.b16 %v5209
    %v5244 = vunpack.c.l.b16 %v5210
    %v5245 = vunpack.c.l.b16 %v5211
    %v5246 = vunpack.c.l.b16 %v5212
    %v5247 = vunpack.c.l.b16 %v5213
    %v5248 = vunpack.c.l.b16 %v5214
    %v5249 = vunpack.c.l.b16 %v5215
    %v5250 = vunpack.c.l.b16 %v5216
    %v5251 = vunpack.c.l.b16 %v5217
    %v5252 = vunpack.c.l.b16 %v5218
    %v5253 = vunpack.c.l.b16 %v5219
    %v5254 = vunpack.c.l.b16 %v5220
    %v5255 = vunpack.c.l.b16 %v5221
    %v5256 = vunpack.c.l.b16 %v5222
    %v5257 = vunpack.c.l.b16 %v5223
    %v5258 = vpack.c.b16 %v5243, %v5242
    %v5259 = vpack.c.b16 %v5245, %v5244
    %v5260 = vpack.c.b16 %v5247, %v5246
    %v5261 = vpack.c.b16 %v5249, %v5248
    %v5262 = vpack.c.b16 %v5251, %v5250
    %v5263 = vpack.c.b16 %v5253, %v5252
    %v5264 = vpack.c.b16 %v5255, %v5254
    %v5265 = vpack.c.b16 %v5257, %v5256
    %5274 = vmatpush.bf16.msra.mxu0 %v5265
    %5275 = vmatpush.bf16.msra.mxu0 %v5264
    %5276 = vmatpush.bf16.msra.mxu0 %v5263
    %5277 = vmatpush.bf16.msra.mxu0 %v5262
    %5278 = vmatpush.bf16.msra.mxu0 %v5261
    %5279 = vmatpush.bf16.msra.mxu0 %v5260
    %5280 = vmatpush.bf16.msra.mxu0 %v5259
    %5281 = vmatpush.bf16.msra.mxu0 %v5258
    %5282 = vmatmul.bf16.gmra.mxu0 %v5224
    %v5283 = vpop.f32.mrf.mxu0
    %v5284 = vadd.f32 0.0, %v5283
    %v5285 = vpop.f32.mrf.mxu0
    %5286 = vdwg.mxu0
    %v5287 = vadd.f32 %v5206, %v5284
    %s5288 = scalar_lea.vmem [#allocation28], 1728
    %v5289 = vld [vmem:[%s5288] sm:$0xf]
    %v5290 = vld [vmem:[%s5288 + $0x4] sm:$0xf]
    %v5291 = vld [vmem:[%s5288 + $0x8] sm:$0xf]
    %v5292 = vld [vmem:[%s5288 + $0xc] sm:$0xf]
    %v5293 = vld [vmem:[%s5288 + $0x10] sm:$0xf]
    %v5294 = vld [vmem:[%s5288 + $0x14] sm:$0xf]
    %v5295 = vld [vmem:[%s5288 + $0x18] sm:$0xf]
    %v5296 = vld [vmem:[%s5288 + $0x1c] sm:$0xf]
    %v5297 = vld [vmem:[%s5288 + $0x20] sm:$0xf]
    %v5298 = vld [vmem:[%s5288 + $0x24] sm:$0xf]
    %v5299 = vld [vmem:[%s5288 + $0x28] sm:$0xf]
    %v5300 = vld [vmem:[%s5288 + $0x2c] sm:$0xf]
    %v5301 = vld [vmem:[%s5288 + $0x30] sm:$0xf]
    %v5302 = vld [vmem:[%s5288 + $0x34] sm:$0xf]
    %v5303 = vld [vmem:[%s5288 + $0x38] sm:$0xf]
    %v5304 = vld [vmem:[%s5288 + $0x3c] sm:$0xf]
    %v5305 = vrot.slane %v5142, 1
    %v5323 = vunpack.c.l.b16 %v5289
    %v5324 = vunpack.c.l.b16 %v5290
    %v5325 = vunpack.c.l.b16 %v5291
    %v5326 = vunpack.c.l.b16 %v5292
    %v5327 = vunpack.c.l.b16 %v5293
    %v5328 = vunpack.c.l.b16 %v5294
    %v5329 = vunpack.c.l.b16 %v5295
    %v5330 = vunpack.c.l.b16 %v5296
    %v5331 = vunpack.c.l.b16 %v5297
    %v5332 = vunpack.c.l.b16 %v5298
    %v5333 = vunpack.c.l.b16 %v5299
    %v5334 = vunpack.c.l.b16 %v5300
    %v5335 = vunpack.c.l.b16 %v5301
    %v5336 = vunpack.c.l.b16 %v5302
    %v5337 = vunpack.c.l.b16 %v5303
    %v5338 = vunpack.c.l.b16 %v5304
    %v5339 = vpack.c.b16 %v5324, %v5323
    %v5340 = vpack.c.b16 %v5326, %v5325
    %v5341 = vpack.c.b16 %v5328, %v5327
    %v5342 = vpack.c.b16 %v5330, %v5329
    %v5343 = vpack.c.b16 %v5332, %v5331
    %v5344 = vpack.c.b16 %v5334, %v5333
    %v5345 = vpack.c.b16 %v5336, %v5335
    %v5346 = vpack.c.b16 %v5338, %v5337
    %5355 = vmatpush.bf16.msra.mxu0 %v5346
    %5356 = vmatpush.bf16.msra.mxu0 %v5345
    %5357 = vmatpush.bf16.msra.mxu0 %v5344
    %5358 = vmatpush.bf16.msra.mxu0 %v5343
    %5359 = vmatpush.bf16.msra.mxu0 %v5342
    %5360 = vmatpush.bf16.msra.mxu0 %v5341
    %5361 = vmatpush.bf16.msra.mxu0 %v5340
    %5362 = vmatpush.bf16.msra.mxu0 %v5339
    %5363 = vmatmul.bf16.gmra.mxu0 %v5305
    %v5364 = vpop.f32.mrf.mxu0
    %v5365 = vadd.f32 0.0, %v5364
    %v5366 = vpop.f32.mrf.mxu0
    %5367 = vdwg.mxu0
    %v5368 = vadd.f32 %v5287, %v5365
    %s5369 = scalar_lea.vmem [#allocation28], 1792
    %v5370 = vld [vmem:[%s5369] sm:$0xf]
    %v5371 = vld [vmem:[%s5369 + $0x4] sm:$0xf]
    %v5372 = vld [vmem:[%s5369 + $0x8] sm:$0xf]
    %v5373 = vld [vmem:[%s5369 + $0xc] sm:$0xf]
    %v5374 = vld [vmem:[%s5369 + $0x10] sm:$0xf]
    %v5375 = vld [vmem:[%s5369 + $0x14] sm:$0xf]
    %v5376 = vld [vmem:[%s5369 + $0x18] sm:$0xf]
    %v5377 = vld [vmem:[%s5369 + $0x1c] sm:$0xf]
    %v5378 = vld [vmem:[%s5369 + $0x20] sm:$0xf]
    %v5379 = vld [vmem:[%s5369 + $0x24] sm:$0xf]
    %v5380 = vld [vmem:[%s5369 + $0x28] sm:$0xf]
    %v5381 = vld [vmem:[%s5369 + $0x2c] sm:$0xf]
    %v5382 = vld [vmem:[%s5369 + $0x30] sm:$0xf]
    %v5383 = vld [vmem:[%s5369 + $0x34] sm:$0xf]
    %v5384 = vld [vmem:[%s5369 + $0x38] sm:$0xf]
    %v5385 = vld [vmem:[%s5369 + $0x3c] sm:$0xf]
    %v5386 = vrot.slane %v5140, 2
    %v5404 = vunpack.c.l.b16 %v5370
    %v5405 = vunpack.c.l.b16 %v5371
    %v5406 = vunpack.c.l.b16 %v5372
    %v5407 = vunpack.c.l.b16 %v5373
    %v5408 = vunpack.c.l.b16 %v5374
    %v5409 = vunpack.c.l.b16 %v5375
    %v5410 = vunpack.c.l.b16 %v5376
    %v5411 = vunpack.c.l.b16 %v5377
    %v5412 = vunpack.c.l.b16 %v5378
    %v5413 = vunpack.c.l.b16 %v5379
    %v5414 = vunpack.c.l.b16 %v5380
    %v5415 = vunpack.c.l.b16 %v5381
    %v5416 = vunpack.c.l.b16 %v5382
    %v5417 = vunpack.c.l.b16 %v5383
    %v5418 = vunpack.c.l.b16 %v5384
    %v5419 = vunpack.c.l.b16 %v5385
    %v5420 = vpack.c.b16 %v5405, %v5404
    %v5421 = vpack.c.b16 %v5407, %v5406
    %v5422 = vpack.c.b16 %v5409, %v5408
    %v5423 = vpack.c.b16 %v5411, %v5410
    %v5424 = vpack.c.b16 %v5413, %v5412
    %v5425 = vpack.c.b16 %v5415, %v5414
    %v5426 = vpack.c.b16 %v5417, %v5416
    %v5427 = vpack.c.b16 %v5419, %v5418
    %5436 = vmatpush.bf16.msra.mxu0 %v5427
    %5437 = vmatpush.bf16.msra.mxu0 %v5426
    %5438 = vmatpush.bf16.msra.mxu0 %v5425
    %5439 = vmatpush.bf16.msra.mxu0 %v5424
    %5440 = vmatpush.bf16.msra.mxu0 %v5423
    %5441 = vmatpush.bf16.msra.mxu0 %v5422
    %5442 = vmatpush.bf16.msra.mxu0 %v5421
    %5443 = vmatpush.bf16.msra.mxu0 %v5420
    %5444 = vmatmul.bf16.gmra.mxu0 %v5386
    %v5445 = vpop.f32.mrf.mxu0
    %v5446 = vadd.f32 0.0, %v5445
    %v5447 = vpop.f32.mrf.mxu0
    %5448 = vdwg.mxu0
    %v5449 = vadd.f32 %v5368, %v5446
    %s5450 = scalar_lea.vmem [#allocation28], 1856
    %v5451 = vld [vmem:[%s5450] sm:$0xf]
    %v5452 = vld [vmem:[%s5450 + $0x4] sm:$0xf]
    %v5453 = vld [vmem:[%s5450 + $0x8] sm:$0xf]
    %v5454 = vld [vmem:[%s5450 + $0xc] sm:$0xf]
    %v5455 = vld [vmem:[%s5450 + $0x10] sm:$0xf]
    %v5456 = vld [vmem:[%s5450 + $0x14] sm:$0xf]
    %v5457 = vld [vmem:[%s5450 + $0x18] sm:$0xf]
    %v5458 = vld [vmem:[%s5450 + $0x1c] sm:$0xf]
    %v5459 = vld [vmem:[%s5450 + $0x20] sm:$0xf]
    %v5460 = vld [vmem:[%s5450 + $0x24] sm:$0xf]
    %v5461 = vld [vmem:[%s5450 + $0x28] sm:$0xf]
    %v5462 = vld [vmem:[%s5450 + $0x2c] sm:$0xf]
    %v5463 = vld [vmem:[%s5450 + $0x30] sm:$0xf]
    %v5464 = vld [vmem:[%s5450 + $0x34] sm:$0xf]
    %v5465 = vld [vmem:[%s5450 + $0x38] sm:$0xf]
    %v5466 = vld [vmem:[%s5450 + $0x3c] sm:$0xf]
    %v5467 = vrot.slane %v5142, 2
    %v5485 = vunpack.c.l.b16 %v5451
    %v5486 = vunpack.c.l.b16 %v5452
    %v5487 = vunpack.c.l.b16 %v5453
    %v5488 = vunpack.c.l.b16 %v5454
    %v5489 = vunpack.c.l.b16 %v5455
    %v5490 = vunpack.c.l.b16 %v5456
    %v5491 = vunpack.c.l.b16 %v5457
    %v5492 = vunpack.c.l.b16 %v5458
    %v5493 = vunpack.c.l.b16 %v5459
    %v5494 = vunpack.c.l.b16 %v5460
    %v5495 = vunpack.c.l.b16 %v5461
    %v5496 = vunpack.c.l.b16 %v5462
    %v5497 = vunpack.c.l.b16 %v5463
    %v5498 = vunpack.c.l.b16 %v5464
    %v5499 = vunpack.c.l.b16 %v5465
    %v5500 = vunpack.c.l.b16 %v5466
    %v5501 = vpack.c.b16 %v5486, %v5485
    %v5502 = vpack.c.b16 %v5488, %v5487
    %v5503 = vpack.c.b16 %v5490, %v5489
    %v5504 = vpack.c.b16 %v5492, %v5491
    %v5505 = vpack.c.b16 %v5494, %v5493
    %v5506 = vpack.c.b16 %v5496, %v5495
    %v5507 = vpack.c.b16 %v5498, %v5497
    %v5508 = vpack.c.b16 %v5500, %v5499
    %5517 = vmatpush.bf16.msra.mxu0 %v5508
    %5518 = vmatpush.bf16.msra.mxu0 %v5507
    %5519 = vmatpush.bf16.msra.mxu0 %v5506
    %5520 = vmatpush.bf16.msra.mxu0 %v5505
    %5521 = vmatpush.bf16.msra.mxu0 %v5504
    %5522 = vmatpush.bf16.msra.mxu0 %v5503
    %5523 = vmatpush.bf16.msra.mxu0 %v5502
    %5524 = vmatpush.bf16.msra.mxu0 %v5501
    %5525 = vmatmul.bf16.gmra.mxu0 %v5467
    %v5526 = vpop.f32.mrf.mxu0
    %v5527 = vadd.f32 0.0, %v5526
    %v5528 = vpop.f32.mrf.mxu0
    %5529 = vdwg.mxu0
    %v5530 = vadd.f32 %v5449, %v5527
    %s5531 = scalar_lea.vmem [#allocation28], 1920
    %v5532 = vld [vmem:[%s5531] sm:$0xf]
    %v5533 = vld [vmem:[%s5531 + $0x4] sm:$0xf]
    %v5534 = vld [vmem:[%s5531 + $0x8] sm:$0xf]
    %v5535 = vld [vmem:[%s5531 + $0xc] sm:$0xf]
    %v5536 = vld [vmem:[%s5531 + $0x10] sm:$0xf]
    %v5537 = vld [vmem:[%s5531 + $0x14] sm:$0xf]
    %v5538 = vld [vmem:[%s5531 + $0x18] sm:$0xf]
    %v5539 = vld [vmem:[%s5531 + $0x1c] sm:$0xf]
    %v5540 = vld [vmem:[%s5531 + $0x20] sm:$0xf]
    %v5541 = vld [vmem:[%s5531 + $0x24] sm:$0xf]
    %v5542 = vld [vmem:[%s5531 + $0x28] sm:$0xf]
    %v5543 = vld [vmem:[%s5531 + $0x2c] sm:$0xf]
    %v5544 = vld [vmem:[%s5531 + $0x30] sm:$0xf]
    %v5545 = vld [vmem:[%s5531 + $0x34] sm:$0xf]
    %v5546 = vld [vmem:[%s5531 + $0x38] sm:$0xf]
    %v5547 = vld [vmem:[%s5531 + $0x3c] sm:$0xf]
    %v5548 = vrot.slane %v5140, 3
    %v5566 = vunpack.c.l.b16 %v5532
    %v5567 = vunpack.c.l.b16 %v5533
    %v5568 = vunpack.c.l.b16 %v5534
    %v5569 = vunpack.c.l.b16 %v5535
    %v5570 = vunpack.c.l.b16 %v5536
    %v5571 = vunpack.c.l.b16 %v5537
    %v5572 = vunpack.c.l.b16 %v5538
    %v5573 = vunpack.c.l.b16 %v5539
    %v5574 = vunpack.c.l.b16 %v5540
    %v5575 = vunpack.c.l.b16 %v5541
    %v5576 = vunpack.c.l.b16 %v5542
    %v5577 = vunpack.c.l.b16 %v5543
    %v5578 = vunpack.c.l.b16 %v5544
    %v5579 = vunpack.c.l.b16 %v5545
    %v5580 = vunpack.c.l.b16 %v5546
    %v5581 = vunpack.c.l.b16 %v5547
    %v5582 = vpack.c.b16 %v5567, %v5566
    %v5583 = vpack.c.b16 %v5569, %v5568
    %v5584 = vpack.c.b16 %v5571, %v5570
    %v5585 = vpack.c.b16 %v5573, %v5572
    %v5586 = vpack.c.b16 %v5575, %v5574
    %v5587 = vpack.c.b16 %v5577, %v5576
    %v5588 = vpack.c.b16 %v5579, %v5578
    %v5589 = vpack.c.b16 %v5581, %v5580
    %5598 = vmatpush.bf16.msra.mxu0 %v5589
    %5599 = vmatpush.bf16.msra.mxu0 %v5588
    %5600 = vmatpush.bf16.msra.mxu0 %v5587
    %5601 = vmatpush.bf16.msra.mxu0 %v5586
    %5602 = vmatpush.bf16.msra.mxu0 %v5585
    %5603 = vmatpush.bf16.msra.mxu0 %v5584
    %5604 = vmatpush.bf16.msra.mxu0 %v5583
    %5605 = vmatpush.bf16.msra.mxu0 %v5582
    %5606 = vmatmul.bf16.gmra.mxu0 %v5548
    %v5607 = vpop.f32.mrf.mxu0
    %v5608 = vadd.f32 0.0, %v5607
    %v5609 = vpop.f32.mrf.mxu0
    %5610 = vdwg.mxu0
    %v5611 = vadd.f32 %v5530, %v5608
    %s5612 = scalar_lea.vmem [#allocation28], 1984
    %v5613 = vld [vmem:[%s5612] sm:$0xf]
    %v5614 = vld [vmem:[%s5612 + $0x4] sm:$0xf]
    %v5615 = vld [vmem:[%s5612 + $0x8] sm:$0xf]
    %v5616 = vld [vmem:[%s5612 + $0xc] sm:$0xf]
    %v5617 = vld [vmem:[%s5612 + $0x10] sm:$0xf]
    %v5618 = vld [vmem:[%s5612 + $0x14] sm:$0xf]
    %v5619 = vld [vmem:[%s5612 + $0x18] sm:$0xf]
    %v5620 = vld [vmem:[%s5612 + $0x1c] sm:$0xf]
    %v5621 = vld [vmem:[%s5612 + $0x20] sm:$0xf]
    %v5622 = vld [vmem:[%s5612 + $0x24] sm:$0xf]
    %v5623 = vld [vmem:[%s5612 + $0x28] sm:$0xf]
    %v5624 = vld [vmem:[%s5612 + $0x2c] sm:$0xf]
    %v5625 = vld [vmem:[%s5612 + $0x30] sm:$0xf]
    %v5626 = vld [vmem:[%s5612 + $0x34] sm:$0xf]
    %v5627 = vld [vmem:[%s5612 + $0x38] sm:$0xf]
    %v5628 = vld [vmem:[%s5612 + $0x3c] sm:$0xf]
    %v5629 = vrot.slane %v5142, 3
    %v5647 = vunpack.c.l.b16 %v5613
    %v5648 = vunpack.c.l.b16 %v5614
    %v5649 = vunpack.c.l.b16 %v5615
    %v5650 = vunpack.c.l.b16 %v5616
    %v5651 = vunpack.c.l.b16 %v5617
    %v5652 = vunpack.c.l.b16 %v5618
    %v5653 = vunpack.c.l.b16 %v5619
    %v5654 = vunpack.c.l.b16 %v5620
    %v5655 = vunpack.c.l.b16 %v5621
    %v5656 = vunpack.c.l.b16 %v5622
    %v5657 = vunpack.c.l.b16 %v5623
    %v5658 = vunpack.c.l.b16 %v5624
    %v5659 = vunpack.c.l.b16 %v5625
    %v5660 = vunpack.c.l.b16 %v5626
    %v5661 = vunpack.c.l.b16 %v5627
    %v5662 = vunpack.c.l.b16 %v5628
    %v5663 = vpack.c.b16 %v5648, %v5647
    %v5664 = vpack.c.b16 %v5650, %v5649
    %v5665 = vpack.c.b16 %v5652, %v5651
    %v5666 = vpack.c.b16 %v5654, %v5653
    %v5667 = vpack.c.b16 %v5656, %v5655
    %v5668 = vpack.c.b16 %v5658, %v5657
    %v5669 = vpack.c.b16 %v5660, %v5659
    %v5670 = vpack.c.b16 %v5662, %v5661
    %5679 = vmatpush.bf16.msra.mxu0 %v5670
    %5680 = vmatpush.bf16.msra.mxu0 %v5669
    %5681 = vmatpush.bf16.msra.mxu0 %v5668
    %5682 = vmatpush.bf16.msra.mxu0 %v5667
    %5683 = vmatpush.bf16.msra.mxu0 %v5666
    %5684 = vmatpush.bf16.msra.mxu0 %v5665
    %5685 = vmatpush.bf16.msra.mxu0 %v5664
    %5686 = vmatpush.bf16.msra.mxu0 %v5663
    %5687 = vmatmul.bf16.gmra.mxu0 %v5629
    %v5688 = vpop.f32.mrf.mxu0
    %v5689 = vadd.f32 0.0, %v5688
    %v5690 = vpop.f32.mrf.mxu0
    %5691 = vdwg.mxu0
    %v5692 = vadd.f32 %v5611, %v5689
    %s5693 = scalar_lea.vmem [#allocation28], 2048
    %v5694 = vld [vmem:[%s5693] sm:$0xf]
    %v5695 = vld [vmem:[%s5693 + $0x4] sm:$0xf]
    %v5696 = vld [vmem:[%s5693 + $0x8] sm:$0xf]
    %v5697 = vld [vmem:[%s5693 + $0xc] sm:$0xf]
    %v5698 = vld [vmem:[%s5693 + $0x10] sm:$0xf]
    %v5699 = vld [vmem:[%s5693 + $0x14] sm:$0xf]
    %v5700 = vld [vmem:[%s5693 + $0x18] sm:$0xf]
    %v5701 = vld [vmem:[%s5693 + $0x1c] sm:$0xf]
    %v5702 = vld [vmem:[%s5693 + $0x20] sm:$0xf]
    %v5703 = vld [vmem:[%s5693 + $0x24] sm:$0xf]
    %v5704 = vld [vmem:[%s5693 + $0x28] sm:$0xf]
    %v5705 = vld [vmem:[%s5693 + $0x2c] sm:$0xf]
    %v5706 = vld [vmem:[%s5693 + $0x30] sm:$0xf]
    %v5707 = vld [vmem:[%s5693 + $0x34] sm:$0xf]
    %v5708 = vld [vmem:[%s5693 + $0x38] sm:$0xf]
    %v5709 = vld [vmem:[%s5693 + $0x3c] sm:$0xf]
    %v5726 = vunpack.c.l.b16 %v5694
    %v5727 = vunpack.c.l.b16 %v5695
    %v5728 = vunpack.c.l.b16 %v5696
    %v5729 = vunpack.c.l.b16 %v5697
    %v5730 = vunpack.c.l.b16 %v5698
    %v5731 = vunpack.c.l.b16 %v5699
    %v5732 = vunpack.c.l.b16 %v5700
    %v5733 = vunpack.c.l.b16 %v5701
    %v5734 = vunpack.c.l.b16 %v5702
    %v5735 = vunpack.c.l.b16 %v5703
    %v5736 = vunpack.c.l.b16 %v5704
    %v5737 = vunpack.c.l.b16 %v5705
    %v5738 = vunpack.c.l.b16 %v5706
    %v5739 = vunpack.c.l.b16 %v5707
    %v5740 = vunpack.c.l.b16 %v5708
    %v5741 = vunpack.c.l.b16 %v5709
    %v5742 = vpack.c.b16 %v5727, %v5726
    %v5743 = vpack.c.b16 %v5729, %v5728
    %v5744 = vpack.c.b16 %v5731, %v5730
    %v5745 = vpack.c.b16 %v5733, %v5732
    %v5746 = vpack.c.b16 %v5735, %v5734
    %v5747 = vpack.c.b16 %v5737, %v5736
    %v5748 = vpack.c.b16 %v5739, %v5738
    %v5749 = vpack.c.b16 %v5741, %v5740
    %5758 = vmatpush.bf16.msra.mxu0 %v5749
    %5759 = vmatpush.bf16.msra.mxu0 %v5748
    %5760 = vmatpush.bf16.msra.mxu0 %v5747
    %5761 = vmatpush.bf16.msra.mxu0 %v5746
    %5762 = vmatpush.bf16.msra.mxu0 %v5745
    %5763 = vmatpush.bf16.msra.mxu0 %v5744
    %5764 = vmatpush.bf16.msra.mxu0 %v5743
    %5765 = vmatpush.bf16.msra.mxu0 %v5742
    %5766 = vmatmul.bf16.gmra.mxu0 %v3088
    %v5767 = vpop.f32.mrf.mxu0
    %v5768 = vadd.f32 0.0, %v5767
    %v5769 = vpop.f32.mrf.mxu0
    %5770 = vdwg.mxu0
    %v5771 = vadd.f32 %v5692, %v5768
    %s5772 = scalar_lea.vmem [#allocation28], 2112
    %v5773 = vld [vmem:[%s5772] sm:$0xf]
    %v5774 = vld [vmem:[%s5772 + $0x4] sm:$0xf]
    %v5775 = vld [vmem:[%s5772 + $0x8] sm:$0xf]
    %v5776 = vld [vmem:[%s5772 + $0xc] sm:$0xf]
    %v5777 = vld [vmem:[%s5772 + $0x10] sm:$0xf]
    %v5778 = vld [vmem:[%s5772 + $0x14] sm:$0xf]
    %v5779 = vld [vmem:[%s5772 + $0x18] sm:$0xf]
    %v5780 = vld [vmem:[%s5772 + $0x1c] sm:$0xf]
    %v5781 = vld [vmem:[%s5772 + $0x20] sm:$0xf]
    %v5782 = vld [vmem:[%s5772 + $0x24] sm:$0xf]
    %v5783 = vld [vmem:[%s5772 + $0x28] sm:$0xf]
    %v5784 = vld [vmem:[%s5772 + $0x2c] sm:$0xf]
    %v5785 = vld [vmem:[%s5772 + $0x30] sm:$0xf]
    %v5786 = vld [vmem:[%s5772 + $0x34] sm:$0xf]
    %v5787 = vld [vmem:[%s5772 + $0x38] sm:$0xf]
    %v5788 = vld [vmem:[%s5772 + $0x3c] sm:$0xf]
    %v5790 = vunpack.c.l.b16 %v3088
    %v5791 = vpack.c.b16 %v5790, %v5790
    %v5793 = vshrl.u32 %v5791, 16
    %v5812 = vunpack.c.l.b16 %v5773
    %v5813 = vunpack.c.l.b16 %v5774
    %v5814 = vunpack.c.l.b16 %v5775
    %v5815 = vunpack.c.l.b16 %v5776
    %v5816 = vunpack.c.l.b16 %v5777
    %v5817 = vunpack.c.l.b16 %v5778
    %v5818 = vunpack.c.l.b16 %v5779
    %v5819 = vunpack.c.l.b16 %v5780
    %v5820 = vunpack.c.l.b16 %v5781
    %v5821 = vunpack.c.l.b16 %v5782
    %v5822 = vunpack.c.l.b16 %v5783
    %v5823 = vunpack.c.l.b16 %v5784
    %v5824 = vunpack.c.l.b16 %v5785
    %v5825 = vunpack.c.l.b16 %v5786
    %v5826 = vunpack.c.l.b16 %v5787
    %v5827 = vunpack.c.l.b16 %v5788
    %v5828 = vpack.c.b16 %v5813, %v5812
    %v5829 = vpack.c.b16 %v5815, %v5814
    %v5830 = vpack.c.b16 %v5817, %v5816
    %v5831 = vpack.c.b16 %v5819, %v5818
    %v5832 = vpack.c.b16 %v5821, %v5820
    %v5833 = vpack.c.b16 %v5823, %v5822
    %v5834 = vpack.c.b16 %v5825, %v5824
    %v5835 = vpack.c.b16 %v5827, %v5826
    %5844 = vmatpush.bf16.msra.mxu0 %v5835
    %5845 = vmatpush.bf16.msra.mxu0 %v5834
    %5846 = vmatpush.bf16.msra.mxu0 %v5833
    %5847 = vmatpush.bf16.msra.mxu0 %v5832
    %5848 = vmatpush.bf16.msra.mxu0 %v5831
    %5849 = vmatpush.bf16.msra.mxu0 %v5830
    %5850 = vmatpush.bf16.msra.mxu0 %v5829
    %5851 = vmatpush.bf16.msra.mxu0 %v5828
    %5852 = vmatmul.bf16.gmra.mxu0 %v5793
    %v5853 = vpop.f32.mrf.mxu0
    %v5854 = vadd.f32 0.0, %v5853
    %v5855 = vpop.f32.mrf.mxu0
    %5856 = vdwg.mxu0
    %v5857 = vadd.f32 %v5771, %v5854
    %s5858 = scalar_lea.vmem [#allocation28], 2176
    %v5859 = vld [vmem:[%s5858] sm:$0xf]
    %v5860 = vld [vmem:[%s5858 + $0x4] sm:$0xf]
    %v5861 = vld [vmem:[%s5858 + $0x8] sm:$0xf]
    %v5862 = vld [vmem:[%s5858 + $0xc] sm:$0xf]
    %v5863 = vld [vmem:[%s5858 + $0x10] sm:$0xf]
    %v5864 = vld [vmem:[%s5858 + $0x14] sm:$0xf]
    %v5865 = vld [vmem:[%s5858 + $0x18] sm:$0xf]
    %v5866 = vld [vmem:[%s5858 + $0x1c] sm:$0xf]
    %v5867 = vld [vmem:[%s5858 + $0x20] sm:$0xf]
    %v5868 = vld [vmem:[%s5858 + $0x24] sm:$0xf]
    %v5869 = vld [vmem:[%s5858 + $0x28] sm:$0xf]
    %v5870 = vld [vmem:[%s5858 + $0x2c] sm:$0xf]
    %v5871 = vld [vmem:[%s5858 + $0x30] sm:$0xf]
    %v5872 = vld [vmem:[%s5858 + $0x34] sm:$0xf]
    %v5873 = vld [vmem:[%s5858 + $0x38] sm:$0xf]
    %v5874 = vld [vmem:[%s5858 + $0x3c] sm:$0xf]
    %v5875 = vrot.slane %v5791, 1
    %v5893 = vunpack.c.l.b16 %v5859
    %v5894 = vunpack.c.l.b16 %v5860
    %v5895 = vunpack.c.l.b16 %v5861
    %v5896 = vunpack.c.l.b16 %v5862
    %v5897 = vunpack.c.l.b16 %v5863
    %v5898 = vunpack.c.l.b16 %v5864
    %v5899 = vunpack.c.l.b16 %v5865
    %v5900 = vunpack.c.l.b16 %v5866
    %v5901 = vunpack.c.l.b16 %v5867
    %v5902 = vunpack.c.l.b16 %v5868
    %v5903 = vunpack.c.l.b16 %v5869
    %v5904 = vunpack.c.l.b16 %v5870
    %v5905 = vunpack.c.l.b16 %v5871
    %v5906 = vunpack.c.l.b16 %v5872
    %v5907 = vunpack.c.l.b16 %v5873
    %v5908 = vunpack.c.l.b16 %v5874
    %v5909 = vpack.c.b16 %v5894, %v5893
    %v5910 = vpack.c.b16 %v5896, %v5895
    %v5911 = vpack.c.b16 %v5898, %v5897
    %v5912 = vpack.c.b16 %v5900, %v5899
    %v5913 = vpack.c.b16 %v5902, %v5901
    %v5914 = vpack.c.b16 %v5904, %v5903
    %v5915 = vpack.c.b16 %v5906, %v5905
    %v5916 = vpack.c.b16 %v5908, %v5907
    %5925 = vmatpush.bf16.msra.mxu0 %v5916
    %5926 = vmatpush.bf16.msra.mxu0 %v5915
    %5927 = vmatpush.bf16.msra.mxu0 %v5914
    %5928 = vmatpush.bf16.msra.mxu0 %v5913
    %5929 = vmatpush.bf16.msra.mxu0 %v5912
    %5930 = vmatpush.bf16.msra.mxu0 %v5911
    %5931 = vmatpush.bf16.msra.mxu0 %v5910
    %5932 = vmatpush.bf16.msra.mxu0 %v5909
    %5933 = vmatmul.bf16.gmra.mxu0 %v5875
    %v5934 = vpop.f32.mrf.mxu0
    %v5935 = vadd.f32 0.0, %v5934
    %v5936 = vpop.f32.mrf.mxu0
    %5937 = vdwg.mxu0
    %v5938 = vadd.f32 %v5857, %v5935
    %s5939 = scalar_lea.vmem [#allocation28], 2240
    %v5940 = vld [vmem:[%s5939] sm:$0xf]
    %v5941 = vld [vmem:[%s5939 + $0x4] sm:$0xf]
    %v5942 = vld [vmem:[%s5939 + $0x8] sm:$0xf]
    %v5943 = vld [vmem:[%s5939 + $0xc] sm:$0xf]
    %v5944 = vld [vmem:[%s5939 + $0x10] sm:$0xf]
    %v5945 = vld [vmem:[%s5939 + $0x14] sm:$0xf]
    %v5946 = vld [vmem:[%s5939 + $0x18] sm:$0xf]
    %v5947 = vld [vmem:[%s5939 + $0x1c] sm:$0xf]
    %v5948 = vld [vmem:[%s5939 + $0x20] sm:$0xf]
    %v5949 = vld [vmem:[%s5939 + $0x24] sm:$0xf]
    %v5950 = vld [vmem:[%s5939 + $0x28] sm:$0xf]
    %v5951 = vld [vmem:[%s5939 + $0x2c] sm:$0xf]
    %v5952 = vld [vmem:[%s5939 + $0x30] sm:$0xf]
    %v5953 = vld [vmem:[%s5939 + $0x34] sm:$0xf]
    %v5954 = vld [vmem:[%s5939 + $0x38] sm:$0xf]
    %v5955 = vld [vmem:[%s5939 + $0x3c] sm:$0xf]
    %v5956 = vrot.slane %v5793, 1
    %v5974 = vunpack.c.l.b16 %v5940
    %v5975 = vunpack.c.l.b16 %v5941
    %v5976 = vunpack.c.l.b16 %v5942
    %v5977 = vunpack.c.l.b16 %v5943
    %v5978 = vunpack.c.l.b16 %v5944
    %v5979 = vunpack.c.l.b16 %v5945
    %v5980 = vunpack.c.l.b16 %v5946
    %v5981 = vunpack.c.l.b16 %v5947
    %v5982 = vunpack.c.l.b16 %v5948
    %v5983 = vunpack.c.l.b16 %v5949
    %v5984 = vunpack.c.l.b16 %v5950
    %v5985 = vunpack.c.l.b16 %v5951
    %v5986 = vunpack.c.l.b16 %v5952
    %v5987 = vunpack.c.l.b16 %v5953
    %v5988 = vunpack.c.l.b16 %v5954
    %v5989 = vunpack.c.l.b16 %v5955
    %v5990 = vpack.c.b16 %v5975, %v5974
    %v5991 = vpack.c.b16 %v5977, %v5976
    %v5992 = vpack.c.b16 %v5979, %v5978
    %v5993 = vpack.c.b16 %v5981, %v5980
    %v5994 = vpack.c.b16 %v5983, %v5982
    %v5995 = vpack.c.b16 %v5985, %v5984
    %v5996 = vpack.c.b16 %v5987, %v5986
    %v5997 = vpack.c.b16 %v5989, %v5988
    %6006 = vmatpush.bf16.msra.mxu0 %v5997
    %6007 = vmatpush.bf16.msra.mxu0 %v5996
    %6008 = vmatpush.bf16.msra.mxu0 %v5995
    %6009 = vmatpush.bf16.msra.mxu0 %v5994
    %6010 = vmatpush.bf16.msra.mxu0 %v5993
    %6011 = vmatpush.bf16.msra.mxu0 %v5992
    %6012 = vmatpush.bf16.msra.mxu0 %v5991
    %6013 = vmatpush.bf16.msra.mxu0 %v5990
    %6014 = vmatmul.bf16.gmra.mxu0 %v5956
    %v6015 = vpop.f32.mrf.mxu0
    %v6016 = vadd.f32 0.0, %v6015
    %v6017 = vpop.f32.mrf.mxu0
    %6018 = vdwg.mxu0
    %v6019 = vadd.f32 %v5938, %v6016
    %s6020 = scalar_lea.vmem [#allocation28], 2304
    %v6021 = vld [vmem:[%s6020] sm:$0xf]
    %v6022 = vld [vmem:[%s6020 + $0x4] sm:$0xf]
    %v6023 = vld [vmem:[%s6020 + $0x8] sm:$0xf]
    %v6024 = vld [vmem:[%s6020 + $0xc] sm:$0xf]
    %v6025 = vld [vmem:[%s6020 + $0x10] sm:$0xf]
    %v6026 = vld [vmem:[%s6020 + $0x14] sm:$0xf]
    %v6027 = vld [vmem:[%s6020 + $0x18] sm:$0xf]
    %v6028 = vld [vmem:[%s6020 + $0x1c] sm:$0xf]
    %v6029 = vld [vmem:[%s6020 + $0x20] sm:$0xf]
    %v6030 = vld [vmem:[%s6020 + $0x24] sm:$0xf]
    %v6031 = vld [vmem:[%s6020 + $0x28] sm:$0xf]
    %v6032 = vld [vmem:[%s6020 + $0x2c] sm:$0xf]
    %v6033 = vld [vmem:[%s6020 + $0x30] sm:$0xf]
    %v6034 = vld [vmem:[%s6020 + $0x34] sm:$0xf]
    %v6035 = vld [vmem:[%s6020 + $0x38] sm:$0xf]
    %v6036 = vld [vmem:[%s6020 + $0x3c] sm:$0xf]
    %v6037 = vrot.slane %v5791, 2
    %v6055 = vunpack.c.l.b16 %v6021
    %v6056 = vunpack.c.l.b16 %v6022
    %v6057 = vunpack.c.l.b16 %v6023
    %v6058 = vunpack.c.l.b16 %v6024
    %v6059 = vunpack.c.l.b16 %v6025
    %v6060 = vunpack.c.l.b16 %v6026
    %v6061 = vunpack.c.l.b16 %v6027
    %v6062 = vunpack.c.l.b16 %v6028
    %v6063 = vunpack.c.l.b16 %v6029
    %v6064 = vunpack.c.l.b16 %v6030
    %v6065 = vunpack.c.l.b16 %v6031
    %v6066 = vunpack.c.l.b16 %v6032
    %v6067 = vunpack.c.l.b16 %v6033
    %v6068 = vunpack.c.l.b16 %v6034
    %v6069 = vunpack.c.l.b16 %v6035
    %v6070 = vunpack.c.l.b16 %v6036
    %v6071 = vpack.c.b16 %v6056, %v6055
    %v6072 = vpack.c.b16 %v6058, %v6057
    %v6073 = vpack.c.b16 %v6060, %v6059
    %v6074 = vpack.c.b16 %v6062, %v6061
    %v6075 = vpack.c.b16 %v6064, %v6063
    %v6076 = vpack.c.b16 %v6066, %v6065
    %v6077 = vpack.c.b16 %v6068, %v6067
    %v6078 = vpack.c.b16 %v6070, %v6069
    %6087 = vmatpush.bf16.msra.mxu0 %v6078
    %6088 = vmatpush.bf16.msra.mxu0 %v6077
    %6089 = vmatpush.bf16.msra.mxu0 %v6076
    %6090 = vmatpush.bf16.msra.mxu0 %v6075
    %6091 = vmatpush.bf16.msra.mxu0 %v6074
    %6092 = vmatpush.bf16.msra.mxu0 %v6073
    %6093 = vmatpush.bf16.msra.mxu0 %v6072
    %6094 = vmatpush.bf16.msra.mxu0 %v6071
    %6095 = vmatmul.bf16.gmra.mxu0 %v6037
    %v6096 = vpop.f32.mrf.mxu0
    %v6097 = vadd.f32 0.0, %v6096
    %v6098 = vpop.f32.mrf.mxu0
    %6099 = vdwg.mxu0
    %v6100 = vadd.f32 %v6019, %v6097
    %s6101 = scalar_lea.vmem [#allocation28], 2368
    %v6102 = vld [vmem:[%s6101] sm:$0xf]
    %v6103 = vld [vmem:[%s6101 + $0x4] sm:$0xf]
    %v6104 = vld [vmem:[%s6101 + $0x8] sm:$0xf]
    %v6105 = vld [vmem:[%s6101 + $0xc] sm:$0xf]
    %v6106 = vld [vmem:[%s6101 + $0x10] sm:$0xf]
    %v6107 = vld [vmem:[%s6101 + $0x14] sm:$0xf]
    %v6108 = vld [vmem:[%s6101 + $0x18] sm:$0xf]
    %v6109 = vld [vmem:[%s6101 + $0x1c] sm:$0xf]
    %v6110 = vld [vmem:[%s6101 + $0x20] sm:$0xf]
    %v6111 = vld [vmem:[%s6101 + $0x24] sm:$0xf]
    %v6112 = vld [vmem:[%s6101 + $0x28] sm:$0xf]
    %v6113 = vld [vmem:[%s6101 + $0x2c] sm:$0xf]
    %v6114 = vld [vmem:[%s6101 + $0x30] sm:$0xf]
    %v6115 = vld [vmem:[%s6101 + $0x34] sm:$0xf]
    %v6116 = vld [vmem:[%s6101 + $0x38] sm:$0xf]
    %v6117 = vld [vmem:[%s6101 + $0x3c] sm:$0xf]
    %v6118 = vrot.slane %v5793, 2
    %v6136 = vunpack.c.l.b16 %v6102
    %v6137 = vunpack.c.l.b16 %v6103
    %v6138 = vunpack.c.l.b16 %v6104
    %v6139 = vunpack.c.l.b16 %v6105
    %v6140 = vunpack.c.l.b16 %v6106
    %v6141 = vunpack.c.l.b16 %v6107
    %v6142 = vunpack.c.l.b16 %v6108
    %v6143 = vunpack.c.l.b16 %v6109
    %v6144 = vunpack.c.l.b16 %v6110
    %v6145 = vunpack.c.l.b16 %v6111
    %v6146 = vunpack.c.l.b16 %v6112
    %v6147 = vunpack.c.l.b16 %v6113
    %v6148 = vunpack.c.l.b16 %v6114
    %v6149 = vunpack.c.l.b16 %v6115
    %v6150 = vunpack.c.l.b16 %v6116
    %v6151 = vunpack.c.l.b16 %v6117
    %v6152 = vpack.c.b16 %v6137, %v6136
    %v6153 = vpack.c.b16 %v6139, %v6138
    %v6154 = vpack.c.b16 %v6141, %v6140
    %v6155 = vpack.c.b16 %v6143, %v6142
    %v6156 = vpack.c.b16 %v6145, %v6144
    %v6157 = vpack.c.b16 %v6147, %v6146
    %v6158 = vpack.c.b16 %v6149, %v6148
    %v6159 = vpack.c.b16 %v6151, %v6150
    %6168 = vmatpush.bf16.msra.mxu0 %v6159
    %6169 = vmatpush.bf16.msra.mxu0 %v6158
    %6170 = vmatpush.bf16.msra.mxu0 %v6157
    %6171 = vmatpush.bf16.msra.mxu0 %v6156
    %6172 = vmatpush.bf16.msra.mxu0 %v6155
    %6173 = vmatpush.bf16.msra.mxu0 %v6154
    %6174 = vmatpush.bf16.msra.mxu0 %v6153
    %6175 = vmatpush.bf16.msra.mxu0 %v6152
    %6176 = vmatmul.bf16.gmra.mxu0 %v6118
    %v6177 = vpop.f32.mrf.mxu0
    %v6178 = vadd.f32 0.0, %v6177
    %v6179 = vpop.f32.mrf.mxu0
    %6180 = vdwg.mxu0
    %v6181 = vadd.f32 %v6100, %v6178
    %s6182 = scalar_lea.vmem [#allocation28], 2432
    %v6183 = vld [vmem:[%s6182] sm:$0xf]
    %v6184 = vld [vmem:[%s6182 + $0x4] sm:$0xf]
    %v6185 = vld [vmem:[%s6182 + $0x8] sm:$0xf]
    %v6186 = vld [vmem:[%s6182 + $0xc] sm:$0xf]
    %v6187 = vld [vmem:[%s6182 + $0x10] sm:$0xf]
    %v6188 = vld [vmem:[%s6182 + $0x14] sm:$0xf]
    %v6189 = vld [vmem:[%s6182 + $0x18] sm:$0xf]
    %v6190 = vld [vmem:[%s6182 + $0x1c] sm:$0xf]
    %v6191 = vld [vmem:[%s6182 + $0x20] sm:$0xf]
    %v6192 = vld [vmem:[%s6182 + $0x24] sm:$0xf]
    %v6193 = vld [vmem:[%s6182 + $0x28] sm:$0xf]
    %v6194 = vld [vmem:[%s6182 + $0x2c] sm:$0xf]
    %v6195 = vld [vmem:[%s6182 + $0x30] sm:$0xf]
    %v6196 = vld [vmem:[%s6182 + $0x34] sm:$0xf]
    %v6197 = vld [vmem:[%s6182 + $0x38] sm:$0xf]
    %v6198 = vld [vmem:[%s6182 + $0x3c] sm:$0xf]
    %v6199 = vrot.slane %v5791, 3
    %v6217 = vunpack.c.l.b16 %v6183
    %v6218 = vunpack.c.l.b16 %v6184
    %v6219 = vunpack.c.l.b16 %v6185
    %v6220 = vunpack.c.l.b16 %v6186
    %v6221 = vunpack.c.l.b16 %v6187
    %v6222 = vunpack.c.l.b16 %v6188
    %v6223 = vunpack.c.l.b16 %v6189
    %v6224 = vunpack.c.l.b16 %v6190
    %v6225 = vunpack.c.l.b16 %v6191
    %v6226 = vunpack.c.l.b16 %v6192
    %v6227 = vunpack.c.l.b16 %v6193
    %v6228 = vunpack.c.l.b16 %v6194
    %v6229 = vunpack.c.l.b16 %v6195
    %v6230 = vunpack.c.l.b16 %v6196
    %v6231 = vunpack.c.l.b16 %v6197
    %v6232 = vunpack.c.l.b16 %v6198
    %v6233 = vpack.c.b16 %v6218, %v6217
    %v6234 = vpack.c.b16 %v6220, %v6219
    %v6235 = vpack.c.b16 %v6222, %v6221
    %v6236 = vpack.c.b16 %v6224, %v6223
    %v6237 = vpack.c.b16 %v6226, %v6225
    %v6238 = vpack.c.b16 %v6228, %v6227
    %v6239 = vpack.c.b16 %v6230, %v6229
    %v6240 = vpack.c.b16 %v6232, %v6231
    %6249 = vmatpush.bf16.msra.mxu0 %v6240
    %6250 = vmatpush.bf16.msra.mxu0 %v6239
    %6251 = vmatpush.bf16.msra.mxu0 %v6238
    %6252 = vmatpush.bf16.msra.mxu0 %v6237
    %6253 = vmatpush.bf16.msra.mxu0 %v6236
    %6254 = vmatpush.bf16.msra.mxu0 %v6235
    %6255 = vmatpush.bf16.msra.mxu0 %v6234
    %6256 = vmatpush.bf16.msra.mxu0 %v6233
    %6257 = vmatmul.bf16.gmra.mxu0 %v6199
    %v6258 = vpop.f32.mrf.mxu0
    %v6259 = vadd.f32 0.0, %v6258
    %v6260 = vpop.f32.mrf.mxu0
    %6261 = vdwg.mxu0
    %v6262 = vadd.f32 %v6181, %v6259
    %s6263 = scalar_lea.vmem [#allocation28], 2496
    %v6264 = vld [vmem:[%s6263] sm:$0xf]
    %v6265 = vld [vmem:[%s6263 + $0x4] sm:$0xf]
    %v6266 = vld [vmem:[%s6263 + $0x8] sm:$0xf]
    %v6267 = vld [vmem:[%s6263 + $0xc] sm:$0xf]
    %v6268 = vld [vmem:[%s6263 + $0x10] sm:$0xf]
    %v6269 = vld [vmem:[%s6263 + $0x14] sm:$0xf]
    %v6270 = vld [vmem:[%s6263 + $0x18] sm:$0xf]
    %v6271 = vld [vmem:[%s6263 + $0x1c] sm:$0xf]
    %v6272 = vld [vmem:[%s6263 + $0x20] sm:$0xf]
    %v6273 = vld [vmem:[%s6263 + $0x24] sm:$0xf]
    %v6274 = vld [vmem:[%s6263 + $0x28] sm:$0xf]
    %v6275 = vld [vmem:[%s6263 + $0x2c] sm:$0xf]
    %v6276 = vld [vmem:[%s6263 + $0x30] sm:$0xf]
    %v6277 = vld [vmem:[%s6263 + $0x34] sm:$0xf]
    %v6278 = vld [vmem:[%s6263 + $0x38] sm:$0xf]
    %v6279 = vld [vmem:[%s6263 + $0x3c] sm:$0xf]
    %v6280 = vrot.slane %v5793, 3
    %v6298 = vunpack.c.l.b16 %v6264
    %v6299 = vunpack.c.l.b16 %v6265
    %v6300 = vunpack.c.l.b16 %v6266
    %v6301 = vunpack.c.l.b16 %v6267
    %v6302 = vunpack.c.l.b16 %v6268
    %v6303 = vunpack.c.l.b16 %v6269
    %v6304 = vunpack.c.l.b16 %v6270
    %v6305 = vunpack.c.l.b16 %v6271
    %v6306 = vunpack.c.l.b16 %v6272
    %v6307 = vunpack.c.l.b16 %v6273
    %v6308 = vunpack.c.l.b16 %v6274
    %v6309 = vunpack.c.l.b16 %v6275
    %v6310 = vunpack.c.l.b16 %v6276
    %v6311 = vunpack.c.l.b16 %v6277
    %v6312 = vunpack.c.l.b16 %v6278
    %v6313 = vunpack.c.l.b16 %v6279
    %v6314 = vpack.c.b16 %v6299, %v6298
    %v6315 = vpack.c.b16 %v6301, %v6300
    %v6316 = vpack.c.b16 %v6303, %v6302
    %v6317 = vpack.c.b16 %v6305, %v6304
    %v6318 = vpack.c.b16 %v6307, %v6306
    %v6319 = vpack.c.b16 %v6309, %v6308
    %v6320 = vpack.c.b16 %v6311, %v6310
    %v6321 = vpack.c.b16 %v6313, %v6312
    %6330 = vmatpush.bf16.msra.mxu0 %v6321
    %6331 = vmatpush.bf16.msra.mxu0 %v6320
    %6332 = vmatpush.bf16.msra.mxu0 %v6319
    %6333 = vmatpush.bf16.msra.mxu0 %v6318
    %6334 = vmatpush.bf16.msra.mxu0 %v6317
    %6335 = vmatpush.bf16.msra.mxu0 %v6316
    %6336 = vmatpush.bf16.msra.mxu0 %v6315
    %6337 = vmatpush.bf16.msra.mxu0 %v6314
    %6338 = vmatmul.bf16.gmra.mxu0 %v6280
    %v6339 = vpop.f32.mrf.mxu0
    %v6340 = vadd.f32 0.0, %v6339
    %v6341 = vpop.f32.mrf.mxu0
    %6342 = vdwg.mxu0
    %v6343 = vadd.f32 %v6262, %v6340
    %s6344 = scalar_lea.vmem [#allocation28], 2560
    %v6345 = vld [vmem:[%s6344] sm:$0xf]
    %v6346 = vld [vmem:[%s6344 + $0x4] sm:$0xf]
    %v6347 = vld [vmem:[%s6344 + $0x8] sm:$0xf]
    %v6348 = vld [vmem:[%s6344 + $0xc] sm:$0xf]
    %v6349 = vld [vmem:[%s6344 + $0x10] sm:$0xf]
    %v6350 = vld [vmem:[%s6344 + $0x14] sm:$0xf]
    %v6351 = vld [vmem:[%s6344 + $0x18] sm:$0xf]
    %v6352 = vld [vmem:[%s6344 + $0x1c] sm:$0xf]
    %v6353 = vld [vmem:[%s6344 + $0x20] sm:$0xf]
    %v6354 = vld [vmem:[%s6344 + $0x24] sm:$0xf]
    %v6355 = vld [vmem:[%s6344 + $0x28] sm:$0xf]
    %v6356 = vld [vmem:[%s6344 + $0x2c] sm:$0xf]
    %v6357 = vld [vmem:[%s6344 + $0x30] sm:$0xf]
    %v6358 = vld [vmem:[%s6344 + $0x34] sm:$0xf]
    %v6359 = vld [vmem:[%s6344 + $0x38] sm:$0xf]
    %v6360 = vld [vmem:[%s6344 + $0x3c] sm:$0xf]
    %v6377 = vunpack.c.l.b16 %v6345
    %v6378 = vunpack.c.l.b16 %v6346
    %v6379 = vunpack.c.l.b16 %v6347
    %v6380 = vunpack.c.l.b16 %v6348
    %v6381 = vunpack.c.l.b16 %v6349
    %v6382 = vunpack.c.l.b16 %v6350
    %v6383 = vunpack.c.l.b16 %v6351
    %v6384 = vunpack.c.l.b16 %v6352
    %v6385 = vunpack.c.l.b16 %v6353
    %v6386 = vunpack.c.l.b16 %v6354
    %v6387 = vunpack.c.l.b16 %v6355
    %v6388 = vunpack.c.l.b16 %v6356
    %v6389 = vunpack.c.l.b16 %v6357
    %v6390 = vunpack.c.l.b16 %v6358
    %v6391 = vunpack.c.l.b16 %v6359
    %v6392 = vunpack.c.l.b16 %v6360
    %v6393 = vpack.c.b16 %v6378, %v6377
    %v6394 = vpack.c.b16 %v6380, %v6379
    %v6395 = vpack.c.b16 %v6382, %v6381
    %v6396 = vpack.c.b16 %v6384, %v6383
    %v6397 = vpack.c.b16 %v6386, %v6385
    %v6398 = vpack.c.b16 %v6388, %v6387
    %v6399 = vpack.c.b16 %v6390, %v6389
    %v6400 = vpack.c.b16 %v6392, %v6391
    %6409 = vmatpush.bf16.msra.mxu0 %v6400
    %6410 = vmatpush.bf16.msra.mxu0 %v6399
    %6411 = vmatpush.bf16.msra.mxu0 %v6398
    %6412 = vmatpush.bf16.msra.mxu0 %v6397
    %6413 = vmatpush.bf16.msra.mxu0 %v6396
    %6414 = vmatpush.bf16.msra.mxu0 %v6395
    %6415 = vmatpush.bf16.msra.mxu0 %v6394
    %6416 = vmatpush.bf16.msra.mxu0 %v6393
    %6417 = vmatmul.bf16.gmra.mxu0 %v3089
    %v6418 = vpop.f32.mrf.mxu0
    %v6419 = vadd.f32 0.0, %v6418
    %v6420 = vpop.f32.mrf.mxu0
    %6421 = vdwg.mxu0
    %v6422 = vadd.f32 %v6343, %v6419
    %s6423 = scalar_lea.vmem [#allocation28], 2624
    %v6424 = vld [vmem:[%s6423] sm:$0xf]
    %v6425 = vld [vmem:[%s6423 + $0x4] sm:$0xf]
    %v6426 = vld [vmem:[%s6423 + $0x8] sm:$0xf]
    %v6427 = vld [vmem:[%s6423 + $0xc] sm:$0xf]
    %v6428 = vld [vmem:[%s6423 + $0x10] sm:$0xf]
    %v6429 = vld [vmem:[%s6423 + $0x14] sm:$0xf]
    %v6430 = vld [vmem:[%s6423 + $0x18] sm:$0xf]
    %v6431 = vld [vmem:[%s6423 + $0x1c] sm:$0xf]
    %v6432 = vld [vmem:[%s6423 + $0x20] sm:$0xf]
    %v6433 = vld [vmem:[%s6423 + $0x24] sm:$0xf]
    %v6434 = vld [vmem:[%s6423 + $0x28] sm:$0xf]
    %v6435 = vld [vmem:[%s6423 + $0x2c] sm:$0xf]
    %v6436 = vld [vmem:[%s6423 + $0x30] sm:$0xf]
    %v6437 = vld [vmem:[%s6423 + $0x34] sm:$0xf]
    %v6438 = vld [vmem:[%s6423 + $0x38] sm:$0xf]
    %v6439 = vld [vmem:[%s6423 + $0x3c] sm:$0xf]
    %v6441 = vunpack.c.l.b16 %v3089
    %v6442 = vpack.c.b16 %v6441, %v6441
    %v6444 = vshrl.u32 %v6442, 16
    %v6463 = vunpack.c.l.b16 %v6424
    %v6464 = vunpack.c.l.b16 %v6425
    %v6465 = vunpack.c.l.b16 %v6426
    %v6466 = vunpack.c.l.b16 %v6427
    %v6467 = vunpack.c.l.b16 %v6428
    %v6468 = vunpack.c.l.b16 %v6429
    %v6469 = vunpack.c.l.b16 %v6430
    %v6470 = vunpack.c.l.b16 %v6431
    %v6471 = vunpack.c.l.b16 %v6432
    %v6472 = vunpack.c.l.b16 %v6433
    %v6473 = vunpack.c.l.b16 %v6434
    %v6474 = vunpack.c.l.b16 %v6435
    %v6475 = vunpack.c.l.b16 %v6436
    %v6476 = vunpack.c.l.b16 %v6437
    %v6477 = vunpack.c.l.b16 %v6438
    %v6478 = vunpack.c.l.b16 %v6439
    %v6479 = vpack.c.b16 %v6464, %v6463
    %v6480 = vpack.c.b16 %v6466, %v6465
    %v6481 = vpack.c.b16 %v6468, %v6467
    %v6482 = vpack.c.b16 %v6470, %v6469
    %v6483 = vpack.c.b16 %v6472, %v6471
    %v6484 = vpack.c.b16 %v6474, %v6473
    %v6485 = vpack.c.b16 %v6476, %v6475
    %v6486 = vpack.c.b16 %v6478, %v6477
    %6495 = vmatpush.bf16.msra.mxu0 %v6486
    %6496 = vmatpush.bf16.msra.mxu0 %v6485
    %6497 = vmatpush.bf16.msra.mxu0 %v6484
    %6498 = vmatpush.bf16.msra.mxu0 %v6483
    %6499 = vmatpush.bf16.msra.mxu0 %v6482
    %6500 = vmatpush.bf16.msra.mxu0 %v6481
    %6501 = vmatpush.bf16.msra.mxu0 %v6480
    %6502 = vmatpush.bf16.msra.mxu0 %v6479
    %6503 = vmatmul.bf16.gmra.mxu0 %v6444
    %v6504 = vpop.f32.mrf.mxu0
    %v6505 = vadd.f32 0.0, %v6504
    %v6506 = vpop.f32.mrf.mxu0
    %6507 = vdwg.mxu0
    %v6508 = vadd.f32 %v6422, %v6505
    %s6509 = scalar_lea.vmem [#allocation28], 2688
    %v6510 = vld [vmem:[%s6509] sm:$0xf]
    %v6511 = vld [vmem:[%s6509 + $0x4] sm:$0xf]
    %v6512 = vld [vmem:[%s6509 + $0x8] sm:$0xf]
    %v6513 = vld [vmem:[%s6509 + $0xc] sm:$0xf]
    %v6514 = vld [vmem:[%s6509 + $0x10] sm:$0xf]
    %v6515 = vld [vmem:[%s6509 + $0x14] sm:$0xf]
    %v6516 = vld [vmem:[%s6509 + $0x18] sm:$0xf]
    %v6517 = vld [vmem:[%s6509 + $0x1c] sm:$0xf]
    %v6518 = vld [vmem:[%s6509 + $0x20] sm:$0xf]
    %v6519 = vld [vmem:[%s6509 + $0x24] sm:$0xf]
    %v6520 = vld [vmem:[%s6509 + $0x28] sm:$0xf]
    %v6521 = vld [vmem:[%s6509 + $0x2c] sm:$0xf]
    %v6522 = vld [vmem:[%s6509 + $0x30] sm:$0xf]
    %v6523 = vld [vmem:[%s6509 + $0x34] sm:$0xf]
    %v6524 = vld [vmem:[%s6509 + $0x38] sm:$0xf]
    %v6525 = vld [vmem:[%s6509 + $0x3c] sm:$0xf]
    %v6526 = vrot.slane %v6442, 1
    %v6544 = vunpack.c.l.b16 %v6510
    %v6545 = vunpack.c.l.b16 %v6511
    %v6546 = vunpack.c.l.b16 %v6512
    %v6547 = vunpack.c.l.b16 %v6513
    %v6548 = vunpack.c.l.b16 %v6514
    %v6549 = vunpack.c.l.b16 %v6515
    %v6550 = vunpack.c.l.b16 %v6516
    %v6551 = vunpack.c.l.b16 %v6517
    %v6552 = vunpack.c.l.b16 %v6518
    %v6553 = vunpack.c.l.b16 %v6519
    %v6554 = vunpack.c.l.b16 %v6520
    %v6555 = vunpack.c.l.b16 %v6521
    %v6556 = vunpack.c.l.b16 %v6522
    %v6557 = vunpack.c.l.b16 %v6523
    %v6558 = vunpack.c.l.b16 %v6524
    %v6559 = vunpack.c.l.b16 %v6525
    %v6560 = vpack.c.b16 %v6545, %v6544
    %v6561 = vpack.c.b16 %v6547, %v6546
    %v6562 = vpack.c.b16 %v6549, %v6548
    %v6563 = vpack.c.b16 %v6551, %v6550
    %v6564 = vpack.c.b16 %v6553, %v6552
    %v6565 = vpack.c.b16 %v6555, %v6554
    %v6566 = vpack.c.b16 %v6557, %v6556
    %v6567 = vpack.c.b16 %v6559, %v6558
    %6576 = vmatpush.bf16.msra.mxu0 %v6567
    %6577 = vmatpush.bf16.msra.mxu0 %v6566
    %6578 = vmatpush.bf16.msra.mxu0 %v6565
    %6579 = vmatpush.bf16.msra.mxu0 %v6564
    %6580 = vmatpush.bf16.msra.mxu0 %v6563
    %6581 = vmatpush.bf16.msra.mxu0 %v6562
    %6582 = vmatpush.bf16.msra.mxu0 %v6561
    %6583 = vmatpush.bf16.msra.mxu0 %v6560
    %6584 = vmatmul.bf16.gmra.mxu0 %v6526
    %v6585 = vpop.f32.mrf.mxu0
    %v6586 = vadd.f32 0.0, %v6585
    %v6587 = vpop.f32.mrf.mxu0
    %6588 = vdwg.mxu0
    %v6589 = vadd.f32 %v6508, %v6586
    %s6590 = scalar_lea.vmem [#allocation28], 2752
    %v6591 = vld [vmem:[%s6590] sm:$0xf]
    %v6592 = vld [vmem:[%s6590 + $0x4] sm:$0xf]
    %v6593 = vld [vmem:[%s6590 + $0x8] sm:$0xf]
    %v6594 = vld [vmem:[%s6590 + $0xc] sm:$0xf]
    %v6595 = vld [vmem:[%s6590 + $0x10] sm:$0xf]
    %v6596 = vld [vmem:[%s6590 + $0x14] sm:$0xf]
    %v6597 = vld [vmem:[%s6590 + $0x18] sm:$0xf]
    %v6598 = vld [vmem:[%s6590 + $0x1c] sm:$0xf]
    %v6599 = vld [vmem:[%s6590 + $0x20] sm:$0xf]
    %v6600 = vld [vmem:[%s6590 + $0x24] sm:$0xf]
    %v6601 = vld [vmem:[%s6590 + $0x28] sm:$0xf]
    %v6602 = vld [vmem:[%s6590 + $0x2c] sm:$0xf]
    %v6603 = vld [vmem:[%s6590 + $0x30] sm:$0xf]
    %v6604 = vld [vmem:[%s6590 + $0x34] sm:$0xf]
    %v6605 = vld [vmem:[%s6590 + $0x38] sm:$0xf]
    %v6606 = vld [vmem:[%s6590 + $0x3c] sm:$0xf]
    %v6607 = vrot.slane %v6444, 1
    %v6625 = vunpack.c.l.b16 %v6591
    %v6626 = vunpack.c.l.b16 %v6592
    %v6627 = vunpack.c.l.b16 %v6593
    %v6628 = vunpack.c.l.b16 %v6594
    %v6629 = vunpack.c.l.b16 %v6595
    %v6630 = vunpack.c.l.b16 %v6596
    %v6631 = vunpack.c.l.b16 %v6597
    %v6632 = vunpack.c.l.b16 %v6598
    %v6633 = vunpack.c.l.b16 %v6599
    %v6634 = vunpack.c.l.b16 %v6600
    %v6635 = vunpack.c.l.b16 %v6601
    %v6636 = vunpack.c.l.b16 %v6602
    %v6637 = vunpack.c.l.b16 %v6603
    %v6638 = vunpack.c.l.b16 %v6604
    %v6639 = vunpack.c.l.b16 %v6605
    %v6640 = vunpack.c.l.b16 %v6606
    %v6641 = vpack.c.b16 %v6626, %v6625
    %v6642 = vpack.c.b16 %v6628, %v6627
    %v6643 = vpack.c.b16 %v6630, %v6629
    %v6644 = vpack.c.b16 %v6632, %v6631
    %v6645 = vpack.c.b16 %v6634, %v6633
    %v6646 = vpack.c.b16 %v6636, %v6635
    %v6647 = vpack.c.b16 %v6638, %v6637
    %v6648 = vpack.c.b16 %v6640, %v6639
    %6657 = vmatpush.bf16.msra.mxu0 %v6648
    %6658 = vmatpush.bf16.msra.mxu0 %v6647
    %6659 = vmatpush.bf16.msra.mxu0 %v6646
    %6660 = vmatpush.bf16.msra.mxu0 %v6645
    %6661 = vmatpush.bf16.msra.mxu0 %v6644
    %6662 = vmatpush.bf16.msra.mxu0 %v6643
    %6663 = vmatpush.bf16.msra.mxu0 %v6642
    %6664 = vmatpush.bf16.msra.mxu0 %v6641
    %6665 = vmatmul.bf16.gmra.mxu0 %v6607
    %v6666 = vpop.f32.mrf.mxu0
    %v6667 = vadd.f32 0.0, %v6666
    %v6668 = vpop.f32.mrf.mxu0
    %6669 = vdwg.mxu0
    %v6670 = vadd.f32 %v6589, %v6667
    %s6671 = scalar_lea.vmem [#allocation28], 2816
    %v6672 = vld [vmem:[%s6671] sm:$0xf]
    %v6673 = vld [vmem:[%s6671 + $0x4] sm:$0xf]
    %v6674 = vld [vmem:[%s6671 + $0x8] sm:$0xf]
    %v6675 = vld [vmem:[%s6671 + $0xc] sm:$0xf]
    %v6676 = vld [vmem:[%s6671 + $0x10] sm:$0xf]
    %v6677 = vld [vmem:[%s6671 + $0x14] sm:$0xf]
    %v6678 = vld [vmem:[%s6671 + $0x18] sm:$0xf]
    %v6679 = vld [vmem:[%s6671 + $0x1c] sm:$0xf]
    %v6680 = vld [vmem:[%s6671 + $0x20] sm:$0xf]
    %v6681 = vld [vmem:[%s6671 + $0x24] sm:$0xf]
    %v6682 = vld [vmem:[%s6671 + $0x28] sm:$0xf]
    %v6683 = vld [vmem:[%s6671 + $0x2c] sm:$0xf]
    %v6684 = vld [vmem:[%s6671 + $0x30] sm:$0xf]
    %v6685 = vld [vmem:[%s6671 + $0x34] sm:$0xf]
    %v6686 = vld [vmem:[%s6671 + $0x38] sm:$0xf]
    %v6687 = vld [vmem:[%s6671 + $0x3c] sm:$0xf]
    %v6688 = vrot.slane %v6442, 2
    %v6706 = vunpack.c.l.b16 %v6672
    %v6707 = vunpack.c.l.b16 %v6673
    %v6708 = vunpack.c.l.b16 %v6674
    %v6709 = vunpack.c.l.b16 %v6675
    %v6710 = vunpack.c.l.b16 %v6676
    %v6711 = vunpack.c.l.b16 %v6677
    %v6712 = vunpack.c.l.b16 %v6678
    %v6713 = vunpack.c.l.b16 %v6679
    %v6714 = vunpack.c.l.b16 %v6680
    %v6715 = vunpack.c.l.b16 %v6681
    %v6716 = vunpack.c.l.b16 %v6682
    %v6717 = vunpack.c.l.b16 %v6683
    %v6718 = vunpack.c.l.b16 %v6684
    %v6719 = vunpack.c.l.b16 %v6685
    %v6720 = vunpack.c.l.b16 %v6686
    %v6721 = vunpack.c.l.b16 %v6687
    %v6722 = vpack.c.b16 %v6707, %v6706
    %v6723 = vpack.c.b16 %v6709, %v6708
    %v6724 = vpack.c.b16 %v6711, %v6710
    %v6725 = vpack.c.b16 %v6713, %v6712
    %v6726 = vpack.c.b16 %v6715, %v6714
    %v6727 = vpack.c.b16 %v6717, %v6716
    %v6728 = vpack.c.b16 %v6719, %v6718
    %v6729 = vpack.c.b16 %v6721, %v6720
    %6738 = vmatpush.bf16.msra.mxu0 %v6729
    %6739 = vmatpush.bf16.msra.mxu0 %v6728
    %6740 = vmatpush.bf16.msra.mxu0 %v6727
    %6741 = vmatpush.bf16.msra.mxu0 %v6726
    %6742 = vmatpush.bf16.msra.mxu0 %v6725
    %6743 = vmatpush.bf16.msra.mxu0 %v6724
    %6744 = vmatpush.bf16.msra.mxu0 %v6723
    %6745 = vmatpush.bf16.msra.mxu0 %v6722
    %6746 = vmatmul.bf16.gmra.mxu0 %v6688
    %v6747 = vpop.f32.mrf.mxu0
    %v6748 = vadd.f32 0.0, %v6747
    %v6749 = vpop.f32.mrf.mxu0
    %6750 = vdwg.mxu0
    %v6751 = vadd.f32 %v6670, %v6748
    %s6752 = scalar_lea.vmem [#allocation28], 2880
    %v6753 = vld [vmem:[%s6752] sm:$0xf]
    %v6754 = vld [vmem:[%s6752 + $0x4] sm:$0xf]
    %v6755 = vld [vmem:[%s6752 + $0x8] sm:$0xf]
    %v6756 = vld [vmem:[%s6752 + $0xc] sm:$0xf]
    %v6757 = vld [vmem:[%s6752 + $0x10] sm:$0xf]
    %v6758 = vld [vmem:[%s6752 + $0x14] sm:$0xf]
    %v6759 = vld [vmem:[%s6752 + $0x18] sm:$0xf]
    %v6760 = vld [vmem:[%s6752 + $0x1c] sm:$0xf]
    %v6761 = vld [vmem:[%s6752 + $0x20] sm:$0xf]
    %v6762 = vld [vmem:[%s6752 + $0x24] sm:$0xf]
    %v6763 = vld [vmem:[%s6752 + $0x28] sm:$0xf]
    %v6764 = vld [vmem:[%s6752 + $0x2c] sm:$0xf]
    %v6765 = vld [vmem:[%s6752 + $0x30] sm:$0xf]
    %v6766 = vld [vmem:[%s6752 + $0x34] sm:$0xf]
    %v6767 = vld [vmem:[%s6752 + $0x38] sm:$0xf]
    %v6768 = vld [vmem:[%s6752 + $0x3c] sm:$0xf]
    %v6769 = vrot.slane %v6444, 2
    %v6787 = vunpack.c.l.b16 %v6753
    %v6788 = vunpack.c.l.b16 %v6754
    %v6789 = vunpack.c.l.b16 %v6755
    %v6790 = vunpack.c.l.b16 %v6756
    %v6791 = vunpack.c.l.b16 %v6757
    %v6792 = vunpack.c.l.b16 %v6758
    %v6793 = vunpack.c.l.b16 %v6759
    %v6794 = vunpack.c.l.b16 %v6760
    %v6795 = vunpack.c.l.b16 %v6761
    %v6796 = vunpack.c.l.b16 %v6762
    %v6797 = vunpack.c.l.b16 %v6763
    %v6798 = vunpack.c.l.b16 %v6764
    %v6799 = vunpack.c.l.b16 %v6765
    %v6800 = vunpack.c.l.b16 %v6766
    %v6801 = vunpack.c.l.b16 %v6767
    %v6802 = vunpack.c.l.b16 %v6768
    %v6803 = vpack.c.b16 %v6788, %v6787
    %v6804 = vpack.c.b16 %v6790, %v6789
    %v6805 = vpack.c.b16 %v6792, %v6791
    %v6806 = vpack.c.b16 %v6794, %v6793
    %v6807 = vpack.c.b16 %v6796, %v6795
    %v6808 = vpack.c.b16 %v6798, %v6797
    %v6809 = vpack.c.b16 %v6800, %v6799
    %v6810 = vpack.c.b16 %v6802, %v6801
    %6819 = vmatpush.bf16.msra.mxu0 %v6810
    %6820 = vmatpush.bf16.msra.mxu0 %v6809
    %6821 = vmatpush.bf16.msra.mxu0 %v6808
    %6822 = vmatpush.bf16.msra.mxu0 %v6807
    %6823 = vmatpush.bf16.msra.mxu0 %v6806
    %6824 = vmatpush.bf16.msra.mxu0 %v6805
    %6825 = vmatpush.bf16.msra.mxu0 %v6804
    %6826 = vmatpush.bf16.msra.mxu0 %v6803
    %6827 = vmatmul.bf16.gmra.mxu0 %v6769
    %v6828 = vpop.f32.mrf.mxu0
    %v6829 = vadd.f32 0.0, %v6828
    %v6830 = vpop.f32.mrf.mxu0
    %6831 = vdwg.mxu0
    %v6832 = vadd.f32 %v6751, %v6829
    %s6833 = scalar_lea.vmem [#allocation28], 2944
    %v6834 = vld [vmem:[%s6833] sm:$0xf]
    %v6835 = vld [vmem:[%s6833 + $0x4] sm:$0xf]
    %v6836 = vld [vmem:[%s6833 + $0x8] sm:$0xf]
    %v6837 = vld [vmem:[%s6833 + $0xc] sm:$0xf]
    %v6838 = vld [vmem:[%s6833 + $0x10] sm:$0xf]
    %v6839 = vld [vmem:[%s6833 + $0x14] sm:$0xf]
    %v6840 = vld [vmem:[%s6833 + $0x18] sm:$0xf]
    %v6841 = vld [vmem:[%s6833 + $0x1c] sm:$0xf]
    %v6842 = vld [vmem:[%s6833 + $0x20] sm:$0xf]
    %v6843 = vld [vmem:[%s6833 + $0x24] sm:$0xf]
    %v6844 = vld [vmem:[%s6833 + $0x28] sm:$0xf]
    %v6845 = vld [vmem:[%s6833 + $0x2c] sm:$0xf]
    %v6846 = vld [vmem:[%s6833 + $0x30] sm:$0xf]
    %v6847 = vld [vmem:[%s6833 + $0x34] sm:$0xf]
    %v6848 = vld [vmem:[%s6833 + $0x38] sm:$0xf]
    %v6849 = vld [vmem:[%s6833 + $0x3c] sm:$0xf]
    %v6850 = vrot.slane %v6442, 3
    %v6868 = vunpack.c.l.b16 %v6834
    %v6869 = vunpack.c.l.b16 %v6835
    %v6870 = vunpack.c.l.b16 %v6836
    %v6871 = vunpack.c.l.b16 %v6837
    %v6872 = vunpack.c.l.b16 %v6838
    %v6873 = vunpack.c.l.b16 %v6839
    %v6874 = vunpack.c.l.b16 %v6840
    %v6875 = vunpack.c.l.b16 %v6841
    %v6876 = vunpack.c.l.b16 %v6842
    %v6877 = vunpack.c.l.b16 %v6843
    %v6878 = vunpack.c.l.b16 %v6844
    %v6879 = vunpack.c.l.b16 %v6845
    %v6880 = vunpack.c.l.b16 %v6846
    %v6881 = vunpack.c.l.b16 %v6847
    %v6882 = vunpack.c.l.b16 %v6848
    %v6883 = vunpack.c.l.b16 %v6849
    %v6884 = vpack.c.b16 %v6869, %v6868
    %v6885 = vpack.c.b16 %v6871, %v6870
    %v6886 = vpack.c.b16 %v6873, %v6872
    %v6887 = vpack.c.b16 %v6875, %v6874
    %v6888 = vpack.c.b16 %v6877, %v6876
    %v6889 = vpack.c.b16 %v6879, %v6878
    %v6890 = vpack.c.b16 %v6881, %v6880
    %v6891 = vpack.c.b16 %v6883, %v6882
    %6900 = vmatpush.bf16.msra.mxu0 %v6891
    %6901 = vmatpush.bf16.msra.mxu0 %v6890
    %6902 = vmatpush.bf16.msra.mxu0 %v6889
    %6903 = vmatpush.bf16.msra.mxu0 %v6888
    %6904 = vmatpush.bf16.msra.mxu0 %v6887
    %6905 = vmatpush.bf16.msra.mxu0 %v6886
    %6906 = vmatpush.bf16.msra.mxu0 %v6885
    %6907 = vmatpush.bf16.msra.mxu0 %v6884
    %6908 = vmatmul.bf16.gmra.mxu0 %v6850
    %v6909 = vpop.f32.mrf.mxu0
    %v6910 = vadd.f32 0.0, %v6909
    %v6911 = vpop.f32.mrf.mxu0
    %6912 = vdwg.mxu0
    %v6913 = vadd.f32 %v6832, %v6910
    %s6914 = scalar_lea.vmem [#allocation28], 3008
    %v6915 = vld [vmem:[%s6914] sm:$0xf]
    %v6916 = vld [vmem:[%s6914 + $0x4] sm:$0xf]
    %v6917 = vld [vmem:[%s6914 + $0x8] sm:$0xf]
    %v6918 = vld [vmem:[%s6914 + $0xc] sm:$0xf]
    %v6919 = vld [vmem:[%s6914 + $0x10] sm:$0xf]
    %v6920 = vld [vmem:[%s6914 + $0x14] sm:$0xf]
    %v6921 = vld [vmem:[%s6914 + $0x18] sm:$0xf]
    %v6922 = vld [vmem:[%s6914 + $0x1c] sm:$0xf]
    %v6923 = vld [vmem:[%s6914 + $0x20] sm:$0xf]
    %v6924 = vld [vmem:[%s6914 + $0x24] sm:$0xf]
    %v6925 = vld [vmem:[%s6914 + $0x28] sm:$0xf]
    %v6926 = vld [vmem:[%s6914 + $0x2c] sm:$0xf]
    %v6927 = vld [vmem:[%s6914 + $0x30] sm:$0xf]
    %v6928 = vld [vmem:[%s6914 + $0x34] sm:$0xf]
    %v6929 = vld [vmem:[%s6914 + $0x38] sm:$0xf]
    %v6930 = vld [vmem:[%s6914 + $0x3c] sm:$0xf]
    %v6931 = vrot.slane %v6444, 3
    %v6949 = vunpack.c.l.b16 %v6915
    %v6950 = vunpack.c.l.b16 %v6916
    %v6951 = vunpack.c.l.b16 %v6917
    %v6952 = vunpack.c.l.b16 %v6918
    %v6953 = vunpack.c.l.b16 %v6919
    %v6954 = vunpack.c.l.b16 %v6920
    %v6955 = vunpack.c.l.b16 %v6921
    %v6956 = vunpack.c.l.b16 %v6922
    %v6957 = vunpack.c.l.b16 %v6923
    %v6958 = vunpack.c.l.b16 %v6924
    %v6959 = vunpack.c.l.b16 %v6925
    %v6960 = vunpack.c.l.b16 %v6926
    %v6961 = vunpack.c.l.b16 %v6927
    %v6962 = vunpack.c.l.b16 %v6928
    %v6963 = vunpack.c.l.b16 %v6929
    %v6964 = vunpack.c.l.b16 %v6930
    %v6965 = vpack.c.b16 %v6950, %v6949
    %v6966 = vpack.c.b16 %v6952, %v6951
    %v6967 = vpack.c.b16 %v6954, %v6953
    %v6968 = vpack.c.b16 %v6956, %v6955
    %v6969 = vpack.c.b16 %v6958, %v6957
    %v6970 = vpack.c.b16 %v6960, %v6959
    %v6971 = vpack.c.b16 %v6962, %v6961
    %v6972 = vpack.c.b16 %v6964, %v6963
    %6981 = vmatpush.bf16.msra.mxu0 %v6972
    %6982 = vmatpush.bf16.msra.mxu0 %v6971
    %6983 = vmatpush.bf16.msra.mxu0 %v6970
    %6984 = vmatpush.bf16.msra.mxu0 %v6969
    %6985 = vmatpush.bf16.msra.mxu0 %v6968
    %6986 = vmatpush.bf16.msra.mxu0 %v6967
    %6987 = vmatpush.bf16.msra.mxu0 %v6966
    %6988 = vmatpush.bf16.msra.mxu0 %v6965
    %6989 = vmatmul.bf16.gmra.mxu0 %v6931
    %v6990 = vpop.f32.mrf.mxu0
    %v6991 = vadd.f32 0.0, %v6990
    %v6992 = vpop.f32.mrf.mxu0
    %6993 = vdwg.mxu0
    %v6994 = vadd.f32 %v6913, %v6991
    %s6995 = scalar_lea.vmem [#allocation28], 3072
    %v6996 = vld [vmem:[%s6995] sm:$0xf]
    %v6997 = vld [vmem:[%s6995 + $0x4] sm:$0xf]
    %v6998 = vld [vmem:[%s6995 + $0x8] sm:$0xf]
    %v6999 = vld [vmem:[%s6995 + $0xc] sm:$0xf]
    %v7000 = vld [vmem:[%s6995 + $0x10] sm:$0xf]
    %v7001 = vld [vmem:[%s6995 + $0x14] sm:$0xf]
    %v7002 = vld [vmem:[%s6995 + $0x18] sm:$0xf]
    %v7003 = vld [vmem:[%s6995 + $0x1c] sm:$0xf]
    %v7004 = vld [vmem:[%s6995 + $0x20] sm:$0xf]
    %v7005 = vld [vmem:[%s6995 + $0x24] sm:$0xf]
    %v7006 = vld [vmem:[%s6995 + $0x28] sm:$0xf]
    %v7007 = vld [vmem:[%s6995 + $0x2c] sm:$0xf]
    %v7008 = vld [vmem:[%s6995 + $0x30] sm:$0xf]
    %v7009 = vld [vmem:[%s6995 + $0x34] sm:$0xf]
    %v7010 = vld [vmem:[%s6995 + $0x38] sm:$0xf]
    %v7011 = vld [vmem:[%s6995 + $0x3c] sm:$0xf]
    %v7028 = vunpack.c.l.b16 %v6996
    %v7029 = vunpack.c.l.b16 %v6997
    %v7030 = vunpack.c.l.b16 %v6998
    %v7031 = vunpack.c.l.b16 %v6999
    %v7032 = vunpack.c.l.b16 %v7000
    %v7033 = vunpack.c.l.b16 %v7001
    %v7034 = vunpack.c.l.b16 %v7002
    %v7035 = vunpack.c.l.b16 %v7003
    %v7036 = vunpack.c.l.b16 %v7004
    %v7037 = vunpack.c.l.b16 %v7005
    %v7038 = vunpack.c.l.b16 %v7006
    %v7039 = vunpack.c.l.b16 %v7007
    %v7040 = vunpack.c.l.b16 %v7008
    %v7041 = vunpack.c.l.b16 %v7009
    %v7042 = vunpack.c.l.b16 %v7010
    %v7043 = vunpack.c.l.b16 %v7011
    %v7044 = vpack.c.b16 %v7029, %v7028
    %v7045 = vpack.c.b16 %v7031, %v7030
    %v7046 = vpack.c.b16 %v7033, %v7032
    %v7047 = vpack.c.b16 %v7035, %v7034
    %v7048 = vpack.c.b16 %v7037, %v7036
    %v7049 = vpack.c.b16 %v7039, %v7038
    %v7050 = vpack.c.b16 %v7041, %v7040
    %v7051 = vpack.c.b16 %v7043, %v7042
    %7060 = vmatpush.bf16.msra.mxu0 %v7051
    %7061 = vmatpush.bf16.msra.mxu0 %v7050
    %7062 = vmatpush.bf16.msra.mxu0 %v7049
    %7063 = vmatpush.bf16.msra.mxu0 %v7048
    %7064 = vmatpush.bf16.msra.mxu0 %v7047
    %7065 = vmatpush.bf16.msra.mxu0 %v7046
    %7066 = vmatpush.bf16.msra.mxu0 %v7045
    %7067 = vmatpush.bf16.msra.mxu0 %v7044
    %7068 = vmatmul.bf16.gmra.mxu0 %v3090
    %v7069 = vpop.f32.mrf.mxu0
    %v7070 = vadd.f32 0.0, %v7069
    %v7071 = vpop.f32.mrf.mxu0
    %7072 = vdwg.mxu0
    %v7073 = vadd.f32 %v6994, %v7070
    %s7074 = scalar_lea.vmem [#allocation28], 3136
    %v7075 = vld [vmem:[%s7074] sm:$0xf]
    %v7076 = vld [vmem:[%s7074 + $0x4] sm:$0xf]
    %v7077 = vld [vmem:[%s7074 + $0x8] sm:$0xf]
    %v7078 = vld [vmem:[%s7074 + $0xc] sm:$0xf]
    %v7079 = vld [vmem:[%s7074 + $0x10] sm:$0xf]
    %v7080 = vld [vmem:[%s7074 + $0x14] sm:$0xf]
    %v7081 = vld [vmem:[%s7074 + $0x18] sm:$0xf]
    %v7082 = vld [vmem:[%s7074 + $0x1c] sm:$0xf]
    %v7083 = vld [vmem:[%s7074 + $0x20] sm:$0xf]
    %v7084 = vld [vmem:[%s7074 + $0x24] sm:$0xf]
    %v7085 = vld [vmem:[%s7074 + $0x28] sm:$0xf]
    %v7086 = vld [vmem:[%s7074 + $0x2c] sm:$0xf]
    %v7087 = vld [vmem:[%s7074 + $0x30] sm:$0xf]
    %v7088 = vld [vmem:[%s7074 + $0x34] sm:$0xf]
    %v7089 = vld [vmem:[%s7074 + $0x38] sm:$0xf]
    %v7090 = vld [vmem:[%s7074 + $0x3c] sm:$0xf]
    %v7092 = vunpack.c.l.b16 %v3090
    %v7093 = vpack.c.b16 %v7092, %v7092
    %v7095 = vshrl.u32 %v7093, 16
    %v7114 = vunpack.c.l.b16 %v7075
    %v7115 = vunpack.c.l.b16 %v7076
    %v7116 = vunpack.c.l.b16 %v7077
    %v7117 = vunpack.c.l.b16 %v7078
    %v7118 = vunpack.c.l.b16 %v7079
    %v7119 = vunpack.c.l.b16 %v7080
    %v7120 = vunpack.c.l.b16 %v7081
    %v7121 = vunpack.c.l.b16 %v7082
    %v7122 = vunpack.c.l.b16 %v7083
    %v7123 = vunpack.c.l.b16 %v7084
    %v7124 = vunpack.c.l.b16 %v7085
    %v7125 = vunpack.c.l.b16 %v7086
    %v7126 = vunpack.c.l.b16 %v7087
    %v7127 = vunpack.c.l.b16 %v7088
    %v7128 = vunpack.c.l.b16 %v7089
    %v7129 = vunpack.c.l.b16 %v7090
    %v7130 = vpack.c.b16 %v7115, %v7114
    %v7131 = vpack.c.b16 %v7117, %v7116
    %v7132 = vpack.c.b16 %v7119, %v7118
    %v7133 = vpack.c.b16 %v7121, %v7120
    %v7134 = vpack.c.b16 %v7123, %v7122
    %v7135 = vpack.c.b16 %v7125, %v7124
    %v7136 = vpack.c.b16 %v7127, %v7126
    %v7137 = vpack.c.b16 %v7129, %v7128
    %7146 = vmatpush.bf16.msra.mxu0 %v7137
    %7147 = vmatpush.bf16.msra.mxu0 %v7136
    %7148 = vmatpush.bf16.msra.mxu0 %v7135
    %7149 = vmatpush.bf16.msra.mxu0 %v7134
    %7150 = vmatpush.bf16.msra.mxu0 %v7133
    %7151 = vmatpush.bf16.msra.mxu0 %v7132
    %7152 = vmatpush.bf16.msra.mxu0 %v7131
    %7153 = vmatpush.bf16.msra.mxu0 %v7130
    %7154 = vmatmul.bf16.gmra.mxu0 %v7095
    %v7155 = vpop.f32.mrf.mxu0
    %v7156 = vadd.f32 0.0, %v7155
    %v7157 = vpop.f32.mrf.mxu0
    %7158 = vdwg.mxu0
    %v7159 = vadd.f32 %v7073, %v7156
    %s7160 = scalar_lea.vmem [#allocation28], 3200
    %v7161 = vld [vmem:[%s7160] sm:$0xf]
    %v7162 = vld [vmem:[%s7160 + $0x4] sm:$0xf]
    %v7163 = vld [vmem:[%s7160 + $0x8] sm:$0xf]
    %v7164 = vld [vmem:[%s7160 + $0xc] sm:$0xf]
    %v7165 = vld [vmem:[%s7160 + $0x10] sm:$0xf]
    %v7166 = vld [vmem:[%s7160 + $0x14] sm:$0xf]
    %v7167 = vld [vmem:[%s7160 + $0x18] sm:$0xf]
    %v7168 = vld [vmem:[%s7160 + $0x1c] sm:$0xf]
    %v7169 = vld [vmem:[%s7160 + $0x20] sm:$0xf]
    %v7170 = vld [vmem:[%s7160 + $0x24] sm:$0xf]
    %v7171 = vld [vmem:[%s7160 + $0x28] sm:$0xf]
    %v7172 = vld [vmem:[%s7160 + $0x2c] sm:$0xf]
    %v7173 = vld [vmem:[%s7160 + $0x30] sm:$0xf]
    %v7174 = vld [vmem:[%s7160 + $0x34] sm:$0xf]
    %v7175 = vld [vmem:[%s7160 + $0x38] sm:$0xf]
    %v7176 = vld [vmem:[%s7160 + $0x3c] sm:$0xf]
    %v7177 = vrot.slane %v7093, 1
    %v7195 = vunpack.c.l.b16 %v7161
    %v7196 = vunpack.c.l.b16 %v7162
    %v7197 = vunpack.c.l.b16 %v7163
    %v7198 = vunpack.c.l.b16 %v7164
    %v7199 = vunpack.c.l.b16 %v7165
    %v7200 = vunpack.c.l.b16 %v7166
    %v7201 = vunpack.c.l.b16 %v7167
    %v7202 = vunpack.c.l.b16 %v7168
    %v7203 = vunpack.c.l.b16 %v7169
    %v7204 = vunpack.c.l.b16 %v7170
    %v7205 = vunpack.c.l.b16 %v7171
    %v7206 = vunpack.c.l.b16 %v7172
    %v7207 = vunpack.c.l.b16 %v7173
    %v7208 = vunpack.c.l.b16 %v7174
    %v7209 = vunpack.c.l.b16 %v7175
    %v7210 = vunpack.c.l.b16 %v7176
    %v7211 = vpack.c.b16 %v7196, %v7195
    %v7212 = vpack.c.b16 %v7198, %v7197
    %v7213 = vpack.c.b16 %v7200, %v7199
    %v7214 = vpack.c.b16 %v7202, %v7201
    %v7215 = vpack.c.b16 %v7204, %v7203
    %v7216 = vpack.c.b16 %v7206, %v7205
    %v7217 = vpack.c.b16 %v7208, %v7207
    %v7218 = vpack.c.b16 %v7210, %v7209
    %7227 = vmatpush.bf16.msra.mxu0 %v7218
    %7228 = vmatpush.bf16.msra.mxu0 %v7217
    %7229 = vmatpush.bf16.msra.mxu0 %v7216
    %7230 = vmatpush.bf16.msra.mxu0 %v7215
    %7231 = vmatpush.bf16.msra.mxu0 %v7214
    %7232 = vmatpush.bf16.msra.mxu0 %v7213
    %7233 = vmatpush.bf16.msra.mxu0 %v7212
    %7234 = vmatpush.bf16.msra.mxu0 %v7211
    %7235 = vmatmul.bf16.gmra.mxu0 %v7177
    %v7236 = vpop.f32.mrf.mxu0
    %v7237 = vadd.f32 0.0, %v7236
    %v7238 = vpop.f32.mrf.mxu0
    %7239 = vdwg.mxu0
    %v7240 = vadd.f32 %v7159, %v7237
    %s7241 = scalar_lea.vmem [#allocation28], 3264
    %v7242 = vld [vmem:[%s7241] sm:$0xf]
    %v7243 = vld [vmem:[%s7241 + $0x4] sm:$0xf]
    %v7244 = vld [vmem:[%s7241 + $0x8] sm:$0xf]
    %v7245 = vld [vmem:[%s7241 + $0xc] sm:$0xf]
    %v7246 = vld [vmem:[%s7241 + $0x10] sm:$0xf]
    %v7247 = vld [vmem:[%s7241 + $0x14] sm:$0xf]
    %v7248 = vld [vmem:[%s7241 + $0x18] sm:$0xf]
    %v7249 = vld [vmem:[%s7241 + $0x1c] sm:$0xf]
    %v7250 = vld [vmem:[%s7241 + $0x20] sm:$0xf]
    %v7251 = vld [vmem:[%s7241 + $0x24] sm:$0xf]
    %v7252 = vld [vmem:[%s7241 + $0x28] sm:$0xf]
    %v7253 = vld [vmem:[%s7241 + $0x2c] sm:$0xf]
    %v7254 = vld [vmem:[%s7241 + $0x30] sm:$0xf]
    %v7255 = vld [vmem:[%s7241 + $0x34] sm:$0xf]
    %v7256 = vld [vmem:[%s7241 + $0x38] sm:$0xf]
    %v7257 = vld [vmem:[%s7241 + $0x3c] sm:$0xf]
    %v7258 = vrot.slane %v7095, 1
    %v7276 = vunpack.c.l.b16 %v7242
    %v7277 = vunpack.c.l.b16 %v7243
    %v7278 = vunpack.c.l.b16 %v7244
    %v7279 = vunpack.c.l.b16 %v7245
    %v7280 = vunpack.c.l.b16 %v7246
    %v7281 = vunpack.c.l.b16 %v7247
    %v7282 = vunpack.c.l.b16 %v7248
    %v7283 = vunpack.c.l.b16 %v7249
    %v7284 = vunpack.c.l.b16 %v7250
    %v7285 = vunpack.c.l.b16 %v7251
    %v7286 = vunpack.c.l.b16 %v7252
    %v7287 = vunpack.c.l.b16 %v7253
    %v7288 = vunpack.c.l.b16 %v7254
    %v7289 = vunpack.c.l.b16 %v7255
    %v7290 = vunpack.c.l.b16 %v7256
    %v7291 = vunpack.c.l.b16 %v7257
    %v7292 = vpack.c.b16 %v7277, %v7276
    %v7293 = vpack.c.b16 %v7279, %v7278
    %v7294 = vpack.c.b16 %v7281, %v7280
    %v7295 = vpack.c.b16 %v7283, %v7282
    %v7296 = vpack.c.b16 %v7285, %v7284
    %v7297 = vpack.c.b16 %v7287, %v7286
    %v7298 = vpack.c.b16 %v7289, %v7288
    %v7299 = vpack.c.b16 %v7291, %v7290
    %7308 = vmatpush.bf16.msra.mxu0 %v7299
    %7309 = vmatpush.bf16.msra.mxu0 %v7298
    %7310 = vmatpush.bf16.msra.mxu0 %v7297
    %7311 = vmatpush.bf16.msra.mxu0 %v7296
    %7312 = vmatpush.bf16.msra.mxu0 %v7295
    %7313 = vmatpush.bf16.msra.mxu0 %v7294
    %7314 = vmatpush.bf16.msra.mxu0 %v7293
    %7315 = vmatpush.bf16.msra.mxu0 %v7292
    %7316 = vmatmul.bf16.gmra.mxu0 %v7258
    %v7317 = vpop.f32.mrf.mxu0
    %v7318 = vadd.f32 0.0, %v7317
    %v7319 = vpop.f32.mrf.mxu0
    %7320 = vdwg.mxu0
    %v7321 = vadd.f32 %v7240, %v7318
    %s7322 = scalar_lea.vmem [#allocation28], 3328
    %v7323 = vld [vmem:[%s7322] sm:$0xf]
    %v7324 = vld [vmem:[%s7322 + $0x4] sm:$0xf]
    %v7325 = vld [vmem:[%s7322 + $0x8] sm:$0xf]
    %v7326 = vld [vmem:[%s7322 + $0xc] sm:$0xf]
    %v7327 = vld [vmem:[%s7322 + $0x10] sm:$0xf]
    %v7328 = vld [vmem:[%s7322 + $0x14] sm:$0xf]
    %v7329 = vld [vmem:[%s7322 + $0x18] sm:$0xf]
    %v7330 = vld [vmem:[%s7322 + $0x1c] sm:$0xf]
    %v7331 = vld [vmem:[%s7322 + $0x20] sm:$0xf]
    %v7332 = vld [vmem:[%s7322 + $0x24] sm:$0xf]
    %v7333 = vld [vmem:[%s7322 + $0x28] sm:$0xf]
    %v7334 = vld [vmem:[%s7322 + $0x2c] sm:$0xf]
    %v7335 = vld [vmem:[%s7322 + $0x30] sm:$0xf]
    %v7336 = vld [vmem:[%s7322 + $0x34] sm:$0xf]
    %v7337 = vld [vmem:[%s7322 + $0x38] sm:$0xf]
    %v7338 = vld [vmem:[%s7322 + $0x3c] sm:$0xf]
    %v7339 = vrot.slane %v7093, 2
    %v7357 = vunpack.c.l.b16 %v7323
    %v7358 = vunpack.c.l.b16 %v7324
    %v7359 = vunpack.c.l.b16 %v7325
    %v7360 = vunpack.c.l.b16 %v7326
    %v7361 = vunpack.c.l.b16 %v7327
    %v7362 = vunpack.c.l.b16 %v7328
    %v7363 = vunpack.c.l.b16 %v7329
    %v7364 = vunpack.c.l.b16 %v7330
    %v7365 = vunpack.c.l.b16 %v7331
    %v7366 = vunpack.c.l.b16 %v7332
    %v7367 = vunpack.c.l.b16 %v7333
    %v7368 = vunpack.c.l.b16 %v7334
    %v7369 = vunpack.c.l.b16 %v7335
    %v7370 = vunpack.c.l.b16 %v7336
    %v7371 = vunpack.c.l.b16 %v7337
    %v7372 = vunpack.c.l.b16 %v7338
    %v7373 = vpack.c.b16 %v7358, %v7357
    %v7374 = vpack.c.b16 %v7360, %v7359
    %v7375 = vpack.c.b16 %v7362, %v7361
    %v7376 = vpack.c.b16 %v7364, %v7363
    %v7377 = vpack.c.b16 %v7366, %v7365
    %v7378 = vpack.c.b16 %v7368, %v7367
    %v7379 = vpack.c.b16 %v7370, %v7369
    %v7380 = vpack.c.b16 %v7372, %v7371
    %7389 = vmatpush.bf16.msra.mxu0 %v7380
    %7390 = vmatpush.bf16.msra.mxu0 %v7379
    %7391 = vmatpush.bf16.msra.mxu0 %v7378
    %7392 = vmatpush.bf16.msra.mxu0 %v7377
    %7393 = vmatpush.bf16.msra.mxu0 %v7376
    %7394 = vmatpush.bf16.msra.mxu0 %v7375
    %7395 = vmatpush.bf16.msra.mxu0 %v7374
    %7396 = vmatpush.bf16.msra.mxu0 %v7373
    %7397 = vmatmul.bf16.gmra.mxu0 %v7339
    %v7398 = vpop.f32.mrf.mxu0
    %v7399 = vadd.f32 0.0, %v7398
    %v7400 = vpop.f32.mrf.mxu0
    %7401 = vdwg.mxu0
    %v7402 = vadd.f32 %v7321, %v7399
    %s7403 = scalar_lea.vmem [#allocation28], 3392
    %v7404 = vld [vmem:[%s7403] sm:$0xf]
    %v7405 = vld [vmem:[%s7403 + $0x4] sm:$0xf]
    %v7406 = vld [vmem:[%s7403 + $0x8] sm:$0xf]
    %v7407 = vld [vmem:[%s7403 + $0xc] sm:$0xf]
    %v7408 = vld [vmem:[%s7403 + $0x10] sm:$0xf]
    %v7409 = vld [vmem:[%s7403 + $0x14] sm:$0xf]
    %v7410 = vld [vmem:[%s7403 + $0x18] sm:$0xf]
    %v7411 = vld [vmem:[%s7403 + $0x1c] sm:$0xf]
    %v7412 = vld [vmem:[%s7403 + $0x20] sm:$0xf]
    %v7413 = vld [vmem:[%s7403 + $0x24] sm:$0xf]
    %v7414 = vld [vmem:[%s7403 + $0x28] sm:$0xf]
    %v7415 = vld [vmem:[%s7403 + $0x2c] sm:$0xf]
    %v7416 = vld [vmem:[%s7403 + $0x30] sm:$0xf]
    %v7417 = vld [vmem:[%s7403 + $0x34] sm:$0xf]
    %v7418 = vld [vmem:[%s7403 + $0x38] sm:$0xf]
    %v7419 = vld [vmem:[%s7403 + $0x3c] sm:$0xf]
    %v7420 = vrot.slane %v7095, 2
    %v7438 = vunpack.c.l.b16 %v7404
    %v7439 = vunpack.c.l.b16 %v7405
    %v7440 = vunpack.c.l.b16 %v7406
    %v7441 = vunpack.c.l.b16 %v7407
    %v7442 = vunpack.c.l.b16 %v7408
    %v7443 = vunpack.c.l.b16 %v7409
    %v7444 = vunpack.c.l.b16 %v7410
    %v7445 = vunpack.c.l.b16 %v7411
    %v7446 = vunpack.c.l.b16 %v7412
    %v7447 = vunpack.c.l.b16 %v7413
    %v7448 = vunpack.c.l.b16 %v7414
    %v7449 = vunpack.c.l.b16 %v7415
    %v7450 = vunpack.c.l.b16 %v7416
    %v7451 = vunpack.c.l.b16 %v7417
    %v7452 = vunpack.c.l.b16 %v7418
    %v7453 = vunpack.c.l.b16 %v7419
    %v7454 = vpack.c.b16 %v7439, %v7438
    %v7455 = vpack.c.b16 %v7441, %v7440
    %v7456 = vpack.c.b16 %v7443, %v7442
    %v7457 = vpack.c.b16 %v7445, %v7444
    %v7458 = vpack.c.b16 %v7447, %v7446
    %v7459 = vpack.c.b16 %v7449, %v7448
    %v7460 = vpack.c.b16 %v7451, %v7450
    %v7461 = vpack.c.b16 %v7453, %v7452
    %7470 = vmatpush.bf16.msra.mxu0 %v7461
    %7471 = vmatpush.bf16.msra.mxu0 %v7460
    %7472 = vmatpush.bf16.msra.mxu0 %v7459
    %7473 = vmatpush.bf16.msra.mxu0 %v7458
    %7474 = vmatpush.bf16.msra.mxu0 %v7457
    %7475 = vmatpush.bf16.msra.mxu0 %v7456
    %7476 = vmatpush.bf16.msra.mxu0 %v7455
    %7477 = vmatpush.bf16.msra.mxu0 %v7454
    %7478 = vmatmul.bf16.gmra.mxu0 %v7420
    %v7479 = vpop.f32.mrf.mxu0
    %v7480 = vadd.f32 0.0, %v7479
    %v7481 = vpop.f32.mrf.mxu0
    %7482 = vdwg.mxu0
    %v7483 = vadd.f32 %v7402, %v7480
    %s7484 = scalar_lea.vmem [#allocation28], 3456
    %v7485 = vld [vmem:[%s7484] sm:$0xf]
    %v7486 = vld [vmem:[%s7484 + $0x4] sm:$0xf]
    %v7487 = vld [vmem:[%s7484 + $0x8] sm:$0xf]
    %v7488 = vld [vmem:[%s7484 + $0xc] sm:$0xf]
    %v7489 = vld [vmem:[%s7484 + $0x10] sm:$0xf]
    %v7490 = vld [vmem:[%s7484 + $0x14] sm:$0xf]
    %v7491 = vld [vmem:[%s7484 + $0x18] sm:$0xf]
    %v7492 = vld [vmem:[%s7484 + $0x1c] sm:$0xf]
    %v7493 = vld [vmem:[%s7484 + $0x20] sm:$0xf]
    %v7494 = vld [vmem:[%s7484 + $0x24] sm:$0xf]
    %v7495 = vld [vmem:[%s7484 + $0x28] sm:$0xf]
    %v7496 = vld [vmem:[%s7484 + $0x2c] sm:$0xf]
    %v7497 = vld [vmem:[%s7484 + $0x30] sm:$0xf]
    %v7498 = vld [vmem:[%s7484 + $0x34] sm:$0xf]
    %v7499 = vld [vmem:[%s7484 + $0x38] sm:$0xf]
    %v7500 = vld [vmem:[%s7484 + $0x3c] sm:$0xf]
    %v7501 = vrot.slane %v7093, 3
    %v7519 = vunpack.c.l.b16 %v7485
    %v7520 = vunpack.c.l.b16 %v7486
    %v7521 = vunpack.c.l.b16 %v7487
    %v7522 = vunpack.c.l.b16 %v7488
    %v7523 = vunpack.c.l.b16 %v7489
    %v7524 = vunpack.c.l.b16 %v7490
    %v7525 = vunpack.c.l.b16 %v7491
    %v7526 = vunpack.c.l.b16 %v7492
    %v7527 = vunpack.c.l.b16 %v7493
    %v7528 = vunpack.c.l.b16 %v7494
    %v7529 = vunpack.c.l.b16 %v7495
    %v7530 = vunpack.c.l.b16 %v7496
    %v7531 = vunpack.c.l.b16 %v7497
    %v7532 = vunpack.c.l.b16 %v7498
    %v7533 = vunpack.c.l.b16 %v7499
    %v7534 = vunpack.c.l.b16 %v7500
    %v7535 = vpack.c.b16 %v7520, %v7519
    %v7536 = vpack.c.b16 %v7522, %v7521
    %v7537 = vpack.c.b16 %v7524, %v7523
    %v7538 = vpack.c.b16 %v7526, %v7525
    %v7539 = vpack.c.b16 %v7528, %v7527
    %v7540 = vpack.c.b16 %v7530, %v7529
    %v7541 = vpack.c.b16 %v7532, %v7531
    %v7542 = vpack.c.b16 %v7534, %v7533
    %7551 = vmatpush.bf16.msra.mxu0 %v7542
    %7552 = vmatpush.bf16.msra.mxu0 %v7541
    %7553 = vmatpush.bf16.msra.mxu0 %v7540
    %7554 = vmatpush.bf16.msra.mxu0 %v7539
    %7555 = vmatpush.bf16.msra.mxu0 %v7538
    %7556 = vmatpush.bf16.msra.mxu0 %v7537
    %7557 = vmatpush.bf16.msra.mxu0 %v7536
    %7558 = vmatpush.bf16.msra.mxu0 %v7535
    %7559 = vmatmul.bf16.gmra.mxu0 %v7501
    %v7560 = vpop.f32.mrf.mxu0
    %v7561 = vadd.f32 0.0, %v7560
    %v7562 = vpop.f32.mrf.mxu0
    %7563 = vdwg.mxu0
    %v7564 = vadd.f32 %v7483, %v7561
    %s7565 = scalar_lea.vmem [#allocation28], 3520
    %v7566 = vld [vmem:[%s7565] sm:$0xf]
    %v7567 = vld [vmem:[%s7565 + $0x4] sm:$0xf]
    %v7568 = vld [vmem:[%s7565 + $0x8] sm:$0xf]
    %v7569 = vld [vmem:[%s7565 + $0xc] sm:$0xf]
    %v7570 = vld [vmem:[%s7565 + $0x10] sm:$0xf]
    %v7571 = vld [vmem:[%s7565 + $0x14] sm:$0xf]
    %v7572 = vld [vmem:[%s7565 + $0x18] sm:$0xf]
    %v7573 = vld [vmem:[%s7565 + $0x1c] sm:$0xf]
    %v7574 = vld [vmem:[%s7565 + $0x20] sm:$0xf]
    %v7575 = vld [vmem:[%s7565 + $0x24] sm:$0xf]
    %v7576 = vld [vmem:[%s7565 + $0x28] sm:$0xf]
    %v7577 = vld [vmem:[%s7565 + $0x2c] sm:$0xf]
    %v7578 = vld [vmem:[%s7565 + $0x30] sm:$0xf]
    %v7579 = vld [vmem:[%s7565 + $0x34] sm:$0xf]
    %v7580 = vld [vmem:[%s7565 + $0x38] sm:$0xf]
    %v7581 = vld [vmem:[%s7565 + $0x3c] sm:$0xf]
    %v7582 = vrot.slane %v7095, 3
    %v7600 = vunpack.c.l.b16 %v7566
    %v7601 = vunpack.c.l.b16 %v7567
    %v7602 = vunpack.c.l.b16 %v7568
    %v7603 = vunpack.c.l.b16 %v7569
    %v7604 = vunpack.c.l.b16 %v7570
    %v7605 = vunpack.c.l.b16 %v7571
    %v7606 = vunpack.c.l.b16 %v7572
    %v7607 = vunpack.c.l.b16 %v7573
    %v7608 = vunpack.c.l.b16 %v7574
    %v7609 = vunpack.c.l.b16 %v7575
    %v7610 = vunpack.c.l.b16 %v7576
    %v7611 = vunpack.c.l.b16 %v7577
    %v7612 = vunpack.c.l.b16 %v7578
    %v7613 = vunpack.c.l.b16 %v7579
    %v7614 = vunpack.c.l.b16 %v7580
    %v7615 = vunpack.c.l.b16 %v7581
    %v7616 = vpack.c.b16 %v7601, %v7600
    %v7617 = vpack.c.b16 %v7603, %v7602
    %v7618 = vpack.c.b16 %v7605, %v7604
    %v7619 = vpack.c.b16 %v7607, %v7606
    %v7620 = vpack.c.b16 %v7609, %v7608
    %v7621 = vpack.c.b16 %v7611, %v7610
    %v7622 = vpack.c.b16 %v7613, %v7612
    %v7623 = vpack.c.b16 %v7615, %v7614
    %7632 = vmatpush.bf16.msra.mxu0 %v7623
    %7633 = vmatpush.bf16.msra.mxu0 %v7622
    %7634 = vmatpush.bf16.msra.mxu0 %v7621
    %7635 = vmatpush.bf16.msra.mxu0 %v7620
    %7636 = vmatpush.bf16.msra.mxu0 %v7619
    %7637 = vmatpush.bf16.msra.mxu0 %v7618
    %7638 = vmatpush.bf16.msra.mxu0 %v7617
    %7639 = vmatpush.bf16.msra.mxu0 %v7616
    %7640 = vmatmul.bf16.gmra.mxu0 %v7582
    %v7641 = vpop.f32.mrf.mxu0
    %v7642 = vadd.f32 0.0, %v7641
    %v7643 = vpop.f32.mrf.mxu0
    %7644 = vdwg.mxu0
    %v7645 = vadd.f32 %v7564, %v7642
    %s7646 = scalar_lea.vmem [#allocation28], 3584
    %v7647 = vld [vmem:[%s7646] sm:$0xf]
    %v7648 = vld [vmem:[%s7646 + $0x4] sm:$0xf]
    %v7649 = vld [vmem:[%s7646 + $0x8] sm:$0xf]
    %v7650 = vld [vmem:[%s7646 + $0xc] sm:$0xf]
    %v7651 = vld [vmem:[%s7646 + $0x10] sm:$0xf]
    %v7652 = vld [vmem:[%s7646 + $0x14] sm:$0xf]
    %v7653 = vld [vmem:[%s7646 + $0x18] sm:$0xf]
    %v7654 = vld [vmem:[%s7646 + $0x1c] sm:$0xf]
    %v7655 = vld [vmem:[%s7646 + $0x20] sm:$0xf]
    %v7656 = vld [vmem:[%s7646 + $0x24] sm:$0xf]
    %v7657 = vld [vmem:[%s7646 + $0x28] sm:$0xf]
    %v7658 = vld [vmem:[%s7646 + $0x2c] sm:$0xf]
    %v7659 = vld [vmem:[%s7646 + $0x30] sm:$0xf]
    %v7660 = vld [vmem:[%s7646 + $0x34] sm:$0xf]
    %v7661 = vld [vmem:[%s7646 + $0x38] sm:$0xf]
    %v7662 = vld [vmem:[%s7646 + $0x3c] sm:$0xf]
    %v7679 = vunpack.c.l.b16 %v7647
    %v7680 = vunpack.c.l.b16 %v7648
    %v7681 = vunpack.c.l.b16 %v7649
    %v7682 = vunpack.c.l.b16 %v7650
    %v7683 = vunpack.c.l.b16 %v7651
    %v7684 = vunpack.c.l.b16 %v7652
    %v7685 = vunpack.c.l.b16 %v7653
    %v7686 = vunpack.c.l.b16 %v7654
    %v7687 = vunpack.c.l.b16 %v7655
    %v7688 = vunpack.c.l.b16 %v7656
    %v7689 = vunpack.c.l.b16 %v7657
    %v7690 = vunpack.c.l.b16 %v7658
    %v7691 = vunpack.c.l.b16 %v7659
    %v7692 = vunpack.c.l.b16 %v7660
    %v7693 = vunpack.c.l.b16 %v7661
    %v7694 = vunpack.c.l.b16 %v7662
    %v7695 = vpack.c.b16 %v7680, %v7679
    %v7696 = vpack.c.b16 %v7682, %v7681
    %v7697 = vpack.c.b16 %v7684, %v7683
    %v7698 = vpack.c.b16 %v7686, %v7685
    %v7699 = vpack.c.b16 %v7688, %v7687
    %v7700 = vpack.c.b16 %v7690, %v7689
    %v7701 = vpack.c.b16 %v7692, %v7691
    %v7702 = vpack.c.b16 %v7694, %v7693
    %7711 = vmatpush.bf16.msra.mxu0 %v7702
    %7712 = vmatpush.bf16.msra.mxu0 %v7701
    %7713 = vmatpush.bf16.msra.mxu0 %v7700
    %7714 = vmatpush.bf16.msra.mxu0 %v7699
    %7715 = vmatpush.bf16.msra.mxu0 %v7698
    %7716 = vmatpush.bf16.msra.mxu0 %v7697
    %7717 = vmatpush.bf16.msra.mxu0 %v7696
    %7718 = vmatpush.bf16.msra.mxu0 %v7695
    %7719 = vmatmul.bf16.gmra.mxu0 %v3091
    %v7720 = vpop.f32.mrf.mxu0
    %v7721 = vadd.f32 0.0, %v7720
    %v7722 = vpop.f32.mrf.mxu0
    %7723 = vdwg.mxu0
    %v7724 = vadd.f32 %v7645, %v7721
    %s7725 = scalar_lea.vmem [#allocation28], 3648
    %v7726 = vld [vmem:[%s7725] sm:$0xf]
    %v7727 = vld [vmem:[%s7725 + $0x4] sm:$0xf]
    %v7728 = vld [vmem:[%s7725 + $0x8] sm:$0xf]
    %v7729 = vld [vmem:[%s7725 + $0xc] sm:$0xf]
    %v7730 = vld [vmem:[%s7725 + $0x10] sm:$0xf]
    %v7731 = vld [vmem:[%s7725 + $0x14] sm:$0xf]
    %v7732 = vld [vmem:[%s7725 + $0x18] sm:$0xf]
    %v7733 = vld [vmem:[%s7725 + $0x1c] sm:$0xf]
    %v7734 = vld [vmem:[%s7725 + $0x20] sm:$0xf]
    %v7735 = vld [vmem:[%s7725 + $0x24] sm:$0xf]
    %v7736 = vld [vmem:[%s7725 + $0x28] sm:$0xf]
    %v7737 = vld [vmem:[%s7725 + $0x2c] sm:$0xf]
    %v7738 = vld [vmem:[%s7725 + $0x30] sm:$0xf]
    %v7739 = vld [vmem:[%s7725 + $0x34] sm:$0xf]
    %v7740 = vld [vmem:[%s7725 + $0x38] sm:$0xf]
    %v7741 = vld [vmem:[%s7725 + $0x3c] sm:$0xf]
    %v7743 = vunpack.c.l.b16 %v3091
    %v7744 = vpack.c.b16 %v7743, %v7743
    %v7746 = vshrl.u32 %v7744, 16
    %v7765 = vunpack.c.l.b16 %v7726
    %v7766 = vunpack.c.l.b16 %v7727
    %v7767 = vunpack.c.l.b16 %v7728
    %v7768 = vunpack.c.l.b16 %v7729
    %v7769 = vunpack.c.l.b16 %v7730
    %v7770 = vunpack.c.l.b16 %v7731
    %v7771 = vunpack.c.l.b16 %v7732
    %v7772 = vunpack.c.l.b16 %v7733
    %v7773 = vunpack.c.l.b16 %v7734
    %v7774 = vunpack.c.l.b16 %v7735
    %v7775 = vunpack.c.l.b16 %v7736
    %v7776 = vunpack.c.l.b16 %v7737
    %v7777 = vunpack.c.l.b16 %v7738
    %v7778 = vunpack.c.l.b16 %v7739
    %v7779 = vunpack.c.l.b16 %v7740
    %v7780 = vunpack.c.l.b16 %v7741
    %v7781 = vpack.c.b16 %v7766, %v7765
    %v7782 = vpack.c.b16 %v7768, %v7767
    %v7783 = vpack.c.b16 %v7770, %v7769
    %v7784 = vpack.c.b16 %v7772, %v7771
    %v7785 = vpack.c.b16 %v7774, %v7773
    %v7786 = vpack.c.b16 %v7776, %v7775
    %v7787 = vpack.c.b16 %v7778, %v7777
    %v7788 = vpack.c.b16 %v7780, %v7779
    %7797 = vmatpush.bf16.msra.mxu0 %v7788
    %7798 = vmatpush.bf16.msra.mxu0 %v7787
    %7799 = vmatpush.bf16.msra.mxu0 %v7786
    %7800 = vmatpush.bf16.msra.mxu0 %v7785
    %7801 = vmatpush.bf16.msra.mxu0 %v7784
    %7802 = vmatpush.bf16.msra.mxu0 %v7783
    %7803 = vmatpush.bf16.msra.mxu0 %v7782
    %7804 = vmatpush.bf16.msra.mxu0 %v7781
    %7805 = vmatmul.bf16.gmra.mxu0 %v7746
    %v7806 = vpop.f32.mrf.mxu0
    %v7807 = vadd.f32 0.0, %v7806
    %v7808 = vpop.f32.mrf.mxu0
    %7809 = vdwg.mxu0
    %v7810 = vadd.f32 %v7724, %v7807
    %s7811 = scalar_lea.vmem [#allocation28], 3712
    %v7812 = vld [vmem:[%s7811] sm:$0xf]
    %v7813 = vld [vmem:[%s7811 + $0x4] sm:$0xf]
    %v7814 = vld [vmem:[%s7811 + $0x8] sm:$0xf]
    %v7815 = vld [vmem:[%s7811 + $0xc] sm:$0xf]
    %v7816 = vld [vmem:[%s7811 + $0x10] sm:$0xf]
    %v7817 = vld [vmem:[%s7811 + $0x14] sm:$0xf]
    %v7818 = vld [vmem:[%s7811 + $0x18] sm:$0xf]
    %v7819 = vld [vmem:[%s7811 + $0x1c] sm:$0xf]
    %v7820 = vld [vmem:[%s7811 + $0x20] sm:$0xf]
    %v7821 = vld [vmem:[%s7811 + $0x24] sm:$0xf]
    %v7822 = vld [vmem:[%s7811 + $0x28] sm:$0xf]
    %v7823 = vld [vmem:[%s7811 + $0x2c] sm:$0xf]
    %v7824 = vld [vmem:[%s7811 + $0x30] sm:$0xf]
    %v7825 = vld [vmem:[%s7811 + $0x34] sm:$0xf]
    %v7826 = vld [vmem:[%s7811 + $0x38] sm:$0xf]
    %v7827 = vld [vmem:[%s7811 + $0x3c] sm:$0xf]
    %v7828 = vrot.slane %v7744, 1
    %v7846 = vunpack.c.l.b16 %v7812
    %v7847 = vunpack.c.l.b16 %v7813
    %v7848 = vunpack.c.l.b16 %v7814
    %v7849 = vunpack.c.l.b16 %v7815
    %v7850 = vunpack.c.l.b16 %v7816
    %v7851 = vunpack.c.l.b16 %v7817
    %v7852 = vunpack.c.l.b16 %v7818
    %v7853 = vunpack.c.l.b16 %v7819
    %v7854 = vunpack.c.l.b16 %v7820
    %v7855 = vunpack.c.l.b16 %v7821
    %v7856 = vunpack.c.l.b16 %v7822
    %v7857 = vunpack.c.l.b16 %v7823
    %v7858 = vunpack.c.l.b16 %v7824
    %v7859 = vunpack.c.l.b16 %v7825
    %v7860 = vunpack.c.l.b16 %v7826
    %v7861 = vunpack.c.l.b16 %v7827
    %v7862 = vpack.c.b16 %v7847, %v7846
    %v7863 = vpack.c.b16 %v7849, %v7848
    %v7864 = vpack.c.b16 %v7851, %v7850
    %v7865 = vpack.c.b16 %v7853, %v7852
    %v7866 = vpack.c.b16 %v7855, %v7854
    %v7867 = vpack.c.b16 %v7857, %v7856
    %v7868 = vpack.c.b16 %v7859, %v7858
    %v7869 = vpack.c.b16 %v7861, %v7860
    %7878 = vmatpush.bf16.msra.mxu0 %v7869
    %7879 = vmatpush.bf16.msra.mxu0 %v7868
    %7880 = vmatpush.bf16.msra.mxu0 %v7867
    %7881 = vmatpush.bf16.msra.mxu0 %v7866
    %7882 = vmatpush.bf16.msra.mxu0 %v7865
    %7883 = vmatpush.bf16.msra.mxu0 %v7864
    %7884 = vmatpush.bf16.msra.mxu0 %v7863
    %7885 = vmatpush.bf16.msra.mxu0 %v7862
    %7886 = vmatmul.bf16.gmra.mxu0 %v7828
    %v7887 = vpop.f32.mrf.mxu0
    %v7888 = vadd.f32 0.0, %v7887
    %v7889 = vpop.f32.mrf.mxu0
    %7890 = vdwg.mxu0
    %v7891 = vadd.f32 %v7810, %v7888
    %s7892 = scalar_lea.vmem [#allocation28], 3776
    %v7893 = vld [vmem:[%s7892] sm:$0xf]
    %v7894 = vld [vmem:[%s7892 + $0x4] sm:$0xf]
    %v7895 = vld [vmem:[%s7892 + $0x8] sm:$0xf]
    %v7896 = vld [vmem:[%s7892 + $0xc] sm:$0xf]
    %v7897 = vld [vmem:[%s7892 + $0x10] sm:$0xf]
    %v7898 = vld [vmem:[%s7892 + $0x14] sm:$0xf]
    %v7899 = vld [vmem:[%s7892 + $0x18] sm:$0xf]
    %v7900 = vld [vmem:[%s7892 + $0x1c] sm:$0xf]
    %v7901 = vld [vmem:[%s7892 + $0x20] sm:$0xf]
    %v7902 = vld [vmem:[%s7892 + $0x24] sm:$0xf]
    %v7903 = vld [vmem:[%s7892 + $0x28] sm:$0xf]
    %v7904 = vld [vmem:[%s7892 + $0x2c] sm:$0xf]
    %v7905 = vld [vmem:[%s7892 + $0x30] sm:$0xf]
    %v7906 = vld [vmem:[%s7892 + $0x34] sm:$0xf]
    %v7907 = vld [vmem:[%s7892 + $0x38] sm:$0xf]
    %v7908 = vld [vmem:[%s7892 + $0x3c] sm:$0xf]
    %v7909 = vrot.slane %v7746, 1
    %v7927 = vunpack.c.l.b16 %v7893
    %v7928 = vunpack.c.l.b16 %v7894
    %v7929 = vunpack.c.l.b16 %v7895
    %v7930 = vunpack.c.l.b16 %v7896
    %v7931 = vunpack.c.l.b16 %v7897
    %v7932 = vunpack.c.l.b16 %v7898
    %v7933 = vunpack.c.l.b16 %v7899
    %v7934 = vunpack.c.l.b16 %v7900
    %v7935 = vunpack.c.l.b16 %v7901
    %v7936 = vunpack.c.l.b16 %v7902
    %v7937 = vunpack.c.l.b16 %v7903
    %v7938 = vunpack.c.l.b16 %v7904
    %v7939 = vunpack.c.l.b16 %v7905
    %v7940 = vunpack.c.l.b16 %v7906
    %v7941 = vunpack.c.l.b16 %v7907
    %v7942 = vunpack.c.l.b16 %v7908
    %v7943 = vpack.c.b16 %v7928, %v7927
    %v7944 = vpack.c.b16 %v7930, %v7929
    %v7945 = vpack.c.b16 %v7932, %v7931
    %v7946 = vpack.c.b16 %v7934, %v7933
    %v7947 = vpack.c.b16 %v7936, %v7935
    %v7948 = vpack.c.b16 %v7938, %v7937
    %v7949 = vpack.c.b16 %v7940, %v7939
    %v7950 = vpack.c.b16 %v7942, %v7941
    %7959 = vmatpush.bf16.msra.mxu0 %v7950
    %7960 = vmatpush.bf16.msra.mxu0 %v7949
    %7961 = vmatpush.bf16.msra.mxu0 %v7948
    %7962 = vmatpush.bf16.msra.mxu0 %v7947
    %7963 = vmatpush.bf16.msra.mxu0 %v7946
    %7964 = vmatpush.bf16.msra.mxu0 %v7945
    %7965 = vmatpush.bf16.msra.mxu0 %v7944
    %7966 = vmatpush.bf16.msra.mxu0 %v7943
    %7967 = vmatmul.bf16.gmra.mxu0 %v7909
    %v7968 = vpop.f32.mrf.mxu0
    %v7969 = vadd.f32 0.0, %v7968
    %v7970 = vpop.f32.mrf.mxu0
    %7971 = vdwg.mxu0
    %v7972 = vadd.f32 %v7891, %v7969
    %s7973 = scalar_lea.vmem [#allocation28], 3840
    %v7974 = vld [vmem:[%s7973] sm:$0xf]
    %v7975 = vld [vmem:[%s7973 + $0x4] sm:$0xf]
    %v7976 = vld [vmem:[%s7973 + $0x8] sm:$0xf]
    %v7977 = vld [vmem:[%s7973 + $0xc] sm:$0xf]
    %v7978 = vld [vmem:[%s7973 + $0x10] sm:$0xf]
    %v7979 = vld [vmem:[%s7973 + $0x14] sm:$0xf]
    %v7980 = vld [vmem:[%s7973 + $0x18] sm:$0xf]
    %v7981 = vld [vmem:[%s7973 + $0x1c] sm:$0xf]
    %v7982 = vld [vmem:[%s7973 + $0x20] sm:$0xf]
    %v7983 = vld [vmem:[%s7973 + $0x24] sm:$0xf]
    %v7984 = vld [vmem:[%s7973 + $0x28] sm:$0xf]
    %v7985 = vld [vmem:[%s7973 + $0x2c] sm:$0xf]
    %v7986 = vld [vmem:[%s7973 + $0x30] sm:$0xf]
    %v7987 = vld [vmem:[%s7973 + $0x34] sm:$0xf]
    %v7988 = vld [vmem:[%s7973 + $0x38] sm:$0xf]
    %v7989 = vld [vmem:[%s7973 + $0x3c] sm:$0xf]
    %v7990 = vrot.slane %v7744, 2
    %v8008 = vunpack.c.l.b16 %v7974
    %v8009 = vunpack.c.l.b16 %v7975
    %v8010 = vunpack.c.l.b16 %v7976
    %v8011 = vunpack.c.l.b16 %v7977
    %v8012 = vunpack.c.l.b16 %v7978
    %v8013 = vunpack.c.l.b16 %v7979
    %v8014 = vunpack.c.l.b16 %v7980
    %v8015 = vunpack.c.l.b16 %v7981
    %v8016 = vunpack.c.l.b16 %v7982
    %v8017 = vunpack.c.l.b16 %v7983
    %v8018 = vunpack.c.l.b16 %v7984
    %v8019 = vunpack.c.l.b16 %v7985
    %v8020 = vunpack.c.l.b16 %v7986
    %v8021 = vunpack.c.l.b16 %v7987
    %v8022 = vunpack.c.l.b16 %v7988
    %v8023 = vunpack.c.l.b16 %v7989
    %v8024 = vpack.c.b16 %v8009, %v8008
    %v8025 = vpack.c.b16 %v8011, %v8010
    %v8026 = vpack.c.b16 %v8013, %v8012
    %v8027 = vpack.c.b16 %v8015, %v8014
    %v8028 = vpack.c.b16 %v8017, %v8016
    %v8029 = vpack.c.b16 %v8019, %v8018
    %v8030 = vpack.c.b16 %v8021, %v8020
    %v8031 = vpack.c.b16 %v8023, %v8022
    %8040 = vmatpush.bf16.msra.mxu0 %v8031
    %8041 = vmatpush.bf16.msra.mxu0 %v8030
    %8042 = vmatpush.bf16.msra.mxu0 %v8029
    %8043 = vmatpush.bf16.msra.mxu0 %v8028
    %8044 = vmatpush.bf16.msra.mxu0 %v8027
    %8045 = vmatpush.bf16.msra.mxu0 %v8026
    %8046 = vmatpush.bf16.msra.mxu0 %v8025
    %8047 = vmatpush.bf16.msra.mxu0 %v8024
    %8048 = vmatmul.bf16.gmra.mxu0 %v7990
    %v8049 = vpop.f32.mrf.mxu0
    %v8050 = vadd.f32 0.0, %v8049
    %v8051 = vpop.f32.mrf.mxu0
    %8052 = vdwg.mxu0
    %v8053 = vadd.f32 %v7972, %v8050
    %s8054 = scalar_lea.vmem [#allocation28], 3904
    %v8055 = vld [vmem:[%s8054] sm:$0xf]
    %v8056 = vld [vmem:[%s8054 + $0x4] sm:$0xf]
    %v8057 = vld [vmem:[%s8054 + $0x8] sm:$0xf]
    %v8058 = vld [vmem:[%s8054 + $0xc] sm:$0xf]
    %v8059 = vld [vmem:[%s8054 + $0x10] sm:$0xf]
    %v8060 = vld [vmem:[%s8054 + $0x14] sm:$0xf]
    %v8061 = vld [vmem:[%s8054 + $0x18] sm:$0xf]
    %v8062 = vld [vmem:[%s8054 + $0x1c] sm:$0xf]
    %v8063 = vld [vmem:[%s8054 + $0x20] sm:$0xf]
    %v8064 = vld [vmem:[%s8054 + $0x24] sm:$0xf]
    %v8065 = vld [vmem:[%s8054 + $0x28] sm:$0xf]
    %v8066 = vld [vmem:[%s8054 + $0x2c] sm:$0xf]
    %v8067 = vld [vmem:[%s8054 + $0x30] sm:$0xf]
    %v8068 = vld [vmem:[%s8054 + $0x34] sm:$0xf]
    %v8069 = vld [vmem:[%s8054 + $0x38] sm:$0xf]
    %v8070 = vld [vmem:[%s8054 + $0x3c] sm:$0xf]
    %v8071 = vrot.slane %v7746, 2
    %v8089 = vunpack.c.l.b16 %v8055
    %v8090 = vunpack.c.l.b16 %v8056
    %v8091 = vunpack.c.l.b16 %v8057
    %v8092 = vunpack.c.l.b16 %v8058
    %v8093 = vunpack.c.l.b16 %v8059
    %v8094 = vunpack.c.l.b16 %v8060
    %v8095 = vunpack.c.l.b16 %v8061
    %v8096 = vunpack.c.l.b16 %v8062
    %v8097 = vunpack.c.l.b16 %v8063
    %v8098 = vunpack.c.l.b16 %v8064
    %v8099 = vunpack.c.l.b16 %v8065
    %v8100 = vunpack.c.l.b16 %v8066
    %v8101 = vunpack.c.l.b16 %v8067
    %v8102 = vunpack.c.l.b16 %v8068
    %v8103 = vunpack.c.l.b16 %v8069
    %v8104 = vunpack.c.l.b16 %v8070
    %v8105 = vpack.c.b16 %v8090, %v8089
    %v8106 = vpack.c.b16 %v8092, %v8091
    %v8107 = vpack.c.b16 %v8094, %v8093
    %v8108 = vpack.c.b16 %v8096, %v8095
    %v8109 = vpack.c.b16 %v8098, %v8097
    %v8110 = vpack.c.b16 %v8100, %v8099
    %v8111 = vpack.c.b16 %v8102, %v8101
    %v8112 = vpack.c.b16 %v8104, %v8103
    %8121 = vmatpush.bf16.msra.mxu0 %v8112
    %8122 = vmatpush.bf16.msra.mxu0 %v8111
    %8123 = vmatpush.bf16.msra.mxu0 %v8110
    %8124 = vmatpush.bf16.msra.mxu0 %v8109
    %8125 = vmatpush.bf16.msra.mxu0 %v8108
    %8126 = vmatpush.bf16.msra.mxu0 %v8107
    %8127 = vmatpush.bf16.msra.mxu0 %v8106
    %8128 = vmatpush.bf16.msra.mxu0 %v8105
    %8129 = vmatmul.bf16.gmra.mxu0 %v8071
    %v8130 = vpop.f32.mrf.mxu0
    %v8131 = vadd.f32 0.0, %v8130
    %v8132 = vpop.f32.mrf.mxu0
    %8133 = vdwg.mxu0
    %v8134 = vadd.f32 %v8053, %v8131
    %s8135 = scalar_lea.vmem [#allocation28], 3968
    %v8136 = vld [vmem:[%s8135] sm:$0xf]
    %v8137 = vld [vmem:[%s8135 + $0x4] sm:$0xf]
    %v8138 = vld [vmem:[%s8135 + $0x8] sm:$0xf]
    %v8139 = vld [vmem:[%s8135 + $0xc] sm:$0xf]
    %v8140 = vld [vmem:[%s8135 + $0x10] sm:$0xf]
    %v8141 = vld [vmem:[%s8135 + $0x14] sm:$0xf]
    %v8142 = vld [vmem:[%s8135 + $0x18] sm:$0xf]
    %v8143 = vld [vmem:[%s8135 + $0x1c] sm:$0xf]
    %v8144 = vld [vmem:[%s8135 + $0x20] sm:$0xf]
    %v8145 = vld [vmem:[%s8135 + $0x24] sm:$0xf]
    %v8146 = vld [vmem:[%s8135 + $0x28] sm:$0xf]
    %v8147 = vld [vmem:[%s8135 + $0x2c] sm:$0xf]
    %v8148 = vld [vmem:[%s8135 + $0x30] sm:$0xf]
    %v8149 = vld [vmem:[%s8135 + $0x34] sm:$0xf]
    %v8150 = vld [vmem:[%s8135 + $0x38] sm:$0xf]
    %v8151 = vld [vmem:[%s8135 + $0x3c] sm:$0xf]
    %v8152 = vrot.slane %v7744, 3
    %v8170 = vunpack.c.l.b16 %v8136
    %v8171 = vunpack.c.l.b16 %v8137
    %v8172 = vunpack.c.l.b16 %v8138
    %v8173 = vunpack.c.l.b16 %v8139
    %v8174 = vunpack.c.l.b16 %v8140
    %v8175 = vunpack.c.l.b16 %v8141
    %v8176 = vunpack.c.l.b16 %v8142
    %v8177 = vunpack.c.l.b16 %v8143
    %v8178 = vunpack.c.l.b16 %v8144
    %v8179 = vunpack.c.l.b16 %v8145
    %v8180 = vunpack.c.l.b16 %v8146
    %v8181 = vunpack.c.l.b16 %v8147
    %v8182 = vunpack.c.l.b16 %v8148
    %v8183 = vunpack.c.l.b16 %v8149
    %v8184 = vunpack.c.l.b16 %v8150
    %v8185 = vunpack.c.l.b16 %v8151
    %v8186 = vpack.c.b16 %v8171, %v8170
    %v8187 = vpack.c.b16 %v8173, %v8172
    %v8188 = vpack.c.b16 %v8175, %v8174
    %v8189 = vpack.c.b16 %v8177, %v8176
    %v8190 = vpack.c.b16 %v8179, %v8178
    %v8191 = vpack.c.b16 %v8181, %v8180
    %v8192 = vpack.c.b16 %v8183, %v8182
    %v8193 = vpack.c.b16 %v8185, %v8184
    %8202 = vmatpush.bf16.msra.mxu0 %v8193
    %8203 = vmatpush.bf16.msra.mxu0 %v8192
    %8204 = vmatpush.bf16.msra.mxu0 %v8191
    %8205 = vmatpush.bf16.msra.mxu0 %v8190
    %8206 = vmatpush.bf16.msra.mxu0 %v8189
    %8207 = vmatpush.bf16.msra.mxu0 %v8188
    %8208 = vmatpush.bf16.msra.mxu0 %v8187
    %8209 = vmatpush.bf16.msra.mxu0 %v8186
    %8210 = vmatmul.bf16.gmra.mxu0 %v8152
    %v8211 = vpop.f32.mrf.mxu0
    %v8212 = vadd.f32 0.0, %v8211
    %v8213 = vpop.f32.mrf.mxu0
    %8214 = vdwg.mxu0
    %v8215 = vadd.f32 %v8134, %v8212
    %s8216 = scalar_lea.vmem [#allocation28], 4032
    %v8217 = vld [vmem:[%s8216] sm:$0xf]
    %v8218 = vld [vmem:[%s8216 + $0x4] sm:$0xf]
    %v8219 = vld [vmem:[%s8216 + $0x8] sm:$0xf]
    %v8220 = vld [vmem:[%s8216 + $0xc] sm:$0xf]
    %v8221 = vld [vmem:[%s8216 + $0x10] sm:$0xf]
    %v8222 = vld [vmem:[%s8216 + $0x14] sm:$0xf]
    %v8223 = vld [vmem:[%s8216 + $0x18] sm:$0xf]
    %v8224 = vld [vmem:[%s8216 + $0x1c] sm:$0xf]
    %v8225 = vld [vmem:[%s8216 + $0x20] sm:$0xf]
    %v8226 = vld [vmem:[%s8216 + $0x24] sm:$0xf]
    %v8227 = vld [vmem:[%s8216 + $0x28] sm:$0xf]
    %v8228 = vld [vmem:[%s8216 + $0x2c] sm:$0xf]
    %v8229 = vld [vmem:[%s8216 + $0x30] sm:$0xf]
    %v8230 = vld [vmem:[%s8216 + $0x34] sm:$0xf]
    %v8231 = vld [vmem:[%s8216 + $0x38] sm:$0xf]
    %v8232 = vld [vmem:[%s8216 + $0x3c] sm:$0xf]
    %v8233 = vrot.slane %v7746, 3
    %v8251 = vunpack.c.l.b16 %v8217
    %v8252 = vunpack.c.l.b16 %v8218
    %v8253 = vunpack.c.l.b16 %v8219
    %v8254 = vunpack.c.l.b16 %v8220
    %v8255 = vunpack.c.l.b16 %v8221
    %v8256 = vunpack.c.l.b16 %v8222
    %v8257 = vunpack.c.l.b16 %v8223
    %v8258 = vunpack.c.l.b16 %v8224
    %v8259 = vunpack.c.l.b16 %v8225
    %v8260 = vunpack.c.l.b16 %v8226
    %v8261 = vunpack.c.l.b16 %v8227
    %v8262 = vunpack.c.l.b16 %v8228
    %v8263 = vunpack.c.l.b16 %v8229
    %v8264 = vunpack.c.l.b16 %v8230
    %v8265 = vunpack.c.l.b16 %v8231
    %v8266 = vunpack.c.l.b16 %v8232
    %v8267 = vpack.c.b16 %v8252, %v8251
    %v8268 = vpack.c.b16 %v8254, %v8253
    %v8269 = vpack.c.b16 %v8256, %v8255
    %v8270 = vpack.c.b16 %v8258, %v8257
    %v8271 = vpack.c.b16 %v8260, %v8259
    %v8272 = vpack.c.b16 %v8262, %v8261
    %v8273 = vpack.c.b16 %v8264, %v8263
    %v8274 = vpack.c.b16 %v8266, %v8265
    %8283 = vmatpush.bf16.msra.mxu0 %v8274
    %8284 = vmatpush.bf16.msra.mxu0 %v8273
    %8285 = vmatpush.bf16.msra.mxu0 %v8272
    %8286 = vmatpush.bf16.msra.mxu0 %v8271
    %8287 = vmatpush.bf16.msra.mxu0 %v8270
    %8288 = vmatpush.bf16.msra.mxu0 %v8269
    %8289 = vmatpush.bf16.msra.mxu0 %v8268
    %8290 = vmatpush.bf16.msra.mxu0 %v8267
    %8291 = vmatmul.bf16.gmra.mxu0 %v8233
    %v8292 = vpop.f32.mrf.mxu0
    %v8293 = vadd.f32 0.0, %v8292
    %v8294 = vpop.f32.mrf.mxu0
    %8295 = vdwg.mxu0
    %v8296 = vadd.f32 %v8215, %v8293
    %v8297 = vperm.slane %v8296, 0
    %8298 = vst [vmem:[%s18] sm:$0xff] %v8297
    // Predicated region
    $region146: #{_efgcn_fused_call.1} parent=1 // pred_check
      _
    $region147: #{_efgcn_fused_call.1} parent=1 // pred_check_branch
      %8300 = sbr.rel (0) target = $region149
    $region148: #{_efgcn_fused_call.1} parent=1 // pred_region
      _
    $region149: #{_efgcn_fused_call.1} parent=1 // pred_fallthru
      _
    // Predicated region
    $region150: #{_efgcn_fused_call.1} parent=1 // pred_check
      _
    $region151: #{_efgcn_fused_call.1} parent=1 // pred_check_branch
      %8302 = sbr.rel (0) target = $region153
    $region152: #{_efgcn_fused_call.1} parent=1 // pred_region
      _
    $region153: #{_efgcn_fused_call.1} parent=1 // pred_fallthru
      _
    %8303 = vsyncpa [#allocation3], 1
    %8304 = vsyncpa [#allocation5], 1
    %8305 = vsyncpa [#allocation8], 1
    %8306 = vsyncpa [#allocation11], 1
    %8307 = vsyncpa [#allocation14], 1
    %8308 = vsyncpa [#allocation17], 1
    %8309 = vsyncpa [#allocation20], 1
    %8310 = vsyncpa [#allocation23], 1
    %8311 = vsyncpa [#allocation26], 1
    %8312 = vsyncpa [#allocation29], 1

</llo_original>
